<compile_context>
chip_gen: v7x
topology: tpu7x:2x2x1
jax: 0.10.0
libtpu: 0.0.40
codegen_flags: <defaults>
</compile_context>

<pallas_src>
import numpy as np
import jax
import jax.numpy as jnp
from jax.experimental import pallas as pl
from jax.experimental.pallas import tpu as pltpu

# CLIP un-normalization constants folded with Normalize(mean=0.5, std=0.5):
#   y = (x * clip_std + clip_mean - 0.5) / 0.5 = x * (clip_std/0.5) + (clip_mean - 0.5)/0.5
_CLIP_STD = np.array([0.26862954, 0.26130258, 0.27577711], dtype=np.float32)
_CLIP_MEAN = np.array([0.48145466, 0.4578275, 0.40821073], dtype=np.float32)

_STEM_COUT = 64
_STEM_HW = 112 * 112          # 12544
_POOL_CHUNK = 1792            # 14 * 128 (lane aligned); 12544 / 1792 = 7 chunks
_K_PAD = 32                   # 3*3*3 = 27 contraction dims padded to 32


# ----------------------------------------------------------------------------
# Adaptive-pool matrices (exact PyTorch floor/ceil bin rule) and their composition
# ----------------------------------------------------------------------------
def _pool_matrix(in_size, out_size):
    A = np.zeros((out_size, in_size), dtype=np.float64)
    for i in range(out_size):
        s = (i * in_size) // out_size
        e = -(-((i + 1) * in_size) // out_size)  # ceil
        A[i, s:e] = 1.0 / float(e - s)
    return A


def _composed_pool_matrices(Hi, Wi):
    """Compose face_pool_1(->256) [if H!=256], crop[35:223, 32:220], face_pool_2(->112).

    Pooling and cropping are linear, so the composition is exact:
        y[b,c] = A_h @ x[b,c] @ A_w^T,  A_h: (112, Hi),  A_w^T: (Wi, 112)
    """
    if Hi != 256:
        ah1, aw1 = _pool_matrix(Hi, 256), _pool_matrix(Wi, 256)
    else:
        ah1, aw1 = np.eye(Hi, dtype=np.float64), np.eye(Wi, dtype=np.float64)
    ah2 = _pool_matrix(188, 112)
    aw2 = _pool_matrix(188, 112)
    ah = (ah2 @ ah1[35:223, :]).astype(np.float32)        # (112, Hi)
    awt = (aw2 @ aw1[32:220, :]).T.astype(np.float32)     # (Wi, 112)
    return jnp.asarray(ah), jnp.asarray(awt)


def _stem_pool_matrix():
    # 112 -> 7 adaptive pool per axis has uniform 16-wide bins; kron gives the full
    # (49, 12544) spatial pooling matrix with entries 1/256 (exactly representable in bf16).
    a7 = _pool_matrix(112, 7)                  # (7, 112)
    return jnp.asarray(np.kron(a7, a7), dtype=jnp.bfloat16)   # (49, 12544)


# ----------------------------------------------------------------------------
# Kernel 1: composed face pool (+ optional folded CLIP affine), one batch per grid step
# ----------------------------------------------------------------------------
def face_pool_pallas(x, ah, awt, scale, shift):
    """x: (B, C, Hi, Wi) f32 -> (B, C, 112, 112) f32; y = scale_c * (A_h @ x_c @ A_w^T) + shift_c."""
    B, C, Hi, Wi = x.shape
    Ho, Wo = ah.shape[0], awt.shape[1]
    # Channels are merged into the matmul M dimension; this reshape is contiguous (free in XLA).
    xr = x.reshape(B, C * Hi, Wi)

    def kernel(x_ref, ah_ref, awt_ref, scale_ref, shift_ref, o_ref):
        # W-contraction for all channels at once: (C*Hi, Wi) @ (Wi, Wo)
        t = jnp.dot(x_ref[0], awt_ref[...], preferred_element_type=jnp.float32)   # (C*Hi, Wo)
        a = ah_ref[...]
        for c in range(C):  # C is tiny (3); unrolled H-contraction per channel
            tc = t[c * Hi:(c + 1) * Hi, :]                                         # (Hi, Wo)
            yc = jnp.dot(a, tc, preferred_element_type=jnp.float32)                # (Ho, Wo)
            o_ref[0, c] = (yc * scale_ref[c] + shift_ref[c]).astype(o_ref.dtype)

    return pl.pallas_call(
        kernel,
        out_shape=jax.ShapeDtypeStruct((B, C, Ho, Wo), x.dtype),
        grid=(B,),
        in_specs=[
            pl.BlockSpec((1, C * Hi, Wi), lambda b: (b, 0, 0)),
            pl.BlockSpec((Ho, Hi), lambda b: (0, 0)),     # resident (constant index)
            pl.BlockSpec((Wi, Wo), lambda b: (0, 0)),     # resident
            pl.BlockSpec(memory_space=pltpu.MemorySpace.SMEM),
            pl.BlockSpec(memory_space=pltpu.MemorySpace.SMEM),
        ],
        out_specs=pl.BlockSpec((1, C, Ho, Wo), lambda b: (b, 0, 0, 0)),
        compiler_params=pltpu.CompilerParams(dimension_semantics=("parallel",)),
    )(xr, ah, awt, scale, shift)


# ----------------------------------------------------------------------------
# Kernel 2 (stub): fused conv-stem (3x3 im2col matmul) + PReLU + 7x7 kron pool
#   grid = (B, n_chunks) over the 12544 spatial positions; pooled (49, 64) accumulator in VMEM.
#   The (12544, 64) feature map never leaves VMEM.
# ----------------------------------------------------------------------------
def _stem_pool_kernel(p_ref, w_ref, b_ref, a_ref, ap_ref, o_ref, acc_ref):
    j = pl.program_id(1)

    @pl.when(j == 0)
    def _():
        acc_ref[...] = jnp.zeros_like(acc_ref)

    feat = jnp.dot(p_ref[0], w_ref[...], preferred_element_type=jnp.float32)   # (chunk, Cout) f32
    feat = feat + b_ref[...]
    feat = jnp.where(feat > 0, feat, a_ref[...] * feat)                         # PReLU
    acc_ref[...] += jnp.dot(ap_ref[...], feat.astype(jnp.bfloat16),
                            preferred_element_type=jnp.float32)                 # (49, Cout)

    @pl.when(j == pl.num_programs(1) - 1)
    def _():
        o_ref[0] = acc_ref[...]


def stem_prelu_pool_pallas(patches, stem_w, stem_b, prelu_a, a_pool):
    B, HW, K = patches.shape
    Cout = stem_w.shape[1]
    n_chunks = HW // _POOL_CHUNK
    return pl.pallas_call(
        _stem_pool_kernel,
        out_shape=jax.ShapeDtypeStruct((B, 49, Cout), jnp.float32),
        grid=(B, n_chunks),
        in_specs=[
            pl.BlockSpec((1, _POOL_CHUNK, K), lambda b, j: (b, j, 0)),
            pl.BlockSpec((K, Cout), lambda b, j: (0, 0)),       # resident bf16 weights
            pl.BlockSpec((1, Cout), lambda b, j: (0, 0)),
            pl.BlockSpec((1, Cout), lambda b, j: (0, 0)),
            pl.BlockSpec((49, _POOL_CHUNK), lambda b, j: (0, j)),
        ],
        out_specs=pl.BlockSpec((1, 49, Cout), lambda b, j: (b, 0, 0)),
        scratch_shapes=[pltpu.VMEM((49, Cout), jnp.float32)],
        compiler_params=pltpu.CompilerParams(
            dimension_semantics=("parallel", "arbitrary")),
    )(patches, stem_w, stem_b, prelu_a, a_pool)


# ----------------------------------------------------------------------------
# Kernel 3 (stub): embedding head, linear (3136 -> 512) + L2 normalize
# ----------------------------------------------------------------------------
def _embed_kernel(x_ref, w_ref, b_ref, o_ref):
    y = jnp.dot(x_ref[...].astype(jnp.bfloat16), w_ref[...],
                preferred_element_type=jnp.float32) + b_ref[...]
    inv = jax.lax.rsqrt(jnp.sum(y * y, axis=-1, keepdims=True) + 1e-12)
    o_ref[...] = (y * inv).astype(o_ref.dtype)


def embed_pallas(flat, fc_w, fc_b):
    B, D = flat.shape
    N = fc_w.shape[1]
    # Footprint ~3.3 MB (bf16 weights) -- no vmem_limit override needed on any generation.
    return pl.pallas_call(
        _embed_kernel,
        out_shape=jax.ShapeDtypeStruct((B, N), jnp.float32),
        grid=(1,),
        in_specs=[
            pl.BlockSpec((B, D), lambda i: (0, 0)),
            pl.BlockSpec((D, N), lambda i: (0, 0)),
            pl.BlockSpec((1, N), lambda i: (0, 0)),
        ],
        out_specs=pl.BlockSpec((B, N), lambda i: (0, 0)),
    )(flat, fc_w, fc_b)


# ----------------------------------------------------------------------------
# Glue: im2col patches for the 3x3/pad-1 stub conv stem (bf16, K padded 27->32)
# ----------------------------------------------------------------------------
def _im2col_3x3_bf16(x):
    # TODO(synk): build the patch tile inside the Pallas kernel from the padded (C, 114, 114)
    # slice (shifted VMEM slices) to avoid this small JAX-side HBM round-trip entirely.
    B, C, H, W = x.shape
    xp = jnp.pad(x, ((0, 0), (0, 0), (1, 1), (1, 1)))
    cols = [xp[:, :, dh:dh + H, dw:dw + W] for dh in range(3) for dw in range(3)]
    p = jnp.stack(cols, axis=2)                      # (B, C, 9, H, W)
    p = p.transpose(0, 3, 4, 1, 2).reshape(B, H * W, C * 9)   # col index = c*9 + dh*3 + dw
    p = jnp.pad(p, ((0, 0), (0, 0), (0, _K_PAD - C * 9)))
    return p.astype(jnp.bfloat16)


# ----------------------------------------------------------------------------
# facenet stand-in
# ----------------------------------------------------------------------------
def facenet_stub(params, x112):
    # TODO(synk): the real IR-SE-50 ArcFace Backbone (bottleneck_IR_SE stacks, model_ir_se50.pth)
    # is external; this stand-in keeps the contract (B,3,112,112) -> L2-normalized (B,512), with
    # conv-stem + 7x7 pool + FC all fused into Pallas matmul kernels.
    B = x112.shape[0]
    patches = _im2col_3x3_bf16(x112)                               # (B, 12544, 32) bf16
    a_pool = _stem_pool_matrix()                                   # (49, 12544) bf16
    pooled = stem_prelu_pool_pallas(patches, params["stem_w"], params["stem_b"],
                                    params["prelu_a"], a_pool)     # (B, 49, 64) f32
    flat = pooled.reshape(B, -1)                                   # (B, 3136), row index = s*64 + c
    return embed_pallas(flat, params["fc_w"], params["fc_b"])      # (B, 512)


# ----------------------------------------------------------------------------
# IDLoss.forward
# ----------------------------------------------------------------------------
def id_loss_forward(params, x, clip_img=False):
    B, C, Hi, Wi = x.shape
    ah, awt = _composed_pool_matrices(Hi, Wi)
    if clip_img:
        # Pool rows sum to 1, so pool(s*x + t) = s*pool(x) + t: apply the per-channel affine
        # to the pooled output inside the pool kernel (no extra HBM pass).
        scale = jnp.asarray(_CLIP_STD / 0.5)
        shift = jnp.asarray((_CLIP_MEAN - 0.5) / 0.5)
    else:
        scale = jnp.ones((C,), jnp.float32)
        shift = jnp.zeros((C,), jnp.float32)
    x112 = face_pool_pallas(x, ah, awt, scale, shift)   # (B, C, 112, 112)
    # facenet(x, multi_scale=True) returns a list of features; forward keeps only the last,
    # the final 512-d embedding.
    return facenet_stub(params, x112)


def init_params(seed=42):
    k = jax.random.PRNGKey(seed)
    k1, k2, k3, k4 = jax.random.split(k, 4)
    Cout = _STEM_COUT
    w = jax.random.normal(k1, (27, Cout), jnp.float32) * 0.05
    w = jnp.pad(w, ((0, _K_PAD - 27), (0, 0))).astype(jnp.bfloat16)   # K padded 27->32, zero rows
    return {
        "stem_w": w,                                                    # (32, 64) bf16
        "stem_b": jax.random.normal(k2, (1, Cout), jnp.float32) * 0.01,
        "prelu_a": jnp.full((1, Cout), 0.25, jnp.float32),
        "fc_w": (jax.random.normal(k3, (Cout * 49, 512), jnp.float32) * 0.02).astype(jnp.bfloat16),
        "fc_b": jax.random.normal(k4, (1, 512), jnp.float32) * 0.01,
    }


if __name__ == "__main__":
    params = init_params()
    key = jax.random.PRNGKey(0)
    # NCHW, 3-channel image (un_norm_clip requires C=3); small spatial so the ->256 path is exercised.
    x = jax.random.normal(key, (2, 3, 64, 64), dtype=jnp.float32)

    fwd = jax.jit(id_loss_forward, static_argnames=("clip_img",))
    out = fwd(params, x)                        # forward(x), default clip_img=False
    out_clip = fwd(params, x, clip_img=True)
    jax.block_until_ready((out, out_clip))

    assert out.shape == (2, 512) and out.dtype == jnp.float32
    assert out_clip.shape == (2, 512)
    assert bool(jnp.all(jnp.isfinite(out))) and bool(jnp.all(jnp.isfinite(out_clip)))
    # Embedding is L2-normalized by construction.
    norms = jnp.linalg.norm(out, axis=-1)
    assert bool(jnp.all(jnp.abs(norms - 1.0) < 1e-3))
    print("KERNEL_OK")
</pallas_src>

<mosaic_0001>
module attributes {stable_mosaic.version = 11 : i64} {
  func.func @kernel(%arg0: i32, %arg1: memref<1x192x64xf32, #tpu.memory_space<vmem>>, %arg2: memref<112x64xf32, #tpu.memory_space<vmem>>, %arg3: memref<64x112xf32, #tpu.memory_space<vmem>>, %arg4: memref<3xf32, #tpu.memory_space<smem>>, %arg5: memref<3xf32, #tpu.memory_space<smem>>, %arg6: memref<1x3x112x112xf32, #tpu.memory_space<vmem>>) attributes {dimension_semantics = [#tpu.dimension_semantics<parallel>], iteration_bounds = array<i64: 2>, scalar_prefetch = 0 : i64, scratch_operands = 0 : i64, tpu.core_type = #tpu.core_type<tc>, window_params = [{transform_indices = @transform_0, window_bounds = array<i64: 1, 192, 64>}, {pipeline_mode = #tpu.pipeline_mode<synchronous>, transform_indices = @transform_1, window_bounds = array<i64: 112, 64>}, {pipeline_mode = #tpu.pipeline_mode<synchronous>, transform_indices = @transform_2, window_bounds = array<i64: 64, 112>}, {transform_indices = @transform_3, window_bounds = array<i64: 3>}, {transform_indices = @transform_4, window_bounds = array<i64: 3>}, {transform_indices = @transform_5, window_bounds = array<i64: 1, 3, 112, 112>}]} {
    %c0 = arith.constant 0 : index
    %c0_0 = arith.constant 0 : index
    %c0_1 = arith.constant 0 : index
    %0 = vector.load %arg1[%c0, %c0_0, %c0_1] : memref<1x192x64xf32, #tpu.memory_space<vmem>>, vector<1x192x64xf32>
    %1 = vector.shape_cast %0 : vector<1x192x64xf32> to vector<192x64xf32>
    %c0_2 = arith.constant 0 : index
    %c0_3 = arith.constant 0 : index
    %2 = vector.load %arg3[%c0_2, %c0_3] : memref<64x112xf32, #tpu.memory_space<vmem>>, vector<64x112xf32>
    %cst = arith.constant dense<0.000000e+00> : vector<192x112xf32>
    %3 = tpu.matmul %1, %2, %cst {dimension_numbers = #tpu.dot_dimension_numbers<[1], [0], [0], [1], [0, 0, 1, 1], [], []>} : vector<192x64xf32>, vector<64x112xf32>, vector<192x112xf32> -> vector<192x112xf32>
    %c0_4 = arith.constant 0 : index
    %c0_5 = arith.constant 0 : index
    %4 = vector.load %arg2[%c0_4, %c0_5] : memref<112x64xf32, #tpu.memory_space<vmem>>, vector<112x64xf32>
    %5 = vector.extract_strided_slice %3 {offsets = [0, 0], sizes = [64, 112], strides = [1, 1]} : vector<192x112xf32> to vector<64x112xf32>
    %cst_6 = arith.constant dense<0.000000e+00> : vector<112x112xf32>
    %6 = tpu.matmul %4, %5, %cst_6 {dimension_numbers = #tpu.dot_dimension_numbers<[1], [0], [0], [1], [0, 0, 1, 1], [], []>} : vector<112x64xf32>, vector<64x112xf32>, vector<112x112xf32> -> vector<112x112xf32>
    %c0_7 = arith.constant 0 : index
    %7 = memref.load %arg4[%c0_7] : memref<3xf32, #tpu.memory_space<smem>>
    %8 = vector.broadcast %7 : f32 to vector<112x112xf32>
    %9 = arith.mulf %6, %8 : vector<112x112xf32>
    %c0_8 = arith.constant 0 : index
    %10 = memref.load %arg5[%c0_8] : memref<3xf32, #tpu.memory_space<smem>>
    %11 = vector.broadcast %10 : f32 to vector<112x112xf32>
    %12 = arith.addf %9, %11 : vector<112x112xf32>
    %c0_9 = arith.constant 0 : index
    %c0_10 = arith.constant 0 : index
    %c0_11 = arith.constant 0 : index
    %c0_12 = arith.constant 0 : index
    %13 = vector.load %arg6[%c0_9, %c0_10, %c0_11, %c0_12] : memref<1x3x112x112xf32, #tpu.memory_space<vmem>>, vector<1x1x112x112xf32>
    %14 = vector.shape_cast %13 : vector<1x1x112x112xf32> to vector<112x112xf32>
    %15 = vector.shape_cast %12 : vector<112x112xf32> to vector<1x1x112x112xf32>
    tpu.vector_store %arg6[%c0_9, %c0_10, %c0_11, %c0_12], %15 {strides = array<i32>} : memref<1x3x112x112xf32, #tpu.memory_space<vmem>>, vector<1x1x112x112xf32>,
    %16 = vector.extract_strided_slice %3 {offsets = [64, 0], sizes = [64, 112], strides = [1, 1]} : vector<192x112xf32> to vector<64x112xf32>
    %cst_13 = arith.constant dense<0.000000e+00> : vector<112x112xf32>
    %17 = tpu.matmul %4, %16, %cst_13 {dimension_numbers = #tpu.dot_dimension_numbers<[1], [0], [0], [1], [0, 0, 1, 1], [], []>} : vector<112x64xf32>, vector<64x112xf32>, vector<112x112xf32> -> vector<112x112xf32>
    %c1 = arith.constant 1 : index
    %18 = memref.load %arg4[%c1] : memref<3xf32, #tpu.memory_space<smem>>
    %19 = vector.broadcast %18 : f32 to vector<112x112xf32>
    %20 = arith.mulf %17, %19 : vector<112x112xf32>
    %c1_14 = arith.constant 1 : index
    %21 = memref.load %arg5[%c1_14] : memref<3xf32, #tpu.memory_space<smem>>
    %22 = vector.broadcast %21 : f32 to vector<112x112xf32>
    %23 = arith.addf %20, %22 : vector<112x112xf32>
    %c0_15 = arith.constant 0 : index
    %c1_16 = arith.constant 1 : index
    %c0_17 = arith.constant 0 : index
    %c0_18 = arith.constant 0 : index
    %24 = vector.load %arg6[%c0_15, %c1_16, %c0_17, %c0_18] : memref<1x3x112x112xf32, #tpu.memory_space<vmem>>, vector<1x1x112x112xf32>
    %25 = vector.shape_cast %24 : vector<1x1x112x112xf32> to vector<112x112xf32>
    %26 = vector.shape_cast %23 : vector<112x112xf32> to vector<1x1x112x112xf32>
    tpu.vector_store %arg6[%c0_15, %c1_16, %c0_17, %c0_18], %26 {strides = array<i32>} : memref<1x3x112x112xf32, #tpu.memory_space<vmem>>, vector<1x1x112x112xf32>,
    %27 = vector.extract_strided_slice %3 {offsets = [128, 0], sizes = [64, 112], strides = [1, 1]} : vector<192x112xf32> to vector<64x112xf32>
    %cst_19 = arith.constant dense<0.000000e+00> : vector<112x112xf32>
    %28 = tpu.matmul %4, %27, %cst_19 {dimension_numbers = #tpu.dot_dimension_numbers<[1], [0], [0], [1], [0, 0, 1, 1], [], []>} : vector<112x64xf32>, vector<64x112xf32>, vector<112x112xf32> -> vector<112x112xf32>
    %c2 = arith.constant 2 : index
    %29 = memref.load %arg4[%c2] : memref<3xf32, #tpu.memory_space<smem>>
    %30 = vector.broadcast %29 : f32 to vector<112x112xf32>
    %31 = arith.mulf %28, %30 : vector<112x112xf32>
    %c2_20 = arith.constant 2 : index
    %32 = memref.load %arg5[%c2_20] : memref<3xf32, #tpu.memory_space<smem>>
    %33 = vector.broadcast %32 : f32 to vector<112x112xf32>
    %34 = arith.addf %31, %33 : vector<112x112xf32>
    %c0_21 = arith.constant 0 : index
    %c2_22 = arith.constant 2 : index
    %c0_23 = arith.constant 0 : index
    %c0_24 = arith.constant 0 : index
    %35 = vector.load %arg6[%c0_21, %c2_22, %c0_23, %c0_24] : memref<1x3x112x112xf32, #tpu.memory_space<vmem>>, vector<1x1x112x112xf32>
    %36 = vector.shape_cast %35 : vector<1x1x112x112xf32> to vector<112x112xf32>
    %37 = vector.shape_cast %34 : vector<112x112xf32> to vector<1x1x112x112xf32>
    tpu.vector_store %arg6[%c0_21, %c2_22, %c0_23, %c0_24], %37 {strides = array<i32>} : memref<1x3x112x112xf32, #tpu.memory_space<vmem>>, vector<1x1x112x112xf32>,
    return
  }
  func.func @transform_0(%arg0: i32) -> (i32, i32, i32) {
    %c0_i32 = arith.constant 0 : i32
    %c0_i32_0 = arith.constant 0 : i32
    %c0_i32_1 = arith.constant 0 : i32
    return %arg0, %c0_i32, %c0_i32_0 : i32, i32, i32
  }
  func.func @transform_1(%arg0: i32) -> (i32, i32) {
    %c0_i32 = arith.constant 0 : i32
    %c0_i32_0 = arith.constant 0 : i32
    %c0_i32_1 = arith.constant 0 : i32
    return %c0_i32, %c0_i32_0 : i32, i32
  }
  func.func @transform_2(%arg0: i32) -> (i32, i32) {
    %c0_i32 = arith.constant 0 : i32
    %c0_i32_0 = arith.constant 0 : i32
    %c0_i32_1 = arith.constant 0 : i32
    return %c0_i32, %c0_i32_0 : i32, i32
  }
  func.func @transform_3(%arg0: i32) -> i32 {
    %c0_i32 = arith.constant 0 : i32
    %c0_i32_0 = arith.constant 0 : i32
    return %c0_i32 : i32
  }
  func.func @transform_4(%arg0: i32) -> i32 {
    %c0_i32 = arith.constant 0 : i32
    %c0_i32_0 = arith.constant 0 : i32
    return %c0_i32 : i32
  }
  func.func @transform_5(%arg0: i32) -> (i32, i32, i32, i32) {
    %c0_i32 = arith.constant 0 : i32
    %c0_i32_0 = arith.constant 0 : i32
    %c0_i32_1 = arith.constant 0 : i32
    %c0_i32_2 = arith.constant 0 : i32
    return %arg0, %c0_i32, %c0_i32_0, %c0_i32_1 : i32, i32, i32, i32
  }
}

module attributes {stable_mosaic.version = 11 : i64} {
  func.func @_stem_pool_kernel(%arg0: i32, %arg1: i32, %arg2: memref<1x1792x32xbf16, #tpu.memory_space<vmem>>, %arg3: memref<32x64xbf16, #tpu.memory_space<vmem>>, %arg4: memref<1x64xf32, #tpu.memory_space<vmem>>, %arg5: memref<1x64xf32, #tpu.memory_space<vmem>>, %arg6: memref<49x1792xbf16, #tpu.memory_space<vmem>>, %arg7: memref<1x49x64xf32, #tpu.memory_space<vmem>>, %arg8: memref<49x64xf32, #tpu.memory_space<vmem>>) attributes {dimension_semantics = [#tpu.dimension_semantics<parallel>, #tpu.dimension_semantics<arbitrary>], iteration_bounds = array<i64: 2, 7>, scalar_prefetch = 0 : i64, scratch_operands = 1 : i64, tpu.core_type = #tpu.core_type<tc>, window_params = [{transform_indices = @transform_0, window_bounds = array<i64: 1, 1792, 32>}, {pipeline_mode = #tpu.pipeline_mode<synchronous>, transform_indices = @transform_1, window_bounds = array<i64: 32, 64>}, {pipeline_mode = #tpu.pipeline_mode<synchronous>, transform_indices = @transform_2, window_bounds = array<i64: 1, 64>}, {pipeline_mode = #tpu.pipeline_mode<synchronous>, transform_indices = @transform_3, window_bounds = array<i64: 1, 64>}, {transform_indices = @transform_4, window_bounds = array<i64: 49, 1792>}, {transform_indices = @transform_5, window_bounds = array<i64: 1, 49, 64>}]} {
    %c0_i32 = arith.constant 0 : i32
    %0 = arith.cmpi eq, %arg1, %c0_i32 : i32
    %1 = arith.extui %0 : i1 to i32
    %c0_i32_0 = arith.constant 0 : i32
    %2 = arith.cmpi ne, %1, %c0_i32_0 : i32
    scf.if %2 {
      %cst_18 = arith.constant 0.000000e+00 : f32
      %25 = vector.broadcast %cst_18 : f32 to vector<49x64xf32>
      %c0_19 = arith.constant 0 : index
      %c0_20 = arith.constant 0 : index
      %26 = vector.load %arg8[%c0_19, %c0_20] : memref<49x64xf32, #tpu.memory_space<vmem>>, vector<49x64xf32>
      tpu.vector_store %arg8[%c0_19, %c0_20], %25 {strides = array<i32>} : memref<49x64xf32, #tpu.memory_space<vmem>>, vector<49x64xf32>,
    } else {
    }
    %c0 = arith.constant 0 : index
    %c0_1 = arith.constant 0 : index
    %c0_2 = arith.constant 0 : index
    %3 = vector.load %arg2[%c0, %c0_1, %c0_2] : memref<1x1792x32xbf16, #tpu.memory_space<vmem>>, vector<1x1792x32xbf16>
    %4 = vector.shape_cast %3 : vector<1x1792x32xbf16> to vector<1792x32xbf16>
    %c0_3 = arith.constant 0 : index
    %c0_4 = arith.constant 0 : index
    %5 = vector.load %arg3[%c0_3, %c0_4] : memref<32x64xbf16, #tpu.memory_space<vmem>>, vector<32x64xbf16>
    %cst = arith.constant dense<0.000000e+00> : vector<1792x64xf32>
    %6 = tpu.matmul %4, %5, %cst {dimension_numbers = #tpu.dot_dimension_numbers<[1], [0], [0], [1], [0, 0, 1, 1], [], []>} : vector<1792x32xbf16>, vector<32x64xbf16>, vector<1792x64xf32> -> vector<1792x64xf32>
    %c0_5 = arith.constant 0 : index
    %c0_6 = arith.constant 0 : index
    %7 = vector.load %arg4[%c0_5, %c0_6] : memref<1x64xf32, #tpu.memory_space<vmem>>, vector<1x64xf32>
    %8 = vector.broadcast %7 : vector<1x64xf32> to vector<1792x64xf32>
    %9 = arith.addf %6, %8 : vector<1792x64xf32>
    %cst_7 = arith.constant 0.000000e+00 : f32
    %10 = vector.broadcast %cst_7 : f32 to vector<1792x64xf32>
    %11 = arith.cmpf ogt, %9, %10 : vector<1792x64xf32>
    %c0_8 = arith.constant 0 : index
    %c0_9 = arith.constant 0 : index
    %12 = vector.load %arg5[%c0_8, %c0_9] : memref<1x64xf32, #tpu.memory_space<vmem>>, vector<1x64xf32>
    %13 = vector.broadcast %12 : vector<1x64xf32> to vector<1792x64xf32>
    %14 = arith.mulf %13, %9 : vector<1792x64xf32>
    %15 = arith.select %11, %9, %14 : vector<1792x64xi1>, vector<1792x64xf32>
    %c0_10 = arith.constant 0 : index
    %c0_11 = arith.constant 0 : index
    %16 = vector.load %arg8[%c0_10, %c0_11] : memref<49x64xf32, #tpu.memory_space<vmem>>, vector<49x64xf32>
    %c0_12 = arith.constant 0 : index
    %c0_13 = arith.constant 0 : index
    %17 = vector.load %arg6[%c0_12, %c0_13] : memref<49x1792xbf16, #tpu.memory_space<vmem>>, vector<49x1792xbf16>
    %18 = arith.truncf %15 : vector<1792x64xf32> to vector<1792x64xbf16>
    %cst_14 = arith.constant dense<0.000000e+00> : vector<49x64xf32>
    %19 = tpu.matmul %17, %18, %cst_14 {dimension_numbers = #tpu.dot_dimension_numbers<[1], [0], [0], [1], [0, 0, 1, 1], [], []>} : vector<49x1792xbf16>, vector<1792x64xbf16>, vector<49x64xf32> -> vector<49x64xf32>
    %20 = arith.addf %16, %19 : vector<49x64xf32>
    %c0_15 = arith.constant 0 : index
    %c0_16 = arith.constant 0 : index
    %21 = vector.load %arg8[%c0_15, %c0_16] : memref<49x64xf32, #tpu.memory_space<vmem>>, vector<49x64xf32>
    tpu.vector_store %arg8[%c0_15, %c0_16], %20 {strides = array<i32>} : memref<49x64xf32, #tpu.memory_space<vmem>>, vector<49x64xf32>,
    %c6_i32 = arith.constant 6 : i32
    %22 = arith.cmpi eq, %arg1, %c6_i32 : i32
    %23 = arith.extui %22 : i1 to i32
    %c0_i32_17 = arith.constant 0 : i32
    %24 = arith.cmpi ne, %23, %c0_i32_17 : i32
    scf.if %24 {
      %c0_18 = arith.constant 0 : index
      %c0_19 = arith.constant 0 : index
      %25 = vector.load %arg8[%c0_18, %c0_19] : memref<49x64xf32, #tpu.memory_space<vmem>>, vector<49x64xf32>
      %c0_20 = arith.constant 0 : index
      %c0_21 = arith.constant 0 : index
      %c0_22 = arith.constant 0 : index
      %26 = vector.load %arg7[%c0_20, %c0_21, %c0_22] : memref<1x49x64xf32, #tpu.memory_space<vmem>>, vector<1x49x64xf32>
      %27 = vector.shape_cast %26 : vector<1x49x64xf32> to vector<49x64xf32>
      %28 = vector.shape_cast %25 : vector<49x64xf32> to vector<1x49x64xf32>
      tpu.vector_store %arg7[%c0_20, %c0_21, %c0_22], %28 {strides = array<i32>} : memref<1x49x64xf32, #tpu.memory_space<vmem>>, vector<1x49x64xf32>,
    } else {
    }
    return
  }
  func.func @transform_0(%arg0: i32, %arg1: i32) -> (i32, i32, i32) {
    %c0_i32 = arith.constant 0 : i32
    %c0_i32_0 = arith.constant 0 : i32
    return %arg0, %arg1, %c0_i32 : i32, i32, i32
  }
  func.func @transform_1(%arg0: i32, %arg1: i32) -> (i32, i32) {
    %c0_i32 = arith.constant 0 : i32
    %c0_i32_0 = arith.constant 0 : i32
    %c0_i32_1 = arith.constant 0 : i32
    return %c0_i32, %c0_i32_0 : i32, i32
  }
  func.func @transform_2(%arg0: i32, %arg1: i32) -> (i32, i32) {
    %c0_i32 = arith.constant 0 : i32
    %c0_i32_0 = arith.constant 0 : i32
    %c0_i32_1 = arith.constant 0 : i32
    return %c0_i32, %c0_i32_0 : i32, i32
  }
  func.func @transform_3(%arg0: i32, %arg1: i32) -> (i32, i32) {
    %c0_i32 = arith.constant 0 : i32
    %c0_i32_0 = arith.constant 0 : i32
    %c0_i32_1 = arith.constant 0 : i32
    return %c0_i32, %c0_i32_0 : i32, i32
  }
  func.func @transform_4(%arg0: i32, %arg1: i32) -> (i32, i32) {
    %c0_i32 = arith.constant 0 : i32
    %c0_i32_0 = arith.constant 0 : i32
    return %c0_i32, %arg1 : i32, i32
  }
  func.func @transform_5(%arg0: i32, %arg1: i32) -> (i32, i32, i32) {
    %c0_i32 = arith.constant 0 : i32
    %c0_i32_0 = arith.constant 0 : i32
    %c0_i32_1 = arith.constant 0 : i32
    return %arg0, %c0_i32, %c0_i32_0 : i32, i32, i32
  }
}

module attributes {stable_mosaic.version = 11 : i64} {
  func.func @_embed_kernel(%arg0: i32, %arg1: memref<2x3136xf32, #tpu.memory_space<vmem>>, %arg2: memref<3136x512xbf16, #tpu.memory_space<vmem>>, %arg3: memref<1x512xf32, #tpu.memory_space<vmem>>, %arg4: memref<2x512xf32, #tpu.memory_space<vmem>>) attributes {dimension_semantics = [#tpu.dimension_semantics<arbitrary>], iteration_bounds = array<i64: 1>, scalar_prefetch = 0 : i64, scratch_operands = 0 : i64, tpu.core_type = #tpu.core_type<tc>, window_params = [{pipeline_mode = #tpu.pipeline_mode<synchronous>, transform_indices = @transform_0, window_bounds = array<i64: 2, 3136>}, {pipeline_mode = #tpu.pipeline_mode<synchronous>, transform_indices = @transform_1, window_bounds = array<i64: 3136, 512>}, {pipeline_mode = #tpu.pipeline_mode<synchronous>, transform_indices = @transform_2, window_bounds = array<i64: 1, 512>}, {pipeline_mode = #tpu.pipeline_mode<synchronous>, transform_indices = @transform_3, window_bounds = array<i64: 2, 512>}]} {
    %c0 = arith.constant 0 : index
    %c0_0 = arith.constant 0 : index
    %0 = vector.load %arg1[%c0, %c0_0] : memref<2x3136xf32, #tpu.memory_space<vmem>>, vector<2x3136xf32>
    %1 = arith.truncf %0 : vector<2x3136xf32> to vector<2x3136xbf16>
    %c0_1 = arith.constant 0 : index
    %c0_2 = arith.constant 0 : index
    %2 = vector.load %arg2[%c0_1, %c0_2] : memref<3136x512xbf16, #tpu.memory_space<vmem>>, vector<3136x512xbf16>
    %cst = arith.constant dense<0.000000e+00> : vector<2x512xf32>
    %3 = tpu.matmul %1, %2, %cst {dimension_numbers = #tpu.dot_dimension_numbers<[1], [0], [0], [1], [0, 0, 1, 1], [], []>} : vector<2x3136xbf16>, vector<3136x512xbf16>, vector<2x512xf32> -> vector<2x512xf32>
    %c0_3 = arith.constant 0 : index
    %c0_4 = arith.constant 0 : index
    %4 = vector.load %arg3[%c0_3, %c0_4] : memref<1x512xf32, #tpu.memory_space<vmem>>, vector<1x512xf32>
    %5 = vector.broadcast %4 : vector<1x512xf32> to vector<2x512xf32>
    %6 = arith.addf %3, %5 : vector<2x512xf32>
    %7 = arith.mulf %6, %6 : vector<2x512xf32>
    %cst_5 = arith.constant dense<0.000000e+00> : vector<2xf32>
    %8 = vector.multi_reduction <add>, %7, %cst_5 [1] : vector<2x512xf32> to vector<2xf32>
    %9 = vector.shape_cast %8 : vector<2xf32> to vector<2x1xf32>
    %cst_6 = arith.constant 9.99999996E-13 : f32
    %10 = vector.broadcast %cst_6 : f32 to vector<2x1xf32>
    %11 = arith.addf %9, %10 : vector<2x1xf32>
    %12 = math.rsqrt %11 : vector<2x1xf32>
    %13 = vector.broadcast %12 : vector<2x1xf32> to vector<2x512xf32>
    %14 = arith.mulf %6, %13 : vector<2x512xf32>
    %c0_7 = arith.constant 0 : index
    %c0_8 = arith.constant 0 : index
    %15 = vector.load %arg4[%c0_7, %c0_8] : memref<2x512xf32, #tpu.memory_space<vmem>>, vector<2x512xf32>
    tpu.vector_store %arg4[%c0_7, %c0_8], %14 {strides = array<i32>} : memref<2x512xf32, #tpu.memory_space<vmem>>, vector<2x512xf32>,
    return
  }
  func.func @transform_0(%arg0: i32) -> (i32, i32) {
    %c0_i32 = arith.constant 0 : i32
    %c0_i32_0 = arith.constant 0 : i32
    %c0_i32_1 = arith.constant 0 : i32
    return %c0_i32, %c0_i32_0 : i32, i32
  }
  func.func @transform_1(%arg0: i32) -> (i32, i32) {
    %c0_i32 = arith.constant 0 : i32
    %c0_i32_0 = arith.constant 0 : i32
    %c0_i32_1 = arith.constant 0 : i32
    return %c0_i32, %c0_i32_0 : i32, i32
  }
  func.func @transform_2(%arg0: i32) -> (i32, i32) {
    %c0_i32 = arith.constant 0 : i32
    %c0_i32_0 = arith.constant 0 : i32
    %c0_i32_1 = arith.constant 0 : i32
    return %c0_i32, %c0_i32_0 : i32, i32
  }
  func.func @transform_3(%arg0: i32) -> (i32, i32) {
    %c0_i32 = arith.constant 0 : i32
    %c0_i32_0 = arith.constant 0 : i32
    %c0_i32_1 = arith.constant 0 : i32
    return %c0_i32, %c0_i32_0 : i32, i32
  }
}

</mosaic_0001>

<llo_original>
// kernel: id_loss_forward.3
$region0: #{id_loss_forward.3}
  #allocation0 [shape = 'u32[]', space=smem, size = 0x4, offset = 0x4, fixed_abs, tag = 'smem constant byte address 0x4 - core index']
  #allocation1 [shape = 'u32[144,128]{1,0:T(1,128)}', space=vmem, size = 0x12000, scoped, tag = 'internal scratch']
  %s0 = inlined_call_operand.hbm [shape: f32[2,192,64], index: 0, kind: input, shape index: {}]
  %s1 = inlined_call_operand.hbm [shape: f32[112,64], index: 1, kind: input, shape index: {}]
  %s2 = inlined_call_operand.hbm [shape: f32[64,112], index: 2, kind: input, shape index: {}]
  %s3 = inlined_call_operand.vmem [shape: f32[3], index: 3, kind: input, shape index: {}]
  %s4 = inlined_call_operand.vmem [shape: f32[3], index: 4, kind: input, shape index: {}]
  %s5 = inlined_call_operand.vmem [shape: f32[2,3,112,112], index: 5, kind: output, shape index: {}]
  %s6 = sld [smem:[#allocation0]]
  $region73: #{id_loss_forward.3} parent=0
    _
  %s8 = ssub.s32 1, %s6
  %s9 = scalar_select 0, %s8, %s6
  $region1: #{id_loss_forward.3} parent=0
    #allocation2 [shape = 'u8[196608]{0}', space=vmem, size = 0x30000, scoped, tag = 'input window, operand 0']
    #allocation3 [shape = 's32[2]{0}', space=sflag, size = 0x8, scoped, tag = 'scoped memory for id_loss_forward.3']
    #allocation4 [shape = 's32[2]{0}', space=sflag, size = 0x8, scoped, tag = 'scoped memory for id_loss_forward.3']
    #allocation5 [shape = 'u8[57344]{0}', space=vmem, size = 0xe000, scoped, tag = 'input window, operand 1, single buffered']
    #allocation6 [shape = 's32[1]{0}', space=sflag, size = 0x4, scoped, tag = 'scoped memory for id_loss_forward.3']
    #allocation7 [shape = 'u8[32768]{0}', space=vmem, size = 0x8000, scoped, tag = 'input window, operand 2, single buffered']
    #allocation8 [shape = 'u8[512]{0}', space=smem, size = 0x200, scoped, tag = 'input window, operand 3, single buffered']
    #allocation9 [shape = 'u8[512]{0}', space=smem, size = 0x200, scoped, tag = 'input window, operand 4, single buffered']
    #allocation10 [shape = 's32[1]{0}', space=sflag, size = 0x4, scoped, tag = 'scoped memory for id_loss_forward.3']
    %10 = vsyncpa [#allocation3], 0
    %s11 = scalar_lea.sflag [#allocation3], 1
    %12 = vsyncpa %s11, 0
    %13 = vsyncpa [#allocation6], 0
    %14 = vsyncpa [#allocation4], 0
    %15 = vsyncpa [#allocation10], 0
    loop: start=0, step=1, limit=4
    $region2: #{id_loss_forward.3} parent=1 // loop_pre_header
      _
    $region3: #{id_loss_forward.3} parent=1 // loop_header
      %s17 = sphi 0, %s21
      %p18 = scmp.ge.s32.totalorder %s17, 4
      %s27 = sphi 0, %s29
      %s30 = sphi 0, %s27
      %s31 = sphi 0, %s30
      %s47 = sphi 0, %s31
      %s51 = sphi 0, %s51
      %s53 = sphi 0, %s51
      %s54 = sphi 0, %s53
      %s68 = sphi 0, %s54
      %s72 = sphi 0, %s72
      %s74 = sphi 0, %s72
      %s75 = sphi 0, %s74
      %s89 = sphi 0, %s75
      %s93 = sphi 0, %s93
      %s95 = sphi 0, %s93
      %s96 = sphi 0, %s95
      %s110 = sphi 0, %s96
      %s114 = sphi 0, %s114
      %s116 = sphi 0, %s114
      %s117 = sphi 0, %s116
      %s131 = sphi 0, %s117
      %s137 = sphi 0, %s139
      %s140 = sphi 0, %s137
      %s141 = sphi 0, %s140
      %s157 = sphi 0, %s141
    $region4: #{id_loss_forward.3} parent=1 // loop_header_branch
      %20 = sbr.rel (%p18) target = $region8
    $region5: #{id_loss_forward.3} parent=1 // loop_body
      %s22 = ssub.s32 %s17, 1
      %s23 = ssub.s32 %s17, 2
      %s24 = sadd.s32 %s17, 1
      %s25 = ssub.s32 %s17, %s24
      %p26 = scmp.eq.s32.totalorder %s25, 0
      %s28 = sadd.s32 %s27, 1
      %s29 = scalar_select %p26, %s27, %s28
      %p32 = pneg %p26
      %p33 = scmp.eq.s32.totalorder %s17, 1
      %p34 = por %p32, %p33
      %p35 = scmp.ne.s32.totalorder %s27, %s30
      %p36 = scmp.eq.s32.totalorder %s17, 0
      %p37 = por %p35, %p36
      %p38 = scmp.ne.s32.totalorder %s27, %s30
      %p39 = scmp.eq.s32.totalorder %s22, 1
      %p40 = por %p38, %p39
      %p41 = scmp.ne.s32.totalorder %s30, %s31
      %p42 = scmp.eq.s32.totalorder %s22, 0
      %p43 = por %p41, %p42
      %p44 = scmp.ne.s32.totalorder %s30, %s31
      %p45 = scmp.eq.s32.totalorder %s23, 1
      %p46 = por %p44, %p45
      %p48 = scmp.ne.s32.totalorder %s31, %s47
      %p49 = scmp.eq.s32.totalorder %s23, 0
      %p50 = por %p48, %p49
      %s52 = sadd.s32 %s51, 1
      %p55 = scmp.eq.s32.totalorder %s17, 1
      %p56 = scmp.ne.s32.totalorder %s51, %s53
      %p57 = scmp.eq.s32.totalorder %s17, 0
      %p58 = por %p56, %p57
      %p59 = scmp.ne.s32.totalorder %s51, %s53
      %p60 = scmp.eq.s32.totalorder %s22, 1
      %p61 = por %p59, %p60
      %p62 = scmp.ne.s32.totalorder %s53, %s54
      %p63 = scmp.eq.s32.totalorder %s22, 0
      %p64 = por %p62, %p63
      %p65 = scmp.ne.s32.totalorder %s53, %s54
      %p66 = scmp.eq.s32.totalorder %s23, 1
      %p67 = por %p65, %p66
      %p69 = scmp.ne.s32.totalorder %s54, %s68
      %p70 = scmp.eq.s32.totalorder %s23, 0
      %p71 = por %p69, %p70
      %s73 = sadd.s32 %s72, 1
      %p76 = scmp.eq.s32.totalorder %s17, 1
      %p77 = scmp.ne.s32.totalorder %s72, %s74
      %p78 = scmp.eq.s32.totalorder %s17, 0
      %p79 = por %p77, %p78
      %p80 = scmp.ne.s32.totalorder %s72, %s74
      %p81 = scmp.eq.s32.totalorder %s22, 1
      %p82 = por %p80, %p81
      %p83 = scmp.ne.s32.totalorder %s74, %s75
      %p84 = scmp.eq.s32.totalorder %s22, 0
      %p85 = por %p83, %p84
      %p86 = scmp.ne.s32.totalorder %s74, %s75
      %p87 = scmp.eq.s32.totalorder %s23, 1
      %p88 = por %p86, %p87
      %p90 = scmp.ne.s32.totalorder %s75, %s89
      %p91 = scmp.eq.s32.totalorder %s23, 0
      %p92 = por %p90, %p91
      %s94 = sadd.s32 %s93, 1
      %p97 = scmp.eq.s32.totalorder %s17, 1
      %p98 = scmp.ne.s32.totalorder %s93, %s95
      %p99 = scmp.eq.s32.totalorder %s17, 0
      %p100 = por %p98, %p99
      %p101 = scmp.ne.s32.totalorder %s93, %s95
      %p102 = scmp.eq.s32.totalorder %s22, 1
      %p103 = por %p101, %p102
      %p104 = scmp.ne.s32.totalorder %s95, %s96
      %p105 = scmp.eq.s32.totalorder %s22, 0
      %p106 = por %p104, %p105
      %p107 = scmp.ne.s32.totalorder %s95, %s96
      %p108 = scmp.eq.s32.totalorder %s23, 1
      %p109 = por %p107, %p108
      %p111 = scmp.ne.s32.totalorder %s96, %s110
      %p112 = scmp.eq.s32.totalorder %s23, 0
      %p113 = por %p111, %p112
      %s115 = sadd.s32 %s114, 1
      %p118 = scmp.eq.s32.totalorder %s17, 1
      %p119 = scmp.ne.s32.totalorder %s114, %s116
      %p120 = scmp.eq.s32.totalorder %s17, 0
      %p121 = por %p119, %p120
      %p122 = scmp.ne.s32.totalorder %s114, %s116
      %p123 = scmp.eq.s32.totalorder %s22, 1
      %p124 = por %p122, %p123
      %p125 = scmp.ne.s32.totalorder %s116, %s117
      %p126 = scmp.eq.s32.totalorder %s22, 0
      %p127 = por %p125, %p126
      %p128 = scmp.ne.s32.totalorder %s116, %s117
      %p129 = scmp.eq.s32.totalorder %s23, 1
      %p130 = por %p128, %p129
      %p132 = scmp.ne.s32.totalorder %s117, %s131
      %p133 = scmp.eq.s32.totalorder %s23, 0
      %p134 = por %p132, %p133
      %s135 = ssub.s32 %s17, %s24
      %p136 = scmp.eq.s32.totalorder %s135, 0
      %s138 = sadd.s32 %s137, 1
      %s139 = scalar_select %p136, %s137, %s138
      %p142 = pneg %p136
      %p143 = scmp.eq.s32.totalorder %s17, 1
      %p144 = por %p142, %p143
      %p145 = scmp.ne.s32.totalorder %s137, %s140
      %p146 = scmp.eq.s32.totalorder %s17, 0
      %p147 = por %p145, %p146
      %p148 = scmp.ne.s32.totalorder %s137, %s140
      %p149 = scmp.eq.s32.totalorder %s22, 1
      %p150 = por %p148, %p149
      %p151 = scmp.ne.s32.totalorder %s140, %s141
      %p152 = scmp.eq.s32.totalorder %s22, 0
      %p153 = por %p151, %p152
      %p154 = scmp.ne.s32.totalorder %s140, %s141
      %p155 = scmp.eq.s32.totalorder %s23, 1
      %p156 = por %p154, %p155
      %p158 = scmp.ne.s32.totalorder %s141, %s157
      %p159 = scmp.eq.s32.totalorder %s23, 0
      %p160 = por %p158, %p159
      %p161 = scmp.le.s32.totalorder 1, %s17
      %p162 = scmp.lt.s32.totalorder %s17, 3
      %p163 = pnand %p161, %p162
      %p164 = pneg %p163
      // Predicated region
      $region9: #{id_loss_forward.3} parent=5 // pred_check
        _
      $region10: #{id_loss_forward.3} parent=5 // pred_check_branch
        %166 = sbr.rel (%p163) target = $region12
      $region11: #{id_loss_forward.3} parent=5 // pred_region
        %s167 = ssub.s32 %s17, 1
        // Predicated region
        $region13: #{id_loss_forward.3} parent=11 // pred_check
          %p168 = pneg %p64
        $region14: #{id_loss_forward.3} parent=11 // pred_check_branch
          %170 = sbr.rel (%p168) target = $region16
        $region15: #{id_loss_forward.3} parent=11 // pred_region
          %s172 = ssub.s32 1792, 1792
          %173 = vsyncadd [#allocation6], %s172
          %s174 = sshll.u32 [#allocation5], 4
          %s175 = int_to_ptr.vmem [resolvable:$true] %s174
          %180 = dma.hbm_to_vmem [thread:$0]  %s1, 1792, %s175, [#allocation6], 128, 128, 8
        $region16: #{id_loss_forward.3} parent=11 // pred_fallthru
          _
        // Predicated region
        $region17: #{id_loss_forward.3} parent=11 // pred_check
          %p181 = pneg %p85
        $region18: #{id_loss_forward.3} parent=11 // pred_check_branch
          %183 = sbr.rel (%p181) target = $region20
        $region19: #{id_loss_forward.3} parent=11 // pred_region
          %s185 = ssub.s32 1024, 1024
          %186 = vsyncadd [#allocation6], %s185
          %s187 = sshll.u32 [#allocation7], 4
          %s188 = int_to_ptr.vmem [resolvable:$true] %s187
          %193 = dma.hbm_to_vmem [thread:$0]  %s2, 1024, %s188, [#allocation6], 128, 128, 8
        $region20: #{id_loss_forward.3} parent=11 // pred_fallthru
          _
        // Predicated region
        $region21: #{id_loss_forward.3} parent=11 // pred_check
          %p194 = pneg %p106
        $region22: #{id_loss_forward.3} parent=11 // pred_check_branch
          %196 = sbr.rel (%p194) target = $region24
        $region23: #{id_loss_forward.3} parent=11 // pred_region
          %s198 = ssub.s32 16, 16
          %199 = vsyncadd [#allocation4], %s198
          %s201 = sshll.u32 %s3, 4
          %s202 = int_to_ptr.vmem [resolvable:$true] %s201
          %204 = dma.vmem_to_smem %s202, 16, [#allocation8], [#allocation4]
        $region24: #{id_loss_forward.3} parent=11 // pred_fallthru
          _
        // Predicated region
        $region25: #{id_loss_forward.3} parent=11 // pred_check
          %p205 = pneg %p127
        $region26: #{id_loss_forward.3} parent=11 // pred_check_branch
          %207 = sbr.rel (%p205) target = $region28
        $region27: #{id_loss_forward.3} parent=11 // pred_region
          %s209 = ssub.s32 16, 16
          %210 = vsyncadd [#allocation10], %s209
          %s212 = sshll.u32 %s4, 4
          %s213 = int_to_ptr.vmem [resolvable:$true] %s212
          %215 = dma.vmem_to_smem %s213, 16, [#allocation9], [#allocation10]
        $region28: #{id_loss_forward.3} parent=11 // pred_fallthru
          _
      $region12: #{id_loss_forward.3} parent=5 // pred_fallthru
        _
      %p216 = scmp.lt.s32.totalorder %s17, 2
      // Predicated region
      $region29: #{id_loss_forward.3} parent=5 // pred_check
        %p217 = pneg %p216
      $region30: #{id_loss_forward.3} parent=5 // pred_check_branch
        %219 = sbr.rel (%p217) target = $region32
      $region31: #{id_loss_forward.3} parent=5 // pred_region
        // Predicated region
        $region33: #{id_loss_forward.3} parent=31 // pred_check
          %p220 = pneg %p37
        $region34: #{id_loss_forward.3} parent=31 // pred_check_branch
          %222 = sbr.rel (%p220) target = $region36
        $region35: #{id_loss_forward.3} parent=31 // pred_region
          %s223 = sand.u32 %s27, 1
          %s224 = scalar_lea.sflag [#allocation3], %s223
          %s225 = sand.u32 %s27, 1
          %s226 = smul.addr %s225, 192
          %s227 = scalar_lea.vmem [#allocation2], %s226
          %s229 = ssub.s32 3072, 3072
          %230 = vsyncadd %s224, %s229
          %s231 = smul.addr %s17, 24
          %s232 = smul.addr %s231, 128
          %s233 = scalar_lea.hbm %s0, %s232
          %s234 = sshll.u32 %s227, 4
          %s235 = int_to_ptr.vmem [resolvable:$true] %s234
          %240 = dma.hbm_to_vmem [thread:$0]  %s233, 3072, %s235, %s224, 128, 128, 8
        $region36: #{id_loss_forward.3} parent=31 // pred_fallthru
          _
      $region32: #{id_loss_forward.3} parent=5 // pred_fallthru
        _
      %p241 = scmp.le.s32.totalorder 1, %s17
      %p242 = scmp.lt.s32.totalorder %s17, 3
      %p243 = pnand %p241, %p242
      %p244 = pneg %p243
      // Predicated region
      $region37: #{id_loss_forward.3} parent=5 // pred_check
        _
      $region38: #{id_loss_forward.3} parent=5 // pred_check_branch
        %246 = sbr.rel (%p243) target = $region40
      $region39: #{id_loss_forward.3} parent=5 // pred_region
        %s247 = ssub.s32 %s17, 1
        %s248 = sand.u32 %s30, 1
        %s249 = scalar_lea.sflag [#allocation3], %s248
        %s250 = sand.u32 %s30, 1
        %s251 = smul.addr %s250, 192
        %s252 = scalar_lea.vmem [#allocation2], %s251
        // Predicated region
        $region41: #{id_loss_forward.3} parent=39 // pred_check
          %p253 = pneg %p43
        $region42: #{id_loss_forward.3} parent=39 // pred_check_branch
          %255 = sbr.rel (%p253) target = $region44
        $region43: #{id_loss_forward.3} parent=39 // pred_region
          %256 = dma.done %s249, 3072
        $region44: #{id_loss_forward.3} parent=39 // pred_fallthru
          _
        // Predicated region
        $region45: #{id_loss_forward.3} parent=39 // pred_check
          %p257 = pneg %p64
        $region46: #{id_loss_forward.3} parent=39 // pred_check_branch
          %259 = sbr.rel (%p257) target = $region48
        $region47: #{id_loss_forward.3} parent=39 // pred_region
          %260 = dma.done [#allocation6], 1792
        $region48: #{id_loss_forward.3} parent=39 // pred_fallthru
          _
        // Predicated region
        $region49: #{id_loss_forward.3} parent=39 // pred_check
          %p261 = pneg %p85
        $region50: #{id_loss_forward.3} parent=39 // pred_check_branch
          %263 = sbr.rel (%p261) target = $region52
        $region51: #{id_loss_forward.3} parent=39 // pred_region
          %264 = dma.done [#allocation6], 1024
        $region52: #{id_loss_forward.3} parent=39 // pred_fallthru
          _
        // Predicated region
        $region53: #{id_loss_forward.3} parent=39 // pred_check
          %p265 = pneg %p106
        $region54: #{id_loss_forward.3} parent=39 // pred_check_branch
          %267 = sbr.rel (%p265) target = $region56
        $region55: #{id_loss_forward.3} parent=39 // pred_region
          %268 = dma.done [#allocation4], 16
        $region56: #{id_loss_forward.3} parent=39 // pred_fallthru
          _
        // Predicated region
        $region57: #{id_loss_forward.3} parent=39 // pred_check
          %p269 = pneg %p127
        $region58: #{id_loss_forward.3} parent=39 // pred_check_branch
          %271 = sbr.rel (%p269) target = $region60
        $region59: #{id_loss_forward.3} parent=39 // pred_region
          %272 = dma.done [#allocation10], 16
        $region60: #{id_loss_forward.3} parent=39 // pred_fallthru
          _
        %273 = sfence
        %s274 = sand.u32 %s30, 1
        %s275 = scalar_lea.sflag [#allocation3], %s274
        %s276 = sand.u32 %s30, 1
        %s277 = smul.addr %s276, 192
        %s278 = scalar_lea.vmem [#allocation2], %s277
        %p279 = pneg %p43
        %p280 = pneg %p40
        %p281 = pneg %p64
        %p282 = pneg %p61
        %p283 = pneg %p85
        %p284 = pneg %p82
        %p285 = pneg %p106
        %p286 = pneg %p103
        %p287 = pneg %p127
        %p288 = pneg %p124
        %p289 = pneg %p153
        %p290 = pneg %p150
        %p291 = scmp.lt.s32.totalorder %s22, 1
        %s292 = scalar_select %p291, %s22, 1
        %s293 = smul.addr %s292, 42
        %s294 = smul.addr %s293, 8
        %s295 = scalar_lea.vmem %s5, %s294
        %p296 = scmp.lt.s32.totalorder %s22, 1
        %s297 = scalar_select %p296, %s22, 1
        %s298 = smul.addr %s297, 42
        %s299 = smul.addr %s298, 8
        %s300 = scalar_lea.vmem %s5, %s299
        %v301 = vld [vmem:[%s252] sm:$0xff]
        %v302 = vld [vmem:[%s252 + $0x8] sm:$0xff]
        %v303 = vld [vmem:[%s252 + $0x10] sm:$0xff]
        %v304 = vld [vmem:[%s252 + $0x18] sm:$0xff]
        %v305 = vld [vmem:[%s252 + $0x20] sm:$0xff]
        %v306 = vld [vmem:[%s252 + $0x28] sm:$0xff]
        %v307 = vld [vmem:[%s252 + $0x30] sm:$0xff]
        %v308 = vld [vmem:[%s252 + $0x38] sm:$0xff]
        %v309 = vld [vmem:[%s252 + $0x40] sm:$0xff]
        %v310 = vld [vmem:[%s252 + $0x48] sm:$0xff]
        %v311 = vld [vmem:[%s252 + $0x50] sm:$0xff]
        %v312 = vld [vmem:[%s252 + $0x58] sm:$0xff]
        %v313 = vld [vmem:[%s252 + $0x60] sm:$0xff]
        %v314 = vld [vmem:[%s252 + $0x68] sm:$0xff]
        %v315 = vld [vmem:[%s252 + $0x70] sm:$0xff]
        %v316 = vld [vmem:[%s252 + $0x78] sm:$0xff]
        %v317 = vld [vmem:[%s252 + $0x80] sm:$0xff]
        %v318 = vld [vmem:[%s252 + $0x88] sm:$0xff]
        %v319 = vld [vmem:[%s252 + $0x90] sm:$0xff]
        %v320 = vld [vmem:[%s252 + $0x98] sm:$0xff]
        %v321 = vld [vmem:[%s252 + $0xa0] sm:$0xff]
        %v322 = vld [vmem:[%s252 + $0xa8] sm:$0xff]
        %v323 = vld [vmem:[%s252 + $0xb0] sm:$0xff]
        %v324 = vld [vmem:[%s252 + $0xb8] sm:$0xff]
        %v325 = vld [vmem:[#allocation7] sm:$0xff]
        %v326 = vld [vmem:[#allocation7 + $0x8] sm:$0xff]
        %v327 = vld [vmem:[#allocation7 + $0x10] sm:$0xff]
        %v328 = vld [vmem:[#allocation7 + $0x18] sm:$0xff]
        %v329 = vld [vmem:[#allocation7 + $0x20] sm:$0xff]
        %v330 = vld [vmem:[#allocation7 + $0x28] sm:$0xff]
        %v331 = vld [vmem:[#allocation7 + $0x30] sm:$0xff]
        %v332 = vld [vmem:[#allocation7 + $0x38] sm:$0xff]
        %vm333 = vcmask 523264
        %v335 = vsel %vm333, %v301, 0
        %v338 = vsel %vm333, %v302, 0
        %v341 = vsel %vm333, %v303, 0
        %v344 = vsel %vm333, %v304, 0
        %v347 = vsel %vm333, %v305, 0
        %v350 = vsel %vm333, %v306, 0
        %v353 = vsel %vm333, %v307, 0
        %v356 = vsel %vm333, %v308, 0
        %v359 = vsel %vm333, %v309, 0
        %v362 = vsel %vm333, %v310, 0
        %v365 = vsel %vm333, %v311, 0
        %v368 = vsel %vm333, %v312, 0
        %v371 = vsel %vm333, %v313, 0
        %v374 = vsel %vm333, %v314, 0
        %v377 = vsel %vm333, %v315, 0
        %v380 = vsel %vm333, %v316, 0
        %v383 = vsel %vm333, %v317, 0
        %v386 = vsel %vm333, %v318, 0
        %v389 = vsel %vm333, %v319, 0
        %v392 = vsel %vm333, %v320, 0
        %v395 = vsel %vm333, %v321, 0
        %v398 = vsel %vm333, %v322, 0
        %v401 = vsel %vm333, %v323, 0
        %v404 = vsel %vm333, %v324, 0
        %406 = vmatprep.subr.mxu0 0.0
        %407 = vmatpush1.msra.mxu0 %v325
        %408 = vmatprep.subr.mxu0 0.0
        %409 = vmatpush1.msra.mxu0 %v326
        %410 = vmatprep.subr.mxu0 0.0
        %411 = vmatpush1.msra.mxu0 %v327
        %412 = vmatprep.subr.mxu0 0.0
        %413 = vmatpush1.msra.mxu0 %v328
        %414 = vmatprep.subr.mxu0 0.0
        %415 = vmatpush1.msra.mxu0 %v329
        %416 = vmatprep.subr.mxu0 0.0
        %417 = vmatpush1.msra.mxu0 %v330
        %418 = vmatprep.subr.mxu0 0.0
        %419 = vmatpush1.msra.mxu0 %v331
        %420 = vmatprep.subr.mxu0 0.0
        %421 = vmatpush1.msra.mxu0 %v332
        %422 = vmatprep.subr.mxu0 0.0
        %423 = vmatpush1.msra.mxu0 0.0
        %424 = vmatprep.subr.mxu0 0.0
        %425 = vmatpush1.msra.mxu0 0.0
        %426 = vmatprep.subr.mxu0 0.0
        %427 = vmatpush1.msra.mxu0 0.0
        %428 = vmatprep.subr.mxu0 0.0
        %429 = vmatpush1.msra.mxu0 0.0
        %430 = vmatprep.subr.mxu0 0.0
        %431 = vmatpush1.msra.mxu0 0.0
        %432 = vmatprep.subr.mxu0 0.0
        %433 = vmatpush1.msra.mxu0 0.0
        %434 = vmatprep.subr.mxu0 0.0
        %435 = vmatpush1.msra.mxu0 0.0
        %436 = vmatprep.subr.mxu0 0.0
        %437 = vmatpush1.msra.mxu0 0.0
        %438 = vmatprep.subr.mxu0 0.0
        %439 = vmatpush1.msra.mxu0 0.0
        %440 = vmatprep.subr.mxu0 0.0
        %441 = vmatpush1.msra.mxu0 0.0
        %442 = vmatprep.subr.mxu0 0.0
        %443 = vmatpush1.msra.mxu0 0.0
        %444 = vmatprep.subr.mxu0 0.0
        %445 = vmatpush1.msra.mxu0 0.0
        %446 = vmatprep.subr.mxu0 0.0
        %447 = vmatpush1.msra.mxu0 0.0
        %448 = vmatprep.subr.mxu0 0.0
        %449 = vmatpush1.msra.mxu0 0.0
        %450 = vmatprep.subr.mxu0 0.0
        %451 = vmatpush1.msra.mxu0 0.0
        %452 = vmatprep.subr.mxu0 0.0
        %453 = vmatpush1.msra.mxu0 0.0
        %454 = vmatprep.subr.mxu0 0.0
        %455 = vmatpush1.msra.mxu0 0.0
        %456 = vmatprep.subr.mxu0 0.0
        %457 = vmatpush1.msra.mxu0 0.0
        %458 = vmatprep.subr.mxu0 0.0
        %459 = vmatpush1.msra.mxu0 0.0
        %460 = vmatprep.subr.mxu0 0.0
        %461 = vmatpush1.msra.mxu0 0.0
        %462 = vmatprep.subr.mxu0 0.0
        %463 = vmatpush1.msra.mxu0 0.0
        %464 = vmatprep.subr.mxu0 0.0
        %465 = vmatpush1.msra.mxu0 0.0
        %466 = vmatprep.subr.mxu0 0.0
        %467 = vmatpush1.msra.mxu0 0.0
        %468 = vmatprep.subr.mxu0 0.0
        %469 = vmatpush1.msra.mxu0 0.0
        %470 = vmatprep.mubr.f32.mxu0 0.0
        %471 = vmatmul.mubr.f32.gmra.mrb[0].mxu0 %v335
        %v472 = vpop.f32.mrb[0].mxu0
        %v473 = vadd.f32 0.0, %v472
        %v474 = vpop.f32.mrb[0].mxu0
        %475 = vmatprep.mubr.f32.mxu0 0.0
        %476 = vmatmul.mubr.f32.gmra.mrb[0].mxu0 %v338
        %v477 = vpop.f32.mrb[0].mxu0
        %v478 = vadd.f32 0.0, %v477
        %v479 = vpop.f32.mrb[0].mxu0
        %480 = vmatprep.mubr.f32.mxu0 0.0
        %481 = vmatmul.mubr.f32.gmra.mrb[0].mxu0 %v341
        %v482 = vpop.f32.mrb[0].mxu0
        %v483 = vadd.f32 0.0, %v482
        %v484 = vpop.f32.mrb[0].mxu0
        %485 = vmatprep.mubr.f32.mxu0 0.0
        %486 = vmatmul.mubr.f32.gmra.mrb[0].mxu0 %v344
        %v487 = vpop.f32.mrb[0].mxu0
        %v488 = vadd.f32 0.0, %v487
        %v489 = vpop.f32.mrb[0].mxu0
        %490 = vmatprep.mubr.f32.mxu0 0.0
        %491 = vmatmul.mubr.f32.gmra.mrb[0].mxu0 %v347
        %v492 = vpop.f32.mrb[0].mxu0
        %v493 = vadd.f32 0.0, %v492
        %v494 = vpop.f32.mrb[0].mxu0
        %495 = vmatprep.mubr.f32.mxu0 0.0
        %496 = vmatmul.mubr.f32.gmra.mrb[0].mxu0 %v350
        %v497 = vpop.f32.mrb[0].mxu0
        %v498 = vadd.f32 0.0, %v497
        %v499 = vpop.f32.mrb[0].mxu0
        %500 = vmatprep.mubr.f32.mxu0 0.0
        %501 = vmatmul.mubr.f32.gmra.mrb[0].mxu0 %v353
        %v502 = vpop.f32.mrb[0].mxu0
        %v503 = vadd.f32 0.0, %v502
        %v504 = vpop.f32.mrb[0].mxu0
        %505 = vmatprep.mubr.f32.mxu0 0.0
        %506 = vmatmul.mubr.f32.gmra.mrb[0].mxu0 %v356
        %v507 = vpop.f32.mrb[0].mxu0
        %v508 = vadd.f32 0.0, %v507
        %v509 = vpop.f32.mrb[0].mxu0
        %510 = vmatprep.mubr.f32.mxu0 0.0
        %511 = vmatmul.mubr.f32.gmra.mrb[0].mxu0 %v359
        %v512 = vpop.f32.mrb[0].mxu0
        %v513 = vadd.f32 0.0, %v512
        %v514 = vpop.f32.mrb[0].mxu0
        %515 = vmatprep.mubr.f32.mxu0 0.0
        %516 = vmatmul.mubr.f32.gmra.mrb[0].mxu0 %v362
        %v517 = vpop.f32.mrb[0].mxu0
        %v518 = vadd.f32 0.0, %v517
        %v519 = vpop.f32.mrb[0].mxu0
        %520 = vmatprep.mubr.f32.mxu0 0.0
        %521 = vmatmul.mubr.f32.gmra.mrb[0].mxu0 %v365
        %v522 = vpop.f32.mrb[0].mxu0
        %v523 = vadd.f32 0.0, %v522
        %v524 = vpop.f32.mrb[0].mxu0
        %525 = vmatprep.mubr.f32.mxu0 0.0
        %526 = vmatmul.mubr.f32.gmra.mrb[0].mxu0 %v368
        %v527 = vpop.f32.mrb[0].mxu0
        %v528 = vadd.f32 0.0, %v527
        %v529 = vpop.f32.mrb[0].mxu0
        %530 = vmatprep.mubr.f32.mxu0 0.0
        %531 = vmatmul.mubr.f32.gmra.mrb[0].mxu0 %v371
        %v532 = vpop.f32.mrb[0].mxu0
        %v533 = vadd.f32 0.0, %v532
        %v534 = vpop.f32.mrb[0].mxu0
        %535 = vmatprep.mubr.f32.mxu0 0.0
        %536 = vmatmul.mubr.f32.gmra.mrb[0].mxu0 %v374
        %v537 = vpop.f32.mrb[0].mxu0
        %v538 = vadd.f32 0.0, %v537
        %v539 = vpop.f32.mrb[0].mxu0
        %540 = vmatprep.mubr.f32.mxu0 0.0
        %541 = vmatmul.mubr.f32.gmra.mrb[0].mxu0 %v377
        %v542 = vpop.f32.mrb[0].mxu0
        %v543 = vadd.f32 0.0, %v542
        %v544 = vpop.f32.mrb[0].mxu0
        %545 = vmatprep.mubr.f32.mxu0 0.0
        %546 = vmatmul.mubr.f32.gmra.mrb[0].mxu0 %v380
        %v547 = vpop.f32.mrb[0].mxu0
        %v548 = vadd.f32 0.0, %v547
        %v549 = vpop.f32.mrb[0].mxu0
        %550 = vmatprep.mubr.f32.mxu0 0.0
        %551 = vmatmul.mubr.f32.gmra.mrb[0].mxu0 %v383
        %v552 = vpop.f32.mrb[0].mxu0
        %v553 = vadd.f32 0.0, %v552
        %v554 = vpop.f32.mrb[0].mxu0
        %555 = vmatprep.mubr.f32.mxu0 0.0
        %556 = vmatmul.mubr.f32.gmra.mrb[0].mxu0 %v386
        %v557 = vpop.f32.mrb[0].mxu0
        %v558 = vadd.f32 0.0, %v557
        %v559 = vpop.f32.mrb[0].mxu0
        %560 = vmatprep.mubr.f32.mxu0 0.0
        %561 = vmatmul.mubr.f32.gmra.mrb[0].mxu0 %v389
        %v562 = vpop.f32.mrb[0].mxu0
        %v563 = vadd.f32 0.0, %v562
        %v564 = vpop.f32.mrb[0].mxu0
        %565 = vmatprep.mubr.f32.mxu0 0.0
        %566 = vmatmul.mubr.f32.gmra.mrb[0].mxu0 %v392
        %v567 = vpop.f32.mrb[0].mxu0
        %v568 = vadd.f32 0.0, %v567
        %v569 = vpop.f32.mrb[0].mxu0
        %570 = vmatprep.mubr.f32.mxu0 0.0
        %571 = vmatmul.mubr.f32.gmra.mrb[0].mxu0 %v395
        %v572 = vpop.f32.mrb[0].mxu0
        %v573 = vadd.f32 0.0, %v572
        %v574 = vpop.f32.mrb[0].mxu0
        %575 = vmatprep.mubr.f32.mxu0 0.0
        %576 = vmatmul.mubr.f32.gmra.mrb[0].mxu0 %v398
        %v577 = vpop.f32.mrb[0].mxu0
        %v578 = vadd.f32 0.0, %v577
        %v579 = vpop.f32.mrb[0].mxu0
        %580 = vmatprep.mubr.f32.mxu0 0.0
        %581 = vmatmul.mubr.f32.gmra.mrb[0].mxu0 %v401
        %v582 = vpop.f32.mrb[0].mxu0
        %v583 = vadd.f32 0.0, %v582
        %v584 = vpop.f32.mrb[0].mxu0
        %585 = vmatprep.mubr.f32.mxu0 0.0
        %586 = vmatmul.mubr.f32.gmra.mrb[0].mxu0 %v404
        %v587 = vpop.f32.mrb[0].mxu0
        %v588 = vadd.f32 0.0, %v587
        %v589 = vpop.f32.mrb[0].mxu0
        %590 = vdwg.mxu0
        %v591 = vld [vmem:[#allocation5] sm:$0xff]
        %v592 = vld [vmem:[#allocation5 + $0x8] sm:$0xff]
        %v593 = vld [vmem:[#allocation5 + $0x10] sm:$0xff]
        %v594 = vld [vmem:[#allocation5 + $0x18] sm:$0xff]
        %v595 = vld [vmem:[#allocation5 + $0x20] sm:$0xff]
        %v596 = vld [vmem:[#allocation5 + $0x28] sm:$0xff]
        %v597 = vld [vmem:[#allocation5 + $0x30] sm:$0xff]
        %v598 = vld [vmem:[#allocation5 + $0x38] sm:$0xff]
        %v599 = vld [vmem:[#allocation5 + $0x40] sm:$0xff]
        %v600 = vld [vmem:[#allocation5 + $0x48] sm:$0xff]
        %v601 = vld [vmem:[#allocation5 + $0x50] sm:$0xff]
        %v602 = vld [vmem:[#allocation5 + $0x58] sm:$0xff]
        %v603 = vld [vmem:[#allocation5 + $0x60] sm:$0xff]
        %v604 = vld [vmem:[#allocation5 + $0x68] sm:$0xff]
        %v606 = vsel %vm333, %v591, 0
        %v609 = vsel %vm333, %v592, 0
        %v612 = vsel %vm333, %v593, 0
        %v615 = vsel %vm333, %v594, 0
        %v618 = vsel %vm333, %v595, 0
        %v621 = vsel %vm333, %v596, 0
        %v624 = vsel %vm333, %v597, 0
        %v627 = vsel %vm333, %v598, 0
        %v630 = vsel %vm333, %v599, 0
        %v633 = vsel %vm333, %v600, 0
        %v636 = vsel %vm333, %v601, 0
        %v639 = vsel %vm333, %v602, 0
        %v642 = vsel %vm333, %v603, 0
        %v645 = vsel %vm333, %v604, 0
        %647 = vmatprep.subr.mxu0 0.0
        %648 = vmatpush1.msra.mxu0 %v473
        %649 = vmatprep.subr.mxu0 0.0
        %650 = vmatpush1.msra.mxu0 %v478
        %651 = vmatprep.subr.mxu0 0.0
        %652 = vmatpush1.msra.mxu0 %v483
        %653 = vmatprep.subr.mxu0 0.0
        %654 = vmatpush1.msra.mxu0 %v488
        %655 = vmatprep.subr.mxu0 0.0
        %656 = vmatpush1.msra.mxu0 %v493
        %657 = vmatprep.subr.mxu0 0.0
        %658 = vmatpush1.msra.mxu0 %v498
        %659 = vmatprep.subr.mxu0 0.0
        %660 = vmatpush1.msra.mxu0 %v503
        %661 = vmatprep.subr.mxu0 0.0
        %662 = vmatpush1.msra.mxu0 %v508
        %663 = vmatprep.subr.mxu0 0.0
        %664 = vmatpush1.msra.mxu0 0.0
        %665 = vmatprep.subr.mxu0 0.0
        %666 = vmatpush1.msra.mxu0 0.0
        %667 = vmatprep.subr.mxu0 0.0
        %668 = vmatpush1.msra.mxu0 0.0
        %669 = vmatprep.subr.mxu0 0.0
        %670 = vmatpush1.msra.mxu0 0.0
        %671 = vmatprep.subr.mxu0 0.0
        %672 = vmatpush1.msra.mxu0 0.0
        %673 = vmatprep.subr.mxu0 0.0
        %674 = vmatpush1.msra.mxu0 0.0
        %675 = vmatprep.subr.mxu0 0.0
        %676 = vmatpush1.msra.mxu0 0.0
        %677 = vmatprep.subr.mxu0 0.0
        %678 = vmatpush1.msra.mxu0 0.0
        %679 = vmatprep.subr.mxu0 0.0
        %680 = vmatpush1.msra.mxu0 0.0
        %681 = vmatprep.subr.mxu0 0.0
        %682 = vmatpush1.msra.mxu0 0.0
        %683 = vmatprep.subr.mxu0 0.0
        %684 = vmatpush1.msra.mxu0 0.0
        %685 = vmatprep.subr.mxu0 0.0
        %686 = vmatpush1.msra.mxu0 0.0
        %687 = vmatprep.subr.mxu0 0.0
        %688 = vmatpush1.msra.mxu0 0.0
        %689 = vmatprep.subr.mxu0 0.0
        %690 = vmatpush1.msra.mxu0 0.0
        %691 = vmatprep.subr.mxu0 0.0
        %692 = vmatpush1.msra.mxu0 0.0
        %693 = vmatprep.subr.mxu0 0.0
        %694 = vmatpush1.msra.mxu0 0.0
        %695 = vmatprep.subr.mxu0 0.0
        %696 = vmatpush1.msra.mxu0 0.0
        %697 = vmatprep.subr.mxu0 0.0
        %698 = vmatpush1.msra.mxu0 0.0
        %699 = vmatprep.subr.mxu0 0.0
        %700 = vmatpush1.msra.mxu0 0.0
        %701 = vmatprep.subr.mxu0 0.0
        %702 = vmatpush1.msra.mxu0 0.0
        %703 = vmatprep.subr.mxu0 0.0
        %704 = vmatpush1.msra.mxu0 0.0
        %705 = vmatprep.subr.mxu0 0.0
        %706 = vmatpush1.msra.mxu0 0.0
        %707 = vmatprep.subr.mxu0 0.0
        %708 = vmatpush1.msra.mxu0 0.0
        %709 = vmatprep.subr.mxu0 0.0
        %710 = vmatpush1.msra.mxu0 0.0
        %711 = vmatprep.mubr.f32.mxu0 0.0
        %712 = vmatmul.mubr.f32.gmra.mrb[0].mxu0 %v606
        %v713 = vpop.f32.mrb[0].mxu0
        %v714 = vadd.f32 0.0, %v713
        %v715 = vpop.f32.mrb[0].mxu0
        %716 = vmatprep.mubr.f32.mxu0 0.0
        %717 = vmatmul.mubr.f32.gmra.mrb[0].mxu0 %v609
        %v718 = vpop.f32.mrb[0].mxu0
        %v719 = vadd.f32 0.0, %v718
        %v720 = vpop.f32.mrb[0].mxu0
        %721 = vmatprep.mubr.f32.mxu0 0.0
        %722 = vmatmul.mubr.f32.gmra.mrb[0].mxu0 %v612
        %v723 = vpop.f32.mrb[0].mxu0
        %v724 = vadd.f32 0.0, %v723
        %v725 = vpop.f32.mrb[0].mxu0
        %726 = vmatprep.mubr.f32.mxu0 0.0
        %727 = vmatmul.mubr.f32.gmra.mrb[0].mxu0 %v615
        %v728 = vpop.f32.mrb[0].mxu0
        %v729 = vadd.f32 0.0, %v728
        %v730 = vpop.f32.mrb[0].mxu0
        %731 = vmatprep.mubr.f32.mxu0 0.0
        %732 = vmatmul.mubr.f32.gmra.mrb[0].mxu0 %v618
        %v733 = vpop.f32.mrb[0].mxu0
        %v734 = vadd.f32 0.0, %v733
        %v735 = vpop.f32.mrb[0].mxu0
        %736 = vmatprep.mubr.f32.mxu0 0.0
        %737 = vmatmul.mubr.f32.gmra.mrb[0].mxu0 %v621
        %v738 = vpop.f32.mrb[0].mxu0
        %v739 = vadd.f32 0.0, %v738
        %v740 = vpop.f32.mrb[0].mxu0
        %741 = vmatprep.mubr.f32.mxu0 0.0
        %742 = vmatmul.mubr.f32.gmra.mrb[0].mxu0 %v624
        %v743 = vpop.f32.mrb[0].mxu0
        %v744 = vadd.f32 0.0, %v743
        %v745 = vpop.f32.mrb[0].mxu0
        %746 = vmatprep.mubr.f32.mxu0 0.0
        %747 = vmatmul.mubr.f32.gmra.mrb[0].mxu0 %v627
        %v748 = vpop.f32.mrb[0].mxu0
        %v749 = vadd.f32 0.0, %v748
        %v750 = vpop.f32.mrb[0].mxu0
        %751 = vmatprep.mubr.f32.mxu0 0.0
        %752 = vmatmul.mubr.f32.gmra.mrb[0].mxu0 %v630
        %v753 = vpop.f32.mrb[0].mxu0
        %v754 = vadd.f32 0.0, %v753
        %v755 = vpop.f32.mrb[0].mxu0
        %756 = vmatprep.mubr.f32.mxu0 0.0
        %757 = vmatmul.mubr.f32.gmra.mrb[0].mxu0 %v633
        %v758 = vpop.f32.mrb[0].mxu0
        %v759 = vadd.f32 0.0, %v758
        %v760 = vpop.f32.mrb[0].mxu0
        %761 = vmatprep.mubr.f32.mxu0 0.0
        %762 = vmatmul.mubr.f32.gmra.mrb[0].mxu0 %v636
        %v763 = vpop.f32.mrb[0].mxu0
        %v764 = vadd.f32 0.0, %v763
        %v765 = vpop.f32.mrb[0].mxu0
        %766 = vmatprep.mubr.f32.mxu0 0.0
        %767 = vmatmul.mubr.f32.gmra.mrb[0].mxu0 %v639
        %v768 = vpop.f32.mrb[0].mxu0
        %v769 = vadd.f32 0.0, %v768
        %v770 = vpop.f32.mrb[0].mxu0
        %771 = vmatprep.mubr.f32.mxu0 0.0
        %772 = vmatmul.mubr.f32.gmra.mrb[0].mxu0 %v642
        %v773 = vpop.f32.mrb[0].mxu0
        %v774 = vadd.f32 0.0, %v773
        %v775 = vpop.f32.mrb[0].mxu0
        %776 = vmatprep.mubr.f32.mxu0 0.0
        %777 = vmatmul.mubr.f32.gmra.mrb[0].mxu0 %v645
        %v778 = vpop.f32.mrb[0].mxu0
        %v779 = vadd.f32 0.0, %v778
        %v780 = vpop.f32.mrb[0].mxu0
        %781 = vdwg.mxu0
        %s782 = sld [smem:[#allocation8]]
        %v783 = vstv %s782
        %v784 = vmul.f32 %v714, %v783
        %v785 = vmul.f32 %v719, %v783
        %v786 = vmul.f32 %v724, %v783
        %v787 = vmul.f32 %v729, %v783
        %v788 = vmul.f32 %v734, %v783
        %v789 = vmul.f32 %v739, %v783
        %v790 = vmul.f32 %v744, %v783
        %v791 = vmul.f32 %v749, %v783
        %v792 = vmul.f32 %v754, %v783
        %v793 = vmul.f32 %v759, %v783
        %v794 = vmul.f32 %v764, %v783
        %v795 = vmul.f32 %v769, %v783
        %v796 = vmul.f32 %v774, %v783
        %v797 = vmul.f32 %v779, %v783
        %s798 = sld [smem:[#allocation9]]
        %v799 = vstv %s798
        %v800 = vadd.f32 %v784, %v799
        %v801 = vadd.f32 %v785, %v799
        %v802 = vadd.f32 %v786, %v799
        %v803 = vadd.f32 %v787, %v799
        %v804 = vadd.f32 %v788, %v799
        %v805 = vadd.f32 %v789, %v799
        %v806 = vadd.f32 %v790, %v799
        %v807 = vadd.f32 %v791, %v799
        %v808 = vadd.f32 %v792, %v799
        %v809 = vadd.f32 %v793, %v799
        %v810 = vadd.f32 %v794, %v799
        %v811 = vadd.f32 %v795, %v799
        %v812 = vadd.f32 %v796, %v799
        %v813 = vadd.f32 %v797, %v799
        %vm814 = vcmask 916480
        %815 = vst.msk [vmem:[%s300] sm:$0xff] %vm814, %v800
        %816 = vst.msk [vmem:[%s300 + $0x8] sm:$0xff] %vm814, %v801
        %817 = vst.msk [vmem:[%s300 + $0x10] sm:$0xff] %vm814, %v802
        %818 = vst.msk [vmem:[%s300 + $0x18] sm:$0xff] %vm814, %v803
        %819 = vst.msk [vmem:[%s300 + $0x20] sm:$0xff] %vm814, %v804
        %820 = vst.msk [vmem:[%s300 + $0x28] sm:$0xff] %vm814, %v805
        %821 = vst.msk [vmem:[%s300 + $0x30] sm:$0xff] %vm814, %v806
        %822 = vst.msk [vmem:[%s300 + $0x38] sm:$0xff] %vm814, %v807
        %823 = vst.msk [vmem:[%s300 + $0x40] sm:$0xff] %vm814, %v808
        %824 = vst.msk [vmem:[%s300 + $0x48] sm:$0xff] %vm814, %v809
        %825 = vst.msk [vmem:[%s300 + $0x50] sm:$0xff] %vm814, %v810
        %826 = vst.msk [vmem:[%s300 + $0x58] sm:$0xff] %vm814, %v811
        %827 = vst.msk [vmem:[%s300 + $0x60] sm:$0xff] %vm814, %v812
        %828 = vst.msk [vmem:[%s300 + $0x68] sm:$0xff] %vm814, %v813
        %829 = vmatprep.subr.mxu0 0.0
        %830 = vmatpush1.msra.mxu0 %v513
        %831 = vmatprep.subr.mxu0 0.0
        %832 = vmatpush1.msra.mxu0 %v518
        %833 = vmatprep.subr.mxu0 0.0
        %834 = vmatpush1.msra.mxu0 %v523
        %835 = vmatprep.subr.mxu0 0.0
        %836 = vmatpush1.msra.mxu0 %v528
        %837 = vmatprep.subr.mxu0 0.0
        %838 = vmatpush1.msra.mxu0 %v533
        %839 = vmatprep.subr.mxu0 0.0
        %840 = vmatpush1.msra.mxu0 %v538
        %841 = vmatprep.subr.mxu0 0.0
        %842 = vmatpush1.msra.mxu0 %v543
        %843 = vmatprep.subr.mxu0 0.0
        %844 = vmatpush1.msra.mxu0 %v548
        %845 = vmatprep.subr.mxu0 0.0
        %846 = vmatpush1.msra.mxu0 0.0
        %847 = vmatprep.subr.mxu0 0.0
        %848 = vmatpush1.msra.mxu0 0.0
        %849 = vmatprep.subr.mxu0 0.0
        %850 = vmatpush1.msra.mxu0 0.0
        %851 = vmatprep.subr.mxu0 0.0
        %852 = vmatpush1.msra.mxu0 0.0
        %853 = vmatprep.subr.mxu0 0.0
        %854 = vmatpush1.msra.mxu0 0.0
        %855 = vmatprep.subr.mxu0 0.0
        %856 = vmatpush1.msra.mxu0 0.0
        %857 = vmatprep.subr.mxu0 0.0
        %858 = vmatpush1.msra.mxu0 0.0
        %859 = vmatprep.subr.mxu0 0.0
        %860 = vmatpush1.msra.mxu0 0.0
        %861 = vmatprep.subr.mxu0 0.0
        %862 = vmatpush1.msra.mxu0 0.0
        %863 = vmatprep.subr.mxu0 0.0
        %864 = vmatpush1.msra.mxu0 0.0
        %865 = vmatprep.subr.mxu0 0.0
        %866 = vmatpush1.msra.mxu0 0.0
        %867 = vmatprep.subr.mxu0 0.0
        %868 = vmatpush1.msra.mxu0 0.0
        %869 = vmatprep.subr.mxu0 0.0
        %870 = vmatpush1.msra.mxu0 0.0
        %871 = vmatprep.subr.mxu0 0.0
        %872 = vmatpush1.msra.mxu0 0.0
        %873 = vmatprep.subr.mxu0 0.0
        %874 = vmatpush1.msra.mxu0 0.0
        %875 = vmatprep.subr.mxu0 0.0
        %876 = vmatpush1.msra.mxu0 0.0
        %877 = vmatprep.subr.mxu0 0.0
        %878 = vmatpush1.msra.mxu0 0.0
        %879 = vmatprep.subr.mxu0 0.0
        %880 = vmatpush1.msra.mxu0 0.0
        %881 = vmatprep.subr.mxu0 0.0
        %882 = vmatpush1.msra.mxu0 0.0
        %883 = vmatprep.subr.mxu0 0.0
        %884 = vmatpush1.msra.mxu0 0.0
        %885 = vmatprep.subr.mxu0 0.0
        %886 = vmatpush1.msra.mxu0 0.0
        %887 = vmatprep.subr.mxu0 0.0
        %888 = vmatpush1.msra.mxu0 0.0
        %889 = vmatprep.subr.mxu0 0.0
        %890 = vmatpush1.msra.mxu0 0.0
        %891 = vmatprep.subr.mxu0 0.0
        %892 = vmatpush1.msra.mxu0 0.0
        %893 = vmatprep.mubr.f32.mxu0 0.0
        %894 = vmatmul.mubr.f32.gmra.mrb[0].mxu0 %v606
        %v895 = vpop.f32.mrb[0].mxu0
        %v896 = vadd.f32 0.0, %v895
        %v897 = vpop.f32.mrb[0].mxu0
        %898 = vmatprep.mubr.f32.mxu0 0.0
        %899 = vmatmul.mubr.f32.gmra.mrb[0].mxu0 %v609
        %v900 = vpop.f32.mrb[0].mxu0
        %v901 = vadd.f32 0.0, %v900
        %v902 = vpop.f32.mrb[0].mxu0
        %903 = vmatprep.mubr.f32.mxu0 0.0
        %904 = vmatmul.mubr.f32.gmra.mrb[0].mxu0 %v612
        %v905 = vpop.f32.mrb[0].mxu0
        %v906 = vadd.f32 0.0, %v905
        %v907 = vpop.f32.mrb[0].mxu0
        %908 = vmatprep.mubr.f32.mxu0 0.0
        %909 = vmatmul.mubr.f32.gmra.mrb[0].mxu0 %v615
        %v910 = vpop.f32.mrb[0].mxu0
        %v911 = vadd.f32 0.0, %v910
        %v912 = vpop.f32.mrb[0].mxu0
        %913 = vmatprep.mubr.f32.mxu0 0.0
        %914 = vmatmul.mubr.f32.gmra.mrb[0].mxu0 %v618
        %v915 = vpop.f32.mrb[0].mxu0
        %v916 = vadd.f32 0.0, %v915
        %v917 = vpop.f32.mrb[0].mxu0
        %918 = vmatprep.mubr.f32.mxu0 0.0
        %919 = vmatmul.mubr.f32.gmra.mrb[0].mxu0 %v621
        %v920 = vpop.f32.mrb[0].mxu0
        %v921 = vadd.f32 0.0, %v920
        %v922 = vpop.f32.mrb[0].mxu0
        %923 = vmatprep.mubr.f32.mxu0 0.0
        %924 = vmatmul.mubr.f32.gmra.mrb[0].mxu0 %v624
        %v925 = vpop.f32.mrb[0].mxu0
        %v926 = vadd.f32 0.0, %v925
        %v927 = vpop.f32.mrb[0].mxu0
        %928 = vmatprep.mubr.f32.mxu0 0.0
        %929 = vmatmul.mubr.f32.gmra.mrb[0].mxu0 %v627
        %v930 = vpop.f32.mrb[0].mxu0
        %v931 = vadd.f32 0.0, %v930
        %v932 = vpop.f32.mrb[0].mxu0
        %933 = vmatprep.mubr.f32.mxu0 0.0
        %934 = vmatmul.mubr.f32.gmra.mrb[0].mxu0 %v630
        %v935 = vpop.f32.mrb[0].mxu0
        %v936 = vadd.f32 0.0, %v935
        %v937 = vpop.f32.mrb[0].mxu0
        %938 = vmatprep.mubr.f32.mxu0 0.0
        %939 = vmatmul.mubr.f32.gmra.mrb[0].mxu0 %v633
        %v940 = vpop.f32.mrb[0].mxu0
        %v941 = vadd.f32 0.0, %v940
        %v942 = vpop.f32.mrb[0].mxu0
        %943 = vmatprep.mubr.f32.mxu0 0.0
        %944 = vmatmul.mubr.f32.gmra.mrb[0].mxu0 %v636
        %v945 = vpop.f32.mrb[0].mxu0
        %v946 = vadd.f32 0.0, %v945
        %v947 = vpop.f32.mrb[0].mxu0
        %948 = vmatprep.mubr.f32.mxu0 0.0
        %949 = vmatmul.mubr.f32.gmra.mrb[0].mxu0 %v639
        %v950 = vpop.f32.mrb[0].mxu0
        %v951 = vadd.f32 0.0, %v950
        %v952 = vpop.f32.mrb[0].mxu0
        %953 = vmatprep.mubr.f32.mxu0 0.0
        %954 = vmatmul.mubr.f32.gmra.mrb[0].mxu0 %v642
        %v955 = vpop.f32.mrb[0].mxu0
        %v956 = vadd.f32 0.0, %v955
        %v957 = vpop.f32.mrb[0].mxu0
        %958 = vmatprep.mubr.f32.mxu0 0.0
        %959 = vmatmul.mubr.f32.gmra.mrb[0].mxu0 %v645
        %v960 = vpop.f32.mrb[0].mxu0
        %v961 = vadd.f32 0.0, %v960
        %v962 = vpop.f32.mrb[0].mxu0
        %963 = vdwg.mxu0
        %s964 = sld [smem:[#allocation8 + $0x1]]
        %v965 = vstv %s964
        %v966 = vmul.f32 %v896, %v965
        %v967 = vmul.f32 %v901, %v965
        %v968 = vmul.f32 %v906, %v965
        %v969 = vmul.f32 %v911, %v965
        %v970 = vmul.f32 %v916, %v965
        %v971 = vmul.f32 %v921, %v965
        %v972 = vmul.f32 %v926, %v965
        %v973 = vmul.f32 %v931, %v965
        %v974 = vmul.f32 %v936, %v965
        %v975 = vmul.f32 %v941, %v965
        %v976 = vmul.f32 %v946, %v965
        %v977 = vmul.f32 %v951, %v965
        %v978 = vmul.f32 %v956, %v965
        %v979 = vmul.f32 %v961, %v965
        %s980 = sld [smem:[#allocation9 + $0x1]]
        %v981 = vstv %s980
        %v982 = vadd.f32 %v966, %v981
        %v983 = vadd.f32 %v967, %v981
        %v984 = vadd.f32 %v968, %v981
        %v985 = vadd.f32 %v969, %v981
        %v986 = vadd.f32 %v970, %v981
        %v987 = vadd.f32 %v971, %v981
        %v988 = vadd.f32 %v972, %v981
        %v989 = vadd.f32 %v973, %v981
        %v990 = vadd.f32 %v974, %v981
        %v991 = vadd.f32 %v975, %v981
        %v992 = vadd.f32 %v976, %v981
        %v993 = vadd.f32 %v977, %v981
        %v994 = vadd.f32 %v978, %v981
        %v995 = vadd.f32 %v979, %v981
        %s996 = scalar_lea.vmem %s300, 112
        %997 = vst.msk [vmem:[%s996] sm:$0xff] %vm814, %v982
        %998 = vst.msk [vmem:[%s996 + $0x8] sm:$0xff] %vm814, %v983
        %999 = vst.msk [vmem:[%s996 + $0x10] sm:$0xff] %vm814, %v984
        %1000 = vst.msk [vmem:[%s996 + $0x18] sm:$0xff] %vm814, %v985
        %1001 = vst.msk [vmem:[%s996 + $0x20] sm:$0xff] %vm814, %v986
        %1002 = vst.msk [vmem:[%s996 + $0x28] sm:$0xff] %vm814, %v987
        %1003 = vst.msk [vmem:[%s996 + $0x30] sm:$0xff] %vm814, %v988
        %1004 = vst.msk [vmem:[%s996 + $0x38] sm:$0xff] %vm814, %v989
        %1005 = vst.msk [vmem:[%s996 + $0x40] sm:$0xff] %vm814, %v990
        %1006 = vst.msk [vmem:[%s996 + $0x48] sm:$0xff] %vm814, %v991
        %1007 = vst.msk [vmem:[%s996 + $0x50] sm:$0xff] %vm814, %v992
        %1008 = vst.msk [vmem:[%s996 + $0x58] sm:$0xff] %vm814, %v993
        %1009 = vst.msk [vmem:[%s996 + $0x60] sm:$0xff] %vm814, %v994
        %1010 = vst.msk [vmem:[%s996 + $0x68] sm:$0xff] %vm814, %v995
        %1011 = vmatprep.subr.mxu0 0.0
        %1012 = vmatpush1.msra.mxu0 %v553
        %1013 = vmatprep.subr.mxu0 0.0
        %1014 = vmatpush1.msra.mxu0 %v558
        %1015 = vmatprep.subr.mxu0 0.0
        %1016 = vmatpush1.msra.mxu0 %v563
        %1017 = vmatprep.subr.mxu0 0.0
        %1018 = vmatpush1.msra.mxu0 %v568
        %1019 = vmatprep.subr.mxu0 0.0
        %1020 = vmatpush1.msra.mxu0 %v573
        %1021 = vmatprep.subr.mxu0 0.0
        %1022 = vmatpush1.msra.mxu0 %v578
        %1023 = vmatprep.subr.mxu0 0.0
        %1024 = vmatpush1.msra.mxu0 %v583
        %1025 = vmatprep.subr.mxu0 0.0
        %1026 = vmatpush1.msra.mxu0 %v588
        %1027 = vmatprep.subr.mxu0 0.0
        %1028 = vmatpush1.msra.mxu0 0.0
        %1029 = vmatprep.subr.mxu0 0.0
        %1030 = vmatpush1.msra.mxu0 0.0
        %1031 = vmatprep.subr.mxu0 0.0
        %1032 = vmatpush1.msra.mxu0 0.0
        %1033 = vmatprep.subr.mxu0 0.0
        %1034 = vmatpush1.msra.mxu0 0.0
        %1035 = vmatprep.subr.mxu0 0.0
        %1036 = vmatpush1.msra.mxu0 0.0
        %1037 = vmatprep.subr.mxu0 0.0
        %1038 = vmatpush1.msra.mxu0 0.0
        %1039 = vmatprep.subr.mxu0 0.0
        %1040 = vmatpush1.msra.mxu0 0.0
        %1041 = vmatprep.subr.mxu0 0.0
        %1042 = vmatpush1.msra.mxu0 0.0
        %1043 = vmatprep.subr.mxu0 0.0
        %1044 = vmatpush1.msra.mxu0 0.0
        %1045 = vmatprep.subr.mxu0 0.0
        %1046 = vmatpush1.msra.mxu0 0.0
        %1047 = vmatprep.subr.mxu0 0.0
        %1048 = vmatpush1.msra.mxu0 0.0
        %1049 = vmatprep.subr.mxu0 0.0
        %1050 = vmatpush1.msra.mxu0 0.0
        %1051 = vmatprep.subr.mxu0 0.0
        %1052 = vmatpush1.msra.mxu0 0.0
        %1053 = vmatprep.subr.mxu0 0.0
        %1054 = vmatpush1.msra.mxu0 0.0
        %1055 = vmatprep.subr.mxu0 0.0
        %1056 = vmatpush1.msra.mxu0 0.0
        %1057 = vmatprep.subr.mxu0 0.0
        %1058 = vmatpush1.msra.mxu0 0.0
        %1059 = vmatprep.subr.mxu0 0.0
        %1060 = vmatpush1.msra.mxu0 0.0
        %1061 = vmatprep.subr.mxu0 0.0
        %1062 = vmatpush1.msra.mxu0 0.0
        %1063 = vmatprep.subr.mxu0 0.0
        %1064 = vmatpush1.msra.mxu0 0.0
        %1065 = vmatprep.subr.mxu0 0.0
        %1066 = vmatpush1.msra.mxu0 0.0
        %1067 = vmatprep.subr.mxu0 0.0
        %1068 = vmatpush1.msra.mxu0 0.0
        %1069 = vmatprep.subr.mxu0 0.0
        %1070 = vmatpush1.msra.mxu0 0.0
        %1071 = vmatprep.subr.mxu0 0.0
        %1072 = vmatpush1.msra.mxu0 0.0
        %1073 = vmatprep.subr.mxu0 0.0
        %1074 = vmatpush1.msra.mxu0 0.0
        %1075 = vmatprep.mubr.f32.mxu0 0.0
        %1076 = vmatmul.mubr.f32.gmra.mrb[0].mxu0 %v606
        %v1077 = vpop.f32.mrb[0].mxu0
        %v1078 = vadd.f32 0.0, %v1077
        %v1079 = vpop.f32.mrb[0].mxu0
        %1080 = vmatprep.mubr.f32.mxu0 0.0
        %1081 = vmatmul.mubr.f32.gmra.mrb[0].mxu0 %v609
        %v1082 = vpop.f32.mrb[0].mxu0
        %v1083 = vadd.f32 0.0, %v1082
        %v1084 = vpop.f32.mrb[0].mxu0
        %1085 = vmatprep.mubr.f32.mxu0 0.0
        %1086 = vmatmul.mubr.f32.gmra.mrb[0].mxu0 %v612
        %v1087 = vpop.f32.mrb[0].mxu0
        %v1088 = vadd.f32 0.0, %v1087
        %v1089 = vpop.f32.mrb[0].mxu0
        %1090 = vmatprep.mubr.f32.mxu0 0.0
        %1091 = vmatmul.mubr.f32.gmra.mrb[0].mxu0 %v615
        %v1092 = vpop.f32.mrb[0].mxu0
        %v1093 = vadd.f32 0.0, %v1092
        %v1094 = vpop.f32.mrb[0].mxu0
        %1095 = vmatprep.mubr.f32.mxu0 0.0
        %1096 = vmatmul.mubr.f32.gmra.mrb[0].mxu0 %v618
        %v1097 = vpop.f32.mrb[0].mxu0
        %v1098 = vadd.f32 0.0, %v1097
        %v1099 = vpop.f32.mrb[0].mxu0
        %1100 = vmatprep.mubr.f32.mxu0 0.0
        %1101 = vmatmul.mubr.f32.gmra.mrb[0].mxu0 %v621
        %v1102 = vpop.f32.mrb[0].mxu0
        %v1103 = vadd.f32 0.0, %v1102
        %v1104 = vpop.f32.mrb[0].mxu0
        %1105 = vmatprep.mubr.f32.mxu0 0.0
        %1106 = vmatmul.mubr.f32.gmra.mrb[0].mxu0 %v624
        %v1107 = vpop.f32.mrb[0].mxu0
        %v1108 = vadd.f32 0.0, %v1107
        %v1109 = vpop.f32.mrb[0].mxu0
        %1110 = vmatprep.mubr.f32.mxu0 0.0
        %1111 = vmatmul.mubr.f32.gmra.mrb[0].mxu0 %v627
        %v1112 = vpop.f32.mrb[0].mxu0
        %v1113 = vadd.f32 0.0, %v1112
        %v1114 = vpop.f32.mrb[0].mxu0
        %1115 = vmatprep.mubr.f32.mxu0 0.0
        %1116 = vmatmul.mubr.f32.gmra.mrb[0].mxu0 %v630
        %v1117 = vpop.f32.mrb[0].mxu0
        %v1118 = vadd.f32 0.0, %v1117
        %v1119 = vpop.f32.mrb[0].mxu0
        %1120 = vmatprep.mubr.f32.mxu0 0.0
        %1121 = vmatmul.mubr.f32.gmra.mrb[0].mxu0 %v633
        %v1122 = vpop.f32.mrb[0].mxu0
        %v1123 = vadd.f32 0.0, %v1122
        %v1124 = vpop.f32.mrb[0].mxu0
        %1125 = vmatprep.mubr.f32.mxu0 0.0
        %1126 = vmatmul.mubr.f32.gmra.mrb[0].mxu0 %v636
        %v1127 = vpop.f32.mrb[0].mxu0
        %v1128 = vadd.f32 0.0, %v1127
        %v1129 = vpop.f32.mrb[0].mxu0
        %1130 = vmatprep.mubr.f32.mxu0 0.0
        %1131 = vmatmul.mubr.f32.gmra.mrb[0].mxu0 %v639
        %v1132 = vpop.f32.mrb[0].mxu0
        %v1133 = vadd.f32 0.0, %v1132
        %v1134 = vpop.f32.mrb[0].mxu0
        %1135 = vmatprep.mubr.f32.mxu0 0.0
        %1136 = vmatmul.mubr.f32.gmra.mrb[0].mxu0 %v642
        %v1137 = vpop.f32.mrb[0].mxu0
        %v1138 = vadd.f32 0.0, %v1137
        %v1139 = vpop.f32.mrb[0].mxu0
        %1140 = vmatprep.mubr.f32.mxu0 0.0
        %1141 = vmatmul.mubr.f32.gmra.mrb[0].mxu0 %v645
        %v1142 = vpop.f32.mrb[0].mxu0
        %v1143 = vadd.f32 0.0, %v1142
        %v1144 = vpop.f32.mrb[0].mxu0
        %1145 = vdwg.mxu0
        %s1146 = sld [smem:[#allocation8 + $0x2]]
        %v1147 = vstv %s1146
        %v1148 = vmul.f32 %v1078, %v1147
        %v1149 = vmul.f32 %v1083, %v1147
        %v1150 = vmul.f32 %v1088, %v1147
        %v1151 = vmul.f32 %v1093, %v1147
        %v1152 = vmul.f32 %v1098, %v1147
        %v1153 = vmul.f32 %v1103, %v1147
        %v1154 = vmul.f32 %v1108, %v1147
        %v1155 = vmul.f32 %v1113, %v1147
        %v1156 = vmul.f32 %v1118, %v1147
        %v1157 = vmul.f32 %v1123, %v1147
        %v1158 = vmul.f32 %v1128, %v1147
        %v1159 = vmul.f32 %v1133, %v1147
        %v1160 = vmul.f32 %v1138, %v1147
        %v1161 = vmul.f32 %v1143, %v1147
        %s1162 = sld [smem:[#allocation9 + $0x2]]
        %v1163 = vstv %s1162
        %v1164 = vadd.f32 %v1148, %v1163
        %v1165 = vadd.f32 %v1149, %v1163
        %v1166 = vadd.f32 %v1150, %v1163
        %v1167 = vadd.f32 %v1151, %v1163
        %v1168 = vadd.f32 %v1152, %v1163
        %v1169 = vadd.f32 %v1153, %v1163
        %v1170 = vadd.f32 %v1154, %v1163
        %v1171 = vadd.f32 %v1155, %v1163
        %v1172 = vadd.f32 %v1156, %v1163
        %v1173 = vadd.f32 %v1157, %v1163
        %v1174 = vadd.f32 %v1158, %v1163
        %v1175 = vadd.f32 %v1159, %v1163
        %v1176 = vadd.f32 %v1160, %v1163
        %v1177 = vadd.f32 %v1161, %v1163
        %s1178 = scalar_lea.vmem %s300, 224
        %1179 = vst.msk [vmem:[%s1178] sm:$0xff] %vm814, %v1164
        %1180 = vst.msk [vmem:[%s1178 + $0x8] sm:$0xff] %vm814, %v1165
        %1181 = vst.msk [vmem:[%s1178 + $0x10] sm:$0xff] %vm814, %v1166
        %1182 = vst.msk [vmem:[%s1178 + $0x18] sm:$0xff] %vm814, %v1167
        %1183 = vst.msk [vmem:[%s1178 + $0x20] sm:$0xff] %vm814, %v1168
        %1184 = vst.msk [vmem:[%s1178 + $0x28] sm:$0xff] %vm814, %v1169
        %1185 = vst.msk [vmem:[%s1178 + $0x30] sm:$0xff] %vm814, %v1170
        %1186 = vst.msk [vmem:[%s1178 + $0x38] sm:$0xff] %vm814, %v1171
        %1187 = vst.msk [vmem:[%s1178 + $0x40] sm:$0xff] %vm814, %v1172
        %1188 = vst.msk [vmem:[%s1178 + $0x48] sm:$0xff] %vm814, %v1173
        %1189 = vst.msk [vmem:[%s1178 + $0x50] sm:$0xff] %vm814, %v1174
        %1190 = vst.msk [vmem:[%s1178 + $0x58] sm:$0xff] %vm814, %v1175
        %1191 = vst.msk [vmem:[%s1178 + $0x60] sm:$0xff] %vm814, %v1176
        %1192 = vst.msk [vmem:[%s1178 + $0x68] sm:$0xff] %vm814, %v1177
        %p1193 = scmp.lt.s32.totalorder %s22, 1
        %s1194 = scalar_select %p1193, %s22, 1
        %s1195 = smul.addr %s1194, 42
        %s1196 = smul.addr %s1195, 8
        %s1197 = scalar_lea.vmem %s5, %s1196
        // Predicated region
        $region61: #{id_loss_forward.3} parent=39 // pred_check
          %p1198 = pneg %p150
        $region62: #{id_loss_forward.3} parent=39 // pred_check_branch
          %1200 = sbr.rel (%p1198) target = $region64
        $region63: #{id_loss_forward.3} parent=39 // pred_region
          _
        $region64: #{id_loss_forward.3} parent=39 // pred_fallthru
          _
      $region40: #{id_loss_forward.3} parent=5 // pred_fallthru
        _
      %p1201 = scmp.le.s32.totalorder 2, %s17
      // Predicated region
      $region65: #{id_loss_forward.3} parent=5 // pred_check
        %p1202 = pneg %p1201
      $region66: #{id_loss_forward.3} parent=5 // pred_check_branch
        %1204 = sbr.rel (%p1202) target = $region68
      $region67: #{id_loss_forward.3} parent=5 // pred_region
        %s1205 = ssub.s32 %s17, 2
        // Predicated region
        $region69: #{id_loss_forward.3} parent=67 // pred_check
          %p1206 = pneg %p156
        $region70: #{id_loss_forward.3} parent=67 // pred_check_branch
          %1208 = sbr.rel (%p1206) target = $region72
        $region71: #{id_loss_forward.3} parent=67 // pred_region
          %p1209 = scmp.lt.s32.totalorder %s23, 1
          %s1210 = scalar_select %p1209, %s23, 1
          %s1211 = smul.addr %s1210, 42
          %s1212 = smul.addr %s1211, 8
          %s1213 = scalar_lea.vmem %s5, %s1212
        $region72: #{id_loss_forward.3} parent=67 // pred_fallthru
          _
      $region68: #{id_loss_forward.3} parent=5 // pred_fallthru
        _
    $region6: #{id_loss_forward.3} parent=1 // loop_footer
      %s21 = sadd.s32 1, %s17
    $region7: #{id_loss_forward.3} parent=1 // loop_footer_branch
      %16 = sbr.rel target = $region3
    $region8: #{id_loss_forward.3} parent=1 // loop_exit
      _
    %1214 = vsyncpa [#allocation3], 1
    %s1215 = scalar_lea.sflag [#allocation3], 1
    %1216 = vsyncpa %s1215, 1
    %1217 = vsyncpa [#allocation6], 1
    %1218 = vsyncpa [#allocation4], 1
    %s1219 = scalar_lea.sflag [#allocation4], 1
    %1220 = vsyncpa %s1219, 1
    %1221 = vsyncpa [#allocation10], 1

// kernel: id_loss_forward.4
$region0: #{id_loss_forward.4}
  #allocation0 [shape = 'u32[]', space=smem, size = 0x4, offset = 0x4, fixed_abs, tag = 'smem constant byte address 0x4 - core index']
  #allocation1 [shape = 'u32[144,128]{1,0:T(1,128)}', space=vmem, size = 0x12000, scoped, tag = 'internal scratch']
  #allocation2 [shape = 'f32[49,64]{1,0:T(8,128)}', space=vmem, size = 0x7000, scoped, tag = 'scratch operand']
  %s0 = inlined_call_operand.vmem [shape: bf16[2,12544,32], index: 0, kind: input, shape index: {}]
  %s1 = inlined_call_operand.vmem [shape: bf16[32,64], index: 1, kind: input, shape index: {}]
  %s2 = inlined_call_operand.vmem [shape: f32[1,64], index: 2, kind: input, shape index: {}]
  %s3 = inlined_call_operand.vmem [shape: f32[1,64], index: 3, kind: input, shape index: {}]
  %s4 = inlined_call_operand.vmem [shape: bf16[49,12544], index: 4, kind: input, shape index: {}]
  %s5 = inlined_call_operand.vmem [shape: f32[2,49,64], index: 5, kind: output, shape index: {}]
  %s6 = sld [smem:[#allocation0]]
  $region84: #{id_loss_forward.4} parent=0
    _
  %s8 = ssub.s32 1, %s6
  %s9 = scalar_select 0, %s8, %s6
  $region1: #{id_loss_forward.4} parent=0
    #allocation3 [shape = 'u8[401408]{0}', space=vmem, size = 0x62000, scoped, tag = 'input window, operand 4']
    loop: start=0, step=1, limit=16
    $region2: #{id_loss_forward.4} parent=1 // loop_pre_header
      _
    $region3: #{id_loss_forward.4} parent=1 // loop_header
      %s11 = sphi 0, %s15
      %p12 = scmp.ge.s32.totalorder %s11, 16
      %s18 = sphi 0, %s30
      %s19 = sphi 0, %s26
      %s20 = sphi 0, %s18
      %s21 = sphi 0, %s19
      %s22 = sphi 0, %s20
      %s23 = sphi 0, %s21
      %s35 = sphi 0, %s37
      %s38 = sphi 0, %s35
      %s39 = sphi 0, %s38
      %s55 = sphi 0, %s39
      %s59 = sphi 0, %s59
      %s61 = sphi 0, %s59
      %s62 = sphi 0, %s61
      %s76 = sphi 0, %s62
      %s80 = sphi 0, %s80
      %s82 = sphi 0, %s80
      %s83 = sphi 0, %s82
      %s97 = sphi 0, %s83
      %s101 = sphi 0, %s101
      %s103 = sphi 0, %s101
      %s104 = sphi 0, %s103
      %s118 = sphi 0, %s104
      %s124 = sphi 0, %s126
      %s127 = sphi 0, %s124
      %s128 = sphi 0, %s127
      %s144 = sphi 0, %s128
      %s150 = sphi 0, %s152
      %s153 = sphi 0, %s150
      %s154 = sphi 0, %s153
      %s170 = sphi 0, %s154
    $region4: #{id_loss_forward.4} parent=1 // loop_header_branch
      %14 = sbr.rel (%p12) target = $region8
    $region5: #{id_loss_forward.4} parent=1 // loop_body
      %s16 = ssub.s32 %s11, 1
      %s17 = ssub.s32 %s11, 2
      %s24 = sadd.s32 1, %s19
      %p25 = scmp.ge.s32.totalorder %s24, 7
      %s26 = scalar_select %p25, 0, %s24
      %s27 = sadd.s32 1, %s18
      %s28 = scalar_select %p25, %s27, %s18
      %p29 = scmp.ge.s32.totalorder %s28, 2
      %s30 = scalar_select %p29, 0, %s28
      %s31 = ssub.s32 %s18, %s30
      %s32 = ssub.s32 %s19, %s26
      %s33 = sor.u32 %s31, %s32
      %p34 = scmp.eq.s32.totalorder %s33, 0
      %s36 = sadd.s32 %s35, 1
      %s37 = scalar_select %p34, %s35, %s36
      %p40 = pneg %p34
      %p41 = scmp.eq.s32.totalorder %s11, 13
      %p42 = por %p40, %p41
      %p43 = scmp.ne.s32.totalorder %s35, %s38
      %p44 = scmp.eq.s32.totalorder %s11, 0
      %p45 = por %p43, %p44
      %p46 = scmp.ne.s32.totalorder %s35, %s38
      %p47 = scmp.eq.s32.totalorder %s16, 13
      %p48 = por %p46, %p47
      %p49 = scmp.ne.s32.totalorder %s38, %s39
      %p50 = scmp.eq.s32.totalorder %s16, 0
      %p51 = por %p49, %p50
      %p52 = scmp.ne.s32.totalorder %s38, %s39
      %p53 = scmp.eq.s32.totalorder %s17, 13
      %p54 = por %p52, %p53
      %p56 = scmp.ne.s32.totalorder %s39, %s55
      %p57 = scmp.eq.s32.totalorder %s17, 0
      %p58 = por %p56, %p57
      %s60 = sadd.s32 %s59, 1
      %p63 = scmp.eq.s32.totalorder %s11, 13
      %p64 = scmp.ne.s32.totalorder %s59, %s61
      %p65 = scmp.eq.s32.totalorder %s11, 0
      %p66 = por %p64, %p65
      %p67 = scmp.ne.s32.totalorder %s59, %s61
      %p68 = scmp.eq.s32.totalorder %s16, 13
      %p69 = por %p67, %p68
      %p70 = scmp.ne.s32.totalorder %s61, %s62
      %p71 = scmp.eq.s32.totalorder %s16, 0
      %p72 = por %p70, %p71
      %p73 = scmp.ne.s32.totalorder %s61, %s62
      %p74 = scmp.eq.s32.totalorder %s17, 13
      %p75 = por %p73, %p74
      %p77 = scmp.ne.s32.totalorder %s62, %s76
      %p78 = scmp.eq.s32.totalorder %s17, 0
      %p79 = por %p77, %p78
      %s81 = sadd.s32 %s80, 1
      %p84 = scmp.eq.s32.totalorder %s11, 13
      %p85 = scmp.ne.s32.totalorder %s80, %s82
      %p86 = scmp.eq.s32.totalorder %s11, 0
      %p87 = por %p85, %p86
      %p88 = scmp.ne.s32.totalorder %s80, %s82
      %p89 = scmp.eq.s32.totalorder %s16, 13
      %p90 = por %p88, %p89
      %p91 = scmp.ne.s32.totalorder %s82, %s83
      %p92 = scmp.eq.s32.totalorder %s16, 0
      %p93 = por %p91, %p92
      %p94 = scmp.ne.s32.totalorder %s82, %s83
      %p95 = scmp.eq.s32.totalorder %s17, 13
      %p96 = por %p94, %p95
      %p98 = scmp.ne.s32.totalorder %s83, %s97
      %p99 = scmp.eq.s32.totalorder %s17, 0
      %p100 = por %p98, %p99
      %s102 = sadd.s32 %s101, 1
      %p105 = scmp.eq.s32.totalorder %s11, 13
      %p106 = scmp.ne.s32.totalorder %s101, %s103
      %p107 = scmp.eq.s32.totalorder %s11, 0
      %p108 = por %p106, %p107
      %p109 = scmp.ne.s32.totalorder %s101, %s103
      %p110 = scmp.eq.s32.totalorder %s16, 13
      %p111 = por %p109, %p110
      %p112 = scmp.ne.s32.totalorder %s103, %s104
      %p113 = scmp.eq.s32.totalorder %s16, 0
      %p114 = por %p112, %p113
      %p115 = scmp.ne.s32.totalorder %s103, %s104
      %p116 = scmp.eq.s32.totalorder %s17, 13
      %p117 = por %p115, %p116
      %p119 = scmp.ne.s32.totalorder %s104, %s118
      %p120 = scmp.eq.s32.totalorder %s17, 0
      %p121 = por %p119, %p120
      %s122 = ssub.s32 %s19, %s26
      %p123 = scmp.eq.s32.totalorder %s122, 0
      %s125 = sadd.s32 %s124, 1
      %s126 = scalar_select %p123, %s124, %s125
      %p129 = pneg %p123
      %p130 = scmp.eq.s32.totalorder %s11, 13
      %p131 = por %p129, %p130
      %p132 = scmp.ne.s32.totalorder %s124, %s127
      %p133 = scmp.eq.s32.totalorder %s11, 0
      %p134 = por %p132, %p133
      %p135 = scmp.ne.s32.totalorder %s124, %s127
      %p136 = scmp.eq.s32.totalorder %s16, 13
      %p137 = por %p135, %p136
      %p138 = scmp.ne.s32.totalorder %s127, %s128
      %p139 = scmp.eq.s32.totalorder %s16, 0
      %p140 = por %p138, %p139
      %p141 = scmp.ne.s32.totalorder %s127, %s128
      %p142 = scmp.eq.s32.totalorder %s17, 13
      %p143 = por %p141, %p142
      %p145 = scmp.ne.s32.totalorder %s128, %s144
      %p146 = scmp.eq.s32.totalorder %s17, 0
      %p147 = por %p145, %p146
      %s148 = ssub.s32 %s18, %s30
      %p149 = scmp.eq.s32.totalorder %s148, 0
      %s151 = sadd.s32 %s150, 1
      %s152 = scalar_select %p149, %s150, %s151
      %p155 = pneg %p149
      %p156 = scmp.eq.s32.totalorder %s11, 13
      %p157 = por %p155, %p156
      %p158 = scmp.ne.s32.totalorder %s150, %s153
      %p159 = scmp.eq.s32.totalorder %s11, 0
      %p160 = por %p158, %p159
      %p161 = scmp.ne.s32.totalorder %s150, %s153
      %p162 = scmp.eq.s32.totalorder %s16, 13
      %p163 = por %p161, %p162
      %p164 = scmp.ne.s32.totalorder %s153, %s154
      %p165 = scmp.eq.s32.totalorder %s16, 0
      %p166 = por %p164, %p165
      %p167 = scmp.ne.s32.totalorder %s153, %s154
      %p168 = scmp.eq.s32.totalorder %s17, 13
      %p169 = por %p167, %p168
      %p171 = scmp.ne.s32.totalorder %s154, %s170
      %p172 = scmp.eq.s32.totalorder %s17, 0
      %p173 = por %p171, %p172
      %p174 = scmp.le.s32.totalorder 1, %s11
      %p175 = scmp.lt.s32.totalorder %s11, 15
      %p176 = pnand %p174, %p175
      %p177 = pneg %p176
      // Predicated region
      $region9: #{id_loss_forward.4} parent=5 // pred_check
        _
      $region10: #{id_loss_forward.4} parent=5 // pred_check_branch
        %179 = sbr.rel (%p176) target = $region12
      $region11: #{id_loss_forward.4} parent=5 // pred_region
        %s180 = ssub.s32 %s11, 1
        // Predicated region
        $region13: #{id_loss_forward.4} parent=11 // pred_check
          %p181 = pneg %p72
        $region14: #{id_loss_forward.4} parent=11 // pred_check_branch
          %183 = sbr.rel (%p181) target = $region16
        $region15: #{id_loss_forward.4} parent=11 // pred_region
          _
        $region16: #{id_loss_forward.4} parent=11 // pred_fallthru
          _
        // Predicated region
        $region17: #{id_loss_forward.4} parent=11 // pred_check
          %p184 = pneg %p93
        $region18: #{id_loss_forward.4} parent=11 // pred_check_branch
          %186 = sbr.rel (%p184) target = $region20
        $region19: #{id_loss_forward.4} parent=11 // pred_region
          _
        $region20: #{id_loss_forward.4} parent=11 // pred_fallthru
          _
        // Predicated region
        $region21: #{id_loss_forward.4} parent=11 // pred_check
          %p187 = pneg %p114
        $region22: #{id_loss_forward.4} parent=11 // pred_check_branch
          %189 = sbr.rel (%p187) target = $region24
        $region23: #{id_loss_forward.4} parent=11 // pred_region
          _
        $region24: #{id_loss_forward.4} parent=11 // pred_fallthru
          _
      $region12: #{id_loss_forward.4} parent=5 // pred_fallthru
        _
      %p190 = scmp.lt.s32.totalorder %s11, 14
      // Predicated region
      $region25: #{id_loss_forward.4} parent=5 // pred_check
        %p191 = pneg %p190
      $region26: #{id_loss_forward.4} parent=5 // pred_check_branch
        %193 = sbr.rel (%p191) target = $region28
      $region27: #{id_loss_forward.4} parent=5 // pred_region
        // Predicated region
        $region29: #{id_loss_forward.4} parent=27 // pred_check
          %p194 = pneg %p45
        $region30: #{id_loss_forward.4} parent=27 // pred_check_branch
          %196 = sbr.rel (%p194) target = $region32
        $region31: #{id_loss_forward.4} parent=27 // pred_region
          %s197 = smul.u32 224, %s19
          %p198 = scmp.lt.s32.totalorder %s18, 1
          %s199 = scalar_select %p198, %s18, 1
          %p200 = scmp.lt.s32.totalorder %s197, 1567
          %s201 = scalar_select %p200, %s197, 1567
          %s202 = smul.addr %s199, 1568
          %s203 = sadd.s32 %s201, %s202
          %s204 = smul.addr %s203, 4
          %s205 = scalar_lea.vmem %s0, %s204
          %s206 = smul.u32 224, %s19
        $region32: #{id_loss_forward.4} parent=27 // pred_fallthru
          _
        // Predicated region
        $region33: #{id_loss_forward.4} parent=27 // pred_check
          %p207 = pneg %p134
        $region34: #{id_loss_forward.4} parent=27 // pred_check_branch
          %209 = sbr.rel (%p207) target = $region36
        $region35: #{id_loss_forward.4} parent=27 // pred_region
          %s210 = sand.u32 %s124, 1
          %s211 = sand.u32 %s124, 1
          %s212 = smul.addr %s211, 392
          %s213 = scalar_lea.vmem [#allocation3], %s212
          %s214 = smul.u32 14, %s19
          %s215 = smul.addr %s214, 4
          %s216 = scalar_lea.vmem %s4, %s215
          // Predicated region
          $region37: #{id_loss_forward.4} parent=35 // pred_check
            _
          $region38: #{id_loss_forward.4} parent=35 // pred_check_branch
            %218 = sbr.rel (0) target = $region40
          $region39: #{id_loss_forward.4} parent=35 // pred_region
            // Predicated region
            $region41: #{id_loss_forward.4} parent=39 // pred_check
              _
            $region42: #{id_loss_forward.4} parent=39 // pred_check_branch
              %220 = sbr.rel (0) target = $region44
            $region43: #{id_loss_forward.4} parent=39 // pred_region
              loop: start=0, step=1, limit=1
              $region45: #{id_loss_forward.4} parent=43 // loop_pre_header
                _
              $region46: #{id_loss_forward.4} parent=43 // loop_header
                %s222 = sphi 0, %s226
                %p223 = scmp.ge.s32.totalorder %s222, 1
                %s227 = sphi %s216, %s216
                %s228 = sphi %s213, %s213
              $region47: #{id_loss_forward.4} parent=43 // loop_header_branch
                %225 = sbr.rel (%p223) target = $region51
              $region48: #{id_loss_forward.4} parent=43 // loop_body
                %v229 = vld [vmem:[%s227] sm:$0xff]
                %230 = vst [vmem:[%s228] sm:$0xff] %v229
                %v231 = vld [vmem:[%s227 + $0x8] sm:$0xff]
                %232 = vst [vmem:[%s228 + $0x8] sm:$0xff] %v231
                %v233 = vld [vmem:[%s227 + $0x10] sm:$0xff]
                %234 = vst [vmem:[%s228 + $0x10] sm:$0xff] %v233
                %v235 = vld [vmem:[%s227 + $0x18] sm:$0xff]
                %236 = vst [vmem:[%s228 + $0x18] sm:$0xff] %v235
                %v237 = vld [vmem:[%s227 + $0x20] sm:$0xff]
                %238 = vst [vmem:[%s228 + $0x20] sm:$0xff] %v237
                %v239 = vld [vmem:[%s227 + $0x28] sm:$0xff]
                %240 = vst [vmem:[%s228 + $0x28] sm:$0xff] %v239
                %v241 = vld [vmem:[%s227 + $0x30] sm:$0xff]
                %242 = vst [vmem:[%s228 + $0x30] sm:$0xff] %v241
                %v243 = vld [vmem:[%s227 + $0x188] sm:$0xff]
                %244 = vst [vmem:[%s228 + $0x38] sm:$0xff] %v243
                %v245 = vld [vmem:[%s227 + $0x190] sm:$0xff]
                %246 = vst [vmem:[%s228 + $0x40] sm:$0xff] %v245
                %v247 = vld [vmem:[%s227 + $0x198] sm:$0xff]
                %248 = vst [vmem:[%s228 + $0x48] sm:$0xff] %v247
                %v249 = vld [vmem:[%s227 + $0x1a0] sm:$0xff]
                %250 = vst [vmem:[%s228 + $0x50] sm:$0xff] %v249
                %v251 = vld [vmem:[%s227 + $0x1a8] sm:$0xff]
                %252 = vst [vmem:[%s228 + $0x58] sm:$0xff] %v251
                %v253 = vld [vmem:[%s227 + $0x1b0] sm:$0xff]
                %254 = vst [vmem:[%s228 + $0x60] sm:$0xff] %v253
                %v255 = vld [vmem:[%s227 + $0x1b8] sm:$0xff]
                %256 = vst [vmem:[%s228 + $0x68] sm:$0xff] %v255
                %v257 = vld [vmem:[%s227 + $0x310] sm:$0xff]
                %258 = vst [vmem:[%s228 + $0x70] sm:$0xff] %v257
                %v259 = vld [vmem:[%s227 + $0x318] sm:$0xff]
                %260 = vst [vmem:[%s228 + $0x78] sm:$0xff] %v259
                %v261 = vld [vmem:[%s227 + $0x320] sm:$0xff]
                %262 = vst [vmem:[%s228 + $0x80] sm:$0xff] %v261
                %v263 = vld [vmem:[%s227 + $0x328] sm:$0xff]
                %264 = vst [vmem:[%s228 + $0x88] sm:$0xff] %v263
                %v265 = vld [vmem:[%s227 + $0x330] sm:$0xff]
                %266 = vst [vmem:[%s228 + $0x90] sm:$0xff] %v265
                %v267 = vld [vmem:[%s227 + $0x338] sm:$0xff]
                %268 = vst [vmem:[%s228 + $0x98] sm:$0xff] %v267
                %v269 = vld [vmem:[%s227 + $0x340] sm:$0xff]
                %270 = vst [vmem:[%s228 + $0xa0] sm:$0xff] %v269
                %v271 = vld [vmem:[%s227 + $0x498] sm:$0xff]
                %272 = vst [vmem:[%s228 + $0xa8] sm:$0xff] %v271
                %v273 = vld [vmem:[%s227 + $0x4a0] sm:$0xff]
                %274 = vst [vmem:[%s228 + $0xb0] sm:$0xff] %v273
                %v275 = vld [vmem:[%s227 + $0x4a8] sm:$0xff]
                %276 = vst [vmem:[%s228 + $0xb8] sm:$0xff] %v275
                %v277 = vld [vmem:[%s227 + $0x4b0] sm:$0xff]
                %278 = vst [vmem:[%s228 + $0xc0] sm:$0xff] %v277
                %v279 = vld [vmem:[%s227 + $0x4b8] sm:$0xff]
                %280 = vst [vmem:[%s228 + $0xc8] sm:$0xff] %v279
                %v281 = vld [vmem:[%s227 + $0x4c0] sm:$0xff]
                %282 = vst [vmem:[%s228 + $0xd0] sm:$0xff] %v281
                %v283 = vld [vmem:[%s227 + $0x4c8] sm:$0xff]
                %284 = vst [vmem:[%s228 + $0xd8] sm:$0xff] %v283
                %v285 = vld [vmem:[%s227 + $0x620] sm:$0xff]
                %286 = vst [vmem:[%s228 + $0xe0] sm:$0xff] %v285
                %v287 = vld [vmem:[%s227 + $0x628] sm:$0xff]
                %288 = vst [vmem:[%s228 + $0xe8] sm:$0xff] %v287
                %v289 = vld [vmem:[%s227 + $0x630] sm:$0xff]
                %290 = vst [vmem:[%s228 + $0xf0] sm:$0xff] %v289
                %v291 = vld [vmem:[%s227 + $0x638] sm:$0xff]
                %292 = vst [vmem:[%s228 + $0xf8] sm:$0xff] %v291
                %v293 = vld [vmem:[%s227 + $0x640] sm:$0xff]
                %294 = vst [vmem:[%s228 + $0x100] sm:$0xff] %v293
                %v295 = vld [vmem:[%s227 + $0x648] sm:$0xff]
                %296 = vst [vmem:[%s228 + $0x108] sm:$0xff] %v295
                %v297 = vld [vmem:[%s227 + $0x650] sm:$0xff]
                %298 = vst [vmem:[%s228 + $0x110] sm:$0xff] %v297
                %v299 = vld [vmem:[%s227 + $0x7a8] sm:$0xff]
                %300 = vst [vmem:[%s228 + $0x118] sm:$0xff] %v299
                %v301 = vld [vmem:[%s227 + $0x7b0] sm:$0xff]
                %302 = vst [vmem:[%s228 + $0x120] sm:$0xff] %v301
                %v303 = vld [vmem:[%s227 + $0x7b8] sm:$0xff]
                %304 = vst [vmem:[%s228 + $0x128] sm:$0xff] %v303
                %v305 = vld [vmem:[%s227 + $0x7c0] sm:$0xff]
                %306 = vst [vmem:[%s228 + $0x130] sm:$0xff] %v305
                %v307 = vld [vmem:[%s227 + $0x7c8] sm:$0xff]
                %308 = vst [vmem:[%s228 + $0x138] sm:$0xff] %v307
                %v309 = vld [vmem:[%s227 + $0x7d0] sm:$0xff]
                %310 = vst [vmem:[%s228 + $0x140] sm:$0xff] %v309
                %v311 = vld [vmem:[%s227 + $0x7d8] sm:$0xff]
                %312 = vst [vmem:[%s228 + $0x148] sm:$0xff] %v311
                %v313 = vld [vmem:[%s227 + $0x930] sm:$0xff]
                %314 = vst [vmem:[%s228 + $0x150] sm:$0xff] %v313
                %v315 = vld [vmem:[%s227 + $0x938] sm:$0xff]
                %316 = vst [vmem:[%s228 + $0x158] sm:$0xff] %v315
                %v317 = vld [vmem:[%s227 + $0x940] sm:$0xff]
                %318 = vst [vmem:[%s228 + $0x160] sm:$0xff] %v317
                %v319 = vld [vmem:[%s227 + $0x948] sm:$0xff]
                %320 = vst [vmem:[%s228 + $0x168] sm:$0xff] %v319
                %v321 = vld [vmem:[%s227 + $0x950] sm:$0xff]
                %322 = vst [vmem:[%s228 + $0x170] sm:$0xff] %v321
                %v323 = vld [vmem:[%s227 + $0x958] sm:$0xff]
                %324 = vst [vmem:[%s228 + $0x178] sm:$0xff] %v323
                %v325 = vld [vmem:[%s227 + $0x960] sm:$0xff]
                %326 = vst [vmem:[%s228 + $0x180] sm:$0xff] %v325
              $region49: #{id_loss_forward.4} parent=43 // loop_footer
                %s226 = sadd.s32 1, %s222
              $region50: #{id_loss_forward.4} parent=43 // loop_footer_branch
                %221 = sbr.rel target = $region46
              $region51: #{id_loss_forward.4} parent=43 // loop_exit
                _
            $region44: #{id_loss_forward.4} parent=39 // pred_fallthru
              _
            // Predicated region
            $region52: #{id_loss_forward.4} parent=39 // pred_check
              _
            $region53: #{id_loss_forward.4} parent=39 // pred_check_branch
              %328 = sbr.rel target = $region55
            $region54: #{id_loss_forward.4} parent=39 // pred_region
              _
            $region55: #{id_loss_forward.4} parent=39 // pred_fallthru
              _
          $region40: #{id_loss_forward.4} parent=35 // pred_fallthru
            _
          %329 = vnop
        $region36: #{id_loss_forward.4} parent=27 // pred_fallthru
          _
      $region28: #{id_loss_forward.4} parent=5 // pred_fallthru
        _
      %p330 = scmp.le.s32.totalorder 1, %s11
      %p331 = scmp.lt.s32.totalorder %s11, 15
      %p332 = pnand %p330, %p331
      %p333 = pneg %p332
      // Predicated region
      $region56: #{id_loss_forward.4} parent=5 // pred_check
        _
      $region57: #{id_loss_forward.4} parent=5 // pred_check_branch
        %335 = sbr.rel (%p332) target = $region59
      $region58: #{id_loss_forward.4} parent=5 // pred_region
        %s336 = ssub.s32 %s11, 1
        %s337 = sand.u32 %s127, 1
        %s338 = sand.u32 %s127, 1
        %s339 = smul.addr %s338, 392
        %s340 = scalar_lea.vmem [#allocation3], %s339
        // Predicated region
        $region60: #{id_loss_forward.4} parent=58 // pred_check
          %p341 = pneg %p140
        $region61: #{id_loss_forward.4} parent=58 // pred_check_branch
          %343 = sbr.rel (%p341) target = $region63
        $region62: #{id_loss_forward.4} parent=58 // pred_region
          _
        $region63: #{id_loss_forward.4} parent=58 // pred_fallthru
          _
        %s344 = smul.u32 224, %s21
        %p345 = scmp.lt.s32.totalorder %s20, 1
        %s346 = scalar_select %p345, %s20, 1
        %p347 = scmp.lt.s32.totalorder %s344, 1567
        %s348 = scalar_select %p347, %s344, 1567
        %s349 = smul.addr %s346, 1568
        %s350 = sadd.s32 %s348, %s349
        %s351 = smul.addr %s350, 4
        %s352 = scalar_lea.vmem %s0, %s351
        %p353 = pneg %p51
        %p354 = pneg %p48
        %p355 = pneg %p72
        %p356 = pneg %p69
        %p357 = pneg %p93
        %p358 = pneg %p90
        %p359 = pneg %p114
        %p360 = pneg %p111
        %s361 = sand.u32 %s127, 1
        %s362 = sand.u32 %s127, 1
        %s363 = smul.addr %s362, 392
        %s364 = scalar_lea.vmem [#allocation3], %s363
        %p365 = pneg %p140
        %p366 = pneg %p137
        %p367 = pneg %p166
        %p368 = pneg %p163
        %p369 = scmp.lt.s32.totalorder %s20, 1
        %s370 = scalar_select %p369, %s20, 1
        %s371 = smul.addr %s370, 7
        %s372 = smul.addr %s371, 8
        %s373 = scalar_lea.vmem %s5, %s372
        %s374 = smul.u32 224, %s21
        %p375 = scmp.lt.s32.totalorder %s20, 1
        %s376 = scalar_select %p375, %s20, 1
        %p377 = scmp.lt.s32.totalorder %s374, 1567
        %s378 = scalar_select %p377, %s374, 1567
        %s379 = smul.addr %s376, 1568
        %s380 = sadd.s32 %s378, %s379
        %s381 = smul.addr %s380, 4
        %s382 = scalar_lea.vmem %s0, %s381
        %s383 = smul.u32 224, %s21
        %s384 = smul.u32 14, %s21
        %p385 = scmp.lt.s32.totalorder %s20, 1
        %s386 = scalar_select %p385, %s20, 1
        %s387 = smul.addr %s386, 7
        %s388 = smul.addr %s387, 8
        %s389 = scalar_lea.vmem %s5, %s388
        %p391 = scmp.eq.s32.totalorder %s21, 0
        // Predicated region
        $region64: #{id_loss_forward.4} parent=58 // pred_check
          %p392 = pneg %p391
        $region65: #{id_loss_forward.4} parent=58 // pred_check_branch
          %394 = sbr.rel (%p392) target = $region67
        $region66: #{id_loss_forward.4} parent=58 // pred_region
          %vm395 = vcmask 523264
          %396 = vst.msk [vmem:[#allocation2] sm:$0xff] %vm395, 0.0
          %397 = vst.msk [vmem:[#allocation2 + $0x8] sm:$0xff] %vm395, 0.0
          %398 = vst.msk [vmem:[#allocation2 + $0x10] sm:$0xff] %vm395, 0.0
          %399 = vst.msk [vmem:[#allocation2 + $0x18] sm:$0xff] %vm395, 0.0
          %400 = vst.msk [vmem:[#allocation2 + $0x20] sm:$0xff] %vm395, 0.0
          %401 = vst.msk [vmem:[#allocation2 + $0x28] sm:$0xff] %vm395, 0.0
          %vm402 = vcmask 516096
          %403 = vst.msk [vmem:[#allocation2 + $0x30] sm:$0x1] %vm402, 0.0
        $region67: #{id_loss_forward.4} parent=58 // pred_fallthru
          _
        %v404 = vld [vmem:[%s382] sm:$0xf]
        %v405 = vld [vmem:[%s382 + $0x4] sm:$0xf]
        %v406 = vld [vmem:[%s382 + $0x8] sm:$0xf]
        %v407 = vld [vmem:[%s382 + $0xc] sm:$0xf]
        %v408 = vld [vmem:[%s382 + $0x10] sm:$0xf]
        %v409 = vld [vmem:[%s382 + $0x14] sm:$0xf]
        %v410 = vld [vmem:[%s382 + $0x18] sm:$0xf]
        %v411 = vld [vmem:[%s382 + $0x1c] sm:$0xf]
        %v412 = vld [vmem:[%s382 + $0x20] sm:$0xf]
        %v413 = vld [vmem:[%s382 + $0x24] sm:$0xf]
        %v414 = vld [vmem:[%s382 + $0x28] sm:$0xf]
        %v415 = vld [vmem:[%s382 + $0x2c] sm:$0xf]
        %v416 = vld [vmem:[%s382 + $0x30] sm:$0xf]
        %v417 = vld [vmem:[%s382 + $0x34] sm:$0xf]
        %v418 = vld [vmem:[%s382 + $0x38] sm:$0xf]
        %v419 = vld [vmem:[%s382 + $0x3c] sm:$0xf]
        %v420 = vld [vmem:[%s382 + $0x40] sm:$0xf]
        %v421 = vld [vmem:[%s382 + $0x44] sm:$0xf]
        %v422 = vld [vmem:[%s382 + $0x48] sm:$0xf]
        %v423 = vld [vmem:[%s382 + $0x4c] sm:$0xf]
        %v424 = vld [vmem:[%s382 + $0x50] sm:$0xf]
        %v425 = vld [vmem:[%s382 + $0x54] sm:$0xf]
        %v426 = vld [vmem:[%s382 + $0x58] sm:$0xf]
        %v427 = vld [vmem:[%s382 + $0x5c] sm:$0xf]
        %v428 = vld [vmem:[%s382 + $0x60] sm:$0xf]
        %v429 = vld [vmem:[%s382 + $0x64] sm:$0xf]
        %v430 = vld [vmem:[%s382 + $0x68] sm:$0xf]
        %v431 = vld [vmem:[%s382 + $0x6c] sm:$0xf]
        %v432 = vld [vmem:[%s382 + $0x70] sm:$0xf]
        %v433 = vld [vmem:[%s382 + $0x74] sm:$0xf]
        %v434 = vld [vmem:[%s382 + $0x78] sm:$0xf]
        %v435 = vld [vmem:[%s382 + $0x7c] sm:$0xf]
        %v436 = vld [vmem:[%s382 + $0x80] sm:$0xf]
        %v437 = vld [vmem:[%s382 + $0x84] sm:$0xf]
        %v438 = vld [vmem:[%s382 + $0x88] sm:$0xf]
        %v439 = vld [vmem:[%s382 + $0x8c] sm:$0xf]
        %v440 = vld [vmem:[%s382 + $0x90] sm:$0xf]
        %v441 = vld [vmem:[%s382 + $0x94] sm:$0xf]
        %v442 = vld [vmem:[%s382 + $0x98] sm:$0xf]
        %v443 = vld [vmem:[%s382 + $0x9c] sm:$0xf]
        %v444 = vld [vmem:[%s382 + $0xa0] sm:$0xf]
        %v445 = vld [vmem:[%s382 + $0xa4] sm:$0xf]
        %v446 = vld [vmem:[%s382 + $0xa8] sm:$0xf]
        %v447 = vld [vmem:[%s382 + $0xac] sm:$0xf]
        %v448 = vld [vmem:[%s382 + $0xb0] sm:$0xf]
        %v449 = vld [vmem:[%s382 + $0xb4] sm:$0xf]
        %v450 = vld [vmem:[%s382 + $0xb8] sm:$0xf]
        %v451 = vld [vmem:[%s382 + $0xbc] sm:$0xf]
        %v452 = vld [vmem:[%s382 + $0xc0] sm:$0xf]
        %v453 = vld [vmem:[%s382 + $0xc4] sm:$0xf]
        %v454 = vld [vmem:[%s382 + $0xc8] sm:$0xf]
        %v455 = vld [vmem:[%s382 + $0xcc] sm:$0xf]
        %v456 = vld [vmem:[%s382 + $0xd0] sm:$0xf]
        %v457 = vld [vmem:[%s382 + $0xd4] sm:$0xf]
        %v458 = vld [vmem:[%s382 + $0xd8] sm:$0xf]
        %v459 = vld [vmem:[%s382 + $0xdc] sm:$0xf]
        %v460 = vld [vmem:[%s382 + $0xe0] sm:$0xf]
        %v461 = vld [vmem:[%s382 + $0xe4] sm:$0xf]
        %v462 = vld [vmem:[%s382 + $0xe8] sm:$0xf]
        %v463 = vld [vmem:[%s382 + $0xec] sm:$0xf]
        %v464 = vld [vmem:[%s382 + $0xf0] sm:$0xf]
        %v465 = vld [vmem:[%s382 + $0xf4] sm:$0xf]
        %v466 = vld [vmem:[%s382 + $0xf8] sm:$0xf]
        %v467 = vld [vmem:[%s382 + $0xfc] sm:$0xf]
        %v468 = vld [vmem:[%s382 + $0x100] sm:$0xf]
        %v469 = vld [vmem:[%s382 + $0x104] sm:$0xf]
        %v470 = vld [vmem:[%s382 + $0x108] sm:$0xf]
        %v471 = vld [vmem:[%s382 + $0x10c] sm:$0xf]
        %v472 = vld [vmem:[%s382 + $0x110] sm:$0xf]
        %v473 = vld [vmem:[%s382 + $0x114] sm:$0xf]
        %v474 = vld [vmem:[%s382 + $0x118] sm:$0xf]
        %v475 = vld [vmem:[%s382 + $0x11c] sm:$0xf]
        %v476 = vld [vmem:[%s382 + $0x120] sm:$0xf]
        %v477 = vld [vmem:[%s382 + $0x124] sm:$0xf]
        %v478 = vld [vmem:[%s382 + $0x128] sm:$0xf]
        %v479 = vld [vmem:[%s382 + $0x12c] sm:$0xf]
        %v480 = vld [vmem:[%s382 + $0x130] sm:$0xf]
        %v481 = vld [vmem:[%s382 + $0x134] sm:$0xf]
        %v482 = vld [vmem:[%s382 + $0x138] sm:$0xf]
        %v483 = vld [vmem:[%s382 + $0x13c] sm:$0xf]
        %v484 = vld [vmem:[%s382 + $0x140] sm:$0xf]
        %v485 = vld [vmem:[%s382 + $0x144] sm:$0xf]
        %v486 = vld [vmem:[%s382 + $0x148] sm:$0xf]
        %v487 = vld [vmem:[%s382 + $0x14c] sm:$0xf]
        %v488 = vld [vmem:[%s382 + $0x150] sm:$0xf]
        %v489 = vld [vmem:[%s382 + $0x154] sm:$0xf]
        %v490 = vld [vmem:[%s382 + $0x158] sm:$0xf]
        %v491 = vld [vmem:[%s382 + $0x15c] sm:$0xf]
        %v492 = vld [vmem:[%s382 + $0x160] sm:$0xf]
        %v493 = vld [vmem:[%s382 + $0x164] sm:$0xf]
        %v494 = vld [vmem:[%s382 + $0x168] sm:$0xf]
        %v495 = vld [vmem:[%s382 + $0x16c] sm:$0xf]
        %v496 = vld [vmem:[%s382 + $0x170] sm:$0xf]
        %v497 = vld [vmem:[%s382 + $0x174] sm:$0xf]
        %v498 = vld [vmem:[%s382 + $0x178] sm:$0xf]
        %v499 = vld [vmem:[%s382 + $0x17c] sm:$0xf]
        %v500 = vld [vmem:[%s382 + $0x180] sm:$0xf]
        %v501 = vld [vmem:[%s382 + $0x184] sm:$0xf]
        %v502 = vld [vmem:[%s382 + $0x188] sm:$0xf]
        %v503 = vld [vmem:[%s382 + $0x18c] sm:$0xf]
        %v504 = vld [vmem:[%s382 + $0x190] sm:$0xf]
        %v505 = vld [vmem:[%s382 + $0x194] sm:$0xf]
        %v506 = vld [vmem:[%s382 + $0x198] sm:$0xf]
        %v507 = vld [vmem:[%s382 + $0x19c] sm:$0xf]
        %v508 = vld [vmem:[%s382 + $0x1a0] sm:$0xf]
        %v509 = vld [vmem:[%s382 + $0x1a4] sm:$0xf]
        %v510 = vld [vmem:[%s382 + $0x1a8] sm:$0xf]
        %v511 = vld [vmem:[%s382 + $0x1ac] sm:$0xf]
        %v512 = vld [vmem:[%s382 + $0x1b0] sm:$0xf]
        %v513 = vld [vmem:[%s382 + $0x1b4] sm:$0xf]
        %v514 = vld [vmem:[%s382 + $0x1b8] sm:$0xf]
        %v515 = vld [vmem:[%s382 + $0x1bc] sm:$0xf]
        %v516 = vld [vmem:[%s382 + $0x1c0] sm:$0xf]
        %v517 = vld [vmem:[%s382 + $0x1c4] sm:$0xf]
        %v518 = vld [vmem:[%s382 + $0x1c8] sm:$0xf]
        %v519 = vld [vmem:[%s382 + $0x1cc] sm:$0xf]
        %v520 = vld [vmem:[%s382 + $0x1d0] sm:$0xf]
        %v521 = vld [vmem:[%s382 + $0x1d4] sm:$0xf]
        %v522 = vld [vmem:[%s382 + $0x1d8] sm:$0xf]
        %v523 = vld [vmem:[%s382 + $0x1dc] sm:$0xf]
        %v524 = vld [vmem:[%s382 + $0x1e0] sm:$0xf]
        %v525 = vld [vmem:[%s382 + $0x1e4] sm:$0xf]
        %v526 = vld [vmem:[%s382 + $0x1e8] sm:$0xf]
        %v527 = vld [vmem:[%s382 + $0x1ec] sm:$0xf]
        %v528 = vld [vmem:[%s382 + $0x1f0] sm:$0xf]
        %v529 = vld [vmem:[%s382 + $0x1f4] sm:$0xf]
        %v530 = vld [vmem:[%s382 + $0x1f8] sm:$0xf]
        %v531 = vld [vmem:[%s382 + $0x1fc] sm:$0xf]
        %v532 = vld [vmem:[%s382 + $0x200] sm:$0xf]
        %v533 = vld [vmem:[%s382 + $0x204] sm:$0xf]
        %v534 = vld [vmem:[%s382 + $0x208] sm:$0xf]
        %v535 = vld [vmem:[%s382 + $0x20c] sm:$0xf]
        %v536 = vld [vmem:[%s382 + $0x210] sm:$0xf]
        %v537 = vld [vmem:[%s382 + $0x214] sm:$0xf]
        %v538 = vld [vmem:[%s382 + $0x218] sm:$0xf]
        %v539 = vld [vmem:[%s382 + $0x21c] sm:$0xf]
        %v540 = vld [vmem:[%s382 + $0x220] sm:$0xf]
        %v541 = vld [vmem:[%s382 + $0x224] sm:$0xf]
        %v542 = vld [vmem:[%s382 + $0x228] sm:$0xf]
        %v543 = vld [vmem:[%s382 + $0x22c] sm:$0xf]
        %v544 = vld [vmem:[%s382 + $0x230] sm:$0xf]
        %v545 = vld [vmem:[%s382 + $0x234] sm:$0xf]
        %v546 = vld [vmem:[%s382 + $0x238] sm:$0xf]
        %v547 = vld [vmem:[%s382 + $0x23c] sm:$0xf]
        %v548 = vld [vmem:[%s382 + $0x240] sm:$0xf]
        %v549 = vld [vmem:[%s382 + $0x244] sm:$0xf]
        %v550 = vld [vmem:[%s382 + $0x248] sm:$0xf]
        %v551 = vld [vmem:[%s382 + $0x24c] sm:$0xf]
        %v552 = vld [vmem:[%s382 + $0x250] sm:$0xf]
        %v553 = vld [vmem:[%s382 + $0x254] sm:$0xf]
        %v554 = vld [vmem:[%s382 + $0x258] sm:$0xf]
        %v555 = vld [vmem:[%s382 + $0x25c] sm:$0xf]
        %v556 = vld [vmem:[%s382 + $0x260] sm:$0xf]
        %v557 = vld [vmem:[%s382 + $0x264] sm:$0xf]
        %v558 = vld [vmem:[%s382 + $0x268] sm:$0xf]
        %v559 = vld [vmem:[%s382 + $0x26c] sm:$0xf]
        %v560 = vld [vmem:[%s382 + $0x270] sm:$0xf]
        %v561 = vld [vmem:[%s382 + $0x274] sm:$0xf]
        %v562 = vld [vmem:[%s382 + $0x278] sm:$0xf]
        %v563 = vld [vmem:[%s382 + $0x27c] sm:$0xf]
        %v564 = vld [vmem:[%s382 + $0x280] sm:$0xf]
        %v565 = vld [vmem:[%s382 + $0x284] sm:$0xf]
        %v566 = vld [vmem:[%s382 + $0x288] sm:$0xf]
        %v567 = vld [vmem:[%s382 + $0x28c] sm:$0xf]
        %v568 = vld [vmem:[%s382 + $0x290] sm:$0xf]
        %v569 = vld [vmem:[%s382 + $0x294] sm:$0xf]
        %v570 = vld [vmem:[%s382 + $0x298] sm:$0xf]
        %v571 = vld [vmem:[%s382 + $0x29c] sm:$0xf]
        %v572 = vld [vmem:[%s382 + $0x2a0] sm:$0xf]
        %v573 = vld [vmem:[%s382 + $0x2a4] sm:$0xf]
        %v574 = vld [vmem:[%s382 + $0x2a8] sm:$0xf]
        %v575 = vld [vmem:[%s382 + $0x2ac] sm:$0xf]
        %v576 = vld [vmem:[%s382 + $0x2b0] sm:$0xf]
        %v577 = vld [vmem:[%s382 + $0x2b4] sm:$0xf]
        %v578 = vld [vmem:[%s382 + $0x2b8] sm:$0xf]
        %v579 = vld [vmem:[%s382 + $0x2bc] sm:$0xf]
        %v580 = vld [vmem:[%s382 + $0x2c0] sm:$0xf]
        %v581 = vld [vmem:[%s382 + $0x2c4] sm:$0xf]
        %v582 = vld [vmem:[%s382 + $0x2c8] sm:$0xf]
        %v583 = vld [vmem:[%s382 + $0x2cc] sm:$0xf]
        %v584 = vld [vmem:[%s382 + $0x2d0] sm:$0xf]
        %v585 = vld [vmem:[%s382 + $0x2d4] sm:$0xf]
        %v586 = vld [vmem:[%s382 + $0x2d8] sm:$0xf]
        %v587 = vld [vmem:[%s382 + $0x2dc] sm:$0xf]
        %v588 = vld [vmem:[%s382 + $0x2e0] sm:$0xf]
        %v589 = vld [vmem:[%s382 + $0x2e4] sm:$0xf]
        %v590 = vld [vmem:[%s382 + $0x2e8] sm:$0xf]
        %v591 = vld [vmem:[%s382 + $0x2ec] sm:$0xf]
        %v592 = vld [vmem:[%s382 + $0x2f0] sm:$0xf]
        %v593 = vld [vmem:[%s382 + $0x2f4] sm:$0xf]
        %v594 = vld [vmem:[%s382 + $0x2f8] sm:$0xf]
        %v595 = vld [vmem:[%s382 + $0x2fc] sm:$0xf]
        %v596 = vld [vmem:[%s382 + $0x300] sm:$0xf]
        %v597 = vld [vmem:[%s382 + $0x304] sm:$0xf]
        %v598 = vld [vmem:[%s382 + $0x308] sm:$0xf]
        %v599 = vld [vmem:[%s382 + $0x30c] sm:$0xf]
        %v600 = vld [vmem:[%s382 + $0x310] sm:$0xf]
        %v601 = vld [vmem:[%s382 + $0x314] sm:$0xf]
        %v602 = vld [vmem:[%s382 + $0x318] sm:$0xf]
        %v603 = vld [vmem:[%s382 + $0x31c] sm:$0xf]
        %v604 = vld [vmem:[%s382 + $0x320] sm:$0xf]
        %v605 = vld [vmem:[%s382 + $0x324] sm:$0xf]
        %v606 = vld [vmem:[%s382 + $0x328] sm:$0xf]
        %v607 = vld [vmem:[%s382 + $0x32c] sm:$0xf]
        %v608 = vld [vmem:[%s382 + $0x330] sm:$0xf]
        %v609 = vld [vmem:[%s382 + $0x334] sm:$0xf]
        %v610 = vld [vmem:[%s382 + $0x338] sm:$0xf]
        %v611 = vld [vmem:[%s382 + $0x33c] sm:$0xf]
        %v612 = vld [vmem:[%s382 + $0x340] sm:$0xf]
        %v613 = vld [vmem:[%s382 + $0x344] sm:$0xf]
        %v614 = vld [vmem:[%s382 + $0x348] sm:$0xf]
        %v615 = vld [vmem:[%s382 + $0x34c] sm:$0xf]
        %v616 = vld [vmem:[%s382 + $0x350] sm:$0xf]
        %v617 = vld [vmem:[%s382 + $0x354] sm:$0xf]
        %v618 = vld [vmem:[%s382 + $0x358] sm:$0xf]
        %v619 = vld [vmem:[%s382 + $0x35c] sm:$0xf]
        %v620 = vld [vmem:[%s382 + $0x360] sm:$0xf]
        %v621 = vld [vmem:[%s382 + $0x364] sm:$0xf]
        %v622 = vld [vmem:[%s382 + $0x368] sm:$0xf]
        %v623 = vld [vmem:[%s382 + $0x36c] sm:$0xf]
        %v624 = vld [vmem:[%s382 + $0x370] sm:$0xf]
        %v625 = vld [vmem:[%s382 + $0x374] sm:$0xf]
        %v626 = vld [vmem:[%s382 + $0x378] sm:$0xf]
        %v627 = vld [vmem:[%s382 + $0x37c] sm:$0xf]
        %v628 = vld [vmem:[%s1] sm:$0xf]
        %v629 = vld [vmem:[%s1 + $0x4] sm:$0xf]
        %v630 = vld [vmem:[%s1 + $0x8] sm:$0xf]
        %v631 = vld [vmem:[%s1 + $0xc] sm:$0xf]
        %v632 = vld [vmem:[%s2] sm:$0x1]
        %v634 = vlaneseq
        %v635 = vshrl.u32 %v634, 7
        %v636 = vsub.s32 0, %v635
        %v637 = vrot.slane %v632, %v636
        %v863 = vunpack.c.l.b16 %v404
        %v864 = vunpack.c.l.b16 %v405
        %v865 = vunpack.c.l.b16 %v406
        %v866 = vunpack.c.l.b16 %v407
        %v867 = vunpack.c.l.b16 %v408
        %v868 = vunpack.c.l.b16 %v409
        %v869 = vunpack.c.l.b16 %v410
        %v870 = vunpack.c.l.b16 %v411
        %v871 = vunpack.c.l.b16 %v412
        %v872 = vunpack.c.l.b16 %v413
        %v873 = vunpack.c.l.b16 %v414
        %v874 = vunpack.c.l.b16 %v415
        %v875 = vunpack.c.l.b16 %v416
        %v876 = vunpack.c.l.b16 %v417
        %v877 = vunpack.c.l.b16 %v418
        %v878 = vunpack.c.l.b16 %v419
        %v879 = vunpack.c.l.b16 %v420
        %v880 = vunpack.c.l.b16 %v421
        %v881 = vunpack.c.l.b16 %v422
        %v882 = vunpack.c.l.b16 %v423
        %v883 = vunpack.c.l.b16 %v424
        %v884 = vunpack.c.l.b16 %v425
        %v885 = vunpack.c.l.b16 %v426
        %v886 = vunpack.c.l.b16 %v427
        %v887 = vunpack.c.l.b16 %v428
        %v888 = vunpack.c.l.b16 %v429
        %v889 = vunpack.c.l.b16 %v430
        %v890 = vunpack.c.l.b16 %v431
        %v891 = vunpack.c.l.b16 %v432
        %v892 = vunpack.c.l.b16 %v433
        %v893 = vunpack.c.l.b16 %v434
        %v894 = vunpack.c.l.b16 %v435
        %v895 = vunpack.c.l.b16 %v436
        %v896 = vunpack.c.l.b16 %v437
        %v897 = vunpack.c.l.b16 %v438
        %v898 = vunpack.c.l.b16 %v439
        %v899 = vunpack.c.l.b16 %v440
        %v900 = vunpack.c.l.b16 %v441
        %v901 = vunpack.c.l.b16 %v442
        %v902 = vunpack.c.l.b16 %v443
        %v903 = vunpack.c.l.b16 %v444
        %v904 = vunpack.c.l.b16 %v445
        %v905 = vunpack.c.l.b16 %v446
        %v906 = vunpack.c.l.b16 %v447
        %v907 = vunpack.c.l.b16 %v448
        %v908 = vunpack.c.l.b16 %v449
        %v909 = vunpack.c.l.b16 %v450
        %v910 = vunpack.c.l.b16 %v451
        %v911 = vunpack.c.l.b16 %v452
        %v912 = vunpack.c.l.b16 %v453
        %v913 = vunpack.c.l.b16 %v454
        %v914 = vunpack.c.l.b16 %v455
        %v915 = vunpack.c.l.b16 %v456
        %v916 = vunpack.c.l.b16 %v457
        %v917 = vunpack.c.l.b16 %v458
        %v918 = vunpack.c.l.b16 %v459
        %v919 = vunpack.c.l.b16 %v460
        %v920 = vunpack.c.l.b16 %v461
        %v921 = vunpack.c.l.b16 %v462
        %v922 = vunpack.c.l.b16 %v463
        %v923 = vunpack.c.l.b16 %v464
        %v924 = vunpack.c.l.b16 %v465
        %v925 = vunpack.c.l.b16 %v466
        %v926 = vunpack.c.l.b16 %v467
        %v927 = vunpack.c.l.b16 %v468
        %v928 = vunpack.c.l.b16 %v469
        %v929 = vunpack.c.l.b16 %v470
        %v930 = vunpack.c.l.b16 %v471
        %v931 = vunpack.c.l.b16 %v472
        %v932 = vunpack.c.l.b16 %v473
        %v933 = vunpack.c.l.b16 %v474
        %v934 = vunpack.c.l.b16 %v475
        %v935 = vunpack.c.l.b16 %v476
        %v936 = vunpack.c.l.b16 %v477
        %v937 = vunpack.c.l.b16 %v478
        %v938 = vunpack.c.l.b16 %v479
        %v939 = vunpack.c.l.b16 %v480
        %v940 = vunpack.c.l.b16 %v481
        %v941 = vunpack.c.l.b16 %v482
        %v942 = vunpack.c.l.b16 %v483
        %v943 = vunpack.c.l.b16 %v484
        %v944 = vunpack.c.l.b16 %v485
        %v945 = vunpack.c.l.b16 %v486
        %v946 = vunpack.c.l.b16 %v487
        %v947 = vunpack.c.l.b16 %v488
        %v948 = vunpack.c.l.b16 %v489
        %v949 = vunpack.c.l.b16 %v490
        %v950 = vunpack.c.l.b16 %v491
        %v951 = vunpack.c.l.b16 %v492
        %v952 = vunpack.c.l.b16 %v493
        %v953 = vunpack.c.l.b16 %v494
        %v954 = vunpack.c.l.b16 %v495
        %v955 = vunpack.c.l.b16 %v496
        %v956 = vunpack.c.l.b16 %v497
        %v957 = vunpack.c.l.b16 %v498
        %v958 = vunpack.c.l.b16 %v499
        %v959 = vunpack.c.l.b16 %v500
        %v960 = vunpack.c.l.b16 %v501
        %v961 = vunpack.c.l.b16 %v502
        %v962 = vunpack.c.l.b16 %v503
        %v963 = vunpack.c.l.b16 %v504
        %v964 = vunpack.c.l.b16 %v505
        %v965 = vunpack.c.l.b16 %v506
        %v966 = vunpack.c.l.b16 %v507
        %v967 = vunpack.c.l.b16 %v508
        %v968 = vunpack.c.l.b16 %v509
        %v969 = vunpack.c.l.b16 %v510
        %v970 = vunpack.c.l.b16 %v511
        %v971 = vunpack.c.l.b16 %v512
        %v972 = vunpack.c.l.b16 %v513
        %v973 = vunpack.c.l.b16 %v514
        %v974 = vunpack.c.l.b16 %v515
        %v975 = vunpack.c.l.b16 %v516
        %v976 = vunpack.c.l.b16 %v517
        %v977 = vunpack.c.l.b16 %v518
        %v978 = vunpack.c.l.b16 %v519
        %v979 = vunpack.c.l.b16 %v520
        %v980 = vunpack.c.l.b16 %v521
        %v981 = vunpack.c.l.b16 %v522
        %v982 = vunpack.c.l.b16 %v523
        %v983 = vunpack.c.l.b16 %v524
        %v984 = vunpack.c.l.b16 %v525
        %v985 = vunpack.c.l.b16 %v526
        %v986 = vunpack.c.l.b16 %v527
        %v987 = vunpack.c.l.b16 %v528
        %v988 = vunpack.c.l.b16 %v529
        %v989 = vunpack.c.l.b16 %v530
        %v990 = vunpack.c.l.b16 %v531
        %v991 = vunpack.c.l.b16 %v532
        %v992 = vunpack.c.l.b16 %v533
        %v993 = vunpack.c.l.b16 %v534
        %v994 = vunpack.c.l.b16 %v535
        %v995 = vunpack.c.l.b16 %v536
        %v996 = vunpack.c.l.b16 %v537
        %v997 = vunpack.c.l.b16 %v538
        %v998 = vunpack.c.l.b16 %v539
        %v999 = vunpack.c.l.b16 %v540
        %v1000 = vunpack.c.l.b16 %v541
        %v1001 = vunpack.c.l.b16 %v542
        %v1002 = vunpack.c.l.b16 %v543
        %v1003 = vunpack.c.l.b16 %v544
        %v1004 = vunpack.c.l.b16 %v545
        %v1005 = vunpack.c.l.b16 %v546
        %v1006 = vunpack.c.l.b16 %v547
        %v1007 = vunpack.c.l.b16 %v548
        %v1008 = vunpack.c.l.b16 %v549
        %v1009 = vunpack.c.l.b16 %v550
        %v1010 = vunpack.c.l.b16 %v551
        %v1011 = vunpack.c.l.b16 %v552
        %v1012 = vunpack.c.l.b16 %v553
        %v1013 = vunpack.c.l.b16 %v554
        %v1014 = vunpack.c.l.b16 %v555
        %v1015 = vunpack.c.l.b16 %v556
        %v1016 = vunpack.c.l.b16 %v557
        %v1017 = vunpack.c.l.b16 %v558
        %v1018 = vunpack.c.l.b16 %v559
        %v1019 = vunpack.c.l.b16 %v560
        %v1020 = vunpack.c.l.b16 %v561
        %v1021 = vunpack.c.l.b16 %v562
        %v1022 = vunpack.c.l.b16 %v563
        %v1023 = vunpack.c.l.b16 %v564
        %v1024 = vunpack.c.l.b16 %v565
        %v1025 = vunpack.c.l.b16 %v566
        %v1026 = vunpack.c.l.b16 %v567
        %v1027 = vunpack.c.l.b16 %v568
        %v1028 = vunpack.c.l.b16 %v569
        %v1029 = vunpack.c.l.b16 %v570
        %v1030 = vunpack.c.l.b16 %v571
        %v1031 = vunpack.c.l.b16 %v572
        %v1032 = vunpack.c.l.b16 %v573
        %v1033 = vunpack.c.l.b16 %v574
        %v1034 = vunpack.c.l.b16 %v575
        %v1035 = vunpack.c.l.b16 %v576
        %v1036 = vunpack.c.l.b16 %v577
        %v1037 = vunpack.c.l.b16 %v578
        %v1038 = vunpack.c.l.b16 %v579
        %v1039 = vunpack.c.l.b16 %v580
        %v1040 = vunpack.c.l.b16 %v581
        %v1041 = vunpack.c.l.b16 %v582
        %v1042 = vunpack.c.l.b16 %v583
        %v1043 = vunpack.c.l.b16 %v584
        %v1044 = vunpack.c.l.b16 %v585
        %v1045 = vunpack.c.l.b16 %v586
        %v1046 = vunpack.c.l.b16 %v587
        %v1047 = vunpack.c.l.b16 %v588
        %v1048 = vunpack.c.l.b16 %v589
        %v1049 = vunpack.c.l.b16 %v590
        %v1050 = vunpack.c.l.b16 %v591
        %v1051 = vunpack.c.l.b16 %v592
        %v1052 = vunpack.c.l.b16 %v593
        %v1053 = vunpack.c.l.b16 %v594
        %v1054 = vunpack.c.l.b16 %v595
        %v1055 = vunpack.c.l.b16 %v596
        %v1056 = vunpack.c.l.b16 %v597
        %v1057 = vunpack.c.l.b16 %v598
        %v1058 = vunpack.c.l.b16 %v599
        %v1059 = vunpack.c.l.b16 %v600
        %v1060 = vunpack.c.l.b16 %v601
        %v1061 = vunpack.c.l.b16 %v602
        %v1062 = vunpack.c.l.b16 %v603
        %v1063 = vunpack.c.l.b16 %v604
        %v1064 = vunpack.c.l.b16 %v605
        %v1065 = vunpack.c.l.b16 %v606
        %v1066 = vunpack.c.l.b16 %v607
        %v1067 = vunpack.c.l.b16 %v608
        %v1068 = vunpack.c.l.b16 %v609
        %v1069 = vunpack.c.l.b16 %v610
        %v1070 = vunpack.c.l.b16 %v611
        %v1071 = vunpack.c.l.b16 %v612
        %v1072 = vunpack.c.l.b16 %v613
        %v1073 = vunpack.c.l.b16 %v614
        %v1074 = vunpack.c.l.b16 %v615
        %v1075 = vunpack.c.l.b16 %v616
        %v1076 = vunpack.c.l.b16 %v617
        %v1077 = vunpack.c.l.b16 %v618
        %v1078 = vunpack.c.l.b16 %v619
        %v1079 = vunpack.c.l.b16 %v620
        %v1080 = vunpack.c.l.b16 %v621
        %v1081 = vunpack.c.l.b16 %v622
        %v1082 = vunpack.c.l.b16 %v623
        %v1083 = vunpack.c.l.b16 %v624
        %v1084 = vunpack.c.l.b16 %v625
        %v1085 = vunpack.c.l.b16 %v626
        %v1086 = vunpack.c.l.b16 %v627
        %v1087 = vpack.c.b16 %v864, %v863
        %v1088 = vpack.c.b16 %v866, %v865
        %v1089 = vpack.c.b16 %v868, %v867
        %v1090 = vpack.c.b16 %v870, %v869
        %v1091 = vpack.c.b16 %v872, %v871
        %v1092 = vpack.c.b16 %v874, %v873
        %v1093 = vpack.c.b16 %v876, %v875
        %v1094 = vpack.c.b16 %v878, %v877
        %v1095 = vpack.c.b16 %v880, %v879
        %v1096 = vpack.c.b16 %v882, %v881
        %v1097 = vpack.c.b16 %v884, %v883
        %v1098 = vpack.c.b16 %v886, %v885
        %v1099 = vpack.c.b16 %v888, %v887
        %v1100 = vpack.c.b16 %v890, %v889
        %v1101 = vpack.c.b16 %v892, %v891
        %v1102 = vpack.c.b16 %v894, %v893
        %v1103 = vpack.c.b16 %v896, %v895
        %v1104 = vpack.c.b16 %v898, %v897
        %v1105 = vpack.c.b16 %v900, %v899
        %v1106 = vpack.c.b16 %v902, %v901
        %v1107 = vpack.c.b16 %v904, %v903
        %v1108 = vpack.c.b16 %v906, %v905
        %v1109 = vpack.c.b16 %v908, %v907
        %v1110 = vpack.c.b16 %v910, %v909
        %v1111 = vpack.c.b16 %v912, %v911
        %v1112 = vpack.c.b16 %v914, %v913
        %v1113 = vpack.c.b16 %v916, %v915
        %v1114 = vpack.c.b16 %v918, %v917
        %v1115 = vpack.c.b16 %v920, %v919
        %v1116 = vpack.c.b16 %v922, %v921
        %v1117 = vpack.c.b16 %v924, %v923
        %v1118 = vpack.c.b16 %v926, %v925
        %v1119 = vpack.c.b16 %v928, %v927
        %v1120 = vpack.c.b16 %v930, %v929
        %v1121 = vpack.c.b16 %v932, %v931
        %v1122 = vpack.c.b16 %v934, %v933
        %v1123 = vpack.c.b16 %v936, %v935
        %v1124 = vpack.c.b16 %v938, %v937
        %v1125 = vpack.c.b16 %v940, %v939
        %v1126 = vpack.c.b16 %v942, %v941
        %v1127 = vpack.c.b16 %v944, %v943
        %v1128 = vpack.c.b16 %v946, %v945
        %v1129 = vpack.c.b16 %v948, %v947
        %v1130 = vpack.c.b16 %v950, %v949
        %v1131 = vpack.c.b16 %v952, %v951
        %v1132 = vpack.c.b16 %v954, %v953
        %v1133 = vpack.c.b16 %v956, %v955
        %v1134 = vpack.c.b16 %v958, %v957
        %v1135 = vpack.c.b16 %v960, %v959
        %v1136 = vpack.c.b16 %v962, %v961
        %v1137 = vpack.c.b16 %v964, %v963
        %v1138 = vpack.c.b16 %v966, %v965
        %v1139 = vpack.c.b16 %v968, %v967
        %v1140 = vpack.c.b16 %v970, %v969
        %v1141 = vpack.c.b16 %v972, %v971
        %v1142 = vpack.c.b16 %v974, %v973
        %v1143 = vpack.c.b16 %v976, %v975
        %v1144 = vpack.c.b16 %v978, %v977
        %v1145 = vpack.c.b16 %v980, %v979
        %v1146 = vpack.c.b16 %v982, %v981
        %v1147 = vpack.c.b16 %v984, %v983
        %v1148 = vpack.c.b16 %v986, %v985
        %v1149 = vpack.c.b16 %v988, %v987
        %v1150 = vpack.c.b16 %v990, %v989
        %v1151 = vpack.c.b16 %v992, %v991
        %v1152 = vpack.c.b16 %v994, %v993
        %v1153 = vpack.c.b16 %v996, %v995
        %v1154 = vpack.c.b16 %v998, %v997
        %v1155 = vpack.c.b16 %v1000, %v999
        %v1156 = vpack.c.b16 %v1002, %v1001
        %v1157 = vpack.c.b16 %v1004, %v1003
        %v1158 = vpack.c.b16 %v1006, %v1005
        %v1159 = vpack.c.b16 %v1008, %v1007
        %v1160 = vpack.c.b16 %v1010, %v1009
        %v1161 = vpack.c.b16 %v1012, %v1011
        %v1162 = vpack.c.b16 %v1014, %v1013
        %v1163 = vpack.c.b16 %v1016, %v1015
        %v1164 = vpack.c.b16 %v1018, %v1017
        %v1165 = vpack.c.b16 %v1020, %v1019
        %v1166 = vpack.c.b16 %v1022, %v1021
        %v1167 = vpack.c.b16 %v1024, %v1023
        %v1168 = vpack.c.b16 %v1026, %v1025
        %v1169 = vpack.c.b16 %v1028, %v1027
        %v1170 = vpack.c.b16 %v1030, %v1029
        %v1171 = vpack.c.b16 %v1032, %v1031
        %v1172 = vpack.c.b16 %v1034, %v1033
        %v1173 = vpack.c.b16 %v1036, %v1035
        %v1174 = vpack.c.b16 %v1038, %v1037
        %v1175 = vpack.c.b16 %v1040, %v1039
        %v1176 = vpack.c.b16 %v1042, %v1041
        %v1177 = vpack.c.b16 %v1044, %v1043
        %v1178 = vpack.c.b16 %v1046, %v1045
        %v1179 = vpack.c.b16 %v1048, %v1047
        %v1180 = vpack.c.b16 %v1050, %v1049
        %v1181 = vpack.c.b16 %v1052, %v1051
        %v1182 = vpack.c.b16 %v1054, %v1053
        %v1183 = vpack.c.b16 %v1056, %v1055
        %v1184 = vpack.c.b16 %v1058, %v1057
        %v1185 = vpack.c.b16 %v1060, %v1059
        %v1186 = vpack.c.b16 %v1062, %v1061
        %v1187 = vpack.c.b16 %v1064, %v1063
        %v1188 = vpack.c.b16 %v1066, %v1065
        %v1189 = vpack.c.b16 %v1068, %v1067
        %v1190 = vpack.c.b16 %v1070, %v1069
        %v1191 = vpack.c.b16 %v1072, %v1071
        %v1192 = vpack.c.b16 %v1074, %v1073
        %v1193 = vpack.c.b16 %v1076, %v1075
        %v1194 = vpack.c.b16 %v1078, %v1077
        %v1195 = vpack.c.b16 %v1080, %v1079
        %v1196 = vpack.c.b16 %v1082, %v1081
        %v1197 = vpack.c.b16 %v1084, %v1083
        %v1198 = vpack.c.b16 %v1086, %v1085
        %v1203 = vunpack.c.l.b16 %v628
        %v1204 = vunpack.c.l.b16 %v629
        %v1205 = vunpack.c.l.b16 %v630
        %v1206 = vunpack.c.l.b16 %v631
        %v1207 = vpack.c.b16 %v1204, %v1203
        %v1208 = vpack.c.b16 %v1206, %v1205
        %vm1211 = vcmask 261120
        %v1213 = vsel %vm1211, %v1087, 0
        %v1216 = vsel %vm1211, %v1088, 0
        %v1219 = vsel %vm1211, %v1089, 0
        %v1222 = vsel %vm1211, %v1090, 0
        %v1225 = vsel %vm1211, %v1091, 0
        %v1228 = vsel %vm1211, %v1092, 0
        %v1231 = vsel %vm1211, %v1093, 0
        %v1234 = vsel %vm1211, %v1094, 0
        %v1237 = vsel %vm1211, %v1095, 0
        %v1240 = vsel %vm1211, %v1096, 0
        %v1243 = vsel %vm1211, %v1097, 0
        %v1246 = vsel %vm1211, %v1098, 0
        %v1249 = vsel %vm1211, %v1099, 0
        %v1252 = vsel %vm1211, %v1100, 0
        %v1255 = vsel %vm1211, %v1101, 0
        %v1258 = vsel %vm1211, %v1102, 0
        %v1261 = vsel %vm1211, %v1103, 0
        %v1264 = vsel %vm1211, %v1104, 0
        %v1267 = vsel %vm1211, %v1105, 0
        %v1270 = vsel %vm1211, %v1106, 0
        %v1273 = vsel %vm1211, %v1107, 0
        %v1276 = vsel %vm1211, %v1108, 0
        %v1279 = vsel %vm1211, %v1109, 0
        %v1282 = vsel %vm1211, %v1110, 0
        %v1285 = vsel %vm1211, %v1111, 0
        %v1288 = vsel %vm1211, %v1112, 0
        %v1291 = vsel %vm1211, %v1113, 0
        %v1294 = vsel %vm1211, %v1114, 0
        %v1297 = vsel %vm1211, %v1115, 0
        %v1300 = vsel %vm1211, %v1116, 0
        %v1303 = vsel %vm1211, %v1117, 0
        %v1306 = vsel %vm1211, %v1118, 0
        %v1309 = vsel %vm1211, %v1119, 0
        %v1312 = vsel %vm1211, %v1120, 0
        %v1315 = vsel %vm1211, %v1121, 0
        %v1318 = vsel %vm1211, %v1122, 0
        %v1321 = vsel %vm1211, %v1123, 0
        %v1324 = vsel %vm1211, %v1124, 0
        %v1327 = vsel %vm1211, %v1125, 0
        %v1330 = vsel %vm1211, %v1126, 0
        %v1333 = vsel %vm1211, %v1127, 0
        %v1336 = vsel %vm1211, %v1128, 0
        %v1339 = vsel %vm1211, %v1129, 0
        %v1342 = vsel %vm1211, %v1130, 0
        %v1345 = vsel %vm1211, %v1131, 0
        %v1348 = vsel %vm1211, %v1132, 0
        %v1351 = vsel %vm1211, %v1133, 0
        %v1354 = vsel %vm1211, %v1134, 0
        %v1357 = vsel %vm1211, %v1135, 0
        %v1360 = vsel %vm1211, %v1136, 0
        %v1363 = vsel %vm1211, %v1137, 0
        %v1366 = vsel %vm1211, %v1138, 0
        %v1369 = vsel %vm1211, %v1139, 0
        %v1372 = vsel %vm1211, %v1140, 0
        %v1375 = vsel %vm1211, %v1141, 0
        %v1378 = vsel %vm1211, %v1142, 0
        %v1381 = vsel %vm1211, %v1143, 0
        %v1384 = vsel %vm1211, %v1144, 0
        %v1387 = vsel %vm1211, %v1145, 0
        %v1390 = vsel %vm1211, %v1146, 0
        %v1393 = vsel %vm1211, %v1147, 0
        %v1396 = vsel %vm1211, %v1148, 0
        %v1399 = vsel %vm1211, %v1149, 0
        %v1402 = vsel %vm1211, %v1150, 0
        %v1405 = vsel %vm1211, %v1151, 0
        %v1408 = vsel %vm1211, %v1152, 0
        %v1411 = vsel %vm1211, %v1153, 0
        %v1414 = vsel %vm1211, %v1154, 0
        %v1417 = vsel %vm1211, %v1155, 0
        %v1420 = vsel %vm1211, %v1156, 0
        %v1423 = vsel %vm1211, %v1157, 0
        %v1426 = vsel %vm1211, %v1158, 0
        %v1429 = vsel %vm1211, %v1159, 0
        %v1432 = vsel %vm1211, %v1160, 0
        %v1435 = vsel %vm1211, %v1161, 0
        %v1438 = vsel %vm1211, %v1162, 0
        %v1441 = vsel %vm1211, %v1163, 0
        %v1444 = vsel %vm1211, %v1164, 0
        %v1447 = vsel %vm1211, %v1165, 0
        %v1450 = vsel %vm1211, %v1166, 0
        %v1453 = vsel %vm1211, %v1167, 0
        %v1456 = vsel %vm1211, %v1168, 0
        %v1459 = vsel %vm1211, %v1169, 0
        %v1462 = vsel %vm1211, %v1170, 0
        %v1465 = vsel %vm1211, %v1171, 0
        %v1468 = vsel %vm1211, %v1172, 0
        %v1471 = vsel %vm1211, %v1173, 0
        %v1474 = vsel %vm1211, %v1174, 0
        %v1477 = vsel %vm1211, %v1175, 0
        %v1480 = vsel %vm1211, %v1176, 0
        %v1483 = vsel %vm1211, %v1177, 0
        %v1486 = vsel %vm1211, %v1178, 0
        %v1489 = vsel %vm1211, %v1179, 0
        %v1492 = vsel %vm1211, %v1180, 0
        %v1495 = vsel %vm1211, %v1181, 0
        %v1498 = vsel %vm1211, %v1182, 0
        %v1501 = vsel %vm1211, %v1183, 0
        %v1504 = vsel %vm1211, %v1184, 0
        %v1507 = vsel %vm1211, %v1185, 0
        %v1510 = vsel %vm1211, %v1186, 0
        %v1513 = vsel %vm1211, %v1187, 0
        %v1516 = vsel %vm1211, %v1188, 0
        %v1519 = vsel %vm1211, %v1189, 0
        %v1522 = vsel %vm1211, %v1190, 0
        %v1525 = vsel %vm1211, %v1191, 0
        %v1528 = vsel %vm1211, %v1192, 0
        %v1531 = vsel %vm1211, %v1193, 0
        %v1534 = vsel %vm1211, %v1194, 0
        %v1537 = vsel %vm1211, %v1195, 0
        %v1540 = vsel %vm1211, %v1196, 0
        %v1543 = vsel %vm1211, %v1197, 0
        %v1546 = vsel %vm1211, %v1198, 0
        %1548 = vmatprep.subr.bf16.mxu0 0
        %1549 = vmatpush1.bf16.msra.mxu0 %v1207
        %1550 = vmatprep.subr.bf16.mxu0 0
        %1551 = vmatpush1.bf16.msra.mxu0 %v1208
        %1552 = vmatprep.subr.bf16.mxu0 0
        %1553 = vmatpush1.bf16.msra.mxu0 0
        %1554 = vmatprep.subr.bf16.mxu0 0
        %1555 = vmatpush1.bf16.msra.mxu0 0
        %1556 = vmatprep.subr.bf16.mxu0 0
        %1557 = vmatpush1.bf16.msra.mxu0 0
        %1558 = vmatprep.subr.bf16.mxu0 0
        %1559 = vmatpush1.bf16.msra.mxu0 0
        %1560 = vmatprep.subr.bf16.mxu0 0
        %1561 = vmatpush1.bf16.msra.mxu0 0
        %1562 = vmatprep.subr.bf16.mxu0 0
        %1563 = vmatpush1.bf16.msra.mxu0 0
        %1564 = vmatprep.subr.bf16.mxu0 0
        %1565 = vmatpush1.bf16.msra.mxu0 0
        %1566 = vmatprep.subr.bf16.mxu0 0
        %1567 = vmatpush1.bf16.msra.mxu0 0
        %1568 = vmatprep.subr.bf16.mxu0 0
        %1569 = vmatpush1.bf16.msra.mxu0 0
        %1570 = vmatprep.subr.bf16.mxu0 0
        %1571 = vmatpush1.bf16.msra.mxu0 0
        %1572 = vmatprep.subr.bf16.mxu0 0
        %1573 = vmatpush1.bf16.msra.mxu0 0
        %1574 = vmatprep.subr.bf16.mxu0 0
        %1575 = vmatpush1.bf16.msra.mxu0 0
        %1576 = vmatprep.subr.bf16.mxu0 0
        %1577 = vmatpush1.bf16.msra.mxu0 0
        %1578 = vmatprep.subr.bf16.mxu0 0
        %1579 = vmatpush1.bf16.msra.mxu0 0
        %1580 = vmatprep.mubr.bf16.mxu0 0
        %1581 = vmatmul.mubr.bf16.gmra.mrb[0].mxu0 %v1213
        %v1582 = vpop.f32.mrb[0].mxu0
        %v1583 = vadd.f32 %v637, %v1582
        %v1584 = vpop.f32.mrb[0].mxu0
        %v1585 = vpop.f32.mrb[0].mxu0
        %v1586 = vadd.f32 %v637, %v1585
        %v1587 = vpop.f32.mrb[0].mxu0
        %1588 = vmatprep.mubr.bf16.mxu0 0
        %1589 = vmatmul.mubr.bf16.gmra.mrb[0].mxu0 %v1216
        %v1590 = vpop.f32.mrb[0].mxu0
        %v1591 = vadd.f32 %v637, %v1590
        %v1592 = vpop.f32.mrb[0].mxu0
        %v1593 = vpop.f32.mrb[0].mxu0
        %v1594 = vadd.f32 %v637, %v1593
        %v1595 = vpop.f32.mrb[0].mxu0
        %1596 = vmatprep.mubr.bf16.mxu0 0
        %1597 = vmatmul.mubr.bf16.gmra.mrb[0].mxu0 %v1219
        %v1598 = vpop.f32.mrb[0].mxu0
        %v1599 = vadd.f32 %v637, %v1598
        %v1600 = vpop.f32.mrb[0].mxu0
        %v1601 = vpop.f32.mrb[0].mxu0
        %v1602 = vadd.f32 %v637, %v1601
        %v1603 = vpop.f32.mrb[0].mxu0
        %1604 = vmatprep.mubr.bf16.mxu0 0
        %1605 = vmatmul.mubr.bf16.gmra.mrb[0].mxu0 %v1222
        %v1606 = vpop.f32.mrb[0].mxu0
        %v1607 = vadd.f32 %v637, %v1606
        %v1608 = vpop.f32.mrb[0].mxu0
        %v1609 = vpop.f32.mrb[0].mxu0
        %v1610 = vadd.f32 %v637, %v1609
        %v1611 = vpop.f32.mrb[0].mxu0
        %1612 = vmatprep.mubr.bf16.mxu0 0
        %1613 = vmatmul.mubr.bf16.gmra.mrb[0].mxu0 %v1225
        %v1614 = vpop.f32.mrb[0].mxu0
        %v1615 = vadd.f32 %v637, %v1614
        %v1616 = vpop.f32.mrb[0].mxu0
        %v1617 = vpop.f32.mrb[0].mxu0
        %v1618 = vadd.f32 %v637, %v1617
        %v1619 = vpop.f32.mrb[0].mxu0
        %1620 = vmatprep.mubr.bf16.mxu0 0
        %1621 = vmatmul.mubr.bf16.gmra.mrb[0].mxu0 %v1228
        %v1622 = vpop.f32.mrb[0].mxu0
        %v1623 = vadd.f32 %v637, %v1622
        %v1624 = vpop.f32.mrb[0].mxu0
        %v1625 = vpop.f32.mrb[0].mxu0
        %v1626 = vadd.f32 %v637, %v1625
        %v1627 = vpop.f32.mrb[0].mxu0
        %1628 = vmatprep.mubr.bf16.mxu0 0
        %1629 = vmatmul.mubr.bf16.gmra.mrb[0].mxu0 %v1231
        %v1630 = vpop.f32.mrb[0].mxu0
        %v1631 = vadd.f32 %v637, %v1630
        %v1632 = vpop.f32.mrb[0].mxu0
        %v1633 = vpop.f32.mrb[0].mxu0
        %v1634 = vadd.f32 %v637, %v1633
        %v1635 = vpop.f32.mrb[0].mxu0
        %1636 = vmatprep.mubr.bf16.mxu0 0
        %1637 = vmatmul.mubr.bf16.gmra.mrb[0].mxu0 %v1234
        %v1638 = vpop.f32.mrb[0].mxu0
        %v1639 = vadd.f32 %v637, %v1638
        %v1640 = vpop.f32.mrb[0].mxu0
        %v1641 = vpop.f32.mrb[0].mxu0
        %v1642 = vadd.f32 %v637, %v1641
        %v1643 = vpop.f32.mrb[0].mxu0
        %1644 = vmatprep.mubr.bf16.mxu0 0
        %1645 = vmatmul.mubr.bf16.gmra.mrb[0].mxu0 %v1237
        %v1646 = vpop.f32.mrb[0].mxu0
        %v1647 = vadd.f32 %v637, %v1646
        %v1648 = vpop.f32.mrb[0].mxu0
        %v1649 = vpop.f32.mrb[0].mxu0
        %v1650 = vadd.f32 %v637, %v1649
        %v1651 = vpop.f32.mrb[0].mxu0
        %1652 = vmatprep.mubr.bf16.mxu0 0
        %1653 = vmatmul.mubr.bf16.gmra.mrb[0].mxu0 %v1240
        %v1654 = vpop.f32.mrb[0].mxu0
        %v1655 = vadd.f32 %v637, %v1654
        %v1656 = vpop.f32.mrb[0].mxu0
        %v1657 = vpop.f32.mrb[0].mxu0
        %v1658 = vadd.f32 %v637, %v1657
        %v1659 = vpop.f32.mrb[0].mxu0
        %1660 = vmatprep.mubr.bf16.mxu0 0
        %1661 = vmatmul.mubr.bf16.gmra.mrb[0].mxu0 %v1243
        %v1662 = vpop.f32.mrb[0].mxu0
        %v1663 = vadd.f32 %v637, %v1662
        %v1664 = vpop.f32.mrb[0].mxu0
        %v1665 = vpop.f32.mrb[0].mxu0
        %v1666 = vadd.f32 %v637, %v1665
        %v1667 = vpop.f32.mrb[0].mxu0
        %1668 = vmatprep.mubr.bf16.mxu0 0
        %1669 = vmatmul.mubr.bf16.gmra.mrb[0].mxu0 %v1246
        %v1670 = vpop.f32.mrb[0].mxu0
        %v1671 = vadd.f32 %v637, %v1670
        %v1672 = vpop.f32.mrb[0].mxu0
        %v1673 = vpop.f32.mrb[0].mxu0
        %v1674 = vadd.f32 %v637, %v1673
        %v1675 = vpop.f32.mrb[0].mxu0
        %1676 = vmatprep.mubr.bf16.mxu0 0
        %1677 = vmatmul.mubr.bf16.gmra.mrb[0].mxu0 %v1249
        %v1678 = vpop.f32.mrb[0].mxu0
        %v1679 = vadd.f32 %v637, %v1678
        %v1680 = vpop.f32.mrb[0].mxu0
        %v1681 = vpop.f32.mrb[0].mxu0
        %v1682 = vadd.f32 %v637, %v1681
        %v1683 = vpop.f32.mrb[0].mxu0
        %1684 = vmatprep.mubr.bf16.mxu0 0
        %1685 = vmatmul.mubr.bf16.gmra.mrb[0].mxu0 %v1252
        %v1686 = vpop.f32.mrb[0].mxu0
        %v1687 = vadd.f32 %v637, %v1686
        %v1688 = vpop.f32.mrb[0].mxu0
        %v1689 = vpop.f32.mrb[0].mxu0
        %v1690 = vadd.f32 %v637, %v1689
        %v1691 = vpop.f32.mrb[0].mxu0
        %1692 = vmatprep.mubr.bf16.mxu0 0
        %1693 = vmatmul.mubr.bf16.gmra.mrb[0].mxu0 %v1255
        %v1694 = vpop.f32.mrb[0].mxu0
        %v1695 = vadd.f32 %v637, %v1694
        %v1696 = vpop.f32.mrb[0].mxu0
        %v1697 = vpop.f32.mrb[0].mxu0
        %v1698 = vadd.f32 %v637, %v1697
        %v1699 = vpop.f32.mrb[0].mxu0
        %1700 = vmatprep.mubr.bf16.mxu0 0
        %1701 = vmatmul.mubr.bf16.gmra.mrb[0].mxu0 %v1258
        %v1702 = vpop.f32.mrb[0].mxu0
        %v1703 = vadd.f32 %v637, %v1702
        %v1704 = vpop.f32.mrb[0].mxu0
        %v1705 = vpop.f32.mrb[0].mxu0
        %v1706 = vadd.f32 %v637, %v1705
        %v1707 = vpop.f32.mrb[0].mxu0
        %1708 = vmatprep.mubr.bf16.mxu0 0
        %1709 = vmatmul.mubr.bf16.gmra.mrb[0].mxu0 %v1261
        %v1710 = vpop.f32.mrb[0].mxu0
        %v1711 = vadd.f32 %v637, %v1710
        %v1712 = vpop.f32.mrb[0].mxu0
        %v1713 = vpop.f32.mrb[0].mxu0
        %v1714 = vadd.f32 %v637, %v1713
        %v1715 = vpop.f32.mrb[0].mxu0
        %1716 = vmatprep.mubr.bf16.mxu0 0
        %1717 = vmatmul.mubr.bf16.gmra.mrb[0].mxu0 %v1264
        %v1718 = vpop.f32.mrb[0].mxu0
        %v1719 = vadd.f32 %v637, %v1718
        %v1720 = vpop.f32.mrb[0].mxu0
        %v1721 = vpop.f32.mrb[0].mxu0
        %v1722 = vadd.f32 %v637, %v1721
        %v1723 = vpop.f32.mrb[0].mxu0
        %1724 = vmatprep.mubr.bf16.mxu0 0
        %1725 = vmatmul.mubr.bf16.gmra.mrb[0].mxu0 %v1267
        %v1726 = vpop.f32.mrb[0].mxu0
        %v1727 = vadd.f32 %v637, %v1726
        %v1728 = vpop.f32.mrb[0].mxu0
        %v1729 = vpop.f32.mrb[0].mxu0
        %v1730 = vadd.f32 %v637, %v1729
        %v1731 = vpop.f32.mrb[0].mxu0
        %1732 = vmatprep.mubr.bf16.mxu0 0
        %1733 = vmatmul.mubr.bf16.gmra.mrb[0].mxu0 %v1270
        %v1734 = vpop.f32.mrb[0].mxu0
        %v1735 = vadd.f32 %v637, %v1734
        %v1736 = vpop.f32.mrb[0].mxu0
        %v1737 = vpop.f32.mrb[0].mxu0
        %v1738 = vadd.f32 %v637, %v1737
        %v1739 = vpop.f32.mrb[0].mxu0
        %1740 = vmatprep.mubr.bf16.mxu0 0
        %1741 = vmatmul.mubr.bf16.gmra.mrb[0].mxu0 %v1273
        %v1742 = vpop.f32.mrb[0].mxu0
        %v1743 = vadd.f32 %v637, %v1742
        %v1744 = vpop.f32.mrb[0].mxu0
        %v1745 = vpop.f32.mrb[0].mxu0
        %v1746 = vadd.f32 %v637, %v1745
        %v1747 = vpop.f32.mrb[0].mxu0
        %1748 = vmatprep.mubr.bf16.mxu0 0
        %1749 = vmatmul.mubr.bf16.gmra.mrb[0].mxu0 %v1276
        %v1750 = vpop.f32.mrb[0].mxu0
        %v1751 = vadd.f32 %v637, %v1750
        %v1752 = vpop.f32.mrb[0].mxu0
        %v1753 = vpop.f32.mrb[0].mxu0
        %v1754 = vadd.f32 %v637, %v1753
        %v1755 = vpop.f32.mrb[0].mxu0
        %1756 = vmatprep.mubr.bf16.mxu0 0
        %1757 = vmatmul.mubr.bf16.gmra.mrb[0].mxu0 %v1279
        %v1758 = vpop.f32.mrb[0].mxu0
        %v1759 = vadd.f32 %v637, %v1758
        %v1760 = vpop.f32.mrb[0].mxu0
        %v1761 = vpop.f32.mrb[0].mxu0
        %v1762 = vadd.f32 %v637, %v1761
        %v1763 = vpop.f32.mrb[0].mxu0
        %1764 = vmatprep.mubr.bf16.mxu0 0
        %1765 = vmatmul.mubr.bf16.gmra.mrb[0].mxu0 %v1282
        %v1766 = vpop.f32.mrb[0].mxu0
        %v1767 = vadd.f32 %v637, %v1766
        %v1768 = vpop.f32.mrb[0].mxu0
        %v1769 = vpop.f32.mrb[0].mxu0
        %v1770 = vadd.f32 %v637, %v1769
        %v1771 = vpop.f32.mrb[0].mxu0
        %1772 = vmatprep.mubr.bf16.mxu0 0
        %1773 = vmatmul.mubr.bf16.gmra.mrb[0].mxu0 %v1285
        %v1774 = vpop.f32.mrb[0].mxu0
        %v1775 = vadd.f32 %v637, %v1774
        %v1776 = vpop.f32.mrb[0].mxu0
        %v1777 = vpop.f32.mrb[0].mxu0
        %v1778 = vadd.f32 %v637, %v1777
        %v1779 = vpop.f32.mrb[0].mxu0
        %1780 = vmatprep.mubr.bf16.mxu0 0
        %1781 = vmatmul.mubr.bf16.gmra.mrb[0].mxu0 %v1288
        %v1782 = vpop.f32.mrb[0].mxu0
        %v1783 = vadd.f32 %v637, %v1782
        %v1784 = vpop.f32.mrb[0].mxu0
        %v1785 = vpop.f32.mrb[0].mxu0
        %v1786 = vadd.f32 %v637, %v1785
        %v1787 = vpop.f32.mrb[0].mxu0
        %1788 = vmatprep.mubr.bf16.mxu0 0
        %1789 = vmatmul.mubr.bf16.gmra.mrb[0].mxu0 %v1291
        %v1790 = vpop.f32.mrb[0].mxu0
        %v1791 = vadd.f32 %v637, %v1790
        %v1792 = vpop.f32.mrb[0].mxu0
        %v1793 = vpop.f32.mrb[0].mxu0
        %v1794 = vadd.f32 %v637, %v1793
        %v1795 = vpop.f32.mrb[0].mxu0
        %1796 = vmatprep.mubr.bf16.mxu0 0
        %1797 = vmatmul.mubr.bf16.gmra.mrb[0].mxu0 %v1294
        %v1798 = vpop.f32.mrb[0].mxu0
        %v1799 = vadd.f32 %v637, %v1798
        %v1800 = vpop.f32.mrb[0].mxu0
        %v1801 = vpop.f32.mrb[0].mxu0
        %v1802 = vadd.f32 %v637, %v1801
        %v1803 = vpop.f32.mrb[0].mxu0
        %1804 = vmatprep.mubr.bf16.mxu0 0
        %1805 = vmatmul.mubr.bf16.gmra.mrb[0].mxu0 %v1297
        %v1806 = vpop.f32.mrb[0].mxu0
        %v1807 = vadd.f32 %v637, %v1806
        %v1808 = vpop.f32.mrb[0].mxu0
        %v1809 = vpop.f32.mrb[0].mxu0
        %v1810 = vadd.f32 %v637, %v1809
        %v1811 = vpop.f32.mrb[0].mxu0
        %1812 = vmatprep.mubr.bf16.mxu0 0
        %1813 = vmatmul.mubr.bf16.gmra.mrb[0].mxu0 %v1300
        %v1814 = vpop.f32.mrb[0].mxu0
        %v1815 = vadd.f32 %v637, %v1814
        %v1816 = vpop.f32.mrb[0].mxu0
        %v1817 = vpop.f32.mrb[0].mxu0
        %v1818 = vadd.f32 %v637, %v1817
        %v1819 = vpop.f32.mrb[0].mxu0
        %1820 = vmatprep.mubr.bf16.mxu0 0
        %1821 = vmatmul.mubr.bf16.gmra.mrb[0].mxu0 %v1303
        %v1822 = vpop.f32.mrb[0].mxu0
        %v1823 = vadd.f32 %v637, %v1822
        %v1824 = vpop.f32.mrb[0].mxu0
        %v1825 = vpop.f32.mrb[0].mxu0
        %v1826 = vadd.f32 %v637, %v1825
        %v1827 = vpop.f32.mrb[0].mxu0
        %1828 = vmatprep.mubr.bf16.mxu0 0
        %1829 = vmatmul.mubr.bf16.gmra.mrb[0].mxu0 %v1306
        %v1830 = vpop.f32.mrb[0].mxu0
        %v1831 = vadd.f32 %v637, %v1830
        %v1832 = vpop.f32.mrb[0].mxu0
        %v1833 = vpop.f32.mrb[0].mxu0
        %v1834 = vadd.f32 %v637, %v1833
        %v1835 = vpop.f32.mrb[0].mxu0
        %1836 = vmatprep.mubr.bf16.mxu0 0
        %1837 = vmatmul.mubr.bf16.gmra.mrb[0].mxu0 %v1309
        %v1838 = vpop.f32.mrb[0].mxu0
        %v1839 = vadd.f32 %v637, %v1838
        %v1840 = vpop.f32.mrb[0].mxu0
        %v1841 = vpop.f32.mrb[0].mxu0
        %v1842 = vadd.f32 %v637, %v1841
        %v1843 = vpop.f32.mrb[0].mxu0
        %1844 = vmatprep.mubr.bf16.mxu0 0
        %1845 = vmatmul.mubr.bf16.gmra.mrb[0].mxu0 %v1312
        %v1846 = vpop.f32.mrb[0].mxu0
        %v1847 = vadd.f32 %v637, %v1846
        %v1848 = vpop.f32.mrb[0].mxu0
        %v1849 = vpop.f32.mrb[0].mxu0
        %v1850 = vadd.f32 %v637, %v1849
        %v1851 = vpop.f32.mrb[0].mxu0
        %1852 = vmatprep.mubr.bf16.mxu0 0
        %1853 = vmatmul.mubr.bf16.gmra.mrb[0].mxu0 %v1315
        %v1854 = vpop.f32.mrb[0].mxu0
        %v1855 = vadd.f32 %v637, %v1854
        %v1856 = vpop.f32.mrb[0].mxu0
        %v1857 = vpop.f32.mrb[0].mxu0
        %v1858 = vadd.f32 %v637, %v1857
        %v1859 = vpop.f32.mrb[0].mxu0
        %1860 = vmatprep.mubr.bf16.mxu0 0
        %1861 = vmatmul.mubr.bf16.gmra.mrb[0].mxu0 %v1318
        %v1862 = vpop.f32.mrb[0].mxu0
        %v1863 = vadd.f32 %v637, %v1862
        %v1864 = vpop.f32.mrb[0].mxu0
        %v1865 = vpop.f32.mrb[0].mxu0
        %v1866 = vadd.f32 %v637, %v1865
        %v1867 = vpop.f32.mrb[0].mxu0
        %1868 = vmatprep.mubr.bf16.mxu0 0
        %1869 = vmatmul.mubr.bf16.gmra.mrb[0].mxu0 %v1321
        %v1870 = vpop.f32.mrb[0].mxu0
        %v1871 = vadd.f32 %v637, %v1870
        %v1872 = vpop.f32.mrb[0].mxu0
        %v1873 = vpop.f32.mrb[0].mxu0
        %v1874 = vadd.f32 %v637, %v1873
        %v1875 = vpop.f32.mrb[0].mxu0
        %1876 = vmatprep.mubr.bf16.mxu0 0
        %1877 = vmatmul.mubr.bf16.gmra.mrb[0].mxu0 %v1324
        %v1878 = vpop.f32.mrb[0].mxu0
        %v1879 = vadd.f32 %v637, %v1878
        %v1880 = vpop.f32.mrb[0].mxu0
        %v1881 = vpop.f32.mrb[0].mxu0
        %v1882 = vadd.f32 %v637, %v1881
        %v1883 = vpop.f32.mrb[0].mxu0
        %1884 = vmatprep.mubr.bf16.mxu0 0
        %1885 = vmatmul.mubr.bf16.gmra.mrb[0].mxu0 %v1327
        %v1886 = vpop.f32.mrb[0].mxu0
        %v1887 = vadd.f32 %v637, %v1886
        %v1888 = vpop.f32.mrb[0].mxu0
        %v1889 = vpop.f32.mrb[0].mxu0
        %v1890 = vadd.f32 %v637, %v1889
        %v1891 = vpop.f32.mrb[0].mxu0
        %1892 = vmatprep.mubr.bf16.mxu0 0
        %1893 = vmatmul.mubr.bf16.gmra.mrb[0].mxu0 %v1330
        %v1894 = vpop.f32.mrb[0].mxu0
        %v1895 = vadd.f32 %v637, %v1894
        %v1896 = vpop.f32.mrb[0].mxu0
        %v1897 = vpop.f32.mrb[0].mxu0
        %v1898 = vadd.f32 %v637, %v1897
        %v1899 = vpop.f32.mrb[0].mxu0
        %1900 = vmatprep.mubr.bf16.mxu0 0
        %1901 = vmatmul.mubr.bf16.gmra.mrb[0].mxu0 %v1333
        %v1902 = vpop.f32.mrb[0].mxu0
        %v1903 = vadd.f32 %v637, %v1902
        %v1904 = vpop.f32.mrb[0].mxu0
        %v1905 = vpop.f32.mrb[0].mxu0
        %v1906 = vadd.f32 %v637, %v1905
        %v1907 = vpop.f32.mrb[0].mxu0
        %1908 = vmatprep.mubr.bf16.mxu0 0
        %1909 = vmatmul.mubr.bf16.gmra.mrb[0].mxu0 %v1336
        %v1910 = vpop.f32.mrb[0].mxu0
        %v1911 = vadd.f32 %v637, %v1910
        %v1912 = vpop.f32.mrb[0].mxu0
        %v1913 = vpop.f32.mrb[0].mxu0
        %v1914 = vadd.f32 %v637, %v1913
        %v1915 = vpop.f32.mrb[0].mxu0
        %1916 = vmatprep.mubr.bf16.mxu0 0
        %1917 = vmatmul.mubr.bf16.gmra.mrb[0].mxu0 %v1339
        %v1918 = vpop.f32.mrb[0].mxu0
        %v1919 = vadd.f32 %v637, %v1918
        %v1920 = vpop.f32.mrb[0].mxu0
        %v1921 = vpop.f32.mrb[0].mxu0
        %v1922 = vadd.f32 %v637, %v1921
        %v1923 = vpop.f32.mrb[0].mxu0
        %1924 = vmatprep.mubr.bf16.mxu0 0
        %1925 = vmatmul.mubr.bf16.gmra.mrb[0].mxu0 %v1342
        %v1926 = vpop.f32.mrb[0].mxu0
        %v1927 = vadd.f32 %v637, %v1926
        %v1928 = vpop.f32.mrb[0].mxu0
        %v1929 = vpop.f32.mrb[0].mxu0
        %v1930 = vadd.f32 %v637, %v1929
        %v1931 = vpop.f32.mrb[0].mxu0
        %1932 = vmatprep.mubr.bf16.mxu0 0
        %1933 = vmatmul.mubr.bf16.gmra.mrb[0].mxu0 %v1345
        %v1934 = vpop.f32.mrb[0].mxu0
        %v1935 = vadd.f32 %v637, %v1934
        %v1936 = vpop.f32.mrb[0].mxu0
        %v1937 = vpop.f32.mrb[0].mxu0
        %v1938 = vadd.f32 %v637, %v1937
        %v1939 = vpop.f32.mrb[0].mxu0
        %1940 = vmatprep.mubr.bf16.mxu0 0
        %1941 = vmatmul.mubr.bf16.gmra.mrb[0].mxu0 %v1348
        %v1942 = vpop.f32.mrb[0].mxu0
        %v1943 = vadd.f32 %v637, %v1942
        %v1944 = vpop.f32.mrb[0].mxu0
        %v1945 = vpop.f32.mrb[0].mxu0
        %v1946 = vadd.f32 %v637, %v1945
        %v1947 = vpop.f32.mrb[0].mxu0
        %1948 = vmatprep.mubr.bf16.mxu0 0
        %1949 = vmatmul.mubr.bf16.gmra.mrb[0].mxu0 %v1351
        %v1950 = vpop.f32.mrb[0].mxu0
        %v1951 = vadd.f32 %v637, %v1950
        %v1952 = vpop.f32.mrb[0].mxu0
        %v1953 = vpop.f32.mrb[0].mxu0
        %v1954 = vadd.f32 %v637, %v1953
        %v1955 = vpop.f32.mrb[0].mxu0
        %1956 = vmatprep.mubr.bf16.mxu0 0
        %1957 = vmatmul.mubr.bf16.gmra.mrb[0].mxu0 %v1354
        %v1958 = vpop.f32.mrb[0].mxu0
        %v1959 = vadd.f32 %v637, %v1958
        %v1960 = vpop.f32.mrb[0].mxu0
        %v1961 = vpop.f32.mrb[0].mxu0
        %v1962 = vadd.f32 %v637, %v1961
        %v1963 = vpop.f32.mrb[0].mxu0
        %1964 = vmatprep.mubr.bf16.mxu0 0
        %1965 = vmatmul.mubr.bf16.gmra.mrb[0].mxu0 %v1357
        %v1966 = vpop.f32.mrb[0].mxu0
        %v1967 = vadd.f32 %v637, %v1966
        %v1968 = vpop.f32.mrb[0].mxu0
        %v1969 = vpop.f32.mrb[0].mxu0
        %v1970 = vadd.f32 %v637, %v1969
        %v1971 = vpop.f32.mrb[0].mxu0
        %1972 = vmatprep.mubr.bf16.mxu0 0
        %1973 = vmatmul.mubr.bf16.gmra.mrb[0].mxu0 %v1360
        %v1974 = vpop.f32.mrb[0].mxu0
        %v1975 = vadd.f32 %v637, %v1974
        %v1976 = vpop.f32.mrb[0].mxu0
        %v1977 = vpop.f32.mrb[0].mxu0
        %v1978 = vadd.f32 %v637, %v1977
        %v1979 = vpop.f32.mrb[0].mxu0
        %1980 = vmatprep.mubr.bf16.mxu0 0
        %1981 = vmatmul.mubr.bf16.gmra.mrb[0].mxu0 %v1363
        %v1982 = vpop.f32.mrb[0].mxu0
        %v1983 = vadd.f32 %v637, %v1982
        %v1984 = vpop.f32.mrb[0].mxu0
        %v1985 = vpop.f32.mrb[0].mxu0
        %v1986 = vadd.f32 %v637, %v1985
        %v1987 = vpop.f32.mrb[0].mxu0
        %1988 = vmatprep.mubr.bf16.mxu0 0
        %1989 = vmatmul.mubr.bf16.gmra.mrb[0].mxu0 %v1366
        %v1990 = vpop.f32.mrb[0].mxu0
        %v1991 = vadd.f32 %v637, %v1990
        %v1992 = vpop.f32.mrb[0].mxu0
        %v1993 = vpop.f32.mrb[0].mxu0
        %v1994 = vadd.f32 %v637, %v1993
        %v1995 = vpop.f32.mrb[0].mxu0
        %1996 = vmatprep.mubr.bf16.mxu0 0
        %1997 = vmatmul.mubr.bf16.gmra.mrb[0].mxu0 %v1369
        %v1998 = vpop.f32.mrb[0].mxu0
        %v1999 = vadd.f32 %v637, %v1998
        %v2000 = vpop.f32.mrb[0].mxu0
        %v2001 = vpop.f32.mrb[0].mxu0
        %v2002 = vadd.f32 %v637, %v2001
        %v2003 = vpop.f32.mrb[0].mxu0
        %2004 = vmatprep.mubr.bf16.mxu0 0
        %2005 = vmatmul.mubr.bf16.gmra.mrb[0].mxu0 %v1372
        %v2006 = vpop.f32.mrb[0].mxu0
        %v2007 = vadd.f32 %v637, %v2006
        %v2008 = vpop.f32.mrb[0].mxu0
        %v2009 = vpop.f32.mrb[0].mxu0
        %v2010 = vadd.f32 %v637, %v2009
        %v2011 = vpop.f32.mrb[0].mxu0
        %2012 = vmatprep.mubr.bf16.mxu0 0
        %2013 = vmatmul.mubr.bf16.gmra.mrb[0].mxu0 %v1375
        %v2014 = vpop.f32.mrb[0].mxu0
        %v2015 = vadd.f32 %v637, %v2014
        %v2016 = vpop.f32.mrb[0].mxu0
        %v2017 = vpop.f32.mrb[0].mxu0
        %v2018 = vadd.f32 %v637, %v2017
        %v2019 = vpop.f32.mrb[0].mxu0
        %2020 = vmatprep.mubr.bf16.mxu0 0
        %2021 = vmatmul.mubr.bf16.gmra.mrb[0].mxu0 %v1378
        %v2022 = vpop.f32.mrb[0].mxu0
        %v2023 = vadd.f32 %v637, %v2022
        %v2024 = vpop.f32.mrb[0].mxu0
        %v2025 = vpop.f32.mrb[0].mxu0
        %v2026 = vadd.f32 %v637, %v2025
        %v2027 = vpop.f32.mrb[0].mxu0
        %2028 = vmatprep.mubr.bf16.mxu0 0
        %2029 = vmatmul.mubr.bf16.gmra.mrb[0].mxu0 %v1381
        %v2030 = vpop.f32.mrb[0].mxu0
        %v2031 = vadd.f32 %v637, %v2030
        %v2032 = vpop.f32.mrb[0].mxu0
        %v2033 = vpop.f32.mrb[0].mxu0
        %v2034 = vadd.f32 %v637, %v2033
        %v2035 = vpop.f32.mrb[0].mxu0
        %2036 = vmatprep.mubr.bf16.mxu0 0
        %2037 = vmatmul.mubr.bf16.gmra.mrb[0].mxu0 %v1384
        %v2038 = vpop.f32.mrb[0].mxu0
        %v2039 = vadd.f32 %v637, %v2038
        %v2040 = vpop.f32.mrb[0].mxu0
        %v2041 = vpop.f32.mrb[0].mxu0
        %v2042 = vadd.f32 %v637, %v2041
        %v2043 = vpop.f32.mrb[0].mxu0
        %2044 = vmatprep.mubr.bf16.mxu0 0
        %2045 = vmatmul.mubr.bf16.gmra.mrb[0].mxu0 %v1387
        %v2046 = vpop.f32.mrb[0].mxu0
        %v2047 = vadd.f32 %v637, %v2046
        %v2048 = vpop.f32.mrb[0].mxu0
        %v2049 = vpop.f32.mrb[0].mxu0
        %v2050 = vadd.f32 %v637, %v2049
        %v2051 = vpop.f32.mrb[0].mxu0
        %2052 = vmatprep.mubr.bf16.mxu0 0
        %2053 = vmatmul.mubr.bf16.gmra.mrb[0].mxu0 %v1390
        %v2054 = vpop.f32.mrb[0].mxu0
        %v2055 = vadd.f32 %v637, %v2054
        %v2056 = vpop.f32.mrb[0].mxu0
        %v2057 = vpop.f32.mrb[0].mxu0
        %v2058 = vadd.f32 %v637, %v2057
        %v2059 = vpop.f32.mrb[0].mxu0
        %2060 = vmatprep.mubr.bf16.mxu0 0
        %2061 = vmatmul.mubr.bf16.gmra.mrb[0].mxu0 %v1393
        %v2062 = vpop.f32.mrb[0].mxu0
        %v2063 = vadd.f32 %v637, %v2062
        %v2064 = vpop.f32.mrb[0].mxu0
        %v2065 = vpop.f32.mrb[0].mxu0
        %v2066 = vadd.f32 %v637, %v2065
        %v2067 = vpop.f32.mrb[0].mxu0
        %2068 = vmatprep.mubr.bf16.mxu0 0
        %2069 = vmatmul.mubr.bf16.gmra.mrb[0].mxu0 %v1396
        %v2070 = vpop.f32.mrb[0].mxu0
        %v2071 = vadd.f32 %v637, %v2070
        %v2072 = vpop.f32.mrb[0].mxu0
        %v2073 = vpop.f32.mrb[0].mxu0
        %v2074 = vadd.f32 %v637, %v2073
        %v2075 = vpop.f32.mrb[0].mxu0
        %2076 = vmatprep.mubr.bf16.mxu0 0
        %2077 = vmatmul.mubr.bf16.gmra.mrb[0].mxu0 %v1399
        %v2078 = vpop.f32.mrb[0].mxu0
        %v2079 = vadd.f32 %v637, %v2078
        %v2080 = vpop.f32.mrb[0].mxu0
        %v2081 = vpop.f32.mrb[0].mxu0
        %v2082 = vadd.f32 %v637, %v2081
        %v2083 = vpop.f32.mrb[0].mxu0
        %2084 = vmatprep.mubr.bf16.mxu0 0
        %2085 = vmatmul.mubr.bf16.gmra.mrb[0].mxu0 %v1402
        %v2086 = vpop.f32.mrb[0].mxu0
        %v2087 = vadd.f32 %v637, %v2086
        %v2088 = vpop.f32.mrb[0].mxu0
        %v2089 = vpop.f32.mrb[0].mxu0
        %v2090 = vadd.f32 %v637, %v2089
        %v2091 = vpop.f32.mrb[0].mxu0
        %2092 = vmatprep.mubr.bf16.mxu0 0
        %2093 = vmatmul.mubr.bf16.gmra.mrb[0].mxu0 %v1405
        %v2094 = vpop.f32.mrb[0].mxu0
        %v2095 = vadd.f32 %v637, %v2094
        %v2096 = vpop.f32.mrb[0].mxu0
        %v2097 = vpop.f32.mrb[0].mxu0
        %v2098 = vadd.f32 %v637, %v2097
        %v2099 = vpop.f32.mrb[0].mxu0
        %2100 = vmatprep.mubr.bf16.mxu0 0
        %2101 = vmatmul.mubr.bf16.gmra.mrb[0].mxu0 %v1408
        %v2102 = vpop.f32.mrb[0].mxu0
        %v2103 = vadd.f32 %v637, %v2102
        %v2104 = vpop.f32.mrb[0].mxu0
        %v2105 = vpop.f32.mrb[0].mxu0
        %v2106 = vadd.f32 %v637, %v2105
        %v2107 = vpop.f32.mrb[0].mxu0
        %2108 = vmatprep.mubr.bf16.mxu0 0
        %2109 = vmatmul.mubr.bf16.gmra.mrb[0].mxu0 %v1411
        %v2110 = vpop.f32.mrb[0].mxu0
        %v2111 = vadd.f32 %v637, %v2110
        %v2112 = vpop.f32.mrb[0].mxu0
        %v2113 = vpop.f32.mrb[0].mxu0
        %v2114 = vadd.f32 %v637, %v2113
        %v2115 = vpop.f32.mrb[0].mxu0
        %2116 = vmatprep.mubr.bf16.mxu0 0
        %2117 = vmatmul.mubr.bf16.gmra.mrb[0].mxu0 %v1414
        %v2118 = vpop.f32.mrb[0].mxu0
        %v2119 = vadd.f32 %v637, %v2118
        %v2120 = vpop.f32.mrb[0].mxu0
        %v2121 = vpop.f32.mrb[0].mxu0
        %v2122 = vadd.f32 %v637, %v2121
        %v2123 = vpop.f32.mrb[0].mxu0
        %2124 = vmatprep.mubr.bf16.mxu0 0
        %2125 = vmatmul.mubr.bf16.gmra.mrb[0].mxu0 %v1417
        %v2126 = vpop.f32.mrb[0].mxu0
        %v2127 = vadd.f32 %v637, %v2126
        %v2128 = vpop.f32.mrb[0].mxu0
        %v2129 = vpop.f32.mrb[0].mxu0
        %v2130 = vadd.f32 %v637, %v2129
        %v2131 = vpop.f32.mrb[0].mxu0
        %2132 = vmatprep.mubr.bf16.mxu0 0
        %2133 = vmatmul.mubr.bf16.gmra.mrb[0].mxu0 %v1420
        %v2134 = vpop.f32.mrb[0].mxu0
        %v2135 = vadd.f32 %v637, %v2134
        %v2136 = vpop.f32.mrb[0].mxu0
        %v2137 = vpop.f32.mrb[0].mxu0
        %v2138 = vadd.f32 %v637, %v2137
        %v2139 = vpop.f32.mrb[0].mxu0
        %2140 = vmatprep.mubr.bf16.mxu0 0
        %2141 = vmatmul.mubr.bf16.gmra.mrb[0].mxu0 %v1423
        %v2142 = vpop.f32.mrb[0].mxu0
        %v2143 = vadd.f32 %v637, %v2142
        %v2144 = vpop.f32.mrb[0].mxu0
        %v2145 = vpop.f32.mrb[0].mxu0
        %v2146 = vadd.f32 %v637, %v2145
        %v2147 = vpop.f32.mrb[0].mxu0
        %2148 = vmatprep.mubr.bf16.mxu0 0
        %2149 = vmatmul.mubr.bf16.gmra.mrb[0].mxu0 %v1426
        %v2150 = vpop.f32.mrb[0].mxu0
        %v2151 = vadd.f32 %v637, %v2150
        %v2152 = vpop.f32.mrb[0].mxu0
        %v2153 = vpop.f32.mrb[0].mxu0
        %v2154 = vadd.f32 %v637, %v2153
        %v2155 = vpop.f32.mrb[0].mxu0
        %2156 = vmatprep.mubr.bf16.mxu0 0
        %2157 = vmatmul.mubr.bf16.gmra.mrb[0].mxu0 %v1429
        %v2158 = vpop.f32.mrb[0].mxu0
        %v2159 = vadd.f32 %v637, %v2158
        %v2160 = vpop.f32.mrb[0].mxu0
        %v2161 = vpop.f32.mrb[0].mxu0
        %v2162 = vadd.f32 %v637, %v2161
        %v2163 = vpop.f32.mrb[0].mxu0
        %2164 = vmatprep.mubr.bf16.mxu0 0
        %2165 = vmatmul.mubr.bf16.gmra.mrb[0].mxu0 %v1432
        %v2166 = vpop.f32.mrb[0].mxu0
        %v2167 = vadd.f32 %v637, %v2166
        %v2168 = vpop.f32.mrb[0].mxu0
        %v2169 = vpop.f32.mrb[0].mxu0
        %v2170 = vadd.f32 %v637, %v2169
        %v2171 = vpop.f32.mrb[0].mxu0
        %2172 = vmatprep.mubr.bf16.mxu0 0
        %2173 = vmatmul.mubr.bf16.gmra.mrb[0].mxu0 %v1435
        %v2174 = vpop.f32.mrb[0].mxu0
        %v2175 = vadd.f32 %v637, %v2174
        %v2176 = vpop.f32.mrb[0].mxu0
        %v2177 = vpop.f32.mrb[0].mxu0
        %v2178 = vadd.f32 %v637, %v2177
        %v2179 = vpop.f32.mrb[0].mxu0
        %2180 = vmatprep.mubr.bf16.mxu0 0
        %2181 = vmatmul.mubr.bf16.gmra.mrb[0].mxu0 %v1438
        %v2182 = vpop.f32.mrb[0].mxu0
        %v2183 = vadd.f32 %v637, %v2182
        %v2184 = vpop.f32.mrb[0].mxu0
        %v2185 = vpop.f32.mrb[0].mxu0
        %v2186 = vadd.f32 %v637, %v2185
        %v2187 = vpop.f32.mrb[0].mxu0
        %2188 = vmatprep.mubr.bf16.mxu0 0
        %2189 = vmatmul.mubr.bf16.gmra.mrb[0].mxu0 %v1441
        %v2190 = vpop.f32.mrb[0].mxu0
        %v2191 = vadd.f32 %v637, %v2190
        %v2192 = vpop.f32.mrb[0].mxu0
        %v2193 = vpop.f32.mrb[0].mxu0
        %v2194 = vadd.f32 %v637, %v2193
        %v2195 = vpop.f32.mrb[0].mxu0
        %2196 = vmatprep.mubr.bf16.mxu0 0
        %2197 = vmatmul.mubr.bf16.gmra.mrb[0].mxu0 %v1444
        %v2198 = vpop.f32.mrb[0].mxu0
        %v2199 = vadd.f32 %v637, %v2198
        %v2200 = vpop.f32.mrb[0].mxu0
        %v2201 = vpop.f32.mrb[0].mxu0
        %v2202 = vadd.f32 %v637, %v2201
        %v2203 = vpop.f32.mrb[0].mxu0
        %2204 = vmatprep.mubr.bf16.mxu0 0
        %2205 = vmatmul.mubr.bf16.gmra.mrb[0].mxu0 %v1447
        %v2206 = vpop.f32.mrb[0].mxu0
        %v2207 = vadd.f32 %v637, %v2206
        %v2208 = vpop.f32.mrb[0].mxu0
        %v2209 = vpop.f32.mrb[0].mxu0
        %v2210 = vadd.f32 %v637, %v2209
        %v2211 = vpop.f32.mrb[0].mxu0
        %2212 = vmatprep.mubr.bf16.mxu0 0
        %2213 = vmatmul.mubr.bf16.gmra.mrb[0].mxu0 %v1450
        %v2214 = vpop.f32.mrb[0].mxu0
        %v2215 = vadd.f32 %v637, %v2214
        %v2216 = vpop.f32.mrb[0].mxu0
        %v2217 = vpop.f32.mrb[0].mxu0
        %v2218 = vadd.f32 %v637, %v2217
        %v2219 = vpop.f32.mrb[0].mxu0
        %2220 = vmatprep.mubr.bf16.mxu0 0
        %2221 = vmatmul.mubr.bf16.gmra.mrb[0].mxu0 %v1453
        %v2222 = vpop.f32.mrb[0].mxu0
        %v2223 = vadd.f32 %v637, %v2222
        %v2224 = vpop.f32.mrb[0].mxu0
        %v2225 = vpop.f32.mrb[0].mxu0
        %v2226 = vadd.f32 %v637, %v2225
        %v2227 = vpop.f32.mrb[0].mxu0
        %2228 = vmatprep.mubr.bf16.mxu0 0
        %2229 = vmatmul.mubr.bf16.gmra.mrb[0].mxu0 %v1456
        %v2230 = vpop.f32.mrb[0].mxu0
        %v2231 = vadd.f32 %v637, %v2230
        %v2232 = vpop.f32.mrb[0].mxu0
        %v2233 = vpop.f32.mrb[0].mxu0
        %v2234 = vadd.f32 %v637, %v2233
        %v2235 = vpop.f32.mrb[0].mxu0
        %2236 = vmatprep.mubr.bf16.mxu0 0
        %2237 = vmatmul.mubr.bf16.gmra.mrb[0].mxu0 %v1459
        %v2238 = vpop.f32.mrb[0].mxu0
        %v2239 = vadd.f32 %v637, %v2238
        %v2240 = vpop.f32.mrb[0].mxu0
        %v2241 = vpop.f32.mrb[0].mxu0
        %v2242 = vadd.f32 %v637, %v2241
        %v2243 = vpop.f32.mrb[0].mxu0
        %2244 = vmatprep.mubr.bf16.mxu0 0
        %2245 = vmatmul.mubr.bf16.gmra.mrb[0].mxu0 %v1462
        %v2246 = vpop.f32.mrb[0].mxu0
        %v2247 = vadd.f32 %v637, %v2246
        %v2248 = vpop.f32.mrb[0].mxu0
        %v2249 = vpop.f32.mrb[0].mxu0
        %v2250 = vadd.f32 %v637, %v2249
        %v2251 = vpop.f32.mrb[0].mxu0
        %2252 = vmatprep.mubr.bf16.mxu0 0
        %2253 = vmatmul.mubr.bf16.gmra.mrb[0].mxu0 %v1465
        %v2254 = vpop.f32.mrb[0].mxu0
        %v2255 = vadd.f32 %v637, %v2254
        %v2256 = vpop.f32.mrb[0].mxu0
        %v2257 = vpop.f32.mrb[0].mxu0
        %v2258 = vadd.f32 %v637, %v2257
        %v2259 = vpop.f32.mrb[0].mxu0
        %2260 = vmatprep.mubr.bf16.mxu0 0
        %2261 = vmatmul.mubr.bf16.gmra.mrb[0].mxu0 %v1468
        %v2262 = vpop.f32.mrb[0].mxu0
        %v2263 = vadd.f32 %v637, %v2262
        %v2264 = vpop.f32.mrb[0].mxu0
        %v2265 = vpop.f32.mrb[0].mxu0
        %v2266 = vadd.f32 %v637, %v2265
        %v2267 = vpop.f32.mrb[0].mxu0
        %2268 = vmatprep.mubr.bf16.mxu0 0
        %2269 = vmatmul.mubr.bf16.gmra.mrb[0].mxu0 %v1471
        %v2270 = vpop.f32.mrb[0].mxu0
        %v2271 = vadd.f32 %v637, %v2270
        %v2272 = vpop.f32.mrb[0].mxu0
        %v2273 = vpop.f32.mrb[0].mxu0
        %v2274 = vadd.f32 %v637, %v2273
        %v2275 = vpop.f32.mrb[0].mxu0
        %2276 = vmatprep.mubr.bf16.mxu0 0
        %2277 = vmatmul.mubr.bf16.gmra.mrb[0].mxu0 %v1474
        %v2278 = vpop.f32.mrb[0].mxu0
        %v2279 = vadd.f32 %v637, %v2278
        %v2280 = vpop.f32.mrb[0].mxu0
        %v2281 = vpop.f32.mrb[0].mxu0
        %v2282 = vadd.f32 %v637, %v2281
        %v2283 = vpop.f32.mrb[0].mxu0
        %2284 = vmatprep.mubr.bf16.mxu0 0
        %2285 = vmatmul.mubr.bf16.gmra.mrb[0].mxu0 %v1477
        %v2286 = vpop.f32.mrb[0].mxu0
        %v2287 = vadd.f32 %v637, %v2286
        %v2288 = vpop.f32.mrb[0].mxu0
        %v2289 = vpop.f32.mrb[0].mxu0
        %v2290 = vadd.f32 %v637, %v2289
        %v2291 = vpop.f32.mrb[0].mxu0
        %2292 = vmatprep.mubr.bf16.mxu0 0
        %2293 = vmatmul.mubr.bf16.gmra.mrb[0].mxu0 %v1480
        %v2294 = vpop.f32.mrb[0].mxu0
        %v2295 = vadd.f32 %v637, %v2294
        %v2296 = vpop.f32.mrb[0].mxu0
        %v2297 = vpop.f32.mrb[0].mxu0
        %v2298 = vadd.f32 %v637, %v2297
        %v2299 = vpop.f32.mrb[0].mxu0
        %2300 = vmatprep.mubr.bf16.mxu0 0
        %2301 = vmatmul.mubr.bf16.gmra.mrb[0].mxu0 %v1483
        %v2302 = vpop.f32.mrb[0].mxu0
        %v2303 = vadd.f32 %v637, %v2302
        %v2304 = vpop.f32.mrb[0].mxu0
        %v2305 = vpop.f32.mrb[0].mxu0
        %v2306 = vadd.f32 %v637, %v2305
        %v2307 = vpop.f32.mrb[0].mxu0
        %2308 = vmatprep.mubr.bf16.mxu0 0
        %2309 = vmatmul.mubr.bf16.gmra.mrb[0].mxu0 %v1486
        %v2310 = vpop.f32.mrb[0].mxu0
        %v2311 = vadd.f32 %v637, %v2310
        %v2312 = vpop.f32.mrb[0].mxu0
        %v2313 = vpop.f32.mrb[0].mxu0
        %v2314 = vadd.f32 %v637, %v2313
        %v2315 = vpop.f32.mrb[0].mxu0
        %2316 = vmatprep.mubr.bf16.mxu0 0
        %2317 = vmatmul.mubr.bf16.gmra.mrb[0].mxu0 %v1489
        %v2318 = vpop.f32.mrb[0].mxu0
        %v2319 = vadd.f32 %v637, %v2318
        %v2320 = vpop.f32.mrb[0].mxu0
        %v2321 = vpop.f32.mrb[0].mxu0
        %v2322 = vadd.f32 %v637, %v2321
        %v2323 = vpop.f32.mrb[0].mxu0
        %2324 = vmatprep.mubr.bf16.mxu0 0
        %2325 = vmatmul.mubr.bf16.gmra.mrb[0].mxu0 %v1492
        %v2326 = vpop.f32.mrb[0].mxu0
        %v2327 = vadd.f32 %v637, %v2326
        %v2328 = vpop.f32.mrb[0].mxu0
        %v2329 = vpop.f32.mrb[0].mxu0
        %v2330 = vadd.f32 %v637, %v2329
        %v2331 = vpop.f32.mrb[0].mxu0
        %2332 = vmatprep.mubr.bf16.mxu0 0
        %2333 = vmatmul.mubr.bf16.gmra.mrb[0].mxu0 %v1495
        %v2334 = vpop.f32.mrb[0].mxu0
        %v2335 = vadd.f32 %v637, %v2334
        %v2336 = vpop.f32.mrb[0].mxu0
        %v2337 = vpop.f32.mrb[0].mxu0
        %v2338 = vadd.f32 %v637, %v2337
        %v2339 = vpop.f32.mrb[0].mxu0
        %2340 = vmatprep.mubr.bf16.mxu0 0
        %2341 = vmatmul.mubr.bf16.gmra.mrb[0].mxu0 %v1498
        %v2342 = vpop.f32.mrb[0].mxu0
        %v2343 = vadd.f32 %v637, %v2342
        %v2344 = vpop.f32.mrb[0].mxu0
        %v2345 = vpop.f32.mrb[0].mxu0
        %v2346 = vadd.f32 %v637, %v2345
        %v2347 = vpop.f32.mrb[0].mxu0
        %2348 = vmatprep.mubr.bf16.mxu0 0
        %2349 = vmatmul.mubr.bf16.gmra.mrb[0].mxu0 %v1501
        %v2350 = vpop.f32.mrb[0].mxu0
        %v2351 = vadd.f32 %v637, %v2350
        %v2352 = vpop.f32.mrb[0].mxu0
        %v2353 = vpop.f32.mrb[0].mxu0
        %v2354 = vadd.f32 %v637, %v2353
        %v2355 = vpop.f32.mrb[0].mxu0
        %2356 = vmatprep.mubr.bf16.mxu0 0
        %2357 = vmatmul.mubr.bf16.gmra.mrb[0].mxu0 %v1504
        %v2358 = vpop.f32.mrb[0].mxu0
        %v2359 = vadd.f32 %v637, %v2358
        %v2360 = vpop.f32.mrb[0].mxu0
        %v2361 = vpop.f32.mrb[0].mxu0
        %v2362 = vadd.f32 %v637, %v2361
        %v2363 = vpop.f32.mrb[0].mxu0
        %2364 = vmatprep.mubr.bf16.mxu0 0
        %2365 = vmatmul.mubr.bf16.gmra.mrb[0].mxu0 %v1507
        %v2366 = vpop.f32.mrb[0].mxu0
        %v2367 = vadd.f32 %v637, %v2366
        %v2368 = vpop.f32.mrb[0].mxu0
        %v2369 = vpop.f32.mrb[0].mxu0
        %v2370 = vadd.f32 %v637, %v2369
        %v2371 = vpop.f32.mrb[0].mxu0
        %2372 = vmatprep.mubr.bf16.mxu0 0
        %2373 = vmatmul.mubr.bf16.gmra.mrb[0].mxu0 %v1510
        %v2374 = vpop.f32.mrb[0].mxu0
        %v2375 = vadd.f32 %v637, %v2374
        %v2376 = vpop.f32.mrb[0].mxu0
        %v2377 = vpop.f32.mrb[0].mxu0
        %v2378 = vadd.f32 %v637, %v2377
        %v2379 = vpop.f32.mrb[0].mxu0
        %2380 = vmatprep.mubr.bf16.mxu0 0
        %2381 = vmatmul.mubr.bf16.gmra.mrb[0].mxu0 %v1513
        %v2382 = vpop.f32.mrb[0].mxu0
        %v2383 = vadd.f32 %v637, %v2382
        %v2384 = vpop.f32.mrb[0].mxu0
        %v2385 = vpop.f32.mrb[0].mxu0
        %v2386 = vadd.f32 %v637, %v2385
        %v2387 = vpop.f32.mrb[0].mxu0
        %2388 = vmatprep.mubr.bf16.mxu0 0
        %2389 = vmatmul.mubr.bf16.gmra.mrb[0].mxu0 %v1516
        %v2390 = vpop.f32.mrb[0].mxu0
        %v2391 = vadd.f32 %v637, %v2390
        %v2392 = vpop.f32.mrb[0].mxu0
        %v2393 = vpop.f32.mrb[0].mxu0
        %v2394 = vadd.f32 %v637, %v2393
        %v2395 = vpop.f32.mrb[0].mxu0
        %2396 = vmatprep.mubr.bf16.mxu0 0
        %2397 = vmatmul.mubr.bf16.gmra.mrb[0].mxu0 %v1519
        %v2398 = vpop.f32.mrb[0].mxu0
        %v2399 = vadd.f32 %v637, %v2398
        %v2400 = vpop.f32.mrb[0].mxu0
        %v2401 = vpop.f32.mrb[0].mxu0
        %v2402 = vadd.f32 %v637, %v2401
        %v2403 = vpop.f32.mrb[0].mxu0
        %2404 = vmatprep.mubr.bf16.mxu0 0
        %2405 = vmatmul.mubr.bf16.gmra.mrb[0].mxu0 %v1522
        %v2406 = vpop.f32.mrb[0].mxu0
        %v2407 = vadd.f32 %v637, %v2406
        %v2408 = vpop.f32.mrb[0].mxu0
        %v2409 = vpop.f32.mrb[0].mxu0
        %v2410 = vadd.f32 %v637, %v2409
        %v2411 = vpop.f32.mrb[0].mxu0
        %2412 = vmatprep.mubr.bf16.mxu0 0
        %2413 = vmatmul.mubr.bf16.gmra.mrb[0].mxu0 %v1525
        %v2414 = vpop.f32.mrb[0].mxu0
        %v2415 = vadd.f32 %v637, %v2414
        %v2416 = vpop.f32.mrb[0].mxu0
        %v2417 = vpop.f32.mrb[0].mxu0
        %v2418 = vadd.f32 %v637, %v2417
        %v2419 = vpop.f32.mrb[0].mxu0
        %2420 = vmatprep.mubr.bf16.mxu0 0
        %2421 = vmatmul.mubr.bf16.gmra.mrb[0].mxu0 %v1528
        %v2422 = vpop.f32.mrb[0].mxu0
        %v2423 = vadd.f32 %v637, %v2422
        %v2424 = vpop.f32.mrb[0].mxu0
        %v2425 = vpop.f32.mrb[0].mxu0
        %v2426 = vadd.f32 %v637, %v2425
        %v2427 = vpop.f32.mrb[0].mxu0
        %2428 = vmatprep.mubr.bf16.mxu0 0
        %2429 = vmatmul.mubr.bf16.gmra.mrb[0].mxu0 %v1531
        %v2430 = vpop.f32.mrb[0].mxu0
        %v2431 = vadd.f32 %v637, %v2430
        %v2432 = vpop.f32.mrb[0].mxu0
        %v2433 = vpop.f32.mrb[0].mxu0
        %v2434 = vadd.f32 %v637, %v2433
        %v2435 = vpop.f32.mrb[0].mxu0
        %2436 = vmatprep.mubr.bf16.mxu0 0
        %2437 = vmatmul.mubr.bf16.gmra.mrb[0].mxu0 %v1534
        %v2438 = vpop.f32.mrb[0].mxu0
        %v2439 = vadd.f32 %v637, %v2438
        %v2440 = vpop.f32.mrb[0].mxu0
        %v2441 = vpop.f32.mrb[0].mxu0
        %v2442 = vadd.f32 %v637, %v2441
        %v2443 = vpop.f32.mrb[0].mxu0
        %2444 = vmatprep.mubr.bf16.mxu0 0
        %2445 = vmatmul.mubr.bf16.gmra.mrb[0].mxu0 %v1537
        %v2446 = vpop.f32.mrb[0].mxu0
        %v2447 = vadd.f32 %v637, %v2446
        %v2448 = vpop.f32.mrb[0].mxu0
        %v2449 = vpop.f32.mrb[0].mxu0
        %v2450 = vadd.f32 %v637, %v2449
        %v2451 = vpop.f32.mrb[0].mxu0
        %2452 = vmatprep.mubr.bf16.mxu0 0
        %2453 = vmatmul.mubr.bf16.gmra.mrb[0].mxu0 %v1540
        %v2454 = vpop.f32.mrb[0].mxu0
        %v2455 = vadd.f32 %v637, %v2454
        %v2456 = vpop.f32.mrb[0].mxu0
        %v2457 = vpop.f32.mrb[0].mxu0
        %v2458 = vadd.f32 %v637, %v2457
        %v2459 = vpop.f32.mrb[0].mxu0
        %2460 = vmatprep.mubr.bf16.mxu0 0
        %2461 = vmatmul.mubr.bf16.gmra.mrb[0].mxu0 %v1543
        %v2462 = vpop.f32.mrb[0].mxu0
        %v2463 = vadd.f32 %v637, %v2462
        %v2464 = vpop.f32.mrb[0].mxu0
        %v2465 = vpop.f32.mrb[0].mxu0
        %v2466 = vadd.f32 %v637, %v2465
        %v2467 = vpop.f32.mrb[0].mxu0
        %2468 = vmatprep.mubr.bf16.mxu0 0
        %2469 = vmatmul.mubr.bf16.gmra.mrb[0].mxu0 %v1546
        %v2470 = vpop.f32.mrb[0].mxu0
        %v2471 = vadd.f32 %v637, %v2470
        %v2472 = vpop.f32.mrb[0].mxu0
        %v2473 = vpop.f32.mrb[0].mxu0
        %v2474 = vadd.f32 %v637, %v2473
        %v2475 = vpop.f32.mrb[0].mxu0
        %2476 = vdwg.mxu0
        %vm2477 = vcmp.gt.f32.partialorder %v1583, 0.0
        %vm2478 = vcmp.gt.f32.partialorder %v1586, 0.0
        %vm2479 = vcmp.gt.f32.partialorder %v1591, 0.0
        %vm2480 = vcmp.gt.f32.partialorder %v1594, 0.0
        %vm2481 = vcmp.gt.f32.partialorder %v1599, 0.0
        %vm2482 = vcmp.gt.f32.partialorder %v1602, 0.0
        %vm2483 = vcmp.gt.f32.partialorder %v1607, 0.0
        %vm2484 = vcmp.gt.f32.partialorder %v1610, 0.0
        %vm2485 = vcmp.gt.f32.partialorder %v1615, 0.0
        %vm2486 = vcmp.gt.f32.partialorder %v1618, 0.0
        %vm2487 = vcmp.gt.f32.partialorder %v1623, 0.0
        %vm2488 = vcmp.gt.f32.partialorder %v1626, 0.0
        %vm2489 = vcmp.gt.f32.partialorder %v1631, 0.0
        %vm2490 = vcmp.gt.f32.partialorder %v1634, 0.0
        %vm2491 = vcmp.gt.f32.partialorder %v1639, 0.0
        %vm2492 = vcmp.gt.f32.partialorder %v1642, 0.0
        %vm2493 = vcmp.gt.f32.partialorder %v1647, 0.0
        %vm2494 = vcmp.gt.f32.partialorder %v1650, 0.0
        %vm2495 = vcmp.gt.f32.partialorder %v1655, 0.0
        %vm2496 = vcmp.gt.f32.partialorder %v1658, 0.0
        %vm2497 = vcmp.gt.f32.partialorder %v1663, 0.0
        %vm2498 = vcmp.gt.f32.partialorder %v1666, 0.0
        %vm2499 = vcmp.gt.f32.partialorder %v1671, 0.0
        %vm2500 = vcmp.gt.f32.partialorder %v1674, 0.0
        %vm2501 = vcmp.gt.f32.partialorder %v1679, 0.0
        %vm2502 = vcmp.gt.f32.partialorder %v1682, 0.0
        %vm2503 = vcmp.gt.f32.partialorder %v1687, 0.0
        %vm2504 = vcmp.gt.f32.partialorder %v1690, 0.0
        %vm2505 = vcmp.gt.f32.partialorder %v1695, 0.0
        %vm2506 = vcmp.gt.f32.partialorder %v1698, 0.0
        %vm2507 = vcmp.gt.f32.partialorder %v1703, 0.0
        %vm2508 = vcmp.gt.f32.partialorder %v1706, 0.0
        %vm2509 = vcmp.gt.f32.partialorder %v1711, 0.0
        %vm2510 = vcmp.gt.f32.partialorder %v1714, 0.0
        %vm2511 = vcmp.gt.f32.partialorder %v1719, 0.0
        %vm2512 = vcmp.gt.f32.partialorder %v1722, 0.0
        %vm2513 = vcmp.gt.f32.partialorder %v1727, 0.0
        %vm2514 = vcmp.gt.f32.partialorder %v1730, 0.0
        %vm2515 = vcmp.gt.f32.partialorder %v1735, 0.0
        %vm2516 = vcmp.gt.f32.partialorder %v1738, 0.0
        %vm2517 = vcmp.gt.f32.partialorder %v1743, 0.0
        %vm2518 = vcmp.gt.f32.partialorder %v1746, 0.0
        %vm2519 = vcmp.gt.f32.partialorder %v1751, 0.0
        %vm2520 = vcmp.gt.f32.partialorder %v1754, 0.0
        %vm2521 = vcmp.gt.f32.partialorder %v1759, 0.0
        %vm2522 = vcmp.gt.f32.partialorder %v1762, 0.0
        %vm2523 = vcmp.gt.f32.partialorder %v1767, 0.0
        %vm2524 = vcmp.gt.f32.partialorder %v1770, 0.0
        %vm2525 = vcmp.gt.f32.partialorder %v1775, 0.0
        %vm2526 = vcmp.gt.f32.partialorder %v1778, 0.0
        %vm2527 = vcmp.gt.f32.partialorder %v1783, 0.0
        %vm2528 = vcmp.gt.f32.partialorder %v1786, 0.0
        %vm2529 = vcmp.gt.f32.partialorder %v1791, 0.0
        %vm2530 = vcmp.gt.f32.partialorder %v1794, 0.0
        %vm2531 = vcmp.gt.f32.partialorder %v1799, 0.0
        %vm2532 = vcmp.gt.f32.partialorder %v1802, 0.0
        %vm2533 = vcmp.gt.f32.partialorder %v1807, 0.0
        %vm2534 = vcmp.gt.f32.partialorder %v1810, 0.0
        %vm2535 = vcmp.gt.f32.partialorder %v1815, 0.0
        %vm2536 = vcmp.gt.f32.partialorder %v1818, 0.0
        %vm2537 = vcmp.gt.f32.partialorder %v1823, 0.0
        %vm2538 = vcmp.gt.f32.partialorder %v1826, 0.0
        %vm2539 = vcmp.gt.f32.partialorder %v1831, 0.0
        %vm2540 = vcmp.gt.f32.partialorder %v1834, 0.0
        %vm2541 = vcmp.gt.f32.partialorder %v1839, 0.0
        %vm2542 = vcmp.gt.f32.partialorder %v1842, 0.0
        %vm2543 = vcmp.gt.f32.partialorder %v1847, 0.0
        %vm2544 = vcmp.gt.f32.partialorder %v1850, 0.0
        %vm2545 = vcmp.gt.f32.partialorder %v1855, 0.0
        %vm2546 = vcmp.gt.f32.partialorder %v1858, 0.0
        %vm2547 = vcmp.gt.f32.partialorder %v1863, 0.0
        %vm2548 = vcmp.gt.f32.partialorder %v1866, 0.0
        %vm2549 = vcmp.gt.f32.partialorder %v1871, 0.0
        %vm2550 = vcmp.gt.f32.partialorder %v1874, 0.0
        %vm2551 = vcmp.gt.f32.partialorder %v1879, 0.0
        %vm2552 = vcmp.gt.f32.partialorder %v1882, 0.0
        %vm2553 = vcmp.gt.f32.partialorder %v1887, 0.0
        %vm2554 = vcmp.gt.f32.partialorder %v1890, 0.0
        %vm2555 = vcmp.gt.f32.partialorder %v1895, 0.0
        %vm2556 = vcmp.gt.f32.partialorder %v1898, 0.0
        %vm2557 = vcmp.gt.f32.partialorder %v1903, 0.0
        %vm2558 = vcmp.gt.f32.partialorder %v1906, 0.0
        %vm2559 = vcmp.gt.f32.partialorder %v1911, 0.0
        %vm2560 = vcmp.gt.f32.partialorder %v1914, 0.0
        %vm2561 = vcmp.gt.f32.partialorder %v1919, 0.0
        %vm2562 = vcmp.gt.f32.partialorder %v1922, 0.0
        %vm2563 = vcmp.gt.f32.partialorder %v1927, 0.0
        %vm2564 = vcmp.gt.f32.partialorder %v1930, 0.0
        %vm2565 = vcmp.gt.f32.partialorder %v1935, 0.0
        %vm2566 = vcmp.gt.f32.partialorder %v1938, 0.0
        %vm2567 = vcmp.gt.f32.partialorder %v1943, 0.0
        %vm2568 = vcmp.gt.f32.partialorder %v1946, 0.0
        %vm2569 = vcmp.gt.f32.partialorder %v1951, 0.0
        %vm2570 = vcmp.gt.f32.partialorder %v1954, 0.0
        %vm2571 = vcmp.gt.f32.partialorder %v1959, 0.0
        %vm2572 = vcmp.gt.f32.partialorder %v1962, 0.0
        %vm2573 = vcmp.gt.f32.partialorder %v1967, 0.0
        %vm2574 = vcmp.gt.f32.partialorder %v1970, 0.0
        %vm2575 = vcmp.gt.f32.partialorder %v1975, 0.0
        %vm2576 = vcmp.gt.f32.partialorder %v1978, 0.0
        %vm2577 = vcmp.gt.f32.partialorder %v1983, 0.0
        %vm2578 = vcmp.gt.f32.partialorder %v1986, 0.0
        %vm2579 = vcmp.gt.f32.partialorder %v1991, 0.0
        %vm2580 = vcmp.gt.f32.partialorder %v1994, 0.0
        %vm2581 = vcmp.gt.f32.partialorder %v1999, 0.0
        %vm2582 = vcmp.gt.f32.partialorder %v2002, 0.0
        %vm2583 = vcmp.gt.f32.partialorder %v2007, 0.0
        %vm2584 = vcmp.gt.f32.partialorder %v2010, 0.0
        %vm2585 = vcmp.gt.f32.partialorder %v2015, 0.0
        %vm2586 = vcmp.gt.f32.partialorder %v2018, 0.0
        %vm2587 = vcmp.gt.f32.partialorder %v2023, 0.0
        %vm2588 = vcmp.gt.f32.partialorder %v2026, 0.0
        %vm2589 = vcmp.gt.f32.partialorder %v2031, 0.0
        %vm2590 = vcmp.gt.f32.partialorder %v2034, 0.0
        %vm2591 = vcmp.gt.f32.partialorder %v2039, 0.0
        %vm2592 = vcmp.gt.f32.partialorder %v2042, 0.0
        %vm2593 = vcmp.gt.f32.partialorder %v2047, 0.0
        %vm2594 = vcmp.gt.f32.partialorder %v2050, 0.0
        %vm2595 = vcmp.gt.f32.partialorder %v2055, 0.0
        %vm2596 = vcmp.gt.f32.partialorder %v2058, 0.0
        %vm2597 = vcmp.gt.f32.partialorder %v2063, 0.0
        %vm2598 = vcmp.gt.f32.partialorder %v2066, 0.0
        %vm2599 = vcmp.gt.f32.partialorder %v2071, 0.0
        %vm2600 = vcmp.gt.f32.partialorder %v2074, 0.0
        %vm2601 = vcmp.gt.f32.partialorder %v2079, 0.0
        %vm2602 = vcmp.gt.f32.partialorder %v2082, 0.0
        %vm2603 = vcmp.gt.f32.partialorder %v2087, 0.0
        %vm2604 = vcmp.gt.f32.partialorder %v2090, 0.0
        %vm2605 = vcmp.gt.f32.partialorder %v2095, 0.0
        %vm2606 = vcmp.gt.f32.partialorder %v2098, 0.0
        %vm2607 = vcmp.gt.f32.partialorder %v2103, 0.0
        %vm2608 = vcmp.gt.f32.partialorder %v2106, 0.0
        %vm2609 = vcmp.gt.f32.partialorder %v2111, 0.0
        %vm2610 = vcmp.gt.f32.partialorder %v2114, 0.0
        %vm2611 = vcmp.gt.f32.partialorder %v2119, 0.0
        %vm2612 = vcmp.gt.f32.partialorder %v2122, 0.0
        %vm2613 = vcmp.gt.f32.partialorder %v2127, 0.0
        %vm2614 = vcmp.gt.f32.partialorder %v2130, 0.0
        %vm2615 = vcmp.gt.f32.partialorder %v2135, 0.0
        %vm2616 = vcmp.gt.f32.partialorder %v2138, 0.0
        %vm2617 = vcmp.gt.f32.partialorder %v2143, 0.0
        %vm2618 = vcmp.gt.f32.partialorder %v2146, 0.0
        %vm2619 = vcmp.gt.f32.partialorder %v2151, 0.0
        %vm2620 = vcmp.gt.f32.partialorder %v2154, 0.0
        %vm2621 = vcmp.gt.f32.partialorder %v2159, 0.0
        %vm2622 = vcmp.gt.f32.partialorder %v2162, 0.0
        %vm2623 = vcmp.gt.f32.partialorder %v2167, 0.0
        %vm2624 = vcmp.gt.f32.partialorder %v2170, 0.0
        %vm2625 = vcmp.gt.f32.partialorder %v2175, 0.0
        %vm2626 = vcmp.gt.f32.partialorder %v2178, 0.0
        %vm2627 = vcmp.gt.f32.partialorder %v2183, 0.0
        %vm2628 = vcmp.gt.f32.partialorder %v2186, 0.0
        %vm2629 = vcmp.gt.f32.partialorder %v2191, 0.0
        %vm2630 = vcmp.gt.f32.partialorder %v2194, 0.0
        %vm2631 = vcmp.gt.f32.partialorder %v2199, 0.0
        %vm2632 = vcmp.gt.f32.partialorder %v2202, 0.0
        %vm2633 = vcmp.gt.f32.partialorder %v2207, 0.0
        %vm2634 = vcmp.gt.f32.partialorder %v2210, 0.0
        %vm2635 = vcmp.gt.f32.partialorder %v2215, 0.0
        %vm2636 = vcmp.gt.f32.partialorder %v2218, 0.0
        %vm2637 = vcmp.gt.f32.partialorder %v2223, 0.0
        %vm2638 = vcmp.gt.f32.partialorder %v2226, 0.0
        %vm2639 = vcmp.gt.f32.partialorder %v2231, 0.0
        %vm2640 = vcmp.gt.f32.partialorder %v2234, 0.0
        %vm2641 = vcmp.gt.f32.partialorder %v2239, 0.0
        %vm2642 = vcmp.gt.f32.partialorder %v2242, 0.0
        %vm2643 = vcmp.gt.f32.partialorder %v2247, 0.0
        %vm2644 = vcmp.gt.f32.partialorder %v2250, 0.0
        %vm2645 = vcmp.gt.f32.partialorder %v2255, 0.0
        %vm2646 = vcmp.gt.f32.partialorder %v2258, 0.0
        %vm2647 = vcmp.gt.f32.partialorder %v2263, 0.0
        %vm2648 = vcmp.gt.f32.partialorder %v2266, 0.0
        %vm2649 = vcmp.gt.f32.partialorder %v2271, 0.0
        %vm2650 = vcmp.gt.f32.partialorder %v2274, 0.0
        %vm2651 = vcmp.gt.f32.partialorder %v2279, 0.0
        %vm2652 = vcmp.gt.f32.partialorder %v2282, 0.0
        %vm2653 = vcmp.gt.f32.partialorder %v2287, 0.0
        %vm2654 = vcmp.gt.f32.partialorder %v2290, 0.0
        %vm2655 = vcmp.gt.f32.partialorder %v2295, 0.0
        %vm2656 = vcmp.gt.f32.partialorder %v2298, 0.0
        %vm2657 = vcmp.gt.f32.partialorder %v2303, 0.0
        %vm2658 = vcmp.gt.f32.partialorder %v2306, 0.0
        %vm2659 = vcmp.gt.f32.partialorder %v2311, 0.0
        %vm2660 = vcmp.gt.f32.partialorder %v2314, 0.0
        %vm2661 = vcmp.gt.f32.partialorder %v2319, 0.0
        %vm2662 = vcmp.gt.f32.partialorder %v2322, 0.0
        %vm2663 = vcmp.gt.f32.partialorder %v2327, 0.0
        %vm2664 = vcmp.gt.f32.partialorder %v2330, 0.0
        %vm2665 = vcmp.gt.f32.partialorder %v2335, 0.0
        %vm2666 = vcmp.gt.f32.partialorder %v2338, 0.0
        %vm2667 = vcmp.gt.f32.partialorder %v2343, 0.0
        %vm2668 = vcmp.gt.f32.partialorder %v2346, 0.0
        %vm2669 = vcmp.gt.f32.partialorder %v2351, 0.0
        %vm2670 = vcmp.gt.f32.partialorder %v2354, 0.0
        %vm2671 = vcmp.gt.f32.partialorder %v2359, 0.0
        %vm2672 = vcmp.gt.f32.partialorder %v2362, 0.0
        %vm2673 = vcmp.gt.f32.partialorder %v2367, 0.0
        %vm2674 = vcmp.gt.f32.partialorder %v2370, 0.0
        %vm2675 = vcmp.gt.f32.partialorder %v2375, 0.0
        %vm2676 = vcmp.gt.f32.partialorder %v2378, 0.0
        %vm2677 = vcmp.gt.f32.partialorder %v2383, 0.0
        %vm2678 = vcmp.gt.f32.partialorder %v2386, 0.0
        %vm2679 = vcmp.gt.f32.partialorder %v2391, 0.0
        %vm2680 = vcmp.gt.f32.partialorder %v2394, 0.0
        %vm2681 = vcmp.gt.f32.partialorder %v2399, 0.0
        %vm2682 = vcmp.gt.f32.partialorder %v2402, 0.0
        %vm2683 = vcmp.gt.f32.partialorder %v2407, 0.0
        %vm2684 = vcmp.gt.f32.partialorder %v2410, 0.0
        %vm2685 = vcmp.gt.f32.partialorder %v2415, 0.0
        %vm2686 = vcmp.gt.f32.partialorder %v2418, 0.0
        %vm2687 = vcmp.gt.f32.partialorder %v2423, 0.0
        %vm2688 = vcmp.gt.f32.partialorder %v2426, 0.0
        %vm2689 = vcmp.gt.f32.partialorder %v2431, 0.0
        %vm2690 = vcmp.gt.f32.partialorder %v2434, 0.0
        %vm2691 = vcmp.gt.f32.partialorder %v2439, 0.0
        %vm2692 = vcmp.gt.f32.partialorder %v2442, 0.0
        %vm2693 = vcmp.gt.f32.partialorder %v2447, 0.0
        %vm2694 = vcmp.gt.f32.partialorder %v2450, 0.0
        %vm2695 = vcmp.gt.f32.partialorder %v2455, 0.0
        %vm2696 = vcmp.gt.f32.partialorder %v2458, 0.0
        %vm2697 = vcmp.gt.f32.partialorder %v2463, 0.0
        %vm2698 = vcmp.gt.f32.partialorder %v2466, 0.0
        %vm2699 = vcmp.gt.f32.partialorder %v2471, 0.0
        %vm2700 = vcmp.gt.f32.partialorder %v2474, 0.0
        %v2701 = vld [vmem:[%s3] sm:$0x1]
        %v2703 = vlaneseq
        %v2704 = vshrl.u32 %v2703, 7
        %v2705 = vsub.s32 0, %v2704
        %v2706 = vrot.slane %v2701, %v2705
        %v2708 = vmul.f32 %v2706, %v1583
        %v2709 = vmul.f32 %v2706, %v1586
        %v2710 = vmul.f32 %v2706, %v1591
        %v2711 = vmul.f32 %v2706, %v1594
        %v2712 = vmul.f32 %v2706, %v1599
        %v2713 = vmul.f32 %v2706, %v1602
        %v2714 = vmul.f32 %v2706, %v1607
        %v2715 = vmul.f32 %v2706, %v1610
        %v2716 = vmul.f32 %v2706, %v1615
        %v2717 = vmul.f32 %v2706, %v1618
        %v2718 = vmul.f32 %v2706, %v1623
        %v2719 = vmul.f32 %v2706, %v1626
        %v2720 = vmul.f32 %v2706, %v1631
        %v2721 = vmul.f32 %v2706, %v1634
        %v2722 = vmul.f32 %v2706, %v1639
        %v2723 = vmul.f32 %v2706, %v1642
        %v2724 = vmul.f32 %v2706, %v1647
        %v2725 = vmul.f32 %v2706, %v1650
        %v2726 = vmul.f32 %v2706, %v1655
        %v2727 = vmul.f32 %v2706, %v1658
        %v2728 = vmul.f32 %v2706, %v1663
        %v2729 = vmul.f32 %v2706, %v1666
        %v2730 = vmul.f32 %v2706, %v1671
        %v2731 = vmul.f32 %v2706, %v1674
        %v2732 = vmul.f32 %v2706, %v1679
        %v2733 = vmul.f32 %v2706, %v1682
        %v2734 = vmul.f32 %v2706, %v1687
        %v2735 = vmul.f32 %v2706, %v1690
        %v2736 = vmul.f32 %v2706, %v1695
        %v2737 = vmul.f32 %v2706, %v1698
        %v2738 = vmul.f32 %v2706, %v1703
        %v2739 = vmul.f32 %v2706, %v1706
        %v2740 = vmul.f32 %v2706, %v1711
        %v2741 = vmul.f32 %v2706, %v1714
        %v2742 = vmul.f32 %v2706, %v1719
        %v2743 = vmul.f32 %v2706, %v1722
        %v2744 = vmul.f32 %v2706, %v1727
        %v2745 = vmul.f32 %v2706, %v1730
        %v2746 = vmul.f32 %v2706, %v1735
        %v2747 = vmul.f32 %v2706, %v1738
        %v2748 = vmul.f32 %v2706, %v1743
        %v2749 = vmul.f32 %v2706, %v1746
        %v2750 = vmul.f32 %v2706, %v1751
        %v2751 = vmul.f32 %v2706, %v1754
        %v2752 = vmul.f32 %v2706, %v1759
        %v2753 = vmul.f32 %v2706, %v1762
        %v2754 = vmul.f32 %v2706, %v1767
        %v2755 = vmul.f32 %v2706, %v1770
        %v2756 = vmul.f32 %v2706, %v1775
        %v2757 = vmul.f32 %v2706, %v1778
        %v2758 = vmul.f32 %v2706, %v1783
        %v2759 = vmul.f32 %v2706, %v1786
        %v2760 = vmul.f32 %v2706, %v1791
        %v2761 = vmul.f32 %v2706, %v1794
        %v2762 = vmul.f32 %v2706, %v1799
        %v2763 = vmul.f32 %v2706, %v1802
        %v2764 = vmul.f32 %v2706, %v1807
        %v2765 = vmul.f32 %v2706, %v1810
        %v2766 = vmul.f32 %v2706, %v1815
        %v2767 = vmul.f32 %v2706, %v1818
        %v2768 = vmul.f32 %v2706, %v1823
        %v2769 = vmul.f32 %v2706, %v1826
        %v2770 = vmul.f32 %v2706, %v1831
        %v2771 = vmul.f32 %v2706, %v1834
        %v2772 = vmul.f32 %v2706, %v1839
        %v2773 = vmul.f32 %v2706, %v1842
        %v2774 = vmul.f32 %v2706, %v1847
        %v2775 = vmul.f32 %v2706, %v1850
        %v2776 = vmul.f32 %v2706, %v1855
        %v2777 = vmul.f32 %v2706, %v1858
        %v2778 = vmul.f32 %v2706, %v1863
        %v2779 = vmul.f32 %v2706, %v1866
        %v2780 = vmul.f32 %v2706, %v1871
        %v2781 = vmul.f32 %v2706, %v1874
        %v2782 = vmul.f32 %v2706, %v1879
        %v2783 = vmul.f32 %v2706, %v1882
        %v2784 = vmul.f32 %v2706, %v1887
        %v2785 = vmul.f32 %v2706, %v1890
        %v2786 = vmul.f32 %v2706, %v1895
        %v2787 = vmul.f32 %v2706, %v1898
        %v2788 = vmul.f32 %v2706, %v1903
        %v2789 = vmul.f32 %v2706, %v1906
        %v2790 = vmul.f32 %v2706, %v1911
        %v2791 = vmul.f32 %v2706, %v1914
        %v2792 = vmul.f32 %v2706, %v1919
        %v2793 = vmul.f32 %v2706, %v1922
        %v2794 = vmul.f32 %v2706, %v1927
        %v2795 = vmul.f32 %v2706, %v1930
        %v2796 = vmul.f32 %v2706, %v1935
        %v2797 = vmul.f32 %v2706, %v1938
        %v2798 = vmul.f32 %v2706, %v1943
        %v2799 = vmul.f32 %v2706, %v1946
        %v2800 = vmul.f32 %v2706, %v1951
        %v2801 = vmul.f32 %v2706, %v1954
        %v2802 = vmul.f32 %v2706, %v1959
        %v2803 = vmul.f32 %v2706, %v1962
        %v2804 = vmul.f32 %v2706, %v1967
        %v2805 = vmul.f32 %v2706, %v1970
        %v2806 = vmul.f32 %v2706, %v1975
        %v2807 = vmul.f32 %v2706, %v1978
        %v2808 = vmul.f32 %v2706, %v1983
        %v2809 = vmul.f32 %v2706, %v1986
        %v2810 = vmul.f32 %v2706, %v1991
        %v2811 = vmul.f32 %v2706, %v1994
        %v2812 = vmul.f32 %v2706, %v1999
        %v2813 = vmul.f32 %v2706, %v2002
        %v2814 = vmul.f32 %v2706, %v2007
        %v2815 = vmul.f32 %v2706, %v2010
        %v2816 = vmul.f32 %v2706, %v2015
        %v2817 = vmul.f32 %v2706, %v2018
        %v2818 = vmul.f32 %v2706, %v2023
        %v2819 = vmul.f32 %v2706, %v2026
        %v2820 = vmul.f32 %v2706, %v2031
        %v2821 = vmul.f32 %v2706, %v2034
        %v2822 = vmul.f32 %v2706, %v2039
        %v2823 = vmul.f32 %v2706, %v2042
        %v2824 = vmul.f32 %v2706, %v2047
        %v2825 = vmul.f32 %v2706, %v2050
        %v2826 = vmul.f32 %v2706, %v2055
        %v2827 = vmul.f32 %v2706, %v2058
        %v2828 = vmul.f32 %v2706, %v2063
        %v2829 = vmul.f32 %v2706, %v2066
        %v2830 = vmul.f32 %v2706, %v2071
        %v2831 = vmul.f32 %v2706, %v2074
        %v2832 = vmul.f32 %v2706, %v2079
        %v2833 = vmul.f32 %v2706, %v2082
        %v2834 = vmul.f32 %v2706, %v2087
        %v2835 = vmul.f32 %v2706, %v2090
        %v2836 = vmul.f32 %v2706, %v2095
        %v2837 = vmul.f32 %v2706, %v2098
        %v2838 = vmul.f32 %v2706, %v2103
        %v2839 = vmul.f32 %v2706, %v2106
        %v2840 = vmul.f32 %v2706, %v2111
        %v2841 = vmul.f32 %v2706, %v2114
        %v2842 = vmul.f32 %v2706, %v2119
        %v2843 = vmul.f32 %v2706, %v2122
        %v2844 = vmul.f32 %v2706, %v2127
        %v2845 = vmul.f32 %v2706, %v2130
        %v2846 = vmul.f32 %v2706, %v2135
        %v2847 = vmul.f32 %v2706, %v2138
        %v2848 = vmul.f32 %v2706, %v2143
        %v2849 = vmul.f32 %v2706, %v2146
        %v2850 = vmul.f32 %v2706, %v2151
        %v2851 = vmul.f32 %v2706, %v2154
        %v2852 = vmul.f32 %v2706, %v2159
        %v2853 = vmul.f32 %v2706, %v2162
        %v2854 = vmul.f32 %v2706, %v2167
        %v2855 = vmul.f32 %v2706, %v2170
        %v2856 = vmul.f32 %v2706, %v2175
        %v2857 = vmul.f32 %v2706, %v2178
        %v2858 = vmul.f32 %v2706, %v2183
        %v2859 = vmul.f32 %v2706, %v2186
        %v2860 = vmul.f32 %v2706, %v2191
        %v2861 = vmul.f32 %v2706, %v2194
        %v2862 = vmul.f32 %v2706, %v2199
        %v2863 = vmul.f32 %v2706, %v2202
        %v2864 = vmul.f32 %v2706, %v2207
        %v2865 = vmul.f32 %v2706, %v2210
        %v2866 = vmul.f32 %v2706, %v2215
        %v2867 = vmul.f32 %v2706, %v2218
        %v2868 = vmul.f32 %v2706, %v2223
        %v2869 = vmul.f32 %v2706, %v2226
        %v2870 = vmul.f32 %v2706, %v2231
        %v2871 = vmul.f32 %v2706, %v2234
        %v2872 = vmul.f32 %v2706, %v2239
        %v2873 = vmul.f32 %v2706, %v2242
        %v2874 = vmul.f32 %v2706, %v2247
        %v2875 = vmul.f32 %v2706, %v2250
        %v2876 = vmul.f32 %v2706, %v2255
        %v2877 = vmul.f32 %v2706, %v2258
        %v2878 = vmul.f32 %v2706, %v2263
        %v2879 = vmul.f32 %v2706, %v2266
        %v2880 = vmul.f32 %v2706, %v2271
        %v2881 = vmul.f32 %v2706, %v2274
        %v2882 = vmul.f32 %v2706, %v2279
        %v2883 = vmul.f32 %v2706, %v2282
        %v2884 = vmul.f32 %v2706, %v2287
        %v2885 = vmul.f32 %v2706, %v2290
        %v2886 = vmul.f32 %v2706, %v2295
        %v2887 = vmul.f32 %v2706, %v2298
        %v2888 = vmul.f32 %v2706, %v2303
        %v2889 = vmul.f32 %v2706, %v2306
        %v2890 = vmul.f32 %v2706, %v2311
        %v2891 = vmul.f32 %v2706, %v2314
        %v2892 = vmul.f32 %v2706, %v2319
        %v2893 = vmul.f32 %v2706, %v2322
        %v2894 = vmul.f32 %v2706, %v2327
        %v2895 = vmul.f32 %v2706, %v2330
        %v2896 = vmul.f32 %v2706, %v2335
        %v2897 = vmul.f32 %v2706, %v2338
        %v2898 = vmul.f32 %v2706, %v2343
        %v2899 = vmul.f32 %v2706, %v2346
        %v2900 = vmul.f32 %v2706, %v2351
        %v2901 = vmul.f32 %v2706, %v2354
        %v2902 = vmul.f32 %v2706, %v2359
        %v2903 = vmul.f32 %v2706, %v2362
        %v2904 = vmul.f32 %v2706, %v2367
        %v2905 = vmul.f32 %v2706, %v2370
        %v2906 = vmul.f32 %v2706, %v2375
        %v2907 = vmul.f32 %v2706, %v2378
        %v2908 = vmul.f32 %v2706, %v2383
        %v2909 = vmul.f32 %v2706, %v2386
        %v2910 = vmul.f32 %v2706, %v2391
        %v2911 = vmul.f32 %v2706, %v2394
        %v2912 = vmul.f32 %v2706, %v2399
        %v2913 = vmul.f32 %v2706, %v2402
        %v2914 = vmul.f32 %v2706, %v2407
        %v2915 = vmul.f32 %v2706, %v2410
        %v2916 = vmul.f32 %v2706, %v2415
        %v2917 = vmul.f32 %v2706, %v2418
        %v2918 = vmul.f32 %v2706, %v2423
        %v2919 = vmul.f32 %v2706, %v2426
        %v2920 = vmul.f32 %v2706, %v2431
        %v2921 = vmul.f32 %v2706, %v2434
        %v2922 = vmul.f32 %v2706, %v2439
        %v2923 = vmul.f32 %v2706, %v2442
        %v2924 = vmul.f32 %v2706, %v2447
        %v2925 = vmul.f32 %v2706, %v2450
        %v2926 = vmul.f32 %v2706, %v2455
        %v2927 = vmul.f32 %v2706, %v2458
        %v2928 = vmul.f32 %v2706, %v2463
        %v2929 = vmul.f32 %v2706, %v2466
        %v2930 = vmul.f32 %v2706, %v2471
        %v2931 = vmul.f32 %v2706, %v2474
        %v2932 = vsel %vm2477, %v1583, %v2708
        %v2933 = vsel %vm2478, %v1586, %v2709
        %v2934 = vsel %vm2479, %v1591, %v2710
        %v2935 = vsel %vm2480, %v1594, %v2711
        %v2936 = vsel %vm2481, %v1599, %v2712
        %v2937 = vsel %vm2482, %v1602, %v2713
        %v2938 = vsel %vm2483, %v1607, %v2714
        %v2939 = vsel %vm2484, %v1610, %v2715
        %v2940 = vsel %vm2485, %v1615, %v2716
        %v2941 = vsel %vm2486, %v1618, %v2717
        %v2942 = vsel %vm2487, %v1623, %v2718
        %v2943 = vsel %vm2488, %v1626, %v2719
        %v2944 = vsel %vm2489, %v1631, %v2720
        %v2945 = vsel %vm2490, %v1634, %v2721
        %v2946 = vsel %vm2491, %v1639, %v2722
        %v2947 = vsel %vm2492, %v1642, %v2723
        %v2948 = vsel %vm2493, %v1647, %v2724
        %v2949 = vsel %vm2494, %v1650, %v2725
        %v2950 = vsel %vm2495, %v1655, %v2726
        %v2951 = vsel %vm2496, %v1658, %v2727
        %v2952 = vsel %vm2497, %v1663, %v2728
        %v2953 = vsel %vm2498, %v1666, %v2729
        %v2954 = vsel %vm2499, %v1671, %v2730
        %v2955 = vsel %vm2500, %v1674, %v2731
        %v2956 = vsel %vm2501, %v1679, %v2732
        %v2957 = vsel %vm2502, %v1682, %v2733
        %v2958 = vsel %vm2503, %v1687, %v2734
        %v2959 = vsel %vm2504, %v1690, %v2735
        %v2960 = vsel %vm2505, %v1695, %v2736
        %v2961 = vsel %vm2506, %v1698, %v2737
        %v2962 = vsel %vm2507, %v1703, %v2738
        %v2963 = vsel %vm2508, %v1706, %v2739
        %v2964 = vsel %vm2509, %v1711, %v2740
        %v2965 = vsel %vm2510, %v1714, %v2741
        %v2966 = vsel %vm2511, %v1719, %v2742
        %v2967 = vsel %vm2512, %v1722, %v2743
        %v2968 = vsel %vm2513, %v1727, %v2744
        %v2969 = vsel %vm2514, %v1730, %v2745
        %v2970 = vsel %vm2515, %v1735, %v2746
        %v2971 = vsel %vm2516, %v1738, %v2747
        %v2972 = vsel %vm2517, %v1743, %v2748
        %v2973 = vsel %vm2518, %v1746, %v2749
        %v2974 = vsel %vm2519, %v1751, %v2750
        %v2975 = vsel %vm2520, %v1754, %v2751
        %v2976 = vsel %vm2521, %v1759, %v2752
        %v2977 = vsel %vm2522, %v1762, %v2753
        %v2978 = vsel %vm2523, %v1767, %v2754
        %v2979 = vsel %vm2524, %v1770, %v2755
        %v2980 = vsel %vm2525, %v1775, %v2756
        %v2981 = vsel %vm2526, %v1778, %v2757
        %v2982 = vsel %vm2527, %v1783, %v2758
        %v2983 = vsel %vm2528, %v1786, %v2759
        %v2984 = vsel %vm2529, %v1791, %v2760
        %v2985 = vsel %vm2530, %v1794, %v2761
        %v2986 = vsel %vm2531, %v1799, %v2762
        %v2987 = vsel %vm2532, %v1802, %v2763
        %v2988 = vsel %vm2533, %v1807, %v2764
        %v2989 = vsel %vm2534, %v1810, %v2765
        %v2990 = vsel %vm2535, %v1815, %v2766
        %v2991 = vsel %vm2536, %v1818, %v2767
        %v2992 = vsel %vm2537, %v1823, %v2768
        %v2993 = vsel %vm2538, %v1826, %v2769
        %v2994 = vsel %vm2539, %v1831, %v2770
        %v2995 = vsel %vm2540, %v1834, %v2771
        %v2996 = vsel %vm2541, %v1839, %v2772
        %v2997 = vsel %vm2542, %v1842, %v2773
        %v2998 = vsel %vm2543, %v1847, %v2774
        %v2999 = vsel %vm2544, %v1850, %v2775
        %v3000 = vsel %vm2545, %v1855, %v2776
        %v3001 = vsel %vm2546, %v1858, %v2777
        %v3002 = vsel %vm2547, %v1863, %v2778
        %v3003 = vsel %vm2548, %v1866, %v2779
        %v3004 = vsel %vm2549, %v1871, %v2780
        %v3005 = vsel %vm2550, %v1874, %v2781
        %v3006 = vsel %vm2551, %v1879, %v2782
        %v3007 = vsel %vm2552, %v1882, %v2783
        %v3008 = vsel %vm2553, %v1887, %v2784
        %v3009 = vsel %vm2554, %v1890, %v2785
        %v3010 = vsel %vm2555, %v1895, %v2786
        %v3011 = vsel %vm2556, %v1898, %v2787
        %v3012 = vsel %vm2557, %v1903, %v2788
        %v3013 = vsel %vm2558, %v1906, %v2789
        %v3014 = vsel %vm2559, %v1911, %v2790
        %v3015 = vsel %vm2560, %v1914, %v2791
        %v3016 = vsel %vm2561, %v1919, %v2792
        %v3017 = vsel %vm2562, %v1922, %v2793
        %v3018 = vsel %vm2563, %v1927, %v2794
        %v3019 = vsel %vm2564, %v1930, %v2795
        %v3020 = vsel %vm2565, %v1935, %v2796
        %v3021 = vsel %vm2566, %v1938, %v2797
        %v3022 = vsel %vm2567, %v1943, %v2798
        %v3023 = vsel %vm2568, %v1946, %v2799
        %v3024 = vsel %vm2569, %v1951, %v2800
        %v3025 = vsel %vm2570, %v1954, %v2801
        %v3026 = vsel %vm2571, %v1959, %v2802
        %v3027 = vsel %vm2572, %v1962, %v2803
        %v3028 = vsel %vm2573, %v1967, %v2804
        %v3029 = vsel %vm2574, %v1970, %v2805
        %v3030 = vsel %vm2575, %v1975, %v2806
        %v3031 = vsel %vm2576, %v1978, %v2807
        %v3032 = vsel %vm2577, %v1983, %v2808
        %v3033 = vsel %vm2578, %v1986, %v2809
        %v3034 = vsel %vm2579, %v1991, %v2810
        %v3035 = vsel %vm2580, %v1994, %v2811
        %v3036 = vsel %vm2581, %v1999, %v2812
        %v3037 = vsel %vm2582, %v2002, %v2813
        %v3038 = vsel %vm2583, %v2007, %v2814
        %v3039 = vsel %vm2584, %v2010, %v2815
        %v3040 = vsel %vm2585, %v2015, %v2816
        %v3041 = vsel %vm2586, %v2018, %v2817
        %v3042 = vsel %vm2587, %v2023, %v2818
        %v3043 = vsel %vm2588, %v2026, %v2819
        %v3044 = vsel %vm2589, %v2031, %v2820
        %v3045 = vsel %vm2590, %v2034, %v2821
        %v3046 = vsel %vm2591, %v2039, %v2822
        %v3047 = vsel %vm2592, %v2042, %v2823
        %v3048 = vsel %vm2593, %v2047, %v2824
        %v3049 = vsel %vm2594, %v2050, %v2825
        %v3050 = vsel %vm2595, %v2055, %v2826
        %v3051 = vsel %vm2596, %v2058, %v2827
        %v3052 = vsel %vm2597, %v2063, %v2828
        %v3053 = vsel %vm2598, %v2066, %v2829
        %v3054 = vsel %vm2599, %v2071, %v2830
        %v3055 = vsel %vm2600, %v2074, %v2831
        %v3056 = vsel %vm2601, %v2079, %v2832
        %v3057 = vsel %vm2602, %v2082, %v2833
        %v3058 = vsel %vm2603, %v2087, %v2834
        %v3059 = vsel %vm2604, %v2090, %v2835
        %v3060 = vsel %vm2605, %v2095, %v2836
        %v3061 = vsel %vm2606, %v2098, %v2837
        %v3062 = vsel %vm2607, %v2103, %v2838
        %v3063 = vsel %vm2608, %v2106, %v2839
        %v3064 = vsel %vm2609, %v2111, %v2840
        %v3065 = vsel %vm2610, %v2114, %v2841
        %v3066 = vsel %vm2611, %v2119, %v2842
        %v3067 = vsel %vm2612, %v2122, %v2843
        %v3068 = vsel %vm2613, %v2127, %v2844
        %v3069 = vsel %vm2614, %v2130, %v2845
        %v3070 = vsel %vm2615, %v2135, %v2846
        %v3071 = vsel %vm2616, %v2138, %v2847
        %v3072 = vsel %vm2617, %v2143, %v2848
        %v3073 = vsel %vm2618, %v2146, %v2849
        %v3074 = vsel %vm2619, %v2151, %v2850
        %v3075 = vsel %vm2620, %v2154, %v2851
        %v3076 = vsel %vm2621, %v2159, %v2852
        %v3077 = vsel %vm2622, %v2162, %v2853
        %v3078 = vsel %vm2623, %v2167, %v2854
        %v3079 = vsel %vm2624, %v2170, %v2855
        %v3080 = vsel %vm2625, %v2175, %v2856
        %v3081 = vsel %vm2626, %v2178, %v2857
        %v3082 = vsel %vm2627, %v2183, %v2858
        %v3083 = vsel %vm2628, %v2186, %v2859
        %v3084 = vsel %vm2629, %v2191, %v2860
        %v3085 = vsel %vm2630, %v2194, %v2861
        %v3086 = vsel %vm2631, %v2199, %v2862
        %v3087 = vsel %vm2632, %v2202, %v2863
        %v3088 = vsel %vm2633, %v2207, %v2864
        %v3089 = vsel %vm2634, %v2210, %v2865
        %v3090 = vsel %vm2635, %v2215, %v2866
        %v3091 = vsel %vm2636, %v2218, %v2867
        %v3092 = vsel %vm2637, %v2223, %v2868
        %v3093 = vsel %vm2638, %v2226, %v2869
        %v3094 = vsel %vm2639, %v2231, %v2870
        %v3095 = vsel %vm2640, %v2234, %v2871
        %v3096 = vsel %vm2641, %v2239, %v2872
        %v3097 = vsel %vm2642, %v2242, %v2873
        %v3098 = vsel %vm2643, %v2247, %v2874
        %v3099 = vsel %vm2644, %v2250, %v2875
        %v3100 = vsel %vm2645, %v2255, %v2876
        %v3101 = vsel %vm2646, %v2258, %v2877
        %v3102 = vsel %vm2647, %v2263, %v2878
        %v3103 = vsel %vm2648, %v2266, %v2879
        %v3104 = vsel %vm2649, %v2271, %v2880
        %v3105 = vsel %vm2650, %v2274, %v2881
        %v3106 = vsel %vm2651, %v2279, %v2882
        %v3107 = vsel %vm2652, %v2282, %v2883
        %v3108 = vsel %vm2653, %v2287, %v2884
        %v3109 = vsel %vm2654, %v2290, %v2885
        %v3110 = vsel %vm2655, %v2295, %v2886
        %v3111 = vsel %vm2656, %v2298, %v2887
        %v3112 = vsel %vm2657, %v2303, %v2888
        %v3113 = vsel %vm2658, %v2306, %v2889
        %v3114 = vsel %vm2659, %v2311, %v2890
        %v3115 = vsel %vm2660, %v2314, %v2891
        %v3116 = vsel %vm2661, %v2319, %v2892
        %v3117 = vsel %vm2662, %v2322, %v2893
        %v3118 = vsel %vm2663, %v2327, %v2894
        %v3119 = vsel %vm2664, %v2330, %v2895
        %v3120 = vsel %vm2665, %v2335, %v2896
        %v3121 = vsel %vm2666, %v2338, %v2897
        %v3122 = vsel %vm2667, %v2343, %v2898
        %v3123 = vsel %vm2668, %v2346, %v2899
        %v3124 = vsel %vm2669, %v2351, %v2900
        %v3125 = vsel %vm2670, %v2354, %v2901
        %v3126 = vsel %vm2671, %v2359, %v2902
        %v3127 = vsel %vm2672, %v2362, %v2903
        %v3128 = vsel %vm2673, %v2367, %v2904
        %v3129 = vsel %vm2674, %v2370, %v2905
        %v3130 = vsel %vm2675, %v2375, %v2906
        %v3131 = vsel %vm2676, %v2378, %v2907
        %v3132 = vsel %vm2677, %v2383, %v2908
        %v3133 = vsel %vm2678, %v2386, %v2909
        %v3134 = vsel %vm2679, %v2391, %v2910
        %v3135 = vsel %vm2680, %v2394, %v2911
        %v3136 = vsel %vm2681, %v2399, %v2912
        %v3137 = vsel %vm2682, %v2402, %v2913
        %v3138 = vsel %vm2683, %v2407, %v2914
        %v3139 = vsel %vm2684, %v2410, %v2915
        %v3140 = vsel %vm2685, %v2415, %v2916
        %v3141 = vsel %vm2686, %v2418, %v2917
        %v3142 = vsel %vm2687, %v2423, %v2918
        %v3143 = vsel %vm2688, %v2426, %v2919
        %v3144 = vsel %vm2689, %v2431, %v2920
        %v3145 = vsel %vm2690, %v2434, %v2921
        %v3146 = vsel %vm2691, %v2439, %v2922
        %v3147 = vsel %vm2692, %v2442, %v2923
        %v3148 = vsel %vm2693, %v2447, %v2924
        %v3149 = vsel %vm2694, %v2450, %v2925
        %v3150 = vsel %vm2695, %v2455, %v2926
        %v3151 = vsel %vm2696, %v2458, %v2927
        %v3152 = vsel %vm2697, %v2463, %v2928
        %v3153 = vsel %vm2698, %v2466, %v2929
        %v3154 = vsel %vm2699, %v2471, %v2930
        %v3155 = vsel %vm2700, %v2474, %v2931
        %v3156 = vld [vmem:[#allocation2] sm:$0xff]
        %v3157 = vld [vmem:[#allocation2 + $0x8] sm:$0xff]
        %v3158 = vld [vmem:[#allocation2 + $0x10] sm:$0xff]
        %v3159 = vld [vmem:[#allocation2 + $0x18] sm:$0xff]
        %v3160 = vld [vmem:[#allocation2 + $0x20] sm:$0xff]
        %v3161 = vld [vmem:[#allocation2 + $0x28] sm:$0xff]
        %v3162 = vld [vmem:[#allocation2 + $0x30] sm:$0x1]
        %v3163 = vld [vmem:[%s340] sm:$0xff]
        %v3164 = vld [vmem:[%s340 + $0x8] sm:$0xff]
        %v3165 = vld [vmem:[%s340 + $0x10] sm:$0xff]
        %v3166 = vld [vmem:[%s340 + $0x18] sm:$0xff]
        %v3167 = vld [vmem:[%s340 + $0x20] sm:$0xff]
        %v3168 = vld [vmem:[%s340 + $0x28] sm:$0xff]
        %v3169 = vld [vmem:[%s340 + $0x30] sm:$0xff]
        %v3170 = vld [vmem:[%s340 + $0x38] sm:$0xff]
        %v3171 = vld [vmem:[%s340 + $0x40] sm:$0xff]
        %v3172 = vld [vmem:[%s340 + $0x48] sm:$0xff]
        %v3173 = vld [vmem:[%s340 + $0x50] sm:$0xff]
        %v3174 = vld [vmem:[%s340 + $0x58] sm:$0xff]
        %v3175 = vld [vmem:[%s340 + $0x60] sm:$0xff]
        %v3176 = vld [vmem:[%s340 + $0x68] sm:$0xff]
        %v3177 = vld [vmem:[%s340 + $0x70] sm:$0xff]
        %v3178 = vld [vmem:[%s340 + $0x78] sm:$0xff]
        %v3179 = vld [vmem:[%s340 + $0x80] sm:$0xff]
        %v3180 = vld [vmem:[%s340 + $0x88] sm:$0xff]
        %v3181 = vld [vmem:[%s340 + $0x90] sm:$0xff]
        %v3182 = vld [vmem:[%s340 + $0x98] sm:$0xff]
        %v3183 = vld [vmem:[%s340 + $0xa0] sm:$0xff]
        %v3184 = vld [vmem:[%s340 + $0xa8] sm:$0xff]
        %v3185 = vld [vmem:[%s340 + $0xb0] sm:$0xff]
        %v3186 = vld [vmem:[%s340 + $0xb8] sm:$0xff]
        %v3187 = vld [vmem:[%s340 + $0xc0] sm:$0xff]
        %v3188 = vld [vmem:[%s340 + $0xc8] sm:$0xff]
        %v3189 = vld [vmem:[%s340 + $0xd0] sm:$0xff]
        %v3190 = vld [vmem:[%s340 + $0xd8] sm:$0xff]
        %v3191 = vld [vmem:[%s340 + $0xe0] sm:$0xff]
        %v3192 = vld [vmem:[%s340 + $0xe8] sm:$0xff]
        %v3193 = vld [vmem:[%s340 + $0xf0] sm:$0xff]
        %v3194 = vld [vmem:[%s340 + $0xf8] sm:$0xff]
        %v3195 = vld [vmem:[%s340 + $0x100] sm:$0xff]
        %v3196 = vld [vmem:[%s340 + $0x108] sm:$0xff]
        %v3197 = vld [vmem:[%s340 + $0x110] sm:$0xff]
        %v3198 = vld [vmem:[%s340 + $0x118] sm:$0xff]
        %v3199 = vld [vmem:[%s340 + $0x120] sm:$0xff]
        %v3200 = vld [vmem:[%s340 + $0x128] sm:$0xff]
        %v3201 = vld [vmem:[%s340 + $0x130] sm:$0xff]
        %v3202 = vld [vmem:[%s340 + $0x138] sm:$0xff]
        %v3203 = vld [vmem:[%s340 + $0x140] sm:$0xff]
        %v3204 = vld [vmem:[%s340 + $0x148] sm:$0xff]
        %v3205 = vld [vmem:[%s340 + $0x150] sm:$0x11]
        %v3206 = vld [vmem:[%s340 + $0x158] sm:$0x11]
        %v3207 = vld [vmem:[%s340 + $0x160] sm:$0x11]
        %v3208 = vld [vmem:[%s340 + $0x168] sm:$0x11]
        %v3209 = vld [vmem:[%s340 + $0x170] sm:$0x11]
        %v3210 = vld [vmem:[%s340 + $0x178] sm:$0x11]
        %v3211 = vld [vmem:[%s340 + $0x180] sm:$0x11]
        %v3212 = vpack.c.bf16 %v2933, %v2932
        %v3213 = vpack.c.bf16 %v2935, %v2934
        %v3214 = vpack.c.bf16 %v2937, %v2936
        %v3215 = vpack.c.bf16 %v2939, %v2938
        %v3216 = vpack.c.bf16 %v2941, %v2940
        %v3217 = vpack.c.bf16 %v2943, %v2942
        %v3218 = vpack.c.bf16 %v2945, %v2944
        %v3219 = vpack.c.bf16 %v2947, %v2946
        %v3220 = vpack.c.bf16 %v2949, %v2948
        %v3221 = vpack.c.bf16 %v2951, %v2950
        %v3222 = vpack.c.bf16 %v2953, %v2952
        %v3223 = vpack.c.bf16 %v2955, %v2954
        %v3224 = vpack.c.bf16 %v2957, %v2956
        %v3225 = vpack.c.bf16 %v2959, %v2958
        %v3226 = vpack.c.bf16 %v2961, %v2960
        %v3227 = vpack.c.bf16 %v2963, %v2962
        %v3228 = vpack.c.bf16 %v2965, %v2964
        %v3229 = vpack.c.bf16 %v2967, %v2966
        %v3230 = vpack.c.bf16 %v2969, %v2968
        %v3231 = vpack.c.bf16 %v2971, %v2970
        %v3232 = vpack.c.bf16 %v2973, %v2972
        %v3233 = vpack.c.bf16 %v2975, %v2974
        %v3234 = vpack.c.bf16 %v2977, %v2976
        %v3235 = vpack.c.bf16 %v2979, %v2978
        %v3236 = vpack.c.bf16 %v2981, %v2980
        %v3237 = vpack.c.bf16 %v2983, %v2982
        %v3238 = vpack.c.bf16 %v2985, %v2984
        %v3239 = vpack.c.bf16 %v2987, %v2986
        %v3240 = vpack.c.bf16 %v2989, %v2988
        %v3241 = vpack.c.bf16 %v2991, %v2990
        %v3242 = vpack.c.bf16 %v2993, %v2992
        %v3243 = vpack.c.bf16 %v2995, %v2994
        %v3244 = vpack.c.bf16 %v2997, %v2996
        %v3245 = vpack.c.bf16 %v2999, %v2998
        %v3246 = vpack.c.bf16 %v3001, %v3000
        %v3247 = vpack.c.bf16 %v3003, %v3002
        %v3248 = vpack.c.bf16 %v3005, %v3004
        %v3249 = vpack.c.bf16 %v3007, %v3006
        %v3250 = vpack.c.bf16 %v3009, %v3008
        %v3251 = vpack.c.bf16 %v3011, %v3010
        %v3252 = vpack.c.bf16 %v3013, %v3012
        %v3253 = vpack.c.bf16 %v3015, %v3014
        %v3254 = vpack.c.bf16 %v3017, %v3016
        %v3255 = vpack.c.bf16 %v3019, %v3018
        %v3256 = vpack.c.bf16 %v3021, %v3020
        %v3257 = vpack.c.bf16 %v3023, %v3022
        %v3258 = vpack.c.bf16 %v3025, %v3024
        %v3259 = vpack.c.bf16 %v3027, %v3026
        %v3260 = vpack.c.bf16 %v3029, %v3028
        %v3261 = vpack.c.bf16 %v3031, %v3030
        %v3262 = vpack.c.bf16 %v3033, %v3032
        %v3263 = vpack.c.bf16 %v3035, %v3034
        %v3264 = vpack.c.bf16 %v3037, %v3036
        %v3265 = vpack.c.bf16 %v3039, %v3038
        %v3266 = vpack.c.bf16 %v3041, %v3040
        %v3267 = vpack.c.bf16 %v3043, %v3042
        %v3268 = vpack.c.bf16 %v3045, %v3044
        %v3269 = vpack.c.bf16 %v3047, %v3046
        %v3270 = vpack.c.bf16 %v3049, %v3048
        %v3271 = vpack.c.bf16 %v3051, %v3050
        %v3272 = vpack.c.bf16 %v3053, %v3052
        %v3273 = vpack.c.bf16 %v3055, %v3054
        %v3274 = vpack.c.bf16 %v3057, %v3056
        %v3275 = vpack.c.bf16 %v3059, %v3058
        %v3276 = vpack.c.bf16 %v3061, %v3060
        %v3277 = vpack.c.bf16 %v3063, %v3062
        %v3278 = vpack.c.bf16 %v3065, %v3064
        %v3279 = vpack.c.bf16 %v3067, %v3066
        %v3280 = vpack.c.bf16 %v3069, %v3068
        %v3281 = vpack.c.bf16 %v3071, %v3070
        %v3282 = vpack.c.bf16 %v3073, %v3072
        %v3283 = vpack.c.bf16 %v3075, %v3074
        %v3284 = vpack.c.bf16 %v3077, %v3076
        %v3285 = vpack.c.bf16 %v3079, %v3078
        %v3286 = vpack.c.bf16 %v3081, %v3080
        %v3287 = vpack.c.bf16 %v3083, %v3082
        %v3288 = vpack.c.bf16 %v3085, %v3084
        %v3289 = vpack.c.bf16 %v3087, %v3086
        %v3290 = vpack.c.bf16 %v3089, %v3088
        %v3291 = vpack.c.bf16 %v3091, %v3090
        %v3292 = vpack.c.bf16 %v3093, %v3092
        %v3293 = vpack.c.bf16 %v3095, %v3094
        %v3294 = vpack.c.bf16 %v3097, %v3096
        %v3295 = vpack.c.bf16 %v3099, %v3098
        %v3296 = vpack.c.bf16 %v3101, %v3100
        %v3297 = vpack.c.bf16 %v3103, %v3102
        %v3298 = vpack.c.bf16 %v3105, %v3104
        %v3299 = vpack.c.bf16 %v3107, %v3106
        %v3300 = vpack.c.bf16 %v3109, %v3108
        %v3301 = vpack.c.bf16 %v3111, %v3110
        %v3302 = vpack.c.bf16 %v3113, %v3112
        %v3303 = vpack.c.bf16 %v3115, %v3114
        %v3304 = vpack.c.bf16 %v3117, %v3116
        %v3305 = vpack.c.bf16 %v3119, %v3118
        %v3306 = vpack.c.bf16 %v3121, %v3120
        %v3307 = vpack.c.bf16 %v3123, %v3122
        %v3308 = vpack.c.bf16 %v3125, %v3124
        %v3309 = vpack.c.bf16 %v3127, %v3126
        %v3310 = vpack.c.bf16 %v3129, %v3128
        %v3311 = vpack.c.bf16 %v3131, %v3130
        %v3312 = vpack.c.bf16 %v3133, %v3132
        %v3313 = vpack.c.bf16 %v3135, %v3134
        %v3314 = vpack.c.bf16 %v3137, %v3136
        %v3315 = vpack.c.bf16 %v3139, %v3138
        %v3316 = vpack.c.bf16 %v3141, %v3140
        %v3317 = vpack.c.bf16 %v3143, %v3142
        %v3318 = vpack.c.bf16 %v3145, %v3144
        %v3319 = vpack.c.bf16 %v3147, %v3146
        %v3320 = vpack.c.bf16 %v3149, %v3148
        %v3321 = vpack.c.bf16 %v3151, %v3150
        %v3322 = vpack.c.bf16 %v3153, %v3152
        %v3323 = vpack.c.bf16 %v3155, %v3154
        %v3373 = vunpack.c.l.b16 %v3163
        %v3374 = vunpack.c.h.b16 %v3163
        %v3375 = vunpack.c.l.b16 %v3164
        %v3376 = vunpack.c.h.b16 %v3164
        %v3377 = vunpack.c.l.b16 %v3165
        %v3378 = vunpack.c.h.b16 %v3165
        %v3379 = vunpack.c.l.b16 %v3166
        %v3380 = vunpack.c.h.b16 %v3166
        %v3381 = vunpack.c.l.b16 %v3167
        %v3382 = vunpack.c.h.b16 %v3167
        %v3383 = vunpack.c.l.b16 %v3168
        %v3384 = vunpack.c.h.b16 %v3168
        %v3385 = vunpack.c.l.b16 %v3169
        %v3386 = vunpack.c.h.b16 %v3169
        %v3387 = vunpack.c.l.b16 %v3170
        %v3388 = vunpack.c.h.b16 %v3170
        %v3389 = vunpack.c.l.b16 %v3171
        %v3390 = vunpack.c.h.b16 %v3171
        %v3391 = vunpack.c.l.b16 %v3172
        %v3392 = vunpack.c.h.b16 %v3172
        %v3393 = vunpack.c.l.b16 %v3173
        %v3394 = vunpack.c.h.b16 %v3173
        %v3395 = vunpack.c.l.b16 %v3174
        %v3396 = vunpack.c.h.b16 %v3174
        %v3397 = vunpack.c.l.b16 %v3175
        %v3398 = vunpack.c.h.b16 %v3175
        %v3399 = vunpack.c.l.b16 %v3176
        %v3400 = vunpack.c.h.b16 %v3176
        %v3401 = vunpack.c.l.b16 %v3177
        %v3402 = vunpack.c.h.b16 %v3177
        %v3403 = vunpack.c.l.b16 %v3178
        %v3404 = vunpack.c.h.b16 %v3178
        %v3405 = vunpack.c.l.b16 %v3179
        %v3406 = vunpack.c.h.b16 %v3179
        %v3407 = vunpack.c.l.b16 %v3180
        %v3408 = vunpack.c.h.b16 %v3180
        %v3409 = vunpack.c.l.b16 %v3181
        %v3410 = vunpack.c.h.b16 %v3181
        %v3411 = vunpack.c.l.b16 %v3182
        %v3412 = vunpack.c.h.b16 %v3182
        %v3413 = vunpack.c.l.b16 %v3183
        %v3414 = vunpack.c.h.b16 %v3183
        %v3415 = vunpack.c.l.b16 %v3184
        %v3416 = vunpack.c.h.b16 %v3184
        %v3417 = vunpack.c.l.b16 %v3185
        %v3418 = vunpack.c.h.b16 %v3185
        %v3419 = vunpack.c.l.b16 %v3186
        %v3420 = vunpack.c.h.b16 %v3186
        %v3421 = vunpack.c.l.b16 %v3187
        %v3422 = vunpack.c.h.b16 %v3187
        %v3423 = vunpack.c.l.b16 %v3188
        %v3424 = vunpack.c.h.b16 %v3188
        %v3425 = vunpack.c.l.b16 %v3189
        %v3426 = vunpack.c.h.b16 %v3189
        %v3427 = vunpack.c.l.b16 %v3190
        %v3428 = vunpack.c.h.b16 %v3190
        %v3429 = vunpack.c.l.b16 %v3191
        %v3430 = vunpack.c.h.b16 %v3191
        %v3431 = vunpack.c.l.b16 %v3192
        %v3432 = vunpack.c.h.b16 %v3192
        %v3433 = vunpack.c.l.b16 %v3193
        %v3434 = vunpack.c.h.b16 %v3193
        %v3435 = vunpack.c.l.b16 %v3194
        %v3436 = vunpack.c.h.b16 %v3194
        %v3437 = vunpack.c.l.b16 %v3195
        %v3438 = vunpack.c.h.b16 %v3195
        %v3439 = vunpack.c.l.b16 %v3196
        %v3440 = vunpack.c.h.b16 %v3196
        %v3441 = vunpack.c.l.b16 %v3197
        %v3442 = vunpack.c.h.b16 %v3197
        %v3443 = vunpack.c.l.b16 %v3198
        %v3444 = vunpack.c.h.b16 %v3198
        %v3445 = vunpack.c.l.b16 %v3199
        %v3446 = vunpack.c.h.b16 %v3199
        %v3447 = vunpack.c.l.b16 %v3200
        %v3448 = vunpack.c.h.b16 %v3200
        %v3449 = vunpack.c.l.b16 %v3201
        %v3450 = vunpack.c.h.b16 %v3201
        %v3451 = vunpack.c.l.b16 %v3202
        %v3452 = vunpack.c.h.b16 %v3202
        %v3453 = vunpack.c.l.b16 %v3203
        %v3454 = vunpack.c.h.b16 %v3203
        %v3455 = vunpack.c.l.b16 %v3204
        %v3456 = vunpack.c.h.b16 %v3204
        %v3457 = vunpack.c.l.b16 %v3205
        %v3458 = vunpack.c.h.b16 %v3205
        %v3459 = vunpack.c.l.b16 %v3206
        %v3460 = vunpack.c.h.b16 %v3206
        %v3461 = vunpack.c.l.b16 %v3207
        %v3462 = vunpack.c.h.b16 %v3207
        %v3463 = vunpack.c.l.b16 %v3208
        %v3464 = vunpack.c.h.b16 %v3208
        %v3465 = vunpack.c.l.b16 %v3209
        %v3466 = vunpack.c.h.b16 %v3209
        %v3467 = vunpack.c.l.b16 %v3210
        %v3468 = vunpack.c.h.b16 %v3210
        %v3469 = vunpack.c.l.b16 %v3211
        %v3470 = vunpack.c.h.b16 %v3211
        %v3471 = vpack.c.b16 %v3387, %v3373
        %v3472 = vpack.c.b16 %v3388, %v3374
        %v3473 = vpack.c.b16 %v3389, %v3375
        %v3474 = vpack.c.b16 %v3390, %v3376
        %v3475 = vpack.c.b16 %v3391, %v3377
        %v3476 = vpack.c.b16 %v3392, %v3378
        %v3477 = vpack.c.b16 %v3393, %v3379
        %v3478 = vpack.c.b16 %v3394, %v3380
        %v3479 = vpack.c.b16 %v3395, %v3381
        %v3480 = vpack.c.b16 %v3396, %v3382
        %v3481 = vpack.c.b16 %v3397, %v3383
        %v3482 = vpack.c.b16 %v3398, %v3384
        %v3483 = vpack.c.b16 %v3399, %v3385
        %v3484 = vpack.c.b16 %v3400, %v3386
        %v3485 = vpack.c.b16 %v3415, %v3401
        %v3486 = vpack.c.b16 %v3416, %v3402
        %v3487 = vpack.c.b16 %v3417, %v3403
        %v3488 = vpack.c.b16 %v3418, %v3404
        %v3489 = vpack.c.b16 %v3419, %v3405
        %v3490 = vpack.c.b16 %v3420, %v3406
        %v3491 = vpack.c.b16 %v3421, %v3407
        %v3492 = vpack.c.b16 %v3422, %v3408
        %v3493 = vpack.c.b16 %v3423, %v3409
        %v3494 = vpack.c.b16 %v3424, %v3410
        %v3495 = vpack.c.b16 %v3425, %v3411
        %v3496 = vpack.c.b16 %v3426, %v3412
        %v3497 = vpack.c.b16 %v3427, %v3413
        %v3498 = vpack.c.b16 %v3428, %v3414
        %v3499 = vpack.c.b16 %v3443, %v3429
        %v3500 = vpack.c.b16 %v3444, %v3430
        %v3501 = vpack.c.b16 %v3445, %v3431
        %v3502 = vpack.c.b16 %v3446, %v3432
        %v3503 = vpack.c.b16 %v3447, %v3433
        %v3504 = vpack.c.b16 %v3448, %v3434
        %v3505 = vpack.c.b16 %v3449, %v3435
        %v3506 = vpack.c.b16 %v3450, %v3436
        %v3507 = vpack.c.b16 %v3451, %v3437
        %v3508 = vpack.c.b16 %v3452, %v3438
        %v3509 = vpack.c.b16 %v3453, %v3439
        %v3510 = vpack.c.b16 %v3454, %v3440
        %v3511 = vpack.c.b16 %v3455, %v3441
        %v3512 = vpack.c.b16 %v3456, %v3442
        %v3513 = vpack.c.b16 %v3457, %v3457
        %v3514 = vpack.c.b16 %v3458, %v3458
        %v3515 = vpack.c.b16 %v3459, %v3459
        %v3516 = vpack.c.b16 %v3460, %v3460
        %v3517 = vpack.c.b16 %v3461, %v3461
        %v3518 = vpack.c.b16 %v3462, %v3462
        %v3519 = vpack.c.b16 %v3463, %v3463
        %v3520 = vpack.c.b16 %v3464, %v3464
        %v3521 = vpack.c.b16 %v3465, %v3465
        %v3522 = vpack.c.b16 %v3466, %v3466
        %v3523 = vpack.c.b16 %v3467, %v3467
        %v3524 = vpack.c.b16 %v3468, %v3468
        %v3525 = vpack.c.b16 %v3469, %v3469
        %v3526 = vpack.c.b16 %v3470, %v3470
        %3583 = vmatprep.subr.bf16.mxu0 0
        %3584 = vmatpush1.bf16.msra.mxu0 %v3212
        %3585 = vmatprep.subr.bf16.mxu0 0
        %3586 = vmatpush1.bf16.msra.mxu0 %v3213
        %3587 = vmatprep.subr.bf16.mxu0 0
        %3588 = vmatpush1.bf16.msra.mxu0 %v3214
        %3589 = vmatprep.subr.bf16.mxu0 0
        %3590 = vmatpush1.bf16.msra.mxu0 %v3215
        %3591 = vmatprep.subr.bf16.mxu0 0
        %3592 = vmatpush1.bf16.msra.mxu0 %v3216
        %3593 = vmatprep.subr.bf16.mxu0 0
        %3594 = vmatpush1.bf16.msra.mxu0 %v3217
        %3595 = vmatprep.subr.bf16.mxu0 0
        %3596 = vmatpush1.bf16.msra.mxu0 %v3218
        %3597 = vmatprep.subr.bf16.mxu0 0
        %3598 = vmatpush1.bf16.msra.mxu0 %v3219
        %3599 = vmatprep.subr.bf16.mxu0 0
        %3600 = vmatpush1.bf16.msra.mxu0 %v3220
        %3601 = vmatprep.subr.bf16.mxu0 0
        %3602 = vmatpush1.bf16.msra.mxu0 %v3221
        %3603 = vmatprep.subr.bf16.mxu0 0
        %3604 = vmatpush1.bf16.msra.mxu0 %v3222
        %3605 = vmatprep.subr.bf16.mxu0 0
        %3606 = vmatpush1.bf16.msra.mxu0 %v3223
        %3607 = vmatprep.subr.bf16.mxu0 0
        %3608 = vmatpush1.bf16.msra.mxu0 %v3224
        %3609 = vmatprep.subr.bf16.mxu0 0
        %3610 = vmatpush1.bf16.msra.mxu0 %v3225
        %3611 = vmatprep.subr.bf16.mxu0 0
        %3612 = vmatpush1.bf16.msra.mxu0 %v3226
        %3613 = vmatprep.subr.bf16.mxu0 0
        %3614 = vmatpush1.bf16.msra.mxu0 %v3227
        %3615 = vmatprep.mubr.bf16.mxu0 %v3472
        %3616 = vmatmul.mubr.bf16.gmra.mrb[0].mxu0 %v3471
        %v3617 = vpop.f32.mrb[0].mxu0
        %v3618 = vadd.f32 0.0, %v3617
        %v3619 = vpop.f32.mrb[0].mxu0
        %v3620 = vpop.f32.mrb[0].mxu0
        %v3621 = vadd.f32 0.0, %v3620
        %v3622 = vpop.f32.mrb[0].mxu0
        %3623 = vmatprep.mubr.bf16.mxu0 %v3486
        %3624 = vmatmul.mubr.bf16.gmra.mrb[0].mxu0 %v3485
        %v3625 = vpop.f32.mrb[0].mxu0
        %v3626 = vadd.f32 0.0, %v3625
        %v3627 = vpop.f32.mrb[0].mxu0
        %v3628 = vpop.f32.mrb[0].mxu0
        %v3629 = vadd.f32 0.0, %v3628
        %v3630 = vpop.f32.mrb[0].mxu0
        %3631 = vmatprep.mubr.bf16.mxu0 %v3500
        %3632 = vmatmul.mubr.bf16.gmra.mrb[0].mxu0 %v3499
        %v3633 = vpop.f32.mrb[0].mxu0
        %v3634 = vadd.f32 0.0, %v3633
        %v3635 = vpop.f32.mrb[0].mxu0
        %v3636 = vpop.f32.mrb[0].mxu0
        %v3637 = vadd.f32 0.0, %v3636
        %v3638 = vpop.f32.mrb[0].mxu0
        %3639 = vmatprep.mubr.bf16.mxu0 %v3514
        %3640 = vmatmul.mubr.bf16.gmra.mrb[0].mxu0 %v3513
        %v3641 = vpop.f32.mrb[0].mxu0
        %v3642 = vadd.f32 0.0, %v3641
        %v3643 = vpop.f32.mrb[0].mxu0
        %v3644 = vpop.f32.mrb[0].mxu0
        %v3645 = vpop.f32.mrb[0].mxu0
        %3646 = vdwg.mxu0
        %3647 = vmatprep.subr.bf16.mxu0 0
        %3648 = vmatpush1.bf16.msra.mxu0 %v3228
        %3649 = vmatprep.subr.bf16.mxu0 0
        %3650 = vmatpush1.bf16.msra.mxu0 %v3229
        %3651 = vmatprep.subr.bf16.mxu0 0
        %3652 = vmatpush1.bf16.msra.mxu0 %v3230
        %3653 = vmatprep.subr.bf16.mxu0 0
        %3654 = vmatpush1.bf16.msra.mxu0 %v3231
        %3655 = vmatprep.subr.bf16.mxu0 0
        %3656 = vmatpush1.bf16.msra.mxu0 %v3232
        %3657 = vmatprep.subr.bf16.mxu0 0
        %3658 = vmatpush1.bf16.msra.mxu0 %v3233
        %3659 = vmatprep.subr.bf16.mxu0 0
        %3660 = vmatpush1.bf16.msra.mxu0 %v3234
        %3661 = vmatprep.subr.bf16.mxu0 0
        %3662 = vmatpush1.bf16.msra.mxu0 %v3235
        %3663 = vmatprep.subr.bf16.mxu0 0
        %3664 = vmatpush1.bf16.msra.mxu0 %v3236
        %3665 = vmatprep.subr.bf16.mxu0 0
        %3666 = vmatpush1.bf16.msra.mxu0 %v3237
        %3667 = vmatprep.subr.bf16.mxu0 0
        %3668 = vmatpush1.bf16.msra.mxu0 %v3238
        %3669 = vmatprep.subr.bf16.mxu0 0
        %3670 = vmatpush1.bf16.msra.mxu0 %v3239
        %3671 = vmatprep.subr.bf16.mxu0 0
        %3672 = vmatpush1.bf16.msra.mxu0 %v3240
        %3673 = vmatprep.subr.bf16.mxu0 0
        %3674 = vmatpush1.bf16.msra.mxu0 %v3241
        %3675 = vmatprep.subr.bf16.mxu0 0
        %3676 = vmatpush1.bf16.msra.mxu0 %v3242
        %3677 = vmatprep.subr.bf16.mxu0 0
        %3678 = vmatpush1.bf16.msra.mxu0 %v3243
        %3679 = vmatprep.mubr.bf16.mxu0 %v3474
        %3680 = vmatmul.mubr.bf16.gmra.mrb[0].mxu0 %v3473
        %v3681 = vpop.f32.mrb[0].mxu0
        %v3682 = vadd.f32 %v3618, %v3681
        %v3683 = vpop.f32.mrb[0].mxu0
        %v3684 = vpop.f32.mrb[0].mxu0
        %v3685 = vadd.f32 %v3621, %v3684
        %v3686 = vpop.f32.mrb[0].mxu0
        %3687 = vmatprep.mubr.bf16.mxu0 %v3488
        %3688 = vmatmul.mubr.bf16.gmra.mrb[0].mxu0 %v3487
        %v3689 = vpop.f32.mrb[0].mxu0
        %v3690 = vadd.f32 %v3626, %v3689
        %v3691 = vpop.f32.mrb[0].mxu0
        %v3692 = vpop.f32.mrb[0].mxu0
        %v3693 = vadd.f32 %v3629, %v3692
        %v3694 = vpop.f32.mrb[0].mxu0
        %3695 = vmatprep.mubr.bf16.mxu0 %v3502
        %3696 = vmatmul.mubr.bf16.gmra.mrb[0].mxu0 %v3501
        %v3697 = vpop.f32.mrb[0].mxu0
        %v3698 = vadd.f32 %v3634, %v3697
        %v3699 = vpop.f32.mrb[0].mxu0
        %v3700 = vpop.f32.mrb[0].mxu0
        %v3701 = vadd.f32 %v3637, %v3700
        %v3702 = vpop.f32.mrb[0].mxu0
        %3703 = vmatprep.mubr.bf16.mxu0 %v3516
        %3704 = vmatmul.mubr.bf16.gmra.mrb[0].mxu0 %v3515
        %v3705 = vpop.f32.mrb[0].mxu0
        %v3706 = vadd.f32 %v3642, %v3705
        %v3707 = vpop.f32.mrb[0].mxu0
        %v3708 = vpop.f32.mrb[0].mxu0
        %v3709 = vpop.f32.mrb[0].mxu0
        %3710 = vdwg.mxu0
        %3711 = vmatprep.subr.bf16.mxu0 0
        %3712 = vmatpush1.bf16.msra.mxu0 %v3244
        %3713 = vmatprep.subr.bf16.mxu0 0
        %3714 = vmatpush1.bf16.msra.mxu0 %v3245
        %3715 = vmatprep.subr.bf16.mxu0 0
        %3716 = vmatpush1.bf16.msra.mxu0 %v3246
        %3717 = vmatprep.subr.bf16.mxu0 0
        %3718 = vmatpush1.bf16.msra.mxu0 %v3247
        %3719 = vmatprep.subr.bf16.mxu0 0
        %3720 = vmatpush1.bf16.msra.mxu0 %v3248
        %3721 = vmatprep.subr.bf16.mxu0 0
        %3722 = vmatpush1.bf16.msra.mxu0 %v3249
        %3723 = vmatprep.subr.bf16.mxu0 0
        %3724 = vmatpush1.bf16.msra.mxu0 %v3250
        %3725 = vmatprep.subr.bf16.mxu0 0
        %3726 = vmatpush1.bf16.msra.mxu0 %v3251
        %3727 = vmatprep.subr.bf16.mxu0 0
        %3728 = vmatpush1.bf16.msra.mxu0 %v3252
        %3729 = vmatprep.subr.bf16.mxu0 0
        %3730 = vmatpush1.bf16.msra.mxu0 %v3253
        %3731 = vmatprep.subr.bf16.mxu0 0
        %3732 = vmatpush1.bf16.msra.mxu0 %v3254
        %3733 = vmatprep.subr.bf16.mxu0 0
        %3734 = vmatpush1.bf16.msra.mxu0 %v3255
        %3735 = vmatprep.subr.bf16.mxu0 0
        %3736 = vmatpush1.bf16.msra.mxu0 %v3256
        %3737 = vmatprep.subr.bf16.mxu0 0
        %3738 = vmatpush1.bf16.msra.mxu0 %v3257
        %3739 = vmatprep.subr.bf16.mxu0 0
        %3740 = vmatpush1.bf16.msra.mxu0 %v3258
        %3741 = vmatprep.subr.bf16.mxu0 0
        %3742 = vmatpush1.bf16.msra.mxu0 %v3259
        %3743 = vmatprep.mubr.bf16.mxu0 %v3476
        %3744 = vmatmul.mubr.bf16.gmra.mrb[0].mxu0 %v3475
        %v3745 = vpop.f32.mrb[0].mxu0
        %v3746 = vadd.f32 %v3682, %v3745
        %v3747 = vpop.f32.mrb[0].mxu0
        %v3748 = vpop.f32.mrb[0].mxu0
        %v3749 = vadd.f32 %v3685, %v3748
        %v3750 = vpop.f32.mrb[0].mxu0
        %3751 = vmatprep.mubr.bf16.mxu0 %v3490
        %3752 = vmatmul.mubr.bf16.gmra.mrb[0].mxu0 %v3489
        %v3753 = vpop.f32.mrb[0].mxu0
        %v3754 = vadd.f32 %v3690, %v3753
        %v3755 = vpop.f32.mrb[0].mxu0
        %v3756 = vpop.f32.mrb[0].mxu0
        %v3757 = vadd.f32 %v3693, %v3756
        %v3758 = vpop.f32.mrb[0].mxu0
        %3759 = vmatprep.mubr.bf16.mxu0 %v3504
        %3760 = vmatmul.mubr.bf16.gmra.mrb[0].mxu0 %v3503
        %v3761 = vpop.f32.mrb[0].mxu0
        %v3762 = vadd.f32 %v3698, %v3761
        %v3763 = vpop.f32.mrb[0].mxu0
        %v3764 = vpop.f32.mrb[0].mxu0
        %v3765 = vadd.f32 %v3701, %v3764
        %v3766 = vpop.f32.mrb[0].mxu0
        %3767 = vmatprep.mubr.bf16.mxu0 %v3518
        %3768 = vmatmul.mubr.bf16.gmra.mrb[0].mxu0 %v3517
        %v3769 = vpop.f32.mrb[0].mxu0
        %v3770 = vadd.f32 %v3706, %v3769
        %v3771 = vpop.f32.mrb[0].mxu0
        %v3772 = vpop.f32.mrb[0].mxu0
        %v3773 = vpop.f32.mrb[0].mxu0
        %3774 = vdwg.mxu0
        %3775 = vmatprep.subr.bf16.mxu0 0
        %3776 = vmatpush1.bf16.msra.mxu0 %v3260
        %3777 = vmatprep.subr.bf16.mxu0 0
        %3778 = vmatpush1.bf16.msra.mxu0 %v3261
        %3779 = vmatprep.subr.bf16.mxu0 0
        %3780 = vmatpush1.bf16.msra.mxu0 %v3262
        %3781 = vmatprep.subr.bf16.mxu0 0
        %3782 = vmatpush1.bf16.msra.mxu0 %v3263
        %3783 = vmatprep.subr.bf16.mxu0 0
        %3784 = vmatpush1.bf16.msra.mxu0 %v3264
        %3785 = vmatprep.subr.bf16.mxu0 0
        %3786 = vmatpush1.bf16.msra.mxu0 %v3265
        %3787 = vmatprep.subr.bf16.mxu0 0
        %3788 = vmatpush1.bf16.msra.mxu0 %v3266
        %3789 = vmatprep.subr.bf16.mxu0 0
        %3790 = vmatpush1.bf16.msra.mxu0 %v3267
        %3791 = vmatprep.subr.bf16.mxu0 0
        %3792 = vmatpush1.bf16.msra.mxu0 %v3268
        %3793 = vmatprep.subr.bf16.mxu0 0
        %3794 = vmatpush1.bf16.msra.mxu0 %v3269
        %3795 = vmatprep.subr.bf16.mxu0 0
        %3796 = vmatpush1.bf16.msra.mxu0 %v3270
        %3797 = vmatprep.subr.bf16.mxu0 0
        %3798 = vmatpush1.bf16.msra.mxu0 %v3271
        %3799 = vmatprep.subr.bf16.mxu0 0
        %3800 = vmatpush1.bf16.msra.mxu0 %v3272
        %3801 = vmatprep.subr.bf16.mxu0 0
        %3802 = vmatpush1.bf16.msra.mxu0 %v3273
        %3803 = vmatprep.subr.bf16.mxu0 0
        %3804 = vmatpush1.bf16.msra.mxu0 %v3274
        %3805 = vmatprep.subr.bf16.mxu0 0
        %3806 = vmatpush1.bf16.msra.mxu0 %v3275
        %3807 = vmatprep.mubr.bf16.mxu0 %v3478
        %3808 = vmatmul.mubr.bf16.gmra.mrb[0].mxu0 %v3477
        %v3809 = vpop.f32.mrb[0].mxu0
        %v3810 = vadd.f32 %v3746, %v3809
        %v3811 = vpop.f32.mrb[0].mxu0
        %v3812 = vpop.f32.mrb[0].mxu0
        %v3813 = vadd.f32 %v3749, %v3812
        %v3814 = vpop.f32.mrb[0].mxu0
        %3815 = vmatprep.mubr.bf16.mxu0 %v3492
        %3816 = vmatmul.mubr.bf16.gmra.mrb[0].mxu0 %v3491
        %v3817 = vpop.f32.mrb[0].mxu0
        %v3818 = vadd.f32 %v3754, %v3817
        %v3819 = vpop.f32.mrb[0].mxu0
        %v3820 = vpop.f32.mrb[0].mxu0
        %v3821 = vadd.f32 %v3757, %v3820
        %v3822 = vpop.f32.mrb[0].mxu0
        %3823 = vmatprep.mubr.bf16.mxu0 %v3506
        %3824 = vmatmul.mubr.bf16.gmra.mrb[0].mxu0 %v3505
        %v3825 = vpop.f32.mrb[0].mxu0
        %v3826 = vadd.f32 %v3762, %v3825
        %v3827 = vpop.f32.mrb[0].mxu0
        %v3828 = vpop.f32.mrb[0].mxu0
        %v3829 = vadd.f32 %v3765, %v3828
        %v3830 = vpop.f32.mrb[0].mxu0
        %3831 = vmatprep.mubr.bf16.mxu0 %v3520
        %3832 = vmatmul.mubr.bf16.gmra.mrb[0].mxu0 %v3519
        %v3833 = vpop.f32.mrb[0].mxu0
        %v3834 = vadd.f32 %v3770, %v3833
        %v3835 = vpop.f32.mrb[0].mxu0
        %v3836 = vpop.f32.mrb[0].mxu0
        %v3837 = vpop.f32.mrb[0].mxu0
        %3838 = vdwg.mxu0
        %3839 = vmatprep.subr.bf16.mxu0 0
        %3840 = vmatpush1.bf16.msra.mxu0 %v3276
        %3841 = vmatprep.subr.bf16.mxu0 0
        %3842 = vmatpush1.bf16.msra.mxu0 %v3277
        %3843 = vmatprep.subr.bf16.mxu0 0
        %3844 = vmatpush1.bf16.msra.mxu0 %v3278
        %3845 = vmatprep.subr.bf16.mxu0 0
        %3846 = vmatpush1.bf16.msra.mxu0 %v3279
        %3847 = vmatprep.subr.bf16.mxu0 0
        %3848 = vmatpush1.bf16.msra.mxu0 %v3280
        %3849 = vmatprep.subr.bf16.mxu0 0
        %3850 = vmatpush1.bf16.msra.mxu0 %v3281
        %3851 = vmatprep.subr.bf16.mxu0 0
        %3852 = vmatpush1.bf16.msra.mxu0 %v3282
        %3853 = vmatprep.subr.bf16.mxu0 0
        %3854 = vmatpush1.bf16.msra.mxu0 %v3283
        %3855 = vmatprep.subr.bf16.mxu0 0
        %3856 = vmatpush1.bf16.msra.mxu0 %v3284
        %3857 = vmatprep.subr.bf16.mxu0 0
        %3858 = vmatpush1.bf16.msra.mxu0 %v3285
        %3859 = vmatprep.subr.bf16.mxu0 0
        %3860 = vmatpush1.bf16.msra.mxu0 %v3286
        %3861 = vmatprep.subr.bf16.mxu0 0
        %3862 = vmatpush1.bf16.msra.mxu0 %v3287
        %3863 = vmatprep.subr.bf16.mxu0 0
        %3864 = vmatpush1.bf16.msra.mxu0 %v3288
        %3865 = vmatprep.subr.bf16.mxu0 0
        %3866 = vmatpush1.bf16.msra.mxu0 %v3289
        %3867 = vmatprep.subr.bf16.mxu0 0
        %3868 = vmatpush1.bf16.msra.mxu0 %v3290
        %3869 = vmatprep.subr.bf16.mxu0 0
        %3870 = vmatpush1.bf16.msra.mxu0 %v3291
        %3871 = vmatprep.mubr.bf16.mxu0 %v3480
        %3872 = vmatmul.mubr.bf16.gmra.mrb[0].mxu0 %v3479
        %v3873 = vpop.f32.mrb[0].mxu0
        %v3874 = vadd.f32 %v3810, %v3873
        %v3875 = vpop.f32.mrb[0].mxu0
        %v3876 = vpop.f32.mrb[0].mxu0
        %v3877 = vadd.f32 %v3813, %v3876
        %v3878 = vpop.f32.mrb[0].mxu0
        %3879 = vmatprep.mubr.bf16.mxu0 %v3494
        %3880 = vmatmul.mubr.bf16.gmra.mrb[0].mxu0 %v3493
        %v3881 = vpop.f32.mrb[0].mxu0
        %v3882 = vadd.f32 %v3818, %v3881
        %v3883 = vpop.f32.mrb[0].mxu0
        %v3884 = vpop.f32.mrb[0].mxu0
        %v3885 = vadd.f32 %v3821, %v3884
        %v3886 = vpop.f32.mrb[0].mxu0
        %3887 = vmatprep.mubr.bf16.mxu0 %v3508
        %3888 = vmatmul.mubr.bf16.gmra.mrb[0].mxu0 %v3507
        %v3889 = vpop.f32.mrb[0].mxu0
        %v3890 = vadd.f32 %v3826, %v3889
        %v3891 = vpop.f32.mrb[0].mxu0
        %v3892 = vpop.f32.mrb[0].mxu0
        %v3893 = vadd.f32 %v3829, %v3892
        %v3894 = vpop.f32.mrb[0].mxu0
        %3895 = vmatprep.mubr.bf16.mxu0 %v3522
        %3896 = vmatmul.mubr.bf16.gmra.mrb[0].mxu0 %v3521
        %v3897 = vpop.f32.mrb[0].mxu0
        %v3898 = vadd.f32 %v3834, %v3897
        %v3899 = vpop.f32.mrb[0].mxu0
        %v3900 = vpop.f32.mrb[0].mxu0
        %v3901 = vpop.f32.mrb[0].mxu0
        %3902 = vdwg.mxu0
        %3903 = vmatprep.subr.bf16.mxu0 0
        %3904 = vmatpush1.bf16.msra.mxu0 %v3292
        %3905 = vmatprep.subr.bf16.mxu0 0
        %3906 = vmatpush1.bf16.msra.mxu0 %v3293
        %3907 = vmatprep.subr.bf16.mxu0 0
        %3908 = vmatpush1.bf16.msra.mxu0 %v3294
        %3909 = vmatprep.subr.bf16.mxu0 0
        %3910 = vmatpush1.bf16.msra.mxu0 %v3295
        %3911 = vmatprep.subr.bf16.mxu0 0
        %3912 = vmatpush1.bf16.msra.mxu0 %v3296
        %3913 = vmatprep.subr.bf16.mxu0 0
        %3914 = vmatpush1.bf16.msra.mxu0 %v3297
        %3915 = vmatprep.subr.bf16.mxu0 0
        %3916 = vmatpush1.bf16.msra.mxu0 %v3298
        %3917 = vmatprep.subr.bf16.mxu0 0
        %3918 = vmatpush1.bf16.msra.mxu0 %v3299
        %3919 = vmatprep.subr.bf16.mxu0 0
        %3920 = vmatpush1.bf16.msra.mxu0 %v3300
        %3921 = vmatprep.subr.bf16.mxu0 0
        %3922 = vmatpush1.bf16.msra.mxu0 %v3301
        %3923 = vmatprep.subr.bf16.mxu0 0
        %3924 = vmatpush1.bf16.msra.mxu0 %v3302
        %3925 = vmatprep.subr.bf16.mxu0 0
        %3926 = vmatpush1.bf16.msra.mxu0 %v3303
        %3927 = vmatprep.subr.bf16.mxu0 0
        %3928 = vmatpush1.bf16.msra.mxu0 %v3304
        %3929 = vmatprep.subr.bf16.mxu0 0
        %3930 = vmatpush1.bf16.msra.mxu0 %v3305
        %3931 = vmatprep.subr.bf16.mxu0 0
        %3932 = vmatpush1.bf16.msra.mxu0 %v3306
        %3933 = vmatprep.subr.bf16.mxu0 0
        %3934 = vmatpush1.bf16.msra.mxu0 %v3307
        %3935 = vmatprep.mubr.bf16.mxu0 %v3482
        %3936 = vmatmul.mubr.bf16.gmra.mrb[0].mxu0 %v3481
        %v3937 = vpop.f32.mrb[0].mxu0
        %v3938 = vadd.f32 %v3874, %v3937
        %v3939 = vpop.f32.mrb[0].mxu0
        %v3940 = vpop.f32.mrb[0].mxu0
        %v3941 = vadd.f32 %v3877, %v3940
        %v3942 = vpop.f32.mrb[0].mxu0
        %3943 = vmatprep.mubr.bf16.mxu0 %v3496
        %3944 = vmatmul.mubr.bf16.gmra.mrb[0].mxu0 %v3495
        %v3945 = vpop.f32.mrb[0].mxu0
        %v3946 = vadd.f32 %v3882, %v3945
        %v3947 = vpop.f32.mrb[0].mxu0
        %v3948 = vpop.f32.mrb[0].mxu0
        %v3949 = vadd.f32 %v3885, %v3948
        %v3950 = vpop.f32.mrb[0].mxu0
        %3951 = vmatprep.mubr.bf16.mxu0 %v3510
        %3952 = vmatmul.mubr.bf16.gmra.mrb[0].mxu0 %v3509
        %v3953 = vpop.f32.mrb[0].mxu0
        %v3954 = vadd.f32 %v3890, %v3953
        %v3955 = vpop.f32.mrb[0].mxu0
        %v3956 = vpop.f32.mrb[0].mxu0
        %v3957 = vadd.f32 %v3893, %v3956
        %v3958 = vpop.f32.mrb[0].mxu0
        %3959 = vmatprep.mubr.bf16.mxu0 %v3524
        %3960 = vmatmul.mubr.bf16.gmra.mrb[0].mxu0 %v3523
        %v3961 = vpop.f32.mrb[0].mxu0
        %v3962 = vadd.f32 %v3898, %v3961
        %v3963 = vpop.f32.mrb[0].mxu0
        %v3964 = vpop.f32.mrb[0].mxu0
        %v3965 = vpop.f32.mrb[0].mxu0
        %3966 = vdwg.mxu0
        %3967 = vmatprep.subr.bf16.mxu0 0
        %3968 = vmatpush1.bf16.msra.mxu0 %v3308
        %3969 = vmatprep.subr.bf16.mxu0 0
        %3970 = vmatpush1.bf16.msra.mxu0 %v3309
        %3971 = vmatprep.subr.bf16.mxu0 0
        %3972 = vmatpush1.bf16.msra.mxu0 %v3310
        %3973 = vmatprep.subr.bf16.mxu0 0
        %3974 = vmatpush1.bf16.msra.mxu0 %v3311
        %3975 = vmatprep.subr.bf16.mxu0 0
        %3976 = vmatpush1.bf16.msra.mxu0 %v3312
        %3977 = vmatprep.subr.bf16.mxu0 0
        %3978 = vmatpush1.bf16.msra.mxu0 %v3313
        %3979 = vmatprep.subr.bf16.mxu0 0
        %3980 = vmatpush1.bf16.msra.mxu0 %v3314
        %3981 = vmatprep.subr.bf16.mxu0 0
        %3982 = vmatpush1.bf16.msra.mxu0 %v3315
        %3983 = vmatprep.subr.bf16.mxu0 0
        %3984 = vmatpush1.bf16.msra.mxu0 %v3316
        %3985 = vmatprep.subr.bf16.mxu0 0
        %3986 = vmatpush1.bf16.msra.mxu0 %v3317
        %3987 = vmatprep.subr.bf16.mxu0 0
        %3988 = vmatpush1.bf16.msra.mxu0 %v3318
        %3989 = vmatprep.subr.bf16.mxu0 0
        %3990 = vmatpush1.bf16.msra.mxu0 %v3319
        %3991 = vmatprep.subr.bf16.mxu0 0
        %3992 = vmatpush1.bf16.msra.mxu0 %v3320
        %3993 = vmatprep.subr.bf16.mxu0 0
        %3994 = vmatpush1.bf16.msra.mxu0 %v3321
        %3995 = vmatprep.subr.bf16.mxu0 0
        %3996 = vmatpush1.bf16.msra.mxu0 %v3322
        %3997 = vmatprep.subr.bf16.mxu0 0
        %3998 = vmatpush1.bf16.msra.mxu0 %v3323
        %3999 = vmatprep.mubr.bf16.mxu0 %v3484
        %4000 = vmatmul.mubr.bf16.gmra.mrb[0].mxu0 %v3483
        %v4001 = vpop.f32.mrb[0].mxu0
        %v4002 = vadd.f32 %v3938, %v4001
        %v4003 = vpop.f32.mrb[0].mxu0
        %v4004 = vpop.f32.mrb[0].mxu0
        %v4005 = vadd.f32 %v3941, %v4004
        %v4006 = vpop.f32.mrb[0].mxu0
        %4007 = vmatprep.mubr.bf16.mxu0 %v3498
        %4008 = vmatmul.mubr.bf16.gmra.mrb[0].mxu0 %v3497
        %v4009 = vpop.f32.mrb[0].mxu0
        %v4010 = vadd.f32 %v3946, %v4009
        %v4011 = vpop.f32.mrb[0].mxu0
        %v4012 = vpop.f32.mrb[0].mxu0
        %v4013 = vadd.f32 %v3949, %v4012
        %v4014 = vpop.f32.mrb[0].mxu0
        %4015 = vmatprep.mubr.bf16.mxu0 %v3512
        %4016 = vmatmul.mubr.bf16.gmra.mrb[0].mxu0 %v3511
        %v4017 = vpop.f32.mrb[0].mxu0
        %v4018 = vadd.f32 %v3954, %v4017
        %v4019 = vpop.f32.mrb[0].mxu0
        %v4020 = vpop.f32.mrb[0].mxu0
        %v4021 = vadd.f32 %v3957, %v4020
        %v4022 = vpop.f32.mrb[0].mxu0
        %4023 = vmatprep.mubr.bf16.mxu0 %v3526
        %4024 = vmatmul.mubr.bf16.gmra.mrb[0].mxu0 %v3525
        %v4025 = vpop.f32.mrb[0].mxu0
        %v4026 = vadd.f32 %v3962, %v4025
        %v4027 = vpop.f32.mrb[0].mxu0
        %v4028 = vpop.f32.mrb[0].mxu0
        %v4029 = vpop.f32.mrb[0].mxu0
        %4030 = vdwg.mxu0
        %v4031 = vadd.f32 %v3156, %v4002
        %v4032 = vadd.f32 %v3157, %v4005
        %v4033 = vadd.f32 %v3158, %v4010
        %v4034 = vadd.f32 %v3159, %v4013
        %v4035 = vadd.f32 %v3160, %v4018
        %v4036 = vadd.f32 %v3161, %v4021
        %v4037 = vadd.f32 %v3162, %v4026
        %vm4038 = vcmask 523264
        %4039 = vst.msk [vmem:[#allocation2] sm:$0xff] %vm4038, %v4031
        %4040 = vst.msk [vmem:[#allocation2 + $0x8] sm:$0xff] %vm4038, %v4032
        %4041 = vst.msk [vmem:[#allocation2 + $0x10] sm:$0xff] %vm4038, %v4033
        %4042 = vst.msk [vmem:[#allocation2 + $0x18] sm:$0xff] %vm4038, %v4034
        %4043 = vst.msk [vmem:[#allocation2 + $0x20] sm:$0xff] %vm4038, %v4035
        %4044 = vst.msk [vmem:[#allocation2 + $0x28] sm:$0xff] %vm4038, %v4036
        %vm4045 = vcmask 516096
        %4046 = vst.msk [vmem:[#allocation2 + $0x30] sm:$0x1] %vm4045, %v4037
        %p4047 = scmp.eq.s32.totalorder %s21, 6
        // Predicated region
        $region68: #{id_loss_forward.4} parent=58 // pred_check
          %p4048 = pneg %p4047
        $region69: #{id_loss_forward.4} parent=58 // pred_check_branch
          %4050 = sbr.rel (%p4048) target = $region71
        $region70: #{id_loss_forward.4} parent=58 // pred_region
          %v4051 = vld [vmem:[#allocation2] sm:$0xff]
          %v4052 = vld [vmem:[#allocation2 + $0x8] sm:$0xff]
          %v4053 = vld [vmem:[#allocation2 + $0x10] sm:$0xff]
          %v4054 = vld [vmem:[#allocation2 + $0x18] sm:$0xff]
          %v4055 = vld [vmem:[#allocation2 + $0x20] sm:$0xff]
          %v4056 = vld [vmem:[#allocation2 + $0x28] sm:$0xff]
          %v4057 = vld [vmem:[#allocation2 + $0x30] sm:$0x1]
          %4058 = vst.msk [vmem:[%s389] sm:$0xff] %vm4038, %v4051
          %4059 = vst.msk [vmem:[%s389 + $0x8] sm:$0xff] %vm4038, %v4052
          %4060 = vst.msk [vmem:[%s389 + $0x10] sm:$0xff] %vm4038, %v4053
          %4061 = vst.msk [vmem:[%s389 + $0x18] sm:$0xff] %vm4038, %v4054
          %4062 = vst.msk [vmem:[%s389 + $0x20] sm:$0xff] %vm4038, %v4055
          %4063 = vst.msk [vmem:[%s389 + $0x28] sm:$0xff] %vm4038, %v4056
          %4064 = vst.msk [vmem:[%s389 + $0x30] sm:$0x1] %vm4045, %v4057
        $region71: #{id_loss_forward.4} parent=58 // pred_fallthru
          _
        %p4065 = scmp.lt.s32.totalorder %s20, 1
        %s4066 = scalar_select %p4065, %s20, 1
        %s4067 = smul.addr %s4066, 7
        %s4068 = smul.addr %s4067, 8
        %s4069 = scalar_lea.vmem %s5, %s4068
        // Predicated region
        $region72: #{id_loss_forward.4} parent=58 // pred_check
          %p4070 = pneg %p163
        $region73: #{id_loss_forward.4} parent=58 // pred_check_branch
          %4072 = sbr.rel (%p4070) target = $region75
        $region74: #{id_loss_forward.4} parent=58 // pred_region
          _
        $region75: #{id_loss_forward.4} parent=58 // pred_fallthru
          _
      $region59: #{id_loss_forward.4} parent=5 // pred_fallthru
        _
      %p4073 = scmp.le.s32.totalorder 2, %s11
      // Predicated region
      $region76: #{id_loss_forward.4} parent=5 // pred_check
        %p4074 = pneg %p4073
      $region77: #{id_loss_forward.4} parent=5 // pred_check_branch
        %4076 = sbr.rel (%p4074) target = $region79
      $region78: #{id_loss_forward.4} parent=5 // pred_region
        %s4077 = ssub.s32 %s11, 2
        // Predicated region
        $region80: #{id_loss_forward.4} parent=78 // pred_check
          %p4078 = pneg %p169
        $region81: #{id_loss_forward.4} parent=78 // pred_check_branch
          %4080 = sbr.rel (%p4078) target = $region83
        $region82: #{id_loss_forward.4} parent=78 // pred_region
          %p4081 = scmp.lt.s32.totalorder %s22, 1
          %s4082 = scalar_select %p4081, %s22, 1
          %s4083 = smul.addr %s4082, 7
          %s4084 = smul.addr %s4083, 8
          %s4085 = scalar_lea.vmem %s5, %s4084
        $region83: #{id_loss_forward.4} parent=78 // pred_fallthru
          _
      $region79: #{id_loss_forward.4} parent=5 // pred_fallthru
        _
    $region6: #{id_loss_forward.4} parent=1 // loop_footer
      %s15 = sadd.s32 1, %s11
    $region7: #{id_loss_forward.4} parent=1 // loop_footer_branch
      %10 = sbr.rel target = $region3
    $region8: #{id_loss_forward.4} parent=1 // loop_exit
      _

// kernel: id_loss_forward.5
$region0: #{id_loss_forward.5}
  #allocation0 [shape = 'u32[]', space=smem, size = 0x4, offset = 0x4, fixed_abs, tag = 'smem constant byte address 0x4 - core index']
  #allocation1 [shape = 'u32[144,128]{1,0:T(1,128)}', space=vmem, size = 0x12000, scoped, tag = 'internal scratch']
  %s0 = inlined_call_operand.vmem [shape: f32[2,3136], index: 0, kind: input, shape index: {}]
  %s1 = inlined_call_operand.vmem [shape: bf16[3136,512], index: 1, kind: input, shape index: {}]
  %s2 = inlined_call_operand.vmem [shape: f32[1,512], index: 2, kind: input, shape index: {}]
  %s3 = inlined_call_operand.hbm [shape: f32[2,512], index: 3, kind: output, shape index: {}]
  %s4 = sld [smem:[#allocation0]]
  $region22: #{id_loss_forward.5} parent=0
    _
  %s6 = ssub.s32 1, %s4
  %s7 = scalar_select 0, %s6, %s4
  $region1: #{id_loss_forward.5} parent=0
    #allocation2 [shape = 'u8[4096]{0}', space=vmem, size = 0x1000, scoped, tag = 'output window, operand 0, single buffered']
    #allocation3 [shape = 's32[1]{0}', space=sflag, size = 0x4, scoped, tag = 'scoped memory for id_loss_forward.5']
    %8 = vsyncpa [#allocation3], 0
    // Predicated region
    $region2: #{id_loss_forward.5} parent=1 // pred_check
      _
    $region3: #{id_loss_forward.5} parent=1 // pred_check_branch
      %10 = sbr.rel (0) target = $region5
    $region4: #{id_loss_forward.5} parent=1 // pred_region
      _
    $region5: #{id_loss_forward.5} parent=1 // pred_fallthru
      _
    // Predicated region
    $region6: #{id_loss_forward.5} parent=1 // pred_check
      _
    $region7: #{id_loss_forward.5} parent=1 // pred_check_branch
      %12 = sbr.rel (0) target = $region9
    $region8: #{id_loss_forward.5} parent=1 // pred_region
      _
    $region9: #{id_loss_forward.5} parent=1 // pred_fallthru
      _
    // Predicated region
    $region10: #{id_loss_forward.5} parent=1 // pred_check
      _
    $region11: #{id_loss_forward.5} parent=1 // pred_check_branch
      %14 = sbr.rel (0) target = $region13
    $region12: #{id_loss_forward.5} parent=1 // pred_region
      _
    $region13: #{id_loss_forward.5} parent=1 // pred_fallthru
      _
    %v16 = vld [vmem:[%s0] sm:$0xff]
    %v17 = vld [vmem:[%s0 + $0x8] sm:$0xff]
    %v18 = vld [vmem:[%s0 + $0x10] sm:$0xff]
    %v19 = vld [vmem:[%s0 + $0x18] sm:$0xff]
    %v20 = vld [vmem:[%s0 + $0x20] sm:$0xff]
    %v21 = vld [vmem:[%s0 + $0x28] sm:$0xff]
    %v22 = vld [vmem:[%s0 + $0x30] sm:$0x3]
    %v30 = vcombine.high %v16, %v16
    %v32 = vunpack.c.l.s4 1983009808
    %v33 = vunpack.c.0.s8 %v32
    %v34 = vlaneseq
    %v35 = vshrl.u32 %v34, 7
    %v36 = vsub.s32 %v33, %v35
    %v37 = vrot.slane %v16, %v36
    %v39 = vunpack.c.l.s4 1983009808
    %v40 = vunpack.c.0.s8 %v39
    %v41 = vlaneseq
    %v42 = vshrl.u32 %v41, 7
    %v43 = vsub.s32 %v40, %v42
    %v44 = vrot.slane %v30, %v43
    %v45 = vcombine.high %v37, %v37
    %v46 = vcombine.high %v44, %v44
    %v47 = vcombine.high %v17, %v17
    %v49 = vunpack.c.l.s4 1983009808
    %v50 = vunpack.c.0.s8 %v49
    %v51 = vlaneseq
    %v52 = vshrl.u32 %v51, 7
    %v53 = vsub.s32 %v50, %v52
    %v54 = vrot.slane %v17, %v53
    %v56 = vunpack.c.l.s4 1983009808
    %v57 = vunpack.c.0.s8 %v56
    %v58 = vlaneseq
    %v59 = vshrl.u32 %v58, 7
    %v60 = vsub.s32 %v57, %v59
    %v61 = vrot.slane %v47, %v60
    %v62 = vcombine.high %v54, %v54
    %v63 = vcombine.high %v61, %v61
    %v64 = vcombine.high %v18, %v18
    %v66 = vunpack.c.l.s4 1983009808
    %v67 = vunpack.c.0.s8 %v66
    %v68 = vlaneseq
    %v69 = vshrl.u32 %v68, 7
    %v70 = vsub.s32 %v67, %v69
    %v71 = vrot.slane %v18, %v70
    %v73 = vunpack.c.l.s4 1983009808
    %v74 = vunpack.c.0.s8 %v73
    %v75 = vlaneseq
    %v76 = vshrl.u32 %v75, 7
    %v77 = vsub.s32 %v74, %v76
    %v78 = vrot.slane %v64, %v77
    %v79 = vcombine.high %v71, %v71
    %v80 = vcombine.high %v78, %v78
    %v81 = vcombine.high %v19, %v19
    %v83 = vunpack.c.l.s4 1983009808
    %v84 = vunpack.c.0.s8 %v83
    %v85 = vlaneseq
    %v86 = vshrl.u32 %v85, 7
    %v87 = vsub.s32 %v84, %v86
    %v88 = vrot.slane %v19, %v87
    %v90 = vunpack.c.l.s4 1983009808
    %v91 = vunpack.c.0.s8 %v90
    %v92 = vlaneseq
    %v93 = vshrl.u32 %v92, 7
    %v94 = vsub.s32 %v91, %v93
    %v95 = vrot.slane %v81, %v94
    %v96 = vcombine.high %v88, %v88
    %v97 = vcombine.high %v95, %v95
    %v98 = vcombine.high %v20, %v20
    %v100 = vunpack.c.l.s4 1983009808
    %v101 = vunpack.c.0.s8 %v100
    %v102 = vlaneseq
    %v103 = vshrl.u32 %v102, 7
    %v104 = vsub.s32 %v101, %v103
    %v105 = vrot.slane %v20, %v104
    %v107 = vunpack.c.l.s4 1983009808
    %v108 = vunpack.c.0.s8 %v107
    %v109 = vlaneseq
    %v110 = vshrl.u32 %v109, 7
    %v111 = vsub.s32 %v108, %v110
    %v112 = vrot.slane %v98, %v111
    %v113 = vcombine.high %v105, %v105
    %v114 = vcombine.high %v112, %v112
    %v115 = vcombine.high %v21, %v21
    %v117 = vunpack.c.l.s4 1983009808
    %v118 = vunpack.c.0.s8 %v117
    %v119 = vlaneseq
    %v120 = vshrl.u32 %v119, 7
    %v121 = vsub.s32 %v118, %v120
    %v122 = vrot.slane %v21, %v121
    %v124 = vunpack.c.l.s4 1983009808
    %v125 = vunpack.c.0.s8 %v124
    %v126 = vlaneseq
    %v127 = vshrl.u32 %v126, 7
    %v128 = vsub.s32 %v125, %v127
    %v129 = vrot.slane %v115, %v128
    %v130 = vcombine.high %v122, %v122
    %v131 = vcombine.high %v129, %v129
    %v133 = vunpack.c.l.s4 1983009808
    %v134 = vunpack.c.0.s8 %v133
    %v135 = vlaneseq
    %v136 = vshrl.u32 %v135, 7
    %v137 = vsub.s32 %v134, %v136
    %v138 = vrot.slane %v22, %v137
    %v164 = vpack.c.bf16 %v37, %v37
    %v165 = vpack.c.bf16 %v45, %v45
    %v166 = vpack.c.bf16 %v44, %v44
    %v167 = vpack.c.bf16 %v46, %v46
    %v168 = vpack.c.bf16 %v54, %v54
    %v169 = vpack.c.bf16 %v62, %v62
    %v170 = vpack.c.bf16 %v61, %v61
    %v171 = vpack.c.bf16 %v63, %v63
    %v172 = vpack.c.bf16 %v71, %v71
    %v173 = vpack.c.bf16 %v79, %v79
    %v174 = vpack.c.bf16 %v78, %v78
    %v175 = vpack.c.bf16 %v80, %v80
    %v176 = vpack.c.bf16 %v88, %v88
    %v177 = vpack.c.bf16 %v96, %v96
    %v178 = vpack.c.bf16 %v95, %v95
    %v179 = vpack.c.bf16 %v97, %v97
    %v180 = vpack.c.bf16 %v105, %v105
    %v181 = vpack.c.bf16 %v113, %v113
    %v182 = vpack.c.bf16 %v112, %v112
    %v183 = vpack.c.bf16 %v114, %v114
    %v184 = vpack.c.bf16 %v122, %v122
    %v185 = vpack.c.bf16 %v130, %v130
    %v186 = vpack.c.bf16 %v129, %v129
    %v187 = vpack.c.bf16 %v131, %v131
    %v188 = vpack.c.bf16 %v138, %v138
    %v189 = vld [vmem:[%s1] sm:$0xff]
    %v190 = vld [vmem:[%s1 + $0x8] sm:$0xff]
    %v191 = vld [vmem:[%s1 + $0x10] sm:$0xff]
    %v192 = vld [vmem:[%s1 + $0x18] sm:$0xff]
    %v193 = vld [vmem:[%s1 + $0x20] sm:$0xff]
    %v194 = vld [vmem:[%s1 + $0x28] sm:$0xff]
    %v195 = vld [vmem:[%s1 + $0x30] sm:$0xff]
    %v196 = vld [vmem:[%s1 + $0x38] sm:$0xff]
    %v197 = vld [vmem:[%s1 + $0x40] sm:$0xff]
    %v198 = vld [vmem:[%s1 + $0x48] sm:$0xff]
    %v199 = vld [vmem:[%s1 + $0x50] sm:$0xff]
    %v200 = vld [vmem:[%s1 + $0x58] sm:$0xff]
    %v201 = vld [vmem:[%s1 + $0x60] sm:$0xff]
    %v202 = vld [vmem:[%s1 + $0x68] sm:$0xff]
    %v203 = vld [vmem:[%s1 + $0x70] sm:$0xff]
    %v204 = vld [vmem:[%s1 + $0x78] sm:$0xff]
    %v205 = vld [vmem:[%s1 + $0x80] sm:$0xff]
    %v206 = vld [vmem:[%s1 + $0x88] sm:$0xff]
    %v207 = vld [vmem:[%s1 + $0x90] sm:$0xff]
    %v208 = vld [vmem:[%s1 + $0x98] sm:$0xff]
    %v209 = vld [vmem:[%s1 + $0xa0] sm:$0xff]
    %v210 = vld [vmem:[%s1 + $0xa8] sm:$0xff]
    %v211 = vld [vmem:[%s1 + $0xb0] sm:$0xff]
    %v212 = vld [vmem:[%s1 + $0xb8] sm:$0xff]
    %v213 = vld [vmem:[%s1 + $0xc0] sm:$0xff]
    %v214 = vld [vmem:[%s1 + $0xc8] sm:$0xff]
    %v215 = vld [vmem:[%s1 + $0xd0] sm:$0xff]
    %v216 = vld [vmem:[%s1 + $0xd8] sm:$0xff]
    %v217 = vld [vmem:[%s1 + $0xe0] sm:$0xff]
    %v218 = vld [vmem:[%s1 + $0xe8] sm:$0xff]
    %v219 = vld [vmem:[%s1 + $0xf0] sm:$0xff]
    %v220 = vld [vmem:[%s1 + $0xf8] sm:$0xff]
    %v221 = vld [vmem:[%s1 + $0x100] sm:$0xff]
    %v222 = vld [vmem:[%s1 + $0x108] sm:$0xff]
    %v223 = vld [vmem:[%s1 + $0x110] sm:$0xff]
    %v224 = vld [vmem:[%s1 + $0x118] sm:$0xff]
    %v225 = vld [vmem:[%s1 + $0x120] sm:$0xff]
    %v226 = vld [vmem:[%s1 + $0x128] sm:$0xff]
    %v227 = vld [vmem:[%s1 + $0x130] sm:$0xff]
    %v228 = vld [vmem:[%s1 + $0x138] sm:$0xff]
    %v229 = vld [vmem:[%s1 + $0x140] sm:$0xff]
    %v230 = vld [vmem:[%s1 + $0x148] sm:$0xff]
    %v231 = vld [vmem:[%s1 + $0x150] sm:$0xff]
    %v232 = vld [vmem:[%s1 + $0x158] sm:$0xff]
    %v233 = vld [vmem:[%s1 + $0x160] sm:$0xff]
    %v234 = vld [vmem:[%s1 + $0x168] sm:$0xff]
    %v235 = vld [vmem:[%s1 + $0x170] sm:$0xff]
    %v236 = vld [vmem:[%s1 + $0x178] sm:$0xff]
    %v237 = vld [vmem:[%s1 + $0x180] sm:$0xff]
    %v238 = vld [vmem:[%s1 + $0x188] sm:$0xff]
    %v239 = vld [vmem:[%s1 + $0x190] sm:$0xff]
    %v240 = vld [vmem:[%s1 + $0x198] sm:$0xff]
    %v241 = vld [vmem:[%s1 + $0x1a0] sm:$0xff]
    %v242 = vld [vmem:[%s1 + $0x1a8] sm:$0xff]
    %v243 = vld [vmem:[%s1 + $0x1b0] sm:$0xff]
    %v244 = vld [vmem:[%s1 + $0x1b8] sm:$0xff]
    %v245 = vld [vmem:[%s1 + $0x1c0] sm:$0xff]
    %v246 = vld [vmem:[%s1 + $0x1c8] sm:$0xff]
    %v247 = vld [vmem:[%s1 + $0x1d0] sm:$0xff]
    %v248 = vld [vmem:[%s1 + $0x1d8] sm:$0xff]
    %v249 = vld [vmem:[%s1 + $0x1e0] sm:$0xff]
    %v250 = vld [vmem:[%s1 + $0x1e8] sm:$0xff]
    %v251 = vld [vmem:[%s1 + $0x1f0] sm:$0xff]
    %v252 = vld [vmem:[%s1 + $0x1f8] sm:$0xff]
    %v253 = vld [vmem:[%s1 + $0x200] sm:$0xff]
    %v254 = vld [vmem:[%s1 + $0x208] sm:$0xff]
    %v255 = vld [vmem:[%s1 + $0x210] sm:$0xff]
    %v256 = vld [vmem:[%s1 + $0x218] sm:$0xff]
    %v257 = vld [vmem:[%s1 + $0x220] sm:$0xff]
    %v258 = vld [vmem:[%s1 + $0x228] sm:$0xff]
    %v259 = vld [vmem:[%s1 + $0x230] sm:$0xff]
    %v260 = vld [vmem:[%s1 + $0x238] sm:$0xff]
    %v261 = vld [vmem:[%s1 + $0x240] sm:$0xff]
    %v262 = vld [vmem:[%s1 + $0x248] sm:$0xff]
    %v263 = vld [vmem:[%s1 + $0x250] sm:$0xff]
    %v264 = vld [vmem:[%s1 + $0x258] sm:$0xff]
    %v265 = vld [vmem:[%s1 + $0x260] sm:$0xff]
    %v266 = vld [vmem:[%s1 + $0x268] sm:$0xff]
    %v267 = vld [vmem:[%s1 + $0x270] sm:$0xff]
    %v268 = vld [vmem:[%s1 + $0x278] sm:$0xff]
    %v269 = vld [vmem:[%s1 + $0x280] sm:$0xff]
    %v270 = vld [vmem:[%s1 + $0x288] sm:$0xff]
    %v271 = vld [vmem:[%s1 + $0x290] sm:$0xff]
    %v272 = vld [vmem:[%s1 + $0x298] sm:$0xff]
    %v273 = vld [vmem:[%s1 + $0x2a0] sm:$0xff]
    %v274 = vld [vmem:[%s1 + $0x2a8] sm:$0xff]
    %v275 = vld [vmem:[%s1 + $0x2b0] sm:$0xff]
    %v276 = vld [vmem:[%s1 + $0x2b8] sm:$0xff]
    %v277 = vld [vmem:[%s1 + $0x2c0] sm:$0xff]
    %v278 = vld [vmem:[%s1 + $0x2c8] sm:$0xff]
    %v279 = vld [vmem:[%s1 + $0x2d0] sm:$0xff]
    %v280 = vld [vmem:[%s1 + $0x2d8] sm:$0xff]
    %v281 = vld [vmem:[%s1 + $0x2e0] sm:$0xff]
    %v282 = vld [vmem:[%s1 + $0x2e8] sm:$0xff]
    %v283 = vld [vmem:[%s1 + $0x2f0] sm:$0xff]
    %v284 = vld [vmem:[%s1 + $0x2f8] sm:$0xff]
    %v285 = vld [vmem:[%s1 + $0x300] sm:$0xff]
    %v286 = vld [vmem:[%s1 + $0x308] sm:$0xff]
    %v287 = vld [vmem:[%s1 + $0x310] sm:$0xff]
    %v288 = vld [vmem:[%s1 + $0x318] sm:$0xff]
    %v289 = vld [vmem:[%s1 + $0x320] sm:$0xff]
    %v290 = vld [vmem:[%s1 + $0x328] sm:$0xff]
    %v291 = vld [vmem:[%s1 + $0x330] sm:$0xff]
    %v292 = vld [vmem:[%s1 + $0x338] sm:$0xff]
    %v293 = vld [vmem:[%s1 + $0x340] sm:$0xff]
    %v294 = vld [vmem:[%s1 + $0x348] sm:$0xff]
    %v295 = vld [vmem:[%s1 + $0x350] sm:$0xff]
    %v296 = vld [vmem:[%s1 + $0x358] sm:$0xff]
    %v297 = vld [vmem:[%s1 + $0x360] sm:$0xff]
    %v298 = vld [vmem:[%s1 + $0x368] sm:$0xff]
    %v299 = vld [vmem:[%s1 + $0x370] sm:$0xff]
    %v300 = vld [vmem:[%s1 + $0x378] sm:$0xff]
    %v301 = vld [vmem:[%s1 + $0x380] sm:$0xff]
    %v302 = vld [vmem:[%s1 + $0x388] sm:$0xff]
    %v303 = vld [vmem:[%s1 + $0x390] sm:$0xff]
    %v304 = vld [vmem:[%s1 + $0x398] sm:$0xff]
    %v305 = vld [vmem:[%s1 + $0x3a0] sm:$0xff]
    %v306 = vld [vmem:[%s1 + $0x3a8] sm:$0xff]
    %v307 = vld [vmem:[%s1 + $0x3b0] sm:$0xff]
    %v308 = vld [vmem:[%s1 + $0x3b8] sm:$0xff]
    %v309 = vld [vmem:[%s1 + $0x3c0] sm:$0xff]
    %v310 = vld [vmem:[%s1 + $0x3c8] sm:$0xff]
    %v311 = vld [vmem:[%s1 + $0x3d0] sm:$0xff]
    %v312 = vld [vmem:[%s1 + $0x3d8] sm:$0xff]
    %v313 = vld [vmem:[%s1 + $0x3e0] sm:$0xff]
    %v314 = vld [vmem:[%s1 + $0x3e8] sm:$0xff]
    %v315 = vld [vmem:[%s1 + $0x3f0] sm:$0xff]
    %v316 = vld [vmem:[%s1 + $0x3f8] sm:$0xff]
    %v317 = vld [vmem:[%s1 + $0x400] sm:$0xff]
    %v318 = vld [vmem:[%s1 + $0x408] sm:$0xff]
    %v319 = vld [vmem:[%s1 + $0x410] sm:$0xff]
    %v320 = vld [vmem:[%s1 + $0x418] sm:$0xff]
    %v321 = vld [vmem:[%s1 + $0x420] sm:$0xff]
    %v322 = vld [vmem:[%s1 + $0x428] sm:$0xff]
    %v323 = vld [vmem:[%s1 + $0x430] sm:$0xff]
    %v324 = vld [vmem:[%s1 + $0x438] sm:$0xff]
    %v325 = vld [vmem:[%s1 + $0x440] sm:$0xff]
    %v326 = vld [vmem:[%s1 + $0x448] sm:$0xff]
    %v327 = vld [vmem:[%s1 + $0x450] sm:$0xff]
    %v328 = vld [vmem:[%s1 + $0x458] sm:$0xff]
    %v329 = vld [vmem:[%s1 + $0x460] sm:$0xff]
    %v330 = vld [vmem:[%s1 + $0x468] sm:$0xff]
    %v331 = vld [vmem:[%s1 + $0x470] sm:$0xff]
    %v332 = vld [vmem:[%s1 + $0x478] sm:$0xff]
    %v333 = vld [vmem:[%s1 + $0x480] sm:$0xff]
    %v334 = vld [vmem:[%s1 + $0x488] sm:$0xff]
    %v335 = vld [vmem:[%s1 + $0x490] sm:$0xff]
    %v336 = vld [vmem:[%s1 + $0x498] sm:$0xff]
    %v337 = vld [vmem:[%s1 + $0x4a0] sm:$0xff]
    %v338 = vld [vmem:[%s1 + $0x4a8] sm:$0xff]
    %v339 = vld [vmem:[%s1 + $0x4b0] sm:$0xff]
    %v340 = vld [vmem:[%s1 + $0x4b8] sm:$0xff]
    %v341 = vld [vmem:[%s1 + $0x4c0] sm:$0xff]
    %v342 = vld [vmem:[%s1 + $0x4c8] sm:$0xff]
    %v343 = vld [vmem:[%s1 + $0x4d0] sm:$0xff]
    %v344 = vld [vmem:[%s1 + $0x4d8] sm:$0xff]
    %v345 = vld [vmem:[%s1 + $0x4e0] sm:$0xff]
    %v346 = vld [vmem:[%s1 + $0x4e8] sm:$0xff]
    %v347 = vld [vmem:[%s1 + $0x4f0] sm:$0xff]
    %v348 = vld [vmem:[%s1 + $0x4f8] sm:$0xff]
    %v349 = vld [vmem:[%s1 + $0x500] sm:$0xff]
    %v350 = vld [vmem:[%s1 + $0x508] sm:$0xff]
    %v351 = vld [vmem:[%s1 + $0x510] sm:$0xff]
    %v352 = vld [vmem:[%s1 + $0x518] sm:$0xff]
    %v353 = vld [vmem:[%s1 + $0x520] sm:$0xff]
    %v354 = vld [vmem:[%s1 + $0x528] sm:$0xff]
    %v355 = vld [vmem:[%s1 + $0x530] sm:$0xff]
    %v356 = vld [vmem:[%s1 + $0x538] sm:$0xff]
    %v357 = vld [vmem:[%s1 + $0x540] sm:$0xff]
    %v358 = vld [vmem:[%s1 + $0x548] sm:$0xff]
    %v359 = vld [vmem:[%s1 + $0x550] sm:$0xff]
    %v360 = vld [vmem:[%s1 + $0x558] sm:$0xff]
    %v361 = vld [vmem:[%s1 + $0x560] sm:$0xff]
    %v362 = vld [vmem:[%s1 + $0x568] sm:$0xff]
    %v363 = vld [vmem:[%s1 + $0x570] sm:$0xff]
    %v364 = vld [vmem:[%s1 + $0x578] sm:$0xff]
    %v365 = vld [vmem:[%s1 + $0x580] sm:$0xff]
    %v366 = vld [vmem:[%s1 + $0x588] sm:$0xff]
    %v367 = vld [vmem:[%s1 + $0x590] sm:$0xff]
    %v368 = vld [vmem:[%s1 + $0x598] sm:$0xff]
    %v369 = vld [vmem:[%s1 + $0x5a0] sm:$0xff]
    %v370 = vld [vmem:[%s1 + $0x5a8] sm:$0xff]
    %v371 = vld [vmem:[%s1 + $0x5b0] sm:$0xff]
    %v372 = vld [vmem:[%s1 + $0x5b8] sm:$0xff]
    %v373 = vld [vmem:[%s1 + $0x5c0] sm:$0xff]
    %v374 = vld [vmem:[%s1 + $0x5c8] sm:$0xff]
    %v375 = vld [vmem:[%s1 + $0x5d0] sm:$0xff]
    %v376 = vld [vmem:[%s1 + $0x5d8] sm:$0xff]
    %v377 = vld [vmem:[%s1 + $0x5e0] sm:$0xff]
    %v378 = vld [vmem:[%s1 + $0x5e8] sm:$0xff]
    %v379 = vld [vmem:[%s1 + $0x5f0] sm:$0xff]
    %v380 = vld [vmem:[%s1 + $0x5f8] sm:$0xff]
    %v381 = vld [vmem:[%s1 + $0x600] sm:$0xff]
    %v382 = vld [vmem:[%s1 + $0x608] sm:$0xff]
    %v383 = vld [vmem:[%s1 + $0x610] sm:$0xff]
    %v384 = vld [vmem:[%s1 + $0x618] sm:$0xff]
    %v385 = vld [vmem:[%s1 + $0x620] sm:$0xff]
    %v386 = vld [vmem:[%s1 + $0x628] sm:$0xff]
    %v387 = vld [vmem:[%s1 + $0x630] sm:$0xff]
    %v388 = vld [vmem:[%s1 + $0x638] sm:$0xff]
    %v389 = vld [vmem:[%s1 + $0x640] sm:$0xff]
    %v390 = vld [vmem:[%s1 + $0x648] sm:$0xff]
    %v391 = vld [vmem:[%s1 + $0x650] sm:$0xff]
    %v392 = vld [vmem:[%s1 + $0x658] sm:$0xff]
    %v393 = vld [vmem:[%s1 + $0x660] sm:$0xff]
    %v394 = vld [vmem:[%s1 + $0x668] sm:$0xff]
    %v395 = vld [vmem:[%s1 + $0x670] sm:$0xff]
    %v396 = vld [vmem:[%s1 + $0x678] sm:$0xff]
    %v397 = vld [vmem:[%s1 + $0x680] sm:$0xff]
    %v398 = vld [vmem:[%s1 + $0x688] sm:$0xff]
    %v399 = vld [vmem:[%s1 + $0x690] sm:$0xff]
    %v400 = vld [vmem:[%s1 + $0x698] sm:$0xff]
    %v401 = vld [vmem:[%s1 + $0x6a0] sm:$0xff]
    %v402 = vld [vmem:[%s1 + $0x6a8] sm:$0xff]
    %v403 = vld [vmem:[%s1 + $0x6b0] sm:$0xff]
    %v404 = vld [vmem:[%s1 + $0x6b8] sm:$0xff]
    %v405 = vld [vmem:[%s1 + $0x6c0] sm:$0xff]
    %v406 = vld [vmem:[%s1 + $0x6c8] sm:$0xff]
    %v407 = vld [vmem:[%s1 + $0x6d0] sm:$0xff]
    %v408 = vld [vmem:[%s1 + $0x6d8] sm:$0xff]
    %v409 = vld [vmem:[%s1 + $0x6e0] sm:$0xff]
    %v410 = vld [vmem:[%s1 + $0x6e8] sm:$0xff]
    %v411 = vld [vmem:[%s1 + $0x6f0] sm:$0xff]
    %v412 = vld [vmem:[%s1 + $0x6f8] sm:$0xff]
    %v413 = vld [vmem:[%s1 + $0x700] sm:$0xff]
    %v414 = vld [vmem:[%s1 + $0x708] sm:$0xff]
    %v415 = vld [vmem:[%s1 + $0x710] sm:$0xff]
    %v416 = vld [vmem:[%s1 + $0x718] sm:$0xff]
    %v417 = vld [vmem:[%s1 + $0x720] sm:$0xff]
    %v418 = vld [vmem:[%s1 + $0x728] sm:$0xff]
    %v419 = vld [vmem:[%s1 + $0x730] sm:$0xff]
    %v420 = vld [vmem:[%s1 + $0x738] sm:$0xff]
    %v421 = vld [vmem:[%s1 + $0x740] sm:$0xff]
    %v422 = vld [vmem:[%s1 + $0x748] sm:$0xff]
    %v423 = vld [vmem:[%s1 + $0x750] sm:$0xff]
    %v424 = vld [vmem:[%s1 + $0x758] sm:$0xff]
    %v425 = vld [vmem:[%s1 + $0x760] sm:$0xff]
    %v426 = vld [vmem:[%s1 + $0x768] sm:$0xff]
    %v427 = vld [vmem:[%s1 + $0x770] sm:$0xff]
    %v428 = vld [vmem:[%s1 + $0x778] sm:$0xff]
    %v429 = vld [vmem:[%s1 + $0x780] sm:$0xff]
    %v430 = vld [vmem:[%s1 + $0x788] sm:$0xff]
    %v431 = vld [vmem:[%s1 + $0x790] sm:$0xff]
    %v432 = vld [vmem:[%s1 + $0x798] sm:$0xff]
    %v433 = vld [vmem:[%s1 + $0x7a0] sm:$0xff]
    %v434 = vld [vmem:[%s1 + $0x7a8] sm:$0xff]
    %v435 = vld [vmem:[%s1 + $0x7b0] sm:$0xff]
    %v436 = vld [vmem:[%s1 + $0x7b8] sm:$0xff]
    %v437 = vld [vmem:[%s1 + $0x7c0] sm:$0xff]
    %v438 = vld [vmem:[%s1 + $0x7c8] sm:$0xff]
    %v439 = vld [vmem:[%s1 + $0x7d0] sm:$0xff]
    %v440 = vld [vmem:[%s1 + $0x7d8] sm:$0xff]
    %v441 = vld [vmem:[%s1 + $0x7e0] sm:$0xff]
    %v442 = vld [vmem:[%s1 + $0x7e8] sm:$0xff]
    %v443 = vld [vmem:[%s1 + $0x7f0] sm:$0xff]
    %v444 = vld [vmem:[%s1 + $0x7f8] sm:$0xff]
    %v445 = vld [vmem:[%s1 + $0x800] sm:$0xff]
    %v446 = vld [vmem:[%s1 + $0x808] sm:$0xff]
    %v447 = vld [vmem:[%s1 + $0x810] sm:$0xff]
    %v448 = vld [vmem:[%s1 + $0x818] sm:$0xff]
    %v449 = vld [vmem:[%s1 + $0x820] sm:$0xff]
    %v450 = vld [vmem:[%s1 + $0x828] sm:$0xff]
    %v451 = vld [vmem:[%s1 + $0x830] sm:$0xff]
    %v452 = vld [vmem:[%s1 + $0x838] sm:$0xff]
    %v453 = vld [vmem:[%s1 + $0x840] sm:$0xff]
    %v454 = vld [vmem:[%s1 + $0x848] sm:$0xff]
    %v455 = vld [vmem:[%s1 + $0x850] sm:$0xff]
    %v456 = vld [vmem:[%s1 + $0x858] sm:$0xff]
    %v457 = vld [vmem:[%s1 + $0x860] sm:$0xff]
    %v458 = vld [vmem:[%s1 + $0x868] sm:$0xff]
    %v459 = vld [vmem:[%s1 + $0x870] sm:$0xff]
    %v460 = vld [vmem:[%s1 + $0x878] sm:$0xff]
    %v461 = vld [vmem:[%s1 + $0x880] sm:$0xff]
    %v462 = vld [vmem:[%s1 + $0x888] sm:$0xff]
    %v463 = vld [vmem:[%s1 + $0x890] sm:$0xff]
    %v464 = vld [vmem:[%s1 + $0x898] sm:$0xff]
    %v465 = vld [vmem:[%s1 + $0x8a0] sm:$0xff]
    %v466 = vld [vmem:[%s1 + $0x8a8] sm:$0xff]
    %v467 = vld [vmem:[%s1 + $0x8b0] sm:$0xff]
    %v468 = vld [vmem:[%s1 + $0x8b8] sm:$0xff]
    %v469 = vld [vmem:[%s1 + $0x8c0] sm:$0xff]
    %v470 = vld [vmem:[%s1 + $0x8c8] sm:$0xff]
    %v471 = vld [vmem:[%s1 + $0x8d0] sm:$0xff]
    %v472 = vld [vmem:[%s1 + $0x8d8] sm:$0xff]
    %v473 = vld [vmem:[%s1 + $0x8e0] sm:$0xff]
    %v474 = vld [vmem:[%s1 + $0x8e8] sm:$0xff]
    %v475 = vld [vmem:[%s1 + $0x8f0] sm:$0xff]
    %v476 = vld [vmem:[%s1 + $0x8f8] sm:$0xff]
    %v477 = vld [vmem:[%s1 + $0x900] sm:$0xff]
    %v478 = vld [vmem:[%s1 + $0x908] sm:$0xff]
    %v479 = vld [vmem:[%s1 + $0x910] sm:$0xff]
    %v480 = vld [vmem:[%s1 + $0x918] sm:$0xff]
    %v481 = vld [vmem:[%s1 + $0x920] sm:$0xff]
    %v482 = vld [vmem:[%s1 + $0x928] sm:$0xff]
    %v483 = vld [vmem:[%s1 + $0x930] sm:$0xff]
    %v484 = vld [vmem:[%s1 + $0x938] sm:$0xff]
    %v485 = vld [vmem:[%s1 + $0x940] sm:$0xff]
    %v486 = vld [vmem:[%s1 + $0x948] sm:$0xff]
    %v487 = vld [vmem:[%s1 + $0x950] sm:$0xff]
    %v488 = vld [vmem:[%s1 + $0x958] sm:$0xff]
    %v489 = vld [vmem:[%s1 + $0x960] sm:$0xff]
    %v490 = vld [vmem:[%s1 + $0x968] sm:$0xff]
    %v491 = vld [vmem:[%s1 + $0x970] sm:$0xff]
    %v492 = vld [vmem:[%s1 + $0x978] sm:$0xff]
    %v493 = vld [vmem:[%s1 + $0x980] sm:$0xff]
    %v494 = vld [vmem:[%s1 + $0x988] sm:$0xff]
    %v495 = vld [vmem:[%s1 + $0x990] sm:$0xff]
    %v496 = vld [vmem:[%s1 + $0x998] sm:$0xff]
    %v497 = vld [vmem:[%s1 + $0x9a0] sm:$0xff]
    %v498 = vld [vmem:[%s1 + $0x9a8] sm:$0xff]
    %v499 = vld [vmem:[%s1 + $0x9b0] sm:$0xff]
    %v500 = vld [vmem:[%s1 + $0x9b8] sm:$0xff]
    %v501 = vld [vmem:[%s1 + $0x9c0] sm:$0xff]
    %v502 = vld [vmem:[%s1 + $0x9c8] sm:$0xff]
    %v503 = vld [vmem:[%s1 + $0x9d0] sm:$0xff]
    %v504 = vld [vmem:[%s1 + $0x9d8] sm:$0xff]
    %v505 = vld [vmem:[%s1 + $0x9e0] sm:$0xff]
    %v506 = vld [vmem:[%s1 + $0x9e8] sm:$0xff]
    %v507 = vld [vmem:[%s1 + $0x9f0] sm:$0xff]
    %v508 = vld [vmem:[%s1 + $0x9f8] sm:$0xff]
    %v509 = vld [vmem:[%s1 + $0xa00] sm:$0xff]
    %v510 = vld [vmem:[%s1 + $0xa08] sm:$0xff]
    %v511 = vld [vmem:[%s1 + $0xa10] sm:$0xff]
    %v512 = vld [vmem:[%s1 + $0xa18] sm:$0xff]
    %v513 = vld [vmem:[%s1 + $0xa20] sm:$0xff]
    %v514 = vld [vmem:[%s1 + $0xa28] sm:$0xff]
    %v515 = vld [vmem:[%s1 + $0xa30] sm:$0xff]
    %v516 = vld [vmem:[%s1 + $0xa38] sm:$0xff]
    %v517 = vld [vmem:[%s1 + $0xa40] sm:$0xff]
    %v518 = vld [vmem:[%s1 + $0xa48] sm:$0xff]
    %v519 = vld [vmem:[%s1 + $0xa50] sm:$0xff]
    %v520 = vld [vmem:[%s1 + $0xa58] sm:$0xff]
    %v521 = vld [vmem:[%s1 + $0xa60] sm:$0xff]
    %v522 = vld [vmem:[%s1 + $0xa68] sm:$0xff]
    %v523 = vld [vmem:[%s1 + $0xa70] sm:$0xff]
    %v524 = vld [vmem:[%s1 + $0xa78] sm:$0xff]
    %v525 = vld [vmem:[%s1 + $0xa80] sm:$0xff]
    %v526 = vld [vmem:[%s1 + $0xa88] sm:$0xff]
    %v527 = vld [vmem:[%s1 + $0xa90] sm:$0xff]
    %v528 = vld [vmem:[%s1 + $0xa98] sm:$0xff]
    %v529 = vld [vmem:[%s1 + $0xaa0] sm:$0xff]
    %v530 = vld [vmem:[%s1 + $0xaa8] sm:$0xff]
    %v531 = vld [vmem:[%s1 + $0xab0] sm:$0xff]
    %v532 = vld [vmem:[%s1 + $0xab8] sm:$0xff]
    %v533 = vld [vmem:[%s1 + $0xac0] sm:$0xff]
    %v534 = vld [vmem:[%s1 + $0xac8] sm:$0xff]
    %v535 = vld [vmem:[%s1 + $0xad0] sm:$0xff]
    %v536 = vld [vmem:[%s1 + $0xad8] sm:$0xff]
    %v537 = vld [vmem:[%s1 + $0xae0] sm:$0xff]
    %v538 = vld [vmem:[%s1 + $0xae8] sm:$0xff]
    %v539 = vld [vmem:[%s1 + $0xaf0] sm:$0xff]
    %v540 = vld [vmem:[%s1 + $0xaf8] sm:$0xff]
    %v541 = vld [vmem:[%s1 + $0xb00] sm:$0xff]
    %v542 = vld [vmem:[%s1 + $0xb08] sm:$0xff]
    %v543 = vld [vmem:[%s1 + $0xb10] sm:$0xff]
    %v544 = vld [vmem:[%s1 + $0xb18] sm:$0xff]
    %v545 = vld [vmem:[%s1 + $0xb20] sm:$0xff]
    %v546 = vld [vmem:[%s1 + $0xb28] sm:$0xff]
    %v547 = vld [vmem:[%s1 + $0xb30] sm:$0xff]
    %v548 = vld [vmem:[%s1 + $0xb38] sm:$0xff]
    %v549 = vld [vmem:[%s1 + $0xb40] sm:$0xff]
    %v550 = vld [vmem:[%s1 + $0xb48] sm:$0xff]
    %v551 = vld [vmem:[%s1 + $0xb50] sm:$0xff]
    %v552 = vld [vmem:[%s1 + $0xb58] sm:$0xff]
    %v553 = vld [vmem:[%s1 + $0xb60] sm:$0xff]
    %v554 = vld [vmem:[%s1 + $0xb68] sm:$0xff]
    %v555 = vld [vmem:[%s1 + $0xb70] sm:$0xff]
    %v556 = vld [vmem:[%s1 + $0xb78] sm:$0xff]
    %v557 = vld [vmem:[%s1 + $0xb80] sm:$0xff]
    %v558 = vld [vmem:[%s1 + $0xb88] sm:$0xff]
    %v559 = vld [vmem:[%s1 + $0xb90] sm:$0xff]
    %v560 = vld [vmem:[%s1 + $0xb98] sm:$0xff]
    %v561 = vld [vmem:[%s1 + $0xba0] sm:$0xff]
    %v562 = vld [vmem:[%s1 + $0xba8] sm:$0xff]
    %v563 = vld [vmem:[%s1 + $0xbb0] sm:$0xff]
    %v564 = vld [vmem:[%s1 + $0xbb8] sm:$0xff]
    %v565 = vld [vmem:[%s1 + $0xbc0] sm:$0xff]
    %v566 = vld [vmem:[%s1 + $0xbc8] sm:$0xff]
    %v567 = vld [vmem:[%s1 + $0xbd0] sm:$0xff]
    %v568 = vld [vmem:[%s1 + $0xbd8] sm:$0xff]
    %v569 = vld [vmem:[%s1 + $0xbe0] sm:$0xff]
    %v570 = vld [vmem:[%s1 + $0xbe8] sm:$0xff]
    %v571 = vld [vmem:[%s1 + $0xbf0] sm:$0xff]
    %v572 = vld [vmem:[%s1 + $0xbf8] sm:$0xff]
    %v573 = vld [vmem:[%s1 + $0xc00] sm:$0xff]
    %v574 = vld [vmem:[%s1 + $0xc08] sm:$0xff]
    %v575 = vld [vmem:[%s1 + $0xc10] sm:$0xff]
    %v576 = vld [vmem:[%s1 + $0xc18] sm:$0xff]
    %v577 = vld [vmem:[%s1 + $0xc20] sm:$0xff]
    %v578 = vld [vmem:[%s1 + $0xc28] sm:$0xff]
    %v579 = vld [vmem:[%s1 + $0xc30] sm:$0xff]
    %v580 = vld [vmem:[%s1 + $0xc38] sm:$0xff]
    %v581 = vld [vmem:[%s1 + $0xc40] sm:$0xff]
    %v582 = vld [vmem:[%s1 + $0xc48] sm:$0xff]
    %v583 = vld [vmem:[%s1 + $0xc50] sm:$0xff]
    %v584 = vld [vmem:[%s1 + $0xc58] sm:$0xff]
    %v585 = vld [vmem:[%s1 + $0xc60] sm:$0xff]
    %v586 = vld [vmem:[%s1 + $0xc68] sm:$0xff]
    %v587 = vld [vmem:[%s1 + $0xc70] sm:$0xff]
    %v588 = vld [vmem:[%s1 + $0xc78] sm:$0xff]
    %v589 = vld [vmem:[%s1 + $0xc80] sm:$0xff]
    %v590 = vld [vmem:[%s1 + $0xc88] sm:$0xff]
    %v591 = vld [vmem:[%s1 + $0xc90] sm:$0xff]
    %v592 = vld [vmem:[%s1 + $0xc98] sm:$0xff]
    %v593 = vld [vmem:[%s1 + $0xca0] sm:$0xff]
    %v594 = vld [vmem:[%s1 + $0xca8] sm:$0xff]
    %v595 = vld [vmem:[%s1 + $0xcb0] sm:$0xff]
    %v596 = vld [vmem:[%s1 + $0xcb8] sm:$0xff]
    %v597 = vld [vmem:[%s1 + $0xcc0] sm:$0xff]
    %v598 = vld [vmem:[%s1 + $0xcc8] sm:$0xff]
    %v599 = vld [vmem:[%s1 + $0xcd0] sm:$0xff]
    %v600 = vld [vmem:[%s1 + $0xcd8] sm:$0xff]
    %v601 = vld [vmem:[%s1 + $0xce0] sm:$0xff]
    %v602 = vld [vmem:[%s1 + $0xce8] sm:$0xff]
    %v603 = vld [vmem:[%s1 + $0xcf0] sm:$0xff]
    %v604 = vld [vmem:[%s1 + $0xcf8] sm:$0xff]
    %v605 = vld [vmem:[%s1 + $0xd00] sm:$0xff]
    %v606 = vld [vmem:[%s1 + $0xd08] sm:$0xff]
    %v607 = vld [vmem:[%s1 + $0xd10] sm:$0xff]
    %v608 = vld [vmem:[%s1 + $0xd18] sm:$0xff]
    %v609 = vld [vmem:[%s1 + $0xd20] sm:$0xff]
    %v610 = vld [vmem:[%s1 + $0xd28] sm:$0xff]
    %v611 = vld [vmem:[%s1 + $0xd30] sm:$0xff]
    %v612 = vld [vmem:[%s1 + $0xd38] sm:$0xff]
    %v613 = vld [vmem:[%s1 + $0xd40] sm:$0xff]
    %v614 = vld [vmem:[%s1 + $0xd48] sm:$0xff]
    %v615 = vld [vmem:[%s1 + $0xd50] sm:$0xff]
    %v616 = vld [vmem:[%s1 + $0xd58] sm:$0xff]
    %v617 = vld [vmem:[%s1 + $0xd60] sm:$0xff]
    %v618 = vld [vmem:[%s1 + $0xd68] sm:$0xff]
    %v619 = vld [vmem:[%s1 + $0xd70] sm:$0xff]
    %v620 = vld [vmem:[%s1 + $0xd78] sm:$0xff]
    %v621 = vld [vmem:[%s1 + $0xd80] sm:$0xff]
    %v622 = vld [vmem:[%s1 + $0xd88] sm:$0xff]
    %v623 = vld [vmem:[%s1 + $0xd90] sm:$0xff]
    %v624 = vld [vmem:[%s1 + $0xd98] sm:$0xff]
    %v625 = vld [vmem:[%s1 + $0xda0] sm:$0xff]
    %v626 = vld [vmem:[%s1 + $0xda8] sm:$0xff]
    %v627 = vld [vmem:[%s1 + $0xdb0] sm:$0xff]
    %v628 = vld [vmem:[%s1 + $0xdb8] sm:$0xff]
    %v629 = vld [vmem:[%s1 + $0xdc0] sm:$0xff]
    %v630 = vld [vmem:[%s1 + $0xdc8] sm:$0xff]
    %v631 = vld [vmem:[%s1 + $0xdd0] sm:$0xff]
    %v632 = vld [vmem:[%s1 + $0xdd8] sm:$0xff]
    %v633 = vld [vmem:[%s1 + $0xde0] sm:$0xff]
    %v634 = vld [vmem:[%s1 + $0xde8] sm:$0xff]
    %v635 = vld [vmem:[%s1 + $0xdf0] sm:$0xff]
    %v636 = vld [vmem:[%s1 + $0xdf8] sm:$0xff]
    %v637 = vld [vmem:[%s1 + $0xe00] sm:$0xff]
    %v638 = vld [vmem:[%s1 + $0xe08] sm:$0xff]
    %v639 = vld [vmem:[%s1 + $0xe10] sm:$0xff]
    %v640 = vld [vmem:[%s1 + $0xe18] sm:$0xff]
    %v641 = vld [vmem:[%s1 + $0xe20] sm:$0xff]
    %v642 = vld [vmem:[%s1 + $0xe28] sm:$0xff]
    %v643 = vld [vmem:[%s1 + $0xe30] sm:$0xff]
    %v644 = vld [vmem:[%s1 + $0xe38] sm:$0xff]
    %v645 = vld [vmem:[%s1 + $0xe40] sm:$0xff]
    %v646 = vld [vmem:[%s1 + $0xe48] sm:$0xff]
    %v647 = vld [vmem:[%s1 + $0xe50] sm:$0xff]
    %v648 = vld [vmem:[%s1 + $0xe58] sm:$0xff]
    %v649 = vld [vmem:[%s1 + $0xe60] sm:$0xff]
    %v650 = vld [vmem:[%s1 + $0xe68] sm:$0xff]
    %v651 = vld [vmem:[%s1 + $0xe70] sm:$0xff]
    %v652 = vld [vmem:[%s1 + $0xe78] sm:$0xff]
    %v653 = vld [vmem:[%s1 + $0xe80] sm:$0xff]
    %v654 = vld [vmem:[%s1 + $0xe88] sm:$0xff]
    %v655 = vld [vmem:[%s1 + $0xe90] sm:$0xff]
    %v656 = vld [vmem:[%s1 + $0xe98] sm:$0xff]
    %v657 = vld [vmem:[%s1 + $0xea0] sm:$0xff]
    %v658 = vld [vmem:[%s1 + $0xea8] sm:$0xff]
    %v659 = vld [vmem:[%s1 + $0xeb0] sm:$0xff]
    %v660 = vld [vmem:[%s1 + $0xeb8] sm:$0xff]
    %v661 = vld [vmem:[%s1 + $0xec0] sm:$0xff]
    %v662 = vld [vmem:[%s1 + $0xec8] sm:$0xff]
    %v663 = vld [vmem:[%s1 + $0xed0] sm:$0xff]
    %v664 = vld [vmem:[%s1 + $0xed8] sm:$0xff]
    %v665 = vld [vmem:[%s1 + $0xee0] sm:$0xff]
    %v666 = vld [vmem:[%s1 + $0xee8] sm:$0xff]
    %v667 = vld [vmem:[%s1 + $0xef0] sm:$0xff]
    %v668 = vld [vmem:[%s1 + $0xef8] sm:$0xff]
    %v669 = vld [vmem:[%s1 + $0xf00] sm:$0xff]
    %v670 = vld [vmem:[%s1 + $0xf08] sm:$0xff]
    %v671 = vld [vmem:[%s1 + $0xf10] sm:$0xff]
    %v672 = vld [vmem:[%s1 + $0xf18] sm:$0xff]
    %v673 = vld [vmem:[%s1 + $0xf20] sm:$0xff]
    %v674 = vld [vmem:[%s1 + $0xf28] sm:$0xff]
    %v675 = vld [vmem:[%s1 + $0xf30] sm:$0xff]
    %v676 = vld [vmem:[%s1 + $0xf38] sm:$0xff]
    %v677 = vld [vmem:[%s1 + $0xf40] sm:$0xff]
    %v678 = vld [vmem:[%s1 + $0xf48] sm:$0xff]
    %v679 = vld [vmem:[%s1 + $0xf50] sm:$0xff]
    %v680 = vld [vmem:[%s1 + $0xf58] sm:$0xff]
    %v681 = vld [vmem:[%s1 + $0xf60] sm:$0xff]
    %v682 = vld [vmem:[%s1 + $0xf68] sm:$0xff]
    %v683 = vld [vmem:[%s1 + $0xf70] sm:$0xff]
    %v684 = vld [vmem:[%s1 + $0xf78] sm:$0xff]
    %v685 = vld [vmem:[%s1 + $0xf80] sm:$0xff]
    %v686 = vld [vmem:[%s1 + $0xf88] sm:$0xff]
    %v687 = vld [vmem:[%s1 + $0xf90] sm:$0xff]
    %v688 = vld [vmem:[%s1 + $0xf98] sm:$0xff]
    %v689 = vld [vmem:[%s1 + $0xfa0] sm:$0xff]
    %v690 = vld [vmem:[%s1 + $0xfa8] sm:$0xff]
    %v691 = vld [vmem:[%s1 + $0xfb0] sm:$0xff]
    %v692 = vld [vmem:[%s1 + $0xfb8] sm:$0xff]
    %v693 = vld [vmem:[%s1 + $0xfc0] sm:$0xff]
    %v694 = vld [vmem:[%s1 + $0xfc8] sm:$0xff]
    %v695 = vld [vmem:[%s1 + $0xfd0] sm:$0xff]
    %v696 = vld [vmem:[%s1 + $0xfd8] sm:$0xff]
    %v697 = vld [vmem:[%s1 + $0xfe0] sm:$0xff]
    %v698 = vld [vmem:[%s1 + $0xfe8] sm:$0xff]
    %v699 = vld [vmem:[%s1 + $0xff0] sm:$0xff]
    %v700 = vld [vmem:[%s1 + $0xff8] sm:$0xff]
    %v701 = vld [vmem:[%s1 + $0x1000] sm:$0xff]
    %v702 = vld [vmem:[%s1 + $0x1008] sm:$0xff]
    %v703 = vld [vmem:[%s1 + $0x1010] sm:$0xff]
    %v704 = vld [vmem:[%s1 + $0x1018] sm:$0xff]
    %v705 = vld [vmem:[%s1 + $0x1020] sm:$0xff]
    %v706 = vld [vmem:[%s1 + $0x1028] sm:$0xff]
    %v707 = vld [vmem:[%s1 + $0x1030] sm:$0xff]
    %v708 = vld [vmem:[%s1 + $0x1038] sm:$0xff]
    %v709 = vld [vmem:[%s1 + $0x1040] sm:$0xff]
    %v710 = vld [vmem:[%s1 + $0x1048] sm:$0xff]
    %v711 = vld [vmem:[%s1 + $0x1050] sm:$0xff]
    %v712 = vld [vmem:[%s1 + $0x1058] sm:$0xff]
    %v713 = vld [vmem:[%s1 + $0x1060] sm:$0xff]
    %v714 = vld [vmem:[%s1 + $0x1068] sm:$0xff]
    %v715 = vld [vmem:[%s1 + $0x1070] sm:$0xff]
    %v716 = vld [vmem:[%s1 + $0x1078] sm:$0xff]
    %v717 = vld [vmem:[%s1 + $0x1080] sm:$0xff]
    %v718 = vld [vmem:[%s1 + $0x1088] sm:$0xff]
    %v719 = vld [vmem:[%s1 + $0x1090] sm:$0xff]
    %v720 = vld [vmem:[%s1 + $0x1098] sm:$0xff]
    %v721 = vld [vmem:[%s1 + $0x10a0] sm:$0xff]
    %v722 = vld [vmem:[%s1 + $0x10a8] sm:$0xff]
    %v723 = vld [vmem:[%s1 + $0x10b0] sm:$0xff]
    %v724 = vld [vmem:[%s1 + $0x10b8] sm:$0xff]
    %v725 = vld [vmem:[%s1 + $0x10c0] sm:$0xff]
    %v726 = vld [vmem:[%s1 + $0x10c8] sm:$0xff]
    %v727 = vld [vmem:[%s1 + $0x10d0] sm:$0xff]
    %v728 = vld [vmem:[%s1 + $0x10d8] sm:$0xff]
    %v729 = vld [vmem:[%s1 + $0x10e0] sm:$0xff]
    %v730 = vld [vmem:[%s1 + $0x10e8] sm:$0xff]
    %v731 = vld [vmem:[%s1 + $0x10f0] sm:$0xff]
    %v732 = vld [vmem:[%s1 + $0x10f8] sm:$0xff]
    %v733 = vld [vmem:[%s1 + $0x1100] sm:$0xff]
    %v734 = vld [vmem:[%s1 + $0x1108] sm:$0xff]
    %v735 = vld [vmem:[%s1 + $0x1110] sm:$0xff]
    %v736 = vld [vmem:[%s1 + $0x1118] sm:$0xff]
    %v737 = vld [vmem:[%s1 + $0x1120] sm:$0xff]
    %v738 = vld [vmem:[%s1 + $0x1128] sm:$0xff]
    %v739 = vld [vmem:[%s1 + $0x1130] sm:$0xff]
    %v740 = vld [vmem:[%s1 + $0x1138] sm:$0xff]
    %v741 = vld [vmem:[%s1 + $0x1140] sm:$0xff]
    %v742 = vld [vmem:[%s1 + $0x1148] sm:$0xff]
    %v743 = vld [vmem:[%s1 + $0x1150] sm:$0xff]
    %v744 = vld [vmem:[%s1 + $0x1158] sm:$0xff]
    %v745 = vld [vmem:[%s1 + $0x1160] sm:$0xff]
    %v746 = vld [vmem:[%s1 + $0x1168] sm:$0xff]
    %v747 = vld [vmem:[%s1 + $0x1170] sm:$0xff]
    %v748 = vld [vmem:[%s1 + $0x1178] sm:$0xff]
    %v749 = vld [vmem:[%s1 + $0x1180] sm:$0xff]
    %v750 = vld [vmem:[%s1 + $0x1188] sm:$0xff]
    %v751 = vld [vmem:[%s1 + $0x1190] sm:$0xff]
    %v752 = vld [vmem:[%s1 + $0x1198] sm:$0xff]
    %v753 = vld [vmem:[%s1 + $0x11a0] sm:$0xff]
    %v754 = vld [vmem:[%s1 + $0x11a8] sm:$0xff]
    %v755 = vld [vmem:[%s1 + $0x11b0] sm:$0xff]
    %v756 = vld [vmem:[%s1 + $0x11b8] sm:$0xff]
    %v757 = vld [vmem:[%s1 + $0x11c0] sm:$0xff]
    %v758 = vld [vmem:[%s1 + $0x11c8] sm:$0xff]
    %v759 = vld [vmem:[%s1 + $0x11d0] sm:$0xff]
    %v760 = vld [vmem:[%s1 + $0x11d8] sm:$0xff]
    %v761 = vld [vmem:[%s1 + $0x11e0] sm:$0xff]
    %v762 = vld [vmem:[%s1 + $0x11e8] sm:$0xff]
    %v763 = vld [vmem:[%s1 + $0x11f0] sm:$0xff]
    %v764 = vld [vmem:[%s1 + $0x11f8] sm:$0xff]
    %v765 = vld [vmem:[%s1 + $0x1200] sm:$0xff]
    %v766 = vld [vmem:[%s1 + $0x1208] sm:$0xff]
    %v767 = vld [vmem:[%s1 + $0x1210] sm:$0xff]
    %v768 = vld [vmem:[%s1 + $0x1218] sm:$0xff]
    %v769 = vld [vmem:[%s1 + $0x1220] sm:$0xff]
    %v770 = vld [vmem:[%s1 + $0x1228] sm:$0xff]
    %v771 = vld [vmem:[%s1 + $0x1230] sm:$0xff]
    %v772 = vld [vmem:[%s1 + $0x1238] sm:$0xff]
    %v773 = vld [vmem:[%s1 + $0x1240] sm:$0xff]
    %v774 = vld [vmem:[%s1 + $0x1248] sm:$0xff]
    %v775 = vld [vmem:[%s1 + $0x1250] sm:$0xff]
    %v776 = vld [vmem:[%s1 + $0x1258] sm:$0xff]
    %v777 = vld [vmem:[%s1 + $0x1260] sm:$0xff]
    %v778 = vld [vmem:[%s1 + $0x1268] sm:$0xff]
    %v779 = vld [vmem:[%s1 + $0x1270] sm:$0xff]
    %v780 = vld [vmem:[%s1 + $0x1278] sm:$0xff]
    %v781 = vld [vmem:[%s1 + $0x1280] sm:$0xff]
    %v782 = vld [vmem:[%s1 + $0x1288] sm:$0xff]
    %v783 = vld [vmem:[%s1 + $0x1290] sm:$0xff]
    %v784 = vld [vmem:[%s1 + $0x1298] sm:$0xff]
    %v785 = vld [vmem:[%s1 + $0x12a0] sm:$0xff]
    %v786 = vld [vmem:[%s1 + $0x12a8] sm:$0xff]
    %v787 = vld [vmem:[%s1 + $0x12b0] sm:$0xff]
    %v788 = vld [vmem:[%s1 + $0x12b8] sm:$0xff]
    %v789 = vld [vmem:[%s1 + $0x12c0] sm:$0xff]
    %v790 = vld [vmem:[%s1 + $0x12c8] sm:$0xff]
    %v791 = vld [vmem:[%s1 + $0x12d0] sm:$0xff]
    %v792 = vld [vmem:[%s1 + $0x12d8] sm:$0xff]
    %v793 = vld [vmem:[%s1 + $0x12e0] sm:$0xff]
    %v794 = vld [vmem:[%s1 + $0x12e8] sm:$0xff]
    %v795 = vld [vmem:[%s1 + $0x12f0] sm:$0xff]
    %v796 = vld [vmem:[%s1 + $0x12f8] sm:$0xff]
    %v797 = vld [vmem:[%s1 + $0x1300] sm:$0xff]
    %v798 = vld [vmem:[%s1 + $0x1308] sm:$0xff]
    %v799 = vld [vmem:[%s1 + $0x1310] sm:$0xff]
    %v800 = vld [vmem:[%s1 + $0x1318] sm:$0xff]
    %v801 = vld [vmem:[%s1 + $0x1320] sm:$0xff]
    %v802 = vld [vmem:[%s1 + $0x1328] sm:$0xff]
    %v803 = vld [vmem:[%s1 + $0x1330] sm:$0xff]
    %v804 = vld [vmem:[%s1 + $0x1338] sm:$0xff]
    %v805 = vld [vmem:[%s1 + $0x1340] sm:$0xff]
    %v806 = vld [vmem:[%s1 + $0x1348] sm:$0xff]
    %v807 = vld [vmem:[%s1 + $0x1350] sm:$0xff]
    %v808 = vld [vmem:[%s1 + $0x1358] sm:$0xff]
    %v809 = vld [vmem:[%s1 + $0x1360] sm:$0xff]
    %v810 = vld [vmem:[%s1 + $0x1368] sm:$0xff]
    %v811 = vld [vmem:[%s1 + $0x1370] sm:$0xff]
    %v812 = vld [vmem:[%s1 + $0x1378] sm:$0xff]
    %v813 = vld [vmem:[%s1 + $0x1380] sm:$0xff]
    %v814 = vld [vmem:[%s1 + $0x1388] sm:$0xff]
    %v815 = vld [vmem:[%s1 + $0x1390] sm:$0xff]
    %v816 = vld [vmem:[%s1 + $0x1398] sm:$0xff]
    %v817 = vld [vmem:[%s1 + $0x13a0] sm:$0xff]
    %v818 = vld [vmem:[%s1 + $0x13a8] sm:$0xff]
    %v819 = vld [vmem:[%s1 + $0x13b0] sm:$0xff]
    %v820 = vld [vmem:[%s1 + $0x13b8] sm:$0xff]
    %v821 = vld [vmem:[%s1 + $0x13c0] sm:$0xff]
    %v822 = vld [vmem:[%s1 + $0x13c8] sm:$0xff]
    %v823 = vld [vmem:[%s1 + $0x13d0] sm:$0xff]
    %v824 = vld [vmem:[%s1 + $0x13d8] sm:$0xff]
    %v825 = vld [vmem:[%s1 + $0x13e0] sm:$0xff]
    %v826 = vld [vmem:[%s1 + $0x13e8] sm:$0xff]
    %v827 = vld [vmem:[%s1 + $0x13f0] sm:$0xff]
    %v828 = vld [vmem:[%s1 + $0x13f8] sm:$0xff]
    %v829 = vld [vmem:[%s1 + $0x1400] sm:$0xff]
    %v830 = vld [vmem:[%s1 + $0x1408] sm:$0xff]
    %v831 = vld [vmem:[%s1 + $0x1410] sm:$0xff]
    %v832 = vld [vmem:[%s1 + $0x1418] sm:$0xff]
    %v833 = vld [vmem:[%s1 + $0x1420] sm:$0xff]
    %v834 = vld [vmem:[%s1 + $0x1428] sm:$0xff]
    %v835 = vld [vmem:[%s1 + $0x1430] sm:$0xff]
    %v836 = vld [vmem:[%s1 + $0x1438] sm:$0xff]
    %v837 = vld [vmem:[%s1 + $0x1440] sm:$0xff]
    %v838 = vld [vmem:[%s1 + $0x1448] sm:$0xff]
    %v839 = vld [vmem:[%s1 + $0x1450] sm:$0xff]
    %v840 = vld [vmem:[%s1 + $0x1458] sm:$0xff]
    %v841 = vld [vmem:[%s1 + $0x1460] sm:$0xff]
    %v842 = vld [vmem:[%s1 + $0x1468] sm:$0xff]
    %v843 = vld [vmem:[%s1 + $0x1470] sm:$0xff]
    %v844 = vld [vmem:[%s1 + $0x1478] sm:$0xff]
    %v845 = vld [vmem:[%s1 + $0x1480] sm:$0xff]
    %v846 = vld [vmem:[%s1 + $0x1488] sm:$0xff]
    %v847 = vld [vmem:[%s1 + $0x1490] sm:$0xff]
    %v848 = vld [vmem:[%s1 + $0x1498] sm:$0xff]
    %v849 = vld [vmem:[%s1 + $0x14a0] sm:$0xff]
    %v850 = vld [vmem:[%s1 + $0x14a8] sm:$0xff]
    %v851 = vld [vmem:[%s1 + $0x14b0] sm:$0xff]
    %v852 = vld [vmem:[%s1 + $0x14b8] sm:$0xff]
    %v853 = vld [vmem:[%s1 + $0x14c0] sm:$0xff]
    %v854 = vld [vmem:[%s1 + $0x14c8] sm:$0xff]
    %v855 = vld [vmem:[%s1 + $0x14d0] sm:$0xff]
    %v856 = vld [vmem:[%s1 + $0x14d8] sm:$0xff]
    %v857 = vld [vmem:[%s1 + $0x14e0] sm:$0xff]
    %v858 = vld [vmem:[%s1 + $0x14e8] sm:$0xff]
    %v859 = vld [vmem:[%s1 + $0x14f0] sm:$0xff]
    %v860 = vld [vmem:[%s1 + $0x14f8] sm:$0xff]
    %v861 = vld [vmem:[%s1 + $0x1500] sm:$0xff]
    %v862 = vld [vmem:[%s1 + $0x1508] sm:$0xff]
    %v863 = vld [vmem:[%s1 + $0x1510] sm:$0xff]
    %v864 = vld [vmem:[%s1 + $0x1518] sm:$0xff]
    %v865 = vld [vmem:[%s1 + $0x1520] sm:$0xff]
    %v866 = vld [vmem:[%s1 + $0x1528] sm:$0xff]
    %v867 = vld [vmem:[%s1 + $0x1530] sm:$0xff]
    %v868 = vld [vmem:[%s1 + $0x1538] sm:$0xff]
    %v869 = vld [vmem:[%s1 + $0x1540] sm:$0xff]
    %v870 = vld [vmem:[%s1 + $0x1548] sm:$0xff]
    %v871 = vld [vmem:[%s1 + $0x1550] sm:$0xff]
    %v872 = vld [vmem:[%s1 + $0x1558] sm:$0xff]
    %v873 = vld [vmem:[%s1 + $0x1560] sm:$0xff]
    %v874 = vld [vmem:[%s1 + $0x1568] sm:$0xff]
    %v875 = vld [vmem:[%s1 + $0x1570] sm:$0xff]
    %v876 = vld [vmem:[%s1 + $0x1578] sm:$0xff]
    %v877 = vld [vmem:[%s1 + $0x1580] sm:$0xff]
    %v878 = vld [vmem:[%s1 + $0x1588] sm:$0xff]
    %v879 = vld [vmem:[%s1 + $0x1590] sm:$0xff]
    %v880 = vld [vmem:[%s1 + $0x1598] sm:$0xff]
    %v881 = vld [vmem:[%s1 + $0x15a0] sm:$0xff]
    %v882 = vld [vmem:[%s1 + $0x15a8] sm:$0xff]
    %v883 = vld [vmem:[%s1 + $0x15b0] sm:$0xff]
    %v884 = vld [vmem:[%s1 + $0x15b8] sm:$0xff]
    %v885 = vld [vmem:[%s1 + $0x15c0] sm:$0xff]
    %v886 = vld [vmem:[%s1 + $0x15c8] sm:$0xff]
    %v887 = vld [vmem:[%s1 + $0x15d0] sm:$0xff]
    %v888 = vld [vmem:[%s1 + $0x15d8] sm:$0xff]
    %v889 = vld [vmem:[%s1 + $0x15e0] sm:$0xff]
    %v890 = vld [vmem:[%s1 + $0x15e8] sm:$0xff]
    %v891 = vld [vmem:[%s1 + $0x15f0] sm:$0xff]
    %v892 = vld [vmem:[%s1 + $0x15f8] sm:$0xff]
    %v893 = vld [vmem:[%s1 + $0x1600] sm:$0xff]
    %v894 = vld [vmem:[%s1 + $0x1608] sm:$0xff]
    %v895 = vld [vmem:[%s1 + $0x1610] sm:$0xff]
    %v896 = vld [vmem:[%s1 + $0x1618] sm:$0xff]
    %v897 = vld [vmem:[%s1 + $0x1620] sm:$0xff]
    %v898 = vld [vmem:[%s1 + $0x1628] sm:$0xff]
    %v899 = vld [vmem:[%s1 + $0x1630] sm:$0xff]
    %v900 = vld [vmem:[%s1 + $0x1638] sm:$0xff]
    %v901 = vld [vmem:[%s1 + $0x1640] sm:$0xff]
    %v902 = vld [vmem:[%s1 + $0x1648] sm:$0xff]
    %v903 = vld [vmem:[%s1 + $0x1650] sm:$0xff]
    %v904 = vld [vmem:[%s1 + $0x1658] sm:$0xff]
    %v905 = vld [vmem:[%s1 + $0x1660] sm:$0xff]
    %v906 = vld [vmem:[%s1 + $0x1668] sm:$0xff]
    %v907 = vld [vmem:[%s1 + $0x1670] sm:$0xff]
    %v908 = vld [vmem:[%s1 + $0x1678] sm:$0xff]
    %v909 = vld [vmem:[%s1 + $0x1680] sm:$0xff]
    %v910 = vld [vmem:[%s1 + $0x1688] sm:$0xff]
    %v911 = vld [vmem:[%s1 + $0x1690] sm:$0xff]
    %v912 = vld [vmem:[%s1 + $0x1698] sm:$0xff]
    %v913 = vld [vmem:[%s1 + $0x16a0] sm:$0xff]
    %v914 = vld [vmem:[%s1 + $0x16a8] sm:$0xff]
    %v915 = vld [vmem:[%s1 + $0x16b0] sm:$0xff]
    %v916 = vld [vmem:[%s1 + $0x16b8] sm:$0xff]
    %v917 = vld [vmem:[%s1 + $0x16c0] sm:$0xff]
    %v918 = vld [vmem:[%s1 + $0x16c8] sm:$0xff]
    %v919 = vld [vmem:[%s1 + $0x16d0] sm:$0xff]
    %v920 = vld [vmem:[%s1 + $0x16d8] sm:$0xff]
    %v921 = vld [vmem:[%s1 + $0x16e0] sm:$0xff]
    %v922 = vld [vmem:[%s1 + $0x16e8] sm:$0xff]
    %v923 = vld [vmem:[%s1 + $0x16f0] sm:$0xff]
    %v924 = vld [vmem:[%s1 + $0x16f8] sm:$0xff]
    %v925 = vld [vmem:[%s1 + $0x1700] sm:$0xff]
    %v926 = vld [vmem:[%s1 + $0x1708] sm:$0xff]
    %v927 = vld [vmem:[%s1 + $0x1710] sm:$0xff]
    %v928 = vld [vmem:[%s1 + $0x1718] sm:$0xff]
    %v929 = vld [vmem:[%s1 + $0x1720] sm:$0xff]
    %v930 = vld [vmem:[%s1 + $0x1728] sm:$0xff]
    %v931 = vld [vmem:[%s1 + $0x1730] sm:$0xff]
    %v932 = vld [vmem:[%s1 + $0x1738] sm:$0xff]
    %v933 = vld [vmem:[%s1 + $0x1740] sm:$0xff]
    %v934 = vld [vmem:[%s1 + $0x1748] sm:$0xff]
    %v935 = vld [vmem:[%s1 + $0x1750] sm:$0xff]
    %v936 = vld [vmem:[%s1 + $0x1758] sm:$0xff]
    %v937 = vld [vmem:[%s1 + $0x1760] sm:$0xff]
    %v938 = vld [vmem:[%s1 + $0x1768] sm:$0xff]
    %v939 = vld [vmem:[%s1 + $0x1770] sm:$0xff]
    %v940 = vld [vmem:[%s1 + $0x1778] sm:$0xff]
    %v941 = vld [vmem:[%s1 + $0x1780] sm:$0xff]
    %v942 = vld [vmem:[%s1 + $0x1788] sm:$0xff]
    %v943 = vld [vmem:[%s1 + $0x1790] sm:$0xff]
    %v944 = vld [vmem:[%s1 + $0x1798] sm:$0xff]
    %v945 = vld [vmem:[%s1 + $0x17a0] sm:$0xff]
    %v946 = vld [vmem:[%s1 + $0x17a8] sm:$0xff]
    %v947 = vld [vmem:[%s1 + $0x17b0] sm:$0xff]
    %v948 = vld [vmem:[%s1 + $0x17b8] sm:$0xff]
    %v949 = vld [vmem:[%s1 + $0x17c0] sm:$0xff]
    %v950 = vld [vmem:[%s1 + $0x17c8] sm:$0xff]
    %v951 = vld [vmem:[%s1 + $0x17d0] sm:$0xff]
    %v952 = vld [vmem:[%s1 + $0x17d8] sm:$0xff]
    %v953 = vld [vmem:[%s1 + $0x17e0] sm:$0xff]
    %v954 = vld [vmem:[%s1 + $0x17e8] sm:$0xff]
    %v955 = vld [vmem:[%s1 + $0x17f0] sm:$0xff]
    %v956 = vld [vmem:[%s1 + $0x17f8] sm:$0xff]
    %v957 = vld [vmem:[%s1 + $0x1800] sm:$0xff]
    %v958 = vld [vmem:[%s1 + $0x1808] sm:$0xff]
    %v959 = vld [vmem:[%s1 + $0x1810] sm:$0xff]
    %v960 = vld [vmem:[%s1 + $0x1818] sm:$0xff]
    %v961 = vld [vmem:[%s1 + $0x1820] sm:$0xff]
    %v962 = vld [vmem:[%s1 + $0x1828] sm:$0xff]
    %v963 = vld [vmem:[%s1 + $0x1830] sm:$0xff]
    %v964 = vld [vmem:[%s1 + $0x1838] sm:$0xff]
    %v965 = vld [vmem:[%s1 + $0x1840] sm:$0xff]
    %v966 = vld [vmem:[%s1 + $0x1848] sm:$0xff]
    %v967 = vld [vmem:[%s1 + $0x1850] sm:$0xff]
    %v968 = vld [vmem:[%s1 + $0x1858] sm:$0xff]
    %v969 = vld [vmem:[%s1 + $0x1860] sm:$0xff]
    %v970 = vld [vmem:[%s1 + $0x1868] sm:$0xff]
    %v971 = vld [vmem:[%s1 + $0x1870] sm:$0xff]
    %v972 = vld [vmem:[%s1 + $0x1878] sm:$0xff]
    %v973 = vld [vmem:[%s2] sm:$0xf]
    %v975 = vlaneseq
    %v976 = vshrl.u32 %v975, 7
    %v977 = vsub.s32 0, %v976
    %v978 = vrot.slane %v973, %v977
    %v979 = vlaneseq
    %v980 = vshrl.u32 %v979, 7
    %v981 = vsub.s32 1, %v980
    %v982 = vrot.slane %v973, %v981
    %v983 = vlaneseq
    %v984 = vshrl.u32 %v983, 7
    %v985 = vsub.s32 2, %v984
    %v986 = vrot.slane %v973, %v985
    %v987 = vlaneseq
    %v988 = vshrl.u32 %v987, 7
    %v989 = vsub.s32 3, %v988
    %v990 = vrot.slane %v973, %v989
    %v1779 = vunpack.c.l.b16 %v189
    %v1780 = vunpack.c.h.b16 %v189
    %v1781 = vunpack.c.l.b16 %v190
    %v1782 = vunpack.c.h.b16 %v190
    %v1783 = vunpack.c.l.b16 %v191
    %v1784 = vunpack.c.h.b16 %v191
    %v1785 = vunpack.c.l.b16 %v192
    %v1786 = vunpack.c.h.b16 %v192
    %v1787 = vunpack.c.l.b16 %v193
    %v1788 = vunpack.c.h.b16 %v193
    %v1789 = vunpack.c.l.b16 %v194
    %v1790 = vunpack.c.h.b16 %v194
    %v1791 = vunpack.c.l.b16 %v195
    %v1792 = vunpack.c.h.b16 %v195
    %v1793 = vunpack.c.l.b16 %v196
    %v1794 = vunpack.c.h.b16 %v196
    %v1795 = vunpack.c.l.b16 %v197
    %v1796 = vunpack.c.h.b16 %v197
    %v1797 = vunpack.c.l.b16 %v198
    %v1798 = vunpack.c.h.b16 %v198
    %v1799 = vunpack.c.l.b16 %v199
    %v1800 = vunpack.c.h.b16 %v199
    %v1801 = vunpack.c.l.b16 %v200
    %v1802 = vunpack.c.h.b16 %v200
    %v1803 = vunpack.c.l.b16 %v201
    %v1804 = vunpack.c.h.b16 %v201
    %v1805 = vunpack.c.l.b16 %v202
    %v1806 = vunpack.c.h.b16 %v202
    %v1807 = vunpack.c.l.b16 %v203
    %v1808 = vunpack.c.h.b16 %v203
    %v1809 = vunpack.c.l.b16 %v204
    %v1810 = vunpack.c.h.b16 %v204
    %v1811 = vunpack.c.l.b16 %v205
    %v1812 = vunpack.c.h.b16 %v205
    %v1813 = vunpack.c.l.b16 %v206
    %v1814 = vunpack.c.h.b16 %v206
    %v1815 = vunpack.c.l.b16 %v207
    %v1816 = vunpack.c.h.b16 %v207
    %v1817 = vunpack.c.l.b16 %v208
    %v1818 = vunpack.c.h.b16 %v208
    %v1819 = vunpack.c.l.b16 %v209
    %v1820 = vunpack.c.h.b16 %v209
    %v1821 = vunpack.c.l.b16 %v210
    %v1822 = vunpack.c.h.b16 %v210
    %v1823 = vunpack.c.l.b16 %v211
    %v1824 = vunpack.c.h.b16 %v211
    %v1825 = vunpack.c.l.b16 %v212
    %v1826 = vunpack.c.h.b16 %v212
    %v1827 = vunpack.c.l.b16 %v213
    %v1828 = vunpack.c.h.b16 %v213
    %v1829 = vunpack.c.l.b16 %v214
    %v1830 = vunpack.c.h.b16 %v214
    %v1831 = vunpack.c.l.b16 %v215
    %v1832 = vunpack.c.h.b16 %v215
    %v1833 = vunpack.c.l.b16 %v216
    %v1834 = vunpack.c.h.b16 %v216
    %v1835 = vunpack.c.l.b16 %v217
    %v1836 = vunpack.c.h.b16 %v217
    %v1837 = vunpack.c.l.b16 %v218
    %v1838 = vunpack.c.h.b16 %v218
    %v1839 = vunpack.c.l.b16 %v219
    %v1840 = vunpack.c.h.b16 %v219
    %v1841 = vunpack.c.l.b16 %v220
    %v1842 = vunpack.c.h.b16 %v220
    %v1843 = vunpack.c.l.b16 %v221
    %v1844 = vunpack.c.h.b16 %v221
    %v1845 = vunpack.c.l.b16 %v222
    %v1846 = vunpack.c.h.b16 %v222
    %v1847 = vunpack.c.l.b16 %v223
    %v1848 = vunpack.c.h.b16 %v223
    %v1849 = vunpack.c.l.b16 %v224
    %v1850 = vunpack.c.h.b16 %v224
    %v1851 = vunpack.c.l.b16 %v225
    %v1852 = vunpack.c.h.b16 %v225
    %v1853 = vunpack.c.l.b16 %v226
    %v1854 = vunpack.c.h.b16 %v226
    %v1855 = vunpack.c.l.b16 %v227
    %v1856 = vunpack.c.h.b16 %v227
    %v1857 = vunpack.c.l.b16 %v228
    %v1858 = vunpack.c.h.b16 %v228
    %v1859 = vunpack.c.l.b16 %v229
    %v1860 = vunpack.c.h.b16 %v229
    %v1861 = vunpack.c.l.b16 %v230
    %v1862 = vunpack.c.h.b16 %v230
    %v1863 = vunpack.c.l.b16 %v231
    %v1864 = vunpack.c.h.b16 %v231
    %v1865 = vunpack.c.l.b16 %v232
    %v1866 = vunpack.c.h.b16 %v232
    %v1867 = vunpack.c.l.b16 %v233
    %v1868 = vunpack.c.h.b16 %v233
    %v1869 = vunpack.c.l.b16 %v234
    %v1870 = vunpack.c.h.b16 %v234
    %v1871 = vunpack.c.l.b16 %v235
    %v1872 = vunpack.c.h.b16 %v235
    %v1873 = vunpack.c.l.b16 %v236
    %v1874 = vunpack.c.h.b16 %v236
    %v1875 = vunpack.c.l.b16 %v237
    %v1876 = vunpack.c.h.b16 %v237
    %v1877 = vunpack.c.l.b16 %v238
    %v1878 = vunpack.c.h.b16 %v238
    %v1879 = vunpack.c.l.b16 %v239
    %v1880 = vunpack.c.h.b16 %v239
    %v1881 = vunpack.c.l.b16 %v240
    %v1882 = vunpack.c.h.b16 %v240
    %v1883 = vunpack.c.l.b16 %v241
    %v1884 = vunpack.c.h.b16 %v241
    %v1885 = vunpack.c.l.b16 %v242
    %v1886 = vunpack.c.h.b16 %v242
    %v1887 = vunpack.c.l.b16 %v243
    %v1888 = vunpack.c.h.b16 %v243
    %v1889 = vunpack.c.l.b16 %v244
    %v1890 = vunpack.c.h.b16 %v244
    %v1891 = vunpack.c.l.b16 %v245
    %v1892 = vunpack.c.h.b16 %v245
    %v1893 = vunpack.c.l.b16 %v246
    %v1894 = vunpack.c.h.b16 %v246
    %v1895 = vunpack.c.l.b16 %v247
    %v1896 = vunpack.c.h.b16 %v247
    %v1897 = vunpack.c.l.b16 %v248
    %v1898 = vunpack.c.h.b16 %v248
    %v1899 = vunpack.c.l.b16 %v249
    %v1900 = vunpack.c.h.b16 %v249
    %v1901 = vunpack.c.l.b16 %v250
    %v1902 = vunpack.c.h.b16 %v250
    %v1903 = vunpack.c.l.b16 %v251
    %v1904 = vunpack.c.h.b16 %v251
    %v1905 = vunpack.c.l.b16 %v252
    %v1906 = vunpack.c.h.b16 %v252
    %v1907 = vunpack.c.l.b16 %v253
    %v1908 = vunpack.c.h.b16 %v253
    %v1909 = vunpack.c.l.b16 %v254
    %v1910 = vunpack.c.h.b16 %v254
    %v1911 = vunpack.c.l.b16 %v255
    %v1912 = vunpack.c.h.b16 %v255
    %v1913 = vunpack.c.l.b16 %v256
    %v1914 = vunpack.c.h.b16 %v256
    %v1915 = vunpack.c.l.b16 %v257
    %v1916 = vunpack.c.h.b16 %v257
    %v1917 = vunpack.c.l.b16 %v258
    %v1918 = vunpack.c.h.b16 %v258
    %v1919 = vunpack.c.l.b16 %v259
    %v1920 = vunpack.c.h.b16 %v259
    %v1921 = vunpack.c.l.b16 %v260
    %v1922 = vunpack.c.h.b16 %v260
    %v1923 = vunpack.c.l.b16 %v261
    %v1924 = vunpack.c.h.b16 %v261
    %v1925 = vunpack.c.l.b16 %v262
    %v1926 = vunpack.c.h.b16 %v262
    %v1927 = vunpack.c.l.b16 %v263
    %v1928 = vunpack.c.h.b16 %v263
    %v1929 = vunpack.c.l.b16 %v264
    %v1930 = vunpack.c.h.b16 %v264
    %v1931 = vunpack.c.l.b16 %v265
    %v1932 = vunpack.c.h.b16 %v265
    %v1933 = vunpack.c.l.b16 %v266
    %v1934 = vunpack.c.h.b16 %v266
    %v1935 = vunpack.c.l.b16 %v267
    %v1936 = vunpack.c.h.b16 %v267
    %v1937 = vunpack.c.l.b16 %v268
    %v1938 = vunpack.c.h.b16 %v268
    %v1939 = vunpack.c.l.b16 %v269
    %v1940 = vunpack.c.h.b16 %v269
    %v1941 = vunpack.c.l.b16 %v270
    %v1942 = vunpack.c.h.b16 %v270
    %v1943 = vunpack.c.l.b16 %v271
    %v1944 = vunpack.c.h.b16 %v271
    %v1945 = vunpack.c.l.b16 %v272
    %v1946 = vunpack.c.h.b16 %v272
    %v1947 = vunpack.c.l.b16 %v273
    %v1948 = vunpack.c.h.b16 %v273
    %v1949 = vunpack.c.l.b16 %v274
    %v1950 = vunpack.c.h.b16 %v274
    %v1951 = vunpack.c.l.b16 %v275
    %v1952 = vunpack.c.h.b16 %v275
    %v1953 = vunpack.c.l.b16 %v276
    %v1954 = vunpack.c.h.b16 %v276
    %v1955 = vunpack.c.l.b16 %v277
    %v1956 = vunpack.c.h.b16 %v277
    %v1957 = vunpack.c.l.b16 %v278
    %v1958 = vunpack.c.h.b16 %v278
    %v1959 = vunpack.c.l.b16 %v279
    %v1960 = vunpack.c.h.b16 %v279
    %v1961 = vunpack.c.l.b16 %v280
    %v1962 = vunpack.c.h.b16 %v280
    %v1963 = vunpack.c.l.b16 %v281
    %v1964 = vunpack.c.h.b16 %v281
    %v1965 = vunpack.c.l.b16 %v282
    %v1966 = vunpack.c.h.b16 %v282
    %v1967 = vunpack.c.l.b16 %v283
    %v1968 = vunpack.c.h.b16 %v283
    %v1969 = vunpack.c.l.b16 %v284
    %v1970 = vunpack.c.h.b16 %v284
    %v1971 = vunpack.c.l.b16 %v285
    %v1972 = vunpack.c.h.b16 %v285
    %v1973 = vunpack.c.l.b16 %v286
    %v1974 = vunpack.c.h.b16 %v286
    %v1975 = vunpack.c.l.b16 %v287
    %v1976 = vunpack.c.h.b16 %v287
    %v1977 = vunpack.c.l.b16 %v288
    %v1978 = vunpack.c.h.b16 %v288
    %v1979 = vunpack.c.l.b16 %v289
    %v1980 = vunpack.c.h.b16 %v289
    %v1981 = vunpack.c.l.b16 %v290
    %v1982 = vunpack.c.h.b16 %v290
    %v1983 = vunpack.c.l.b16 %v291
    %v1984 = vunpack.c.h.b16 %v291
    %v1985 = vunpack.c.l.b16 %v292
    %v1986 = vunpack.c.h.b16 %v292
    %v1987 = vunpack.c.l.b16 %v293
    %v1988 = vunpack.c.h.b16 %v293
    %v1989 = vunpack.c.l.b16 %v294
    %v1990 = vunpack.c.h.b16 %v294
    %v1991 = vunpack.c.l.b16 %v295
    %v1992 = vunpack.c.h.b16 %v295
    %v1993 = vunpack.c.l.b16 %v296
    %v1994 = vunpack.c.h.b16 %v296
    %v1995 = vunpack.c.l.b16 %v297
    %v1996 = vunpack.c.h.b16 %v297
    %v1997 = vunpack.c.l.b16 %v298
    %v1998 = vunpack.c.h.b16 %v298
    %v1999 = vunpack.c.l.b16 %v299
    %v2000 = vunpack.c.h.b16 %v299
    %v2001 = vunpack.c.l.b16 %v300
    %v2002 = vunpack.c.h.b16 %v300
    %v2003 = vunpack.c.l.b16 %v301
    %v2004 = vunpack.c.h.b16 %v301
    %v2005 = vunpack.c.l.b16 %v302
    %v2006 = vunpack.c.h.b16 %v302
    %v2007 = vunpack.c.l.b16 %v303
    %v2008 = vunpack.c.h.b16 %v303
    %v2009 = vunpack.c.l.b16 %v304
    %v2010 = vunpack.c.h.b16 %v304
    %v2011 = vunpack.c.l.b16 %v305
    %v2012 = vunpack.c.h.b16 %v305
    %v2013 = vunpack.c.l.b16 %v306
    %v2014 = vunpack.c.h.b16 %v306
    %v2015 = vunpack.c.l.b16 %v307
    %v2016 = vunpack.c.h.b16 %v307
    %v2017 = vunpack.c.l.b16 %v308
    %v2018 = vunpack.c.h.b16 %v308
    %v2019 = vunpack.c.l.b16 %v309
    %v2020 = vunpack.c.h.b16 %v309
    %v2021 = vunpack.c.l.b16 %v310
    %v2022 = vunpack.c.h.b16 %v310
    %v2023 = vunpack.c.l.b16 %v311
    %v2024 = vunpack.c.h.b16 %v311
    %v2025 = vunpack.c.l.b16 %v312
    %v2026 = vunpack.c.h.b16 %v312
    %v2027 = vunpack.c.l.b16 %v313
    %v2028 = vunpack.c.h.b16 %v313
    %v2029 = vunpack.c.l.b16 %v314
    %v2030 = vunpack.c.h.b16 %v314
    %v2031 = vunpack.c.l.b16 %v315
    %v2032 = vunpack.c.h.b16 %v315
    %v2033 = vunpack.c.l.b16 %v316
    %v2034 = vunpack.c.h.b16 %v316
    %v2035 = vunpack.c.l.b16 %v317
    %v2036 = vunpack.c.h.b16 %v317
    %v2037 = vunpack.c.l.b16 %v318
    %v2038 = vunpack.c.h.b16 %v318
    %v2039 = vunpack.c.l.b16 %v319
    %v2040 = vunpack.c.h.b16 %v319
    %v2041 = vunpack.c.l.b16 %v320
    %v2042 = vunpack.c.h.b16 %v320
    %v2043 = vunpack.c.l.b16 %v321
    %v2044 = vunpack.c.h.b16 %v321
    %v2045 = vunpack.c.l.b16 %v322
    %v2046 = vunpack.c.h.b16 %v322
    %v2047 = vunpack.c.l.b16 %v323
    %v2048 = vunpack.c.h.b16 %v323
    %v2049 = vunpack.c.l.b16 %v324
    %v2050 = vunpack.c.h.b16 %v324
    %v2051 = vunpack.c.l.b16 %v325
    %v2052 = vunpack.c.h.b16 %v325
    %v2053 = vunpack.c.l.b16 %v326
    %v2054 = vunpack.c.h.b16 %v326
    %v2055 = vunpack.c.l.b16 %v327
    %v2056 = vunpack.c.h.b16 %v327
    %v2057 = vunpack.c.l.b16 %v328
    %v2058 = vunpack.c.h.b16 %v328
    %v2059 = vunpack.c.l.b16 %v329
    %v2060 = vunpack.c.h.b16 %v329
    %v2061 = vunpack.c.l.b16 %v330
    %v2062 = vunpack.c.h.b16 %v330
    %v2063 = vunpack.c.l.b16 %v331
    %v2064 = vunpack.c.h.b16 %v331
    %v2065 = vunpack.c.l.b16 %v332
    %v2066 = vunpack.c.h.b16 %v332
    %v2067 = vunpack.c.l.b16 %v333
    %v2068 = vunpack.c.h.b16 %v333
    %v2069 = vunpack.c.l.b16 %v334
    %v2070 = vunpack.c.h.b16 %v334
    %v2071 = vunpack.c.l.b16 %v335
    %v2072 = vunpack.c.h.b16 %v335
    %v2073 = vunpack.c.l.b16 %v336
    %v2074 = vunpack.c.h.b16 %v336
    %v2075 = vunpack.c.l.b16 %v337
    %v2076 = vunpack.c.h.b16 %v337
    %v2077 = vunpack.c.l.b16 %v338
    %v2078 = vunpack.c.h.b16 %v338
    %v2079 = vunpack.c.l.b16 %v339
    %v2080 = vunpack.c.h.b16 %v339
    %v2081 = vunpack.c.l.b16 %v340
    %v2082 = vunpack.c.h.b16 %v340
    %v2083 = vunpack.c.l.b16 %v341
    %v2084 = vunpack.c.h.b16 %v341
    %v2085 = vunpack.c.l.b16 %v342
    %v2086 = vunpack.c.h.b16 %v342
    %v2087 = vunpack.c.l.b16 %v343
    %v2088 = vunpack.c.h.b16 %v343
    %v2089 = vunpack.c.l.b16 %v344
    %v2090 = vunpack.c.h.b16 %v344
    %v2091 = vunpack.c.l.b16 %v345
    %v2092 = vunpack.c.h.b16 %v345
    %v2093 = vunpack.c.l.b16 %v346
    %v2094 = vunpack.c.h.b16 %v346
    %v2095 = vunpack.c.l.b16 %v347
    %v2096 = vunpack.c.h.b16 %v347
    %v2097 = vunpack.c.l.b16 %v348
    %v2098 = vunpack.c.h.b16 %v348
    %v2099 = vunpack.c.l.b16 %v349
    %v2100 = vunpack.c.h.b16 %v349
    %v2101 = vunpack.c.l.b16 %v350
    %v2102 = vunpack.c.h.b16 %v350
    %v2103 = vunpack.c.l.b16 %v351
    %v2104 = vunpack.c.h.b16 %v351
    %v2105 = vunpack.c.l.b16 %v352
    %v2106 = vunpack.c.h.b16 %v352
    %v2107 = vunpack.c.l.b16 %v353
    %v2108 = vunpack.c.h.b16 %v353
    %v2109 = vunpack.c.l.b16 %v354
    %v2110 = vunpack.c.h.b16 %v354
    %v2111 = vunpack.c.l.b16 %v355
    %v2112 = vunpack.c.h.b16 %v355
    %v2113 = vunpack.c.l.b16 %v356
    %v2114 = vunpack.c.h.b16 %v356
    %v2115 = vunpack.c.l.b16 %v357
    %v2116 = vunpack.c.h.b16 %v357
    %v2117 = vunpack.c.l.b16 %v358
    %v2118 = vunpack.c.h.b16 %v358
    %v2119 = vunpack.c.l.b16 %v359
    %v2120 = vunpack.c.h.b16 %v359
    %v2121 = vunpack.c.l.b16 %v360
    %v2122 = vunpack.c.h.b16 %v360
    %v2123 = vunpack.c.l.b16 %v361
    %v2124 = vunpack.c.h.b16 %v361
    %v2125 = vunpack.c.l.b16 %v362
    %v2126 = vunpack.c.h.b16 %v362
    %v2127 = vunpack.c.l.b16 %v363
    %v2128 = vunpack.c.h.b16 %v363
    %v2129 = vunpack.c.l.b16 %v364
    %v2130 = vunpack.c.h.b16 %v364
    %v2131 = vunpack.c.l.b16 %v365
    %v2132 = vunpack.c.h.b16 %v365
    %v2133 = vunpack.c.l.b16 %v366
    %v2134 = vunpack.c.h.b16 %v366
    %v2135 = vunpack.c.l.b16 %v367
    %v2136 = vunpack.c.h.b16 %v367
    %v2137 = vunpack.c.l.b16 %v368
    %v2138 = vunpack.c.h.b16 %v368
    %v2139 = vunpack.c.l.b16 %v369
    %v2140 = vunpack.c.h.b16 %v369
    %v2141 = vunpack.c.l.b16 %v370
    %v2142 = vunpack.c.h.b16 %v370
    %v2143 = vunpack.c.l.b16 %v371
    %v2144 = vunpack.c.h.b16 %v371
    %v2145 = vunpack.c.l.b16 %v372
    %v2146 = vunpack.c.h.b16 %v372
    %v2147 = vunpack.c.l.b16 %v373
    %v2148 = vunpack.c.h.b16 %v373
    %v2149 = vunpack.c.l.b16 %v374
    %v2150 = vunpack.c.h.b16 %v374
    %v2151 = vunpack.c.l.b16 %v375
    %v2152 = vunpack.c.h.b16 %v375
    %v2153 = vunpack.c.l.b16 %v376
    %v2154 = vunpack.c.h.b16 %v376
    %v2155 = vunpack.c.l.b16 %v377
    %v2156 = vunpack.c.h.b16 %v377
    %v2157 = vunpack.c.l.b16 %v378
    %v2158 = vunpack.c.h.b16 %v378
    %v2159 = vunpack.c.l.b16 %v379
    %v2160 = vunpack.c.h.b16 %v379
    %v2161 = vunpack.c.l.b16 %v380
    %v2162 = vunpack.c.h.b16 %v380
    %v2163 = vunpack.c.l.b16 %v381
    %v2164 = vunpack.c.h.b16 %v381
    %v2165 = vunpack.c.l.b16 %v382
    %v2166 = vunpack.c.h.b16 %v382
    %v2167 = vunpack.c.l.b16 %v383
    %v2168 = vunpack.c.h.b16 %v383
    %v2169 = vunpack.c.l.b16 %v384
    %v2170 = vunpack.c.h.b16 %v384
    %v2171 = vunpack.c.l.b16 %v385
    %v2172 = vunpack.c.h.b16 %v385
    %v2173 = vunpack.c.l.b16 %v386
    %v2174 = vunpack.c.h.b16 %v386
    %v2175 = vunpack.c.l.b16 %v387
    %v2176 = vunpack.c.h.b16 %v387
    %v2177 = vunpack.c.l.b16 %v388
    %v2178 = vunpack.c.h.b16 %v388
    %v2179 = vunpack.c.l.b16 %v389
    %v2180 = vunpack.c.h.b16 %v389
    %v2181 = vunpack.c.l.b16 %v390
    %v2182 = vunpack.c.h.b16 %v390
    %v2183 = vunpack.c.l.b16 %v391
    %v2184 = vunpack.c.h.b16 %v391
    %v2185 = vunpack.c.l.b16 %v392
    %v2186 = vunpack.c.h.b16 %v392
    %v2187 = vunpack.c.l.b16 %v393
    %v2188 = vunpack.c.h.b16 %v393
    %v2189 = vunpack.c.l.b16 %v394
    %v2190 = vunpack.c.h.b16 %v394
    %v2191 = vunpack.c.l.b16 %v395
    %v2192 = vunpack.c.h.b16 %v395
    %v2193 = vunpack.c.l.b16 %v396
    %v2194 = vunpack.c.h.b16 %v396
    %v2195 = vunpack.c.l.b16 %v397
    %v2196 = vunpack.c.h.b16 %v397
    %v2197 = vunpack.c.l.b16 %v398
    %v2198 = vunpack.c.h.b16 %v398
    %v2199 = vunpack.c.l.b16 %v399
    %v2200 = vunpack.c.h.b16 %v399
    %v2201 = vunpack.c.l.b16 %v400
    %v2202 = vunpack.c.h.b16 %v400
    %v2203 = vunpack.c.l.b16 %v401
    %v2204 = vunpack.c.h.b16 %v401
    %v2205 = vunpack.c.l.b16 %v402
    %v2206 = vunpack.c.h.b16 %v402
    %v2207 = vunpack.c.l.b16 %v403
    %v2208 = vunpack.c.h.b16 %v403
    %v2209 = vunpack.c.l.b16 %v404
    %v2210 = vunpack.c.h.b16 %v404
    %v2211 = vunpack.c.l.b16 %v405
    %v2212 = vunpack.c.h.b16 %v405
    %v2213 = vunpack.c.l.b16 %v406
    %v2214 = vunpack.c.h.b16 %v406
    %v2215 = vunpack.c.l.b16 %v407
    %v2216 = vunpack.c.h.b16 %v407
    %v2217 = vunpack.c.l.b16 %v408
    %v2218 = vunpack.c.h.b16 %v408
    %v2219 = vunpack.c.l.b16 %v409
    %v2220 = vunpack.c.h.b16 %v409
    %v2221 = vunpack.c.l.b16 %v410
    %v2222 = vunpack.c.h.b16 %v410
    %v2223 = vunpack.c.l.b16 %v411
    %v2224 = vunpack.c.h.b16 %v411
    %v2225 = vunpack.c.l.b16 %v412
    %v2226 = vunpack.c.h.b16 %v412
    %v2227 = vunpack.c.l.b16 %v413
    %v2228 = vunpack.c.h.b16 %v413
    %v2229 = vunpack.c.l.b16 %v414
    %v2230 = vunpack.c.h.b16 %v414
    %v2231 = vunpack.c.l.b16 %v415
    %v2232 = vunpack.c.h.b16 %v415
    %v2233 = vunpack.c.l.b16 %v416
    %v2234 = vunpack.c.h.b16 %v416
    %v2235 = vunpack.c.l.b16 %v417
    %v2236 = vunpack.c.h.b16 %v417
    %v2237 = vunpack.c.l.b16 %v418
    %v2238 = vunpack.c.h.b16 %v418
    %v2239 = vunpack.c.l.b16 %v419
    %v2240 = vunpack.c.h.b16 %v419
    %v2241 = vunpack.c.l.b16 %v420
    %v2242 = vunpack.c.h.b16 %v420
    %v2243 = vunpack.c.l.b16 %v421
    %v2244 = vunpack.c.h.b16 %v421
    %v2245 = vunpack.c.l.b16 %v422
    %v2246 = vunpack.c.h.b16 %v422
    %v2247 = vunpack.c.l.b16 %v423
    %v2248 = vunpack.c.h.b16 %v423
    %v2249 = vunpack.c.l.b16 %v424
    %v2250 = vunpack.c.h.b16 %v424
    %v2251 = vunpack.c.l.b16 %v425
    %v2252 = vunpack.c.h.b16 %v425
    %v2253 = vunpack.c.l.b16 %v426
    %v2254 = vunpack.c.h.b16 %v426
    %v2255 = vunpack.c.l.b16 %v427
    %v2256 = vunpack.c.h.b16 %v427
    %v2257 = vunpack.c.l.b16 %v428
    %v2258 = vunpack.c.h.b16 %v428
    %v2259 = vunpack.c.l.b16 %v429
    %v2260 = vunpack.c.h.b16 %v429
    %v2261 = vunpack.c.l.b16 %v430
    %v2262 = vunpack.c.h.b16 %v430
    %v2263 = vunpack.c.l.b16 %v431
    %v2264 = vunpack.c.h.b16 %v431
    %v2265 = vunpack.c.l.b16 %v432
    %v2266 = vunpack.c.h.b16 %v432
    %v2267 = vunpack.c.l.b16 %v433
    %v2268 = vunpack.c.h.b16 %v433
    %v2269 = vunpack.c.l.b16 %v434
    %v2270 = vunpack.c.h.b16 %v434
    %v2271 = vunpack.c.l.b16 %v435
    %v2272 = vunpack.c.h.b16 %v435
    %v2273 = vunpack.c.l.b16 %v436
    %v2274 = vunpack.c.h.b16 %v436
    %v2275 = vunpack.c.l.b16 %v437
    %v2276 = vunpack.c.h.b16 %v437
    %v2277 = vunpack.c.l.b16 %v438
    %v2278 = vunpack.c.h.b16 %v438
    %v2279 = vunpack.c.l.b16 %v439
    %v2280 = vunpack.c.h.b16 %v439
    %v2281 = vunpack.c.l.b16 %v440
    %v2282 = vunpack.c.h.b16 %v440
    %v2283 = vunpack.c.l.b16 %v441
    %v2284 = vunpack.c.h.b16 %v441
    %v2285 = vunpack.c.l.b16 %v442
    %v2286 = vunpack.c.h.b16 %v442
    %v2287 = vunpack.c.l.b16 %v443
    %v2288 = vunpack.c.h.b16 %v443
    %v2289 = vunpack.c.l.b16 %v444
    %v2290 = vunpack.c.h.b16 %v444
    %v2291 = vunpack.c.l.b16 %v445
    %v2292 = vunpack.c.h.b16 %v445
    %v2293 = vunpack.c.l.b16 %v446
    %v2294 = vunpack.c.h.b16 %v446
    %v2295 = vunpack.c.l.b16 %v447
    %v2296 = vunpack.c.h.b16 %v447
    %v2297 = vunpack.c.l.b16 %v448
    %v2298 = vunpack.c.h.b16 %v448
    %v2299 = vunpack.c.l.b16 %v449
    %v2300 = vunpack.c.h.b16 %v449
    %v2301 = vunpack.c.l.b16 %v450
    %v2302 = vunpack.c.h.b16 %v450
    %v2303 = vunpack.c.l.b16 %v451
    %v2304 = vunpack.c.h.b16 %v451
    %v2305 = vunpack.c.l.b16 %v452
    %v2306 = vunpack.c.h.b16 %v452
    %v2307 = vunpack.c.l.b16 %v453
    %v2308 = vunpack.c.h.b16 %v453
    %v2309 = vunpack.c.l.b16 %v454
    %v2310 = vunpack.c.h.b16 %v454
    %v2311 = vunpack.c.l.b16 %v455
    %v2312 = vunpack.c.h.b16 %v455
    %v2313 = vunpack.c.l.b16 %v456
    %v2314 = vunpack.c.h.b16 %v456
    %v2315 = vunpack.c.l.b16 %v457
    %v2316 = vunpack.c.h.b16 %v457
    %v2317 = vunpack.c.l.b16 %v458
    %v2318 = vunpack.c.h.b16 %v458
    %v2319 = vunpack.c.l.b16 %v459
    %v2320 = vunpack.c.h.b16 %v459
    %v2321 = vunpack.c.l.b16 %v460
    %v2322 = vunpack.c.h.b16 %v460
    %v2323 = vunpack.c.l.b16 %v461
    %v2324 = vunpack.c.h.b16 %v461
    %v2325 = vunpack.c.l.b16 %v462
    %v2326 = vunpack.c.h.b16 %v462
    %v2327 = vunpack.c.l.b16 %v463
    %v2328 = vunpack.c.h.b16 %v463
    %v2329 = vunpack.c.l.b16 %v464
    %v2330 = vunpack.c.h.b16 %v464
    %v2331 = vunpack.c.l.b16 %v465
    %v2332 = vunpack.c.h.b16 %v465
    %v2333 = vunpack.c.l.b16 %v466
    %v2334 = vunpack.c.h.b16 %v466
    %v2335 = vunpack.c.l.b16 %v467
    %v2336 = vunpack.c.h.b16 %v467
    %v2337 = vunpack.c.l.b16 %v468
    %v2338 = vunpack.c.h.b16 %v468
    %v2339 = vunpack.c.l.b16 %v469
    %v2340 = vunpack.c.h.b16 %v469
    %v2341 = vunpack.c.l.b16 %v470
    %v2342 = vunpack.c.h.b16 %v470
    %v2343 = vunpack.c.l.b16 %v471
    %v2344 = vunpack.c.h.b16 %v471
    %v2345 = vunpack.c.l.b16 %v472
    %v2346 = vunpack.c.h.b16 %v472
    %v2347 = vunpack.c.l.b16 %v473
    %v2348 = vunpack.c.h.b16 %v473
    %v2349 = vunpack.c.l.b16 %v474
    %v2350 = vunpack.c.h.b16 %v474
    %v2351 = vunpack.c.l.b16 %v475
    %v2352 = vunpack.c.h.b16 %v475
    %v2353 = vunpack.c.l.b16 %v476
    %v2354 = vunpack.c.h.b16 %v476
    %v2355 = vunpack.c.l.b16 %v477
    %v2356 = vunpack.c.h.b16 %v477
    %v2357 = vunpack.c.l.b16 %v478
    %v2358 = vunpack.c.h.b16 %v478
    %v2359 = vunpack.c.l.b16 %v479
    %v2360 = vunpack.c.h.b16 %v479
    %v2361 = vunpack.c.l.b16 %v480
    %v2362 = vunpack.c.h.b16 %v480
    %v2363 = vunpack.c.l.b16 %v481
    %v2364 = vunpack.c.h.b16 %v481
    %v2365 = vunpack.c.l.b16 %v482
    %v2366 = vunpack.c.h.b16 %v482
    %v2367 = vunpack.c.l.b16 %v483
    %v2368 = vunpack.c.h.b16 %v483
    %v2369 = vunpack.c.l.b16 %v484
    %v2370 = vunpack.c.h.b16 %v484
    %v2371 = vunpack.c.l.b16 %v485
    %v2372 = vunpack.c.h.b16 %v485
    %v2373 = vunpack.c.l.b16 %v486
    %v2374 = vunpack.c.h.b16 %v486
    %v2375 = vunpack.c.l.b16 %v487
    %v2376 = vunpack.c.h.b16 %v487
    %v2377 = vunpack.c.l.b16 %v488
    %v2378 = vunpack.c.h.b16 %v488
    %v2379 = vunpack.c.l.b16 %v489
    %v2380 = vunpack.c.h.b16 %v489
    %v2381 = vunpack.c.l.b16 %v490
    %v2382 = vunpack.c.h.b16 %v490
    %v2383 = vunpack.c.l.b16 %v491
    %v2384 = vunpack.c.h.b16 %v491
    %v2385 = vunpack.c.l.b16 %v492
    %v2386 = vunpack.c.h.b16 %v492
    %v2387 = vunpack.c.l.b16 %v493
    %v2388 = vunpack.c.h.b16 %v493
    %v2389 = vunpack.c.l.b16 %v494
    %v2390 = vunpack.c.h.b16 %v494
    %v2391 = vunpack.c.l.b16 %v495
    %v2392 = vunpack.c.h.b16 %v495
    %v2393 = vunpack.c.l.b16 %v496
    %v2394 = vunpack.c.h.b16 %v496
    %v2395 = vunpack.c.l.b16 %v497
    %v2396 = vunpack.c.h.b16 %v497
    %v2397 = vunpack.c.l.b16 %v498
    %v2398 = vunpack.c.h.b16 %v498
    %v2399 = vunpack.c.l.b16 %v499
    %v2400 = vunpack.c.h.b16 %v499
    %v2401 = vunpack.c.l.b16 %v500
    %v2402 = vunpack.c.h.b16 %v500
    %v2403 = vunpack.c.l.b16 %v501
    %v2404 = vunpack.c.h.b16 %v501
    %v2405 = vunpack.c.l.b16 %v502
    %v2406 = vunpack.c.h.b16 %v502
    %v2407 = vunpack.c.l.b16 %v503
    %v2408 = vunpack.c.h.b16 %v503
    %v2409 = vunpack.c.l.b16 %v504
    %v2410 = vunpack.c.h.b16 %v504
    %v2411 = vunpack.c.l.b16 %v505
    %v2412 = vunpack.c.h.b16 %v505
    %v2413 = vunpack.c.l.b16 %v506
    %v2414 = vunpack.c.h.b16 %v506
    %v2415 = vunpack.c.l.b16 %v507
    %v2416 = vunpack.c.h.b16 %v507
    %v2417 = vunpack.c.l.b16 %v508
    %v2418 = vunpack.c.h.b16 %v508
    %v2419 = vunpack.c.l.b16 %v509
    %v2420 = vunpack.c.h.b16 %v509
    %v2421 = vunpack.c.l.b16 %v510
    %v2422 = vunpack.c.h.b16 %v510
    %v2423 = vunpack.c.l.b16 %v511
    %v2424 = vunpack.c.h.b16 %v511
    %v2425 = vunpack.c.l.b16 %v512
    %v2426 = vunpack.c.h.b16 %v512
    %v2427 = vunpack.c.l.b16 %v513
    %v2428 = vunpack.c.h.b16 %v513
    %v2429 = vunpack.c.l.b16 %v514
    %v2430 = vunpack.c.h.b16 %v514
    %v2431 = vunpack.c.l.b16 %v515
    %v2432 = vunpack.c.h.b16 %v515
    %v2433 = vunpack.c.l.b16 %v516
    %v2434 = vunpack.c.h.b16 %v516
    %v2435 = vunpack.c.l.b16 %v517
    %v2436 = vunpack.c.h.b16 %v517
    %v2437 = vunpack.c.l.b16 %v518
    %v2438 = vunpack.c.h.b16 %v518
    %v2439 = vunpack.c.l.b16 %v519
    %v2440 = vunpack.c.h.b16 %v519
    %v2441 = vunpack.c.l.b16 %v520
    %v2442 = vunpack.c.h.b16 %v520
    %v2443 = vunpack.c.l.b16 %v521
    %v2444 = vunpack.c.h.b16 %v521
    %v2445 = vunpack.c.l.b16 %v522
    %v2446 = vunpack.c.h.b16 %v522
    %v2447 = vunpack.c.l.b16 %v523
    %v2448 = vunpack.c.h.b16 %v523
    %v2449 = vunpack.c.l.b16 %v524
    %v2450 = vunpack.c.h.b16 %v524
    %v2451 = vunpack.c.l.b16 %v525
    %v2452 = vunpack.c.h.b16 %v525
    %v2453 = vunpack.c.l.b16 %v526
    %v2454 = vunpack.c.h.b16 %v526
    %v2455 = vunpack.c.l.b16 %v527
    %v2456 = vunpack.c.h.b16 %v527
    %v2457 = vunpack.c.l.b16 %v528
    %v2458 = vunpack.c.h.b16 %v528
    %v2459 = vunpack.c.l.b16 %v529
    %v2460 = vunpack.c.h.b16 %v529
    %v2461 = vunpack.c.l.b16 %v530
    %v2462 = vunpack.c.h.b16 %v530
    %v2463 = vunpack.c.l.b16 %v531
    %v2464 = vunpack.c.h.b16 %v531
    %v2465 = vunpack.c.l.b16 %v532
    %v2466 = vunpack.c.h.b16 %v532
    %v2467 = vunpack.c.l.b16 %v533
    %v2468 = vunpack.c.h.b16 %v533
    %v2469 = vunpack.c.l.b16 %v534
    %v2470 = vunpack.c.h.b16 %v534
    %v2471 = vunpack.c.l.b16 %v535
    %v2472 = vunpack.c.h.b16 %v535
    %v2473 = vunpack.c.l.b16 %v536
    %v2474 = vunpack.c.h.b16 %v536
    %v2475 = vunpack.c.l.b16 %v537
    %v2476 = vunpack.c.h.b16 %v537
    %v2477 = vunpack.c.l.b16 %v538
    %v2478 = vunpack.c.h.b16 %v538
    %v2479 = vunpack.c.l.b16 %v539
    %v2480 = vunpack.c.h.b16 %v539
    %v2481 = vunpack.c.l.b16 %v540
    %v2482 = vunpack.c.h.b16 %v540
    %v2483 = vunpack.c.l.b16 %v541
    %v2484 = vunpack.c.h.b16 %v541
    %v2485 = vunpack.c.l.b16 %v542
    %v2486 = vunpack.c.h.b16 %v542
    %v2487 = vunpack.c.l.b16 %v543
    %v2488 = vunpack.c.h.b16 %v543
    %v2489 = vunpack.c.l.b16 %v544
    %v2490 = vunpack.c.h.b16 %v544
    %v2491 = vunpack.c.l.b16 %v545
    %v2492 = vunpack.c.h.b16 %v545
    %v2493 = vunpack.c.l.b16 %v546
    %v2494 = vunpack.c.h.b16 %v546
    %v2495 = vunpack.c.l.b16 %v547
    %v2496 = vunpack.c.h.b16 %v547
    %v2497 = vunpack.c.l.b16 %v548
    %v2498 = vunpack.c.h.b16 %v548
    %v2499 = vunpack.c.l.b16 %v549
    %v2500 = vunpack.c.h.b16 %v549
    %v2501 = vunpack.c.l.b16 %v550
    %v2502 = vunpack.c.h.b16 %v550
    %v2503 = vunpack.c.l.b16 %v551
    %v2504 = vunpack.c.h.b16 %v551
    %v2505 = vunpack.c.l.b16 %v552
    %v2506 = vunpack.c.h.b16 %v552
    %v2507 = vunpack.c.l.b16 %v553
    %v2508 = vunpack.c.h.b16 %v553
    %v2509 = vunpack.c.l.b16 %v554
    %v2510 = vunpack.c.h.b16 %v554
    %v2511 = vunpack.c.l.b16 %v555
    %v2512 = vunpack.c.h.b16 %v555
    %v2513 = vunpack.c.l.b16 %v556
    %v2514 = vunpack.c.h.b16 %v556
    %v2515 = vunpack.c.l.b16 %v557
    %v2516 = vunpack.c.h.b16 %v557
    %v2517 = vunpack.c.l.b16 %v558
    %v2518 = vunpack.c.h.b16 %v558
    %v2519 = vunpack.c.l.b16 %v559
    %v2520 = vunpack.c.h.b16 %v559
    %v2521 = vunpack.c.l.b16 %v560
    %v2522 = vunpack.c.h.b16 %v560
    %v2523 = vunpack.c.l.b16 %v561
    %v2524 = vunpack.c.h.b16 %v561
    %v2525 = vunpack.c.l.b16 %v562
    %v2526 = vunpack.c.h.b16 %v562
    %v2527 = vunpack.c.l.b16 %v563
    %v2528 = vunpack.c.h.b16 %v563
    %v2529 = vunpack.c.l.b16 %v564
    %v2530 = vunpack.c.h.b16 %v564
    %v2531 = vunpack.c.l.b16 %v565
    %v2532 = vunpack.c.h.b16 %v565
    %v2533 = vunpack.c.l.b16 %v566
    %v2534 = vunpack.c.h.b16 %v566
    %v2535 = vunpack.c.l.b16 %v567
    %v2536 = vunpack.c.h.b16 %v567
    %v2537 = vunpack.c.l.b16 %v568
    %v2538 = vunpack.c.h.b16 %v568
    %v2539 = vunpack.c.l.b16 %v569
    %v2540 = vunpack.c.h.b16 %v569
    %v2541 = vunpack.c.l.b16 %v570
    %v2542 = vunpack.c.h.b16 %v570
    %v2543 = vunpack.c.l.b16 %v571
    %v2544 = vunpack.c.h.b16 %v571
    %v2545 = vunpack.c.l.b16 %v572
    %v2546 = vunpack.c.h.b16 %v572
    %v2547 = vunpack.c.l.b16 %v573
    %v2548 = vunpack.c.h.b16 %v573
    %v2549 = vunpack.c.l.b16 %v574
    %v2550 = vunpack.c.h.b16 %v574
    %v2551 = vunpack.c.l.b16 %v575
    %v2552 = vunpack.c.h.b16 %v575
    %v2553 = vunpack.c.l.b16 %v576
    %v2554 = vunpack.c.h.b16 %v576
    %v2555 = vunpack.c.l.b16 %v577
    %v2556 = vunpack.c.h.b16 %v577
    %v2557 = vunpack.c.l.b16 %v578
    %v2558 = vunpack.c.h.b16 %v578
    %v2559 = vunpack.c.l.b16 %v579
    %v2560 = vunpack.c.h.b16 %v579
    %v2561 = vunpack.c.l.b16 %v580
    %v2562 = vunpack.c.h.b16 %v580
    %v2563 = vunpack.c.l.b16 %v581
    %v2564 = vunpack.c.h.b16 %v581
    %v2565 = vunpack.c.l.b16 %v582
    %v2566 = vunpack.c.h.b16 %v582
    %v2567 = vunpack.c.l.b16 %v583
    %v2568 = vunpack.c.h.b16 %v583
    %v2569 = vunpack.c.l.b16 %v584
    %v2570 = vunpack.c.h.b16 %v584
    %v2571 = vunpack.c.l.b16 %v585
    %v2572 = vunpack.c.h.b16 %v585
    %v2573 = vunpack.c.l.b16 %v586
    %v2574 = vunpack.c.h.b16 %v586
    %v2575 = vunpack.c.l.b16 %v587
    %v2576 = vunpack.c.h.b16 %v587
    %v2577 = vunpack.c.l.b16 %v588
    %v2578 = vunpack.c.h.b16 %v588
    %v2579 = vunpack.c.l.b16 %v589
    %v2580 = vunpack.c.h.b16 %v589
    %v2581 = vunpack.c.l.b16 %v590
    %v2582 = vunpack.c.h.b16 %v590
    %v2583 = vunpack.c.l.b16 %v591
    %v2584 = vunpack.c.h.b16 %v591
    %v2585 = vunpack.c.l.b16 %v592
    %v2586 = vunpack.c.h.b16 %v592
    %v2587 = vunpack.c.l.b16 %v593
    %v2588 = vunpack.c.h.b16 %v593
    %v2589 = vunpack.c.l.b16 %v594
    %v2590 = vunpack.c.h.b16 %v594
    %v2591 = vunpack.c.l.b16 %v595
    %v2592 = vunpack.c.h.b16 %v595
    %v2593 = vunpack.c.l.b16 %v596
    %v2594 = vunpack.c.h.b16 %v596
    %v2595 = vunpack.c.l.b16 %v597
    %v2596 = vunpack.c.h.b16 %v597
    %v2597 = vunpack.c.l.b16 %v598
    %v2598 = vunpack.c.h.b16 %v598
    %v2599 = vunpack.c.l.b16 %v599
    %v2600 = vunpack.c.h.b16 %v599
    %v2601 = vunpack.c.l.b16 %v600
    %v2602 = vunpack.c.h.b16 %v600
    %v2603 = vunpack.c.l.b16 %v601
    %v2604 = vunpack.c.h.b16 %v601
    %v2605 = vunpack.c.l.b16 %v602
    %v2606 = vunpack.c.h.b16 %v602
    %v2607 = vunpack.c.l.b16 %v603
    %v2608 = vunpack.c.h.b16 %v603
    %v2609 = vunpack.c.l.b16 %v604
    %v2610 = vunpack.c.h.b16 %v604
    %v2611 = vunpack.c.l.b16 %v605
    %v2612 = vunpack.c.h.b16 %v605
    %v2613 = vunpack.c.l.b16 %v606
    %v2614 = vunpack.c.h.b16 %v606
    %v2615 = vunpack.c.l.b16 %v607
    %v2616 = vunpack.c.h.b16 %v607
    %v2617 = vunpack.c.l.b16 %v608
    %v2618 = vunpack.c.h.b16 %v608
    %v2619 = vunpack.c.l.b16 %v609
    %v2620 = vunpack.c.h.b16 %v609
    %v2621 = vunpack.c.l.b16 %v610
    %v2622 = vunpack.c.h.b16 %v610
    %v2623 = vunpack.c.l.b16 %v611
    %v2624 = vunpack.c.h.b16 %v611
    %v2625 = vunpack.c.l.b16 %v612
    %v2626 = vunpack.c.h.b16 %v612
    %v2627 = vunpack.c.l.b16 %v613
    %v2628 = vunpack.c.h.b16 %v613
    %v2629 = vunpack.c.l.b16 %v614
    %v2630 = vunpack.c.h.b16 %v614
    %v2631 = vunpack.c.l.b16 %v615
    %v2632 = vunpack.c.h.b16 %v615
    %v2633 = vunpack.c.l.b16 %v616
    %v2634 = vunpack.c.h.b16 %v616
    %v2635 = vunpack.c.l.b16 %v617
    %v2636 = vunpack.c.h.b16 %v617
    %v2637 = vunpack.c.l.b16 %v618
    %v2638 = vunpack.c.h.b16 %v618
    %v2639 = vunpack.c.l.b16 %v619
    %v2640 = vunpack.c.h.b16 %v619
    %v2641 = vunpack.c.l.b16 %v620
    %v2642 = vunpack.c.h.b16 %v620
    %v2643 = vunpack.c.l.b16 %v621
    %v2644 = vunpack.c.h.b16 %v621
    %v2645 = vunpack.c.l.b16 %v622
    %v2646 = vunpack.c.h.b16 %v622
    %v2647 = vunpack.c.l.b16 %v623
    %v2648 = vunpack.c.h.b16 %v623
    %v2649 = vunpack.c.l.b16 %v624
    %v2650 = vunpack.c.h.b16 %v624
    %v2651 = vunpack.c.l.b16 %v625
    %v2652 = vunpack.c.h.b16 %v625
    %v2653 = vunpack.c.l.b16 %v626
    %v2654 = vunpack.c.h.b16 %v626
    %v2655 = vunpack.c.l.b16 %v627
    %v2656 = vunpack.c.h.b16 %v627
    %v2657 = vunpack.c.l.b16 %v628
    %v2658 = vunpack.c.h.b16 %v628
    %v2659 = vunpack.c.l.b16 %v629
    %v2660 = vunpack.c.h.b16 %v629
    %v2661 = vunpack.c.l.b16 %v630
    %v2662 = vunpack.c.h.b16 %v630
    %v2663 = vunpack.c.l.b16 %v631
    %v2664 = vunpack.c.h.b16 %v631
    %v2665 = vunpack.c.l.b16 %v632
    %v2666 = vunpack.c.h.b16 %v632
    %v2667 = vunpack.c.l.b16 %v633
    %v2668 = vunpack.c.h.b16 %v633
    %v2669 = vunpack.c.l.b16 %v634
    %v2670 = vunpack.c.h.b16 %v634
    %v2671 = vunpack.c.l.b16 %v635
    %v2672 = vunpack.c.h.b16 %v635
    %v2673 = vunpack.c.l.b16 %v636
    %v2674 = vunpack.c.h.b16 %v636
    %v2675 = vunpack.c.l.b16 %v637
    %v2676 = vunpack.c.h.b16 %v637
    %v2677 = vunpack.c.l.b16 %v638
    %v2678 = vunpack.c.h.b16 %v638
    %v2679 = vunpack.c.l.b16 %v639
    %v2680 = vunpack.c.h.b16 %v639
    %v2681 = vunpack.c.l.b16 %v640
    %v2682 = vunpack.c.h.b16 %v640
    %v2683 = vunpack.c.l.b16 %v641
    %v2684 = vunpack.c.h.b16 %v641
    %v2685 = vunpack.c.l.b16 %v642
    %v2686 = vunpack.c.h.b16 %v642
    %v2687 = vunpack.c.l.b16 %v643
    %v2688 = vunpack.c.h.b16 %v643
    %v2689 = vunpack.c.l.b16 %v644
    %v2690 = vunpack.c.h.b16 %v644
    %v2691 = vunpack.c.l.b16 %v645
    %v2692 = vunpack.c.h.b16 %v645
    %v2693 = vunpack.c.l.b16 %v646
    %v2694 = vunpack.c.h.b16 %v646
    %v2695 = vunpack.c.l.b16 %v647
    %v2696 = vunpack.c.h.b16 %v647
    %v2697 = vunpack.c.l.b16 %v648
    %v2698 = vunpack.c.h.b16 %v648
    %v2699 = vunpack.c.l.b16 %v649
    %v2700 = vunpack.c.h.b16 %v649
    %v2701 = vunpack.c.l.b16 %v650
    %v2702 = vunpack.c.h.b16 %v650
    %v2703 = vunpack.c.l.b16 %v651
    %v2704 = vunpack.c.h.b16 %v651
    %v2705 = vunpack.c.l.b16 %v652
    %v2706 = vunpack.c.h.b16 %v652
    %v2707 = vunpack.c.l.b16 %v653
    %v2708 = vunpack.c.h.b16 %v653
    %v2709 = vunpack.c.l.b16 %v654
    %v2710 = vunpack.c.h.b16 %v654
    %v2711 = vunpack.c.l.b16 %v655
    %v2712 = vunpack.c.h.b16 %v655
    %v2713 = vunpack.c.l.b16 %v656
    %v2714 = vunpack.c.h.b16 %v656
    %v2715 = vunpack.c.l.b16 %v657
    %v2716 = vunpack.c.h.b16 %v657
    %v2717 = vunpack.c.l.b16 %v658
    %v2718 = vunpack.c.h.b16 %v658
    %v2719 = vunpack.c.l.b16 %v659
    %v2720 = vunpack.c.h.b16 %v659
    %v2721 = vunpack.c.l.b16 %v660
    %v2722 = vunpack.c.h.b16 %v660
    %v2723 = vunpack.c.l.b16 %v661
    %v2724 = vunpack.c.h.b16 %v661
    %v2725 = vunpack.c.l.b16 %v662
    %v2726 = vunpack.c.h.b16 %v662
    %v2727 = vunpack.c.l.b16 %v663
    %v2728 = vunpack.c.h.b16 %v663
    %v2729 = vunpack.c.l.b16 %v664
    %v2730 = vunpack.c.h.b16 %v664
    %v2731 = vunpack.c.l.b16 %v665
    %v2732 = vunpack.c.h.b16 %v665
    %v2733 = vunpack.c.l.b16 %v666
    %v2734 = vunpack.c.h.b16 %v666
    %v2735 = vunpack.c.l.b16 %v667
    %v2736 = vunpack.c.h.b16 %v667
    %v2737 = vunpack.c.l.b16 %v668
    %v2738 = vunpack.c.h.b16 %v668
    %v2739 = vunpack.c.l.b16 %v669
    %v2740 = vunpack.c.h.b16 %v669
    %v2741 = vunpack.c.l.b16 %v670
    %v2742 = vunpack.c.h.b16 %v670
    %v2743 = vunpack.c.l.b16 %v671
    %v2744 = vunpack.c.h.b16 %v671
    %v2745 = vunpack.c.l.b16 %v672
    %v2746 = vunpack.c.h.b16 %v672
    %v2747 = vunpack.c.l.b16 %v673
    %v2748 = vunpack.c.h.b16 %v673
    %v2749 = vunpack.c.l.b16 %v674
    %v2750 = vunpack.c.h.b16 %v674
    %v2751 = vunpack.c.l.b16 %v675
    %v2752 = vunpack.c.h.b16 %v675
    %v2753 = vunpack.c.l.b16 %v676
    %v2754 = vunpack.c.h.b16 %v676
    %v2755 = vunpack.c.l.b16 %v677
    %v2756 = vunpack.c.h.b16 %v677
    %v2757 = vunpack.c.l.b16 %v678
    %v2758 = vunpack.c.h.b16 %v678
    %v2759 = vunpack.c.l.b16 %v679
    %v2760 = vunpack.c.h.b16 %v679
    %v2761 = vunpack.c.l.b16 %v680
    %v2762 = vunpack.c.h.b16 %v680
    %v2763 = vunpack.c.l.b16 %v681
    %v2764 = vunpack.c.h.b16 %v681
    %v2765 = vunpack.c.l.b16 %v682
    %v2766 = vunpack.c.h.b16 %v682
    %v2767 = vunpack.c.l.b16 %v683
    %v2768 = vunpack.c.h.b16 %v683
    %v2769 = vunpack.c.l.b16 %v684
    %v2770 = vunpack.c.h.b16 %v684
    %v2771 = vunpack.c.l.b16 %v685
    %v2772 = vunpack.c.h.b16 %v685
    %v2773 = vunpack.c.l.b16 %v686
    %v2774 = vunpack.c.h.b16 %v686
    %v2775 = vunpack.c.l.b16 %v687
    %v2776 = vunpack.c.h.b16 %v687
    %v2777 = vunpack.c.l.b16 %v688
    %v2778 = vunpack.c.h.b16 %v688
    %v2779 = vunpack.c.l.b16 %v689
    %v2780 = vunpack.c.h.b16 %v689
    %v2781 = vunpack.c.l.b16 %v690
    %v2782 = vunpack.c.h.b16 %v690
    %v2783 = vunpack.c.l.b16 %v691
    %v2784 = vunpack.c.h.b16 %v691
    %v2785 = vunpack.c.l.b16 %v692
    %v2786 = vunpack.c.h.b16 %v692
    %v2787 = vunpack.c.l.b16 %v693
    %v2788 = vunpack.c.h.b16 %v693
    %v2789 = vunpack.c.l.b16 %v694
    %v2790 = vunpack.c.h.b16 %v694
    %v2791 = vunpack.c.l.b16 %v695
    %v2792 = vunpack.c.h.b16 %v695
    %v2793 = vunpack.c.l.b16 %v696
    %v2794 = vunpack.c.h.b16 %v696
    %v2795 = vunpack.c.l.b16 %v697
    %v2796 = vunpack.c.h.b16 %v697
    %v2797 = vunpack.c.l.b16 %v698
    %v2798 = vunpack.c.h.b16 %v698
    %v2799 = vunpack.c.l.b16 %v699
    %v2800 = vunpack.c.h.b16 %v699
    %v2801 = vunpack.c.l.b16 %v700
    %v2802 = vunpack.c.h.b16 %v700
    %v2803 = vunpack.c.l.b16 %v701
    %v2804 = vunpack.c.h.b16 %v701
    %v2805 = vunpack.c.l.b16 %v702
    %v2806 = vunpack.c.h.b16 %v702
    %v2807 = vunpack.c.l.b16 %v703
    %v2808 = vunpack.c.h.b16 %v703
    %v2809 = vunpack.c.l.b16 %v704
    %v2810 = vunpack.c.h.b16 %v704
    %v2811 = vunpack.c.l.b16 %v705
    %v2812 = vunpack.c.h.b16 %v705
    %v2813 = vunpack.c.l.b16 %v706
    %v2814 = vunpack.c.h.b16 %v706
    %v2815 = vunpack.c.l.b16 %v707
    %v2816 = vunpack.c.h.b16 %v707
    %v2817 = vunpack.c.l.b16 %v708
    %v2818 = vunpack.c.h.b16 %v708
    %v2819 = vunpack.c.l.b16 %v709
    %v2820 = vunpack.c.h.b16 %v709
    %v2821 = vunpack.c.l.b16 %v710
    %v2822 = vunpack.c.h.b16 %v710
    %v2823 = vunpack.c.l.b16 %v711
    %v2824 = vunpack.c.h.b16 %v711
    %v2825 = vunpack.c.l.b16 %v712
    %v2826 = vunpack.c.h.b16 %v712
    %v2827 = vunpack.c.l.b16 %v713
    %v2828 = vunpack.c.h.b16 %v713
    %v2829 = vunpack.c.l.b16 %v714
    %v2830 = vunpack.c.h.b16 %v714
    %v2831 = vunpack.c.l.b16 %v715
    %v2832 = vunpack.c.h.b16 %v715
    %v2833 = vunpack.c.l.b16 %v716
    %v2834 = vunpack.c.h.b16 %v716
    %v2835 = vunpack.c.l.b16 %v717
    %v2836 = vunpack.c.h.b16 %v717
    %v2837 = vunpack.c.l.b16 %v718
    %v2838 = vunpack.c.h.b16 %v718
    %v2839 = vunpack.c.l.b16 %v719
    %v2840 = vunpack.c.h.b16 %v719
    %v2841 = vunpack.c.l.b16 %v720
    %v2842 = vunpack.c.h.b16 %v720
    %v2843 = vunpack.c.l.b16 %v721
    %v2844 = vunpack.c.h.b16 %v721
    %v2845 = vunpack.c.l.b16 %v722
    %v2846 = vunpack.c.h.b16 %v722
    %v2847 = vunpack.c.l.b16 %v723
    %v2848 = vunpack.c.h.b16 %v723
    %v2849 = vunpack.c.l.b16 %v724
    %v2850 = vunpack.c.h.b16 %v724
    %v2851 = vunpack.c.l.b16 %v725
    %v2852 = vunpack.c.h.b16 %v725
    %v2853 = vunpack.c.l.b16 %v726
    %v2854 = vunpack.c.h.b16 %v726
    %v2855 = vunpack.c.l.b16 %v727
    %v2856 = vunpack.c.h.b16 %v727
    %v2857 = vunpack.c.l.b16 %v728
    %v2858 = vunpack.c.h.b16 %v728
    %v2859 = vunpack.c.l.b16 %v729
    %v2860 = vunpack.c.h.b16 %v729
    %v2861 = vunpack.c.l.b16 %v730
    %v2862 = vunpack.c.h.b16 %v730
    %v2863 = vunpack.c.l.b16 %v731
    %v2864 = vunpack.c.h.b16 %v731
    %v2865 = vunpack.c.l.b16 %v732
    %v2866 = vunpack.c.h.b16 %v732
    %v2867 = vunpack.c.l.b16 %v733
    %v2868 = vunpack.c.h.b16 %v733
    %v2869 = vunpack.c.l.b16 %v734
    %v2870 = vunpack.c.h.b16 %v734
    %v2871 = vunpack.c.l.b16 %v735
    %v2872 = vunpack.c.h.b16 %v735
    %v2873 = vunpack.c.l.b16 %v736
    %v2874 = vunpack.c.h.b16 %v736
    %v2875 = vunpack.c.l.b16 %v737
    %v2876 = vunpack.c.h.b16 %v737
    %v2877 = vunpack.c.l.b16 %v738
    %v2878 = vunpack.c.h.b16 %v738
    %v2879 = vunpack.c.l.b16 %v739
    %v2880 = vunpack.c.h.b16 %v739
    %v2881 = vunpack.c.l.b16 %v740
    %v2882 = vunpack.c.h.b16 %v740
    %v2883 = vunpack.c.l.b16 %v741
    %v2884 = vunpack.c.h.b16 %v741
    %v2885 = vunpack.c.l.b16 %v742
    %v2886 = vunpack.c.h.b16 %v742
    %v2887 = vunpack.c.l.b16 %v743
    %v2888 = vunpack.c.h.b16 %v743
    %v2889 = vunpack.c.l.b16 %v744
    %v2890 = vunpack.c.h.b16 %v744
    %v2891 = vunpack.c.l.b16 %v745
    %v2892 = vunpack.c.h.b16 %v745
    %v2893 = vunpack.c.l.b16 %v746
    %v2894 = vunpack.c.h.b16 %v746
    %v2895 = vunpack.c.l.b16 %v747
    %v2896 = vunpack.c.h.b16 %v747
    %v2897 = vunpack.c.l.b16 %v748
    %v2898 = vunpack.c.h.b16 %v748
    %v2899 = vunpack.c.l.b16 %v749
    %v2900 = vunpack.c.h.b16 %v749
    %v2901 = vunpack.c.l.b16 %v750
    %v2902 = vunpack.c.h.b16 %v750
    %v2903 = vunpack.c.l.b16 %v751
    %v2904 = vunpack.c.h.b16 %v751
    %v2905 = vunpack.c.l.b16 %v752
    %v2906 = vunpack.c.h.b16 %v752
    %v2907 = vunpack.c.l.b16 %v753
    %v2908 = vunpack.c.h.b16 %v753
    %v2909 = vunpack.c.l.b16 %v754
    %v2910 = vunpack.c.h.b16 %v754
    %v2911 = vunpack.c.l.b16 %v755
    %v2912 = vunpack.c.h.b16 %v755
    %v2913 = vunpack.c.l.b16 %v756
    %v2914 = vunpack.c.h.b16 %v756
    %v2915 = vunpack.c.l.b16 %v757
    %v2916 = vunpack.c.h.b16 %v757
    %v2917 = vunpack.c.l.b16 %v758
    %v2918 = vunpack.c.h.b16 %v758
    %v2919 = vunpack.c.l.b16 %v759
    %v2920 = vunpack.c.h.b16 %v759
    %v2921 = vunpack.c.l.b16 %v760
    %v2922 = vunpack.c.h.b16 %v760
    %v2923 = vunpack.c.l.b16 %v761
    %v2924 = vunpack.c.h.b16 %v761
    %v2925 = vunpack.c.l.b16 %v762
    %v2926 = vunpack.c.h.b16 %v762
    %v2927 = vunpack.c.l.b16 %v763
    %v2928 = vunpack.c.h.b16 %v763
    %v2929 = vunpack.c.l.b16 %v764
    %v2930 = vunpack.c.h.b16 %v764
    %v2931 = vunpack.c.l.b16 %v765
    %v2932 = vunpack.c.h.b16 %v765
    %v2933 = vunpack.c.l.b16 %v766
    %v2934 = vunpack.c.h.b16 %v766
    %v2935 = vunpack.c.l.b16 %v767
    %v2936 = vunpack.c.h.b16 %v767
    %v2937 = vunpack.c.l.b16 %v768
    %v2938 = vunpack.c.h.b16 %v768
    %v2939 = vunpack.c.l.b16 %v769
    %v2940 = vunpack.c.h.b16 %v769
    %v2941 = vunpack.c.l.b16 %v770
    %v2942 = vunpack.c.h.b16 %v770
    %v2943 = vunpack.c.l.b16 %v771
    %v2944 = vunpack.c.h.b16 %v771
    %v2945 = vunpack.c.l.b16 %v772
    %v2946 = vunpack.c.h.b16 %v772
    %v2947 = vunpack.c.l.b16 %v773
    %v2948 = vunpack.c.h.b16 %v773
    %v2949 = vunpack.c.l.b16 %v774
    %v2950 = vunpack.c.h.b16 %v774
    %v2951 = vunpack.c.l.b16 %v775
    %v2952 = vunpack.c.h.b16 %v775
    %v2953 = vunpack.c.l.b16 %v776
    %v2954 = vunpack.c.h.b16 %v776
    %v2955 = vunpack.c.l.b16 %v777
    %v2956 = vunpack.c.h.b16 %v777
    %v2957 = vunpack.c.l.b16 %v778
    %v2958 = vunpack.c.h.b16 %v778
    %v2959 = vunpack.c.l.b16 %v779
    %v2960 = vunpack.c.h.b16 %v779
    %v2961 = vunpack.c.l.b16 %v780
    %v2962 = vunpack.c.h.b16 %v780
    %v2963 = vunpack.c.l.b16 %v781
    %v2964 = vunpack.c.h.b16 %v781
    %v2965 = vunpack.c.l.b16 %v782
    %v2966 = vunpack.c.h.b16 %v782
    %v2967 = vunpack.c.l.b16 %v783
    %v2968 = vunpack.c.h.b16 %v783
    %v2969 = vunpack.c.l.b16 %v784
    %v2970 = vunpack.c.h.b16 %v784
    %v2971 = vunpack.c.l.b16 %v785
    %v2972 = vunpack.c.h.b16 %v785
    %v2973 = vunpack.c.l.b16 %v786
    %v2974 = vunpack.c.h.b16 %v786
    %v2975 = vunpack.c.l.b16 %v787
    %v2976 = vunpack.c.h.b16 %v787
    %v2977 = vunpack.c.l.b16 %v788
    %v2978 = vunpack.c.h.b16 %v788
    %v2979 = vunpack.c.l.b16 %v789
    %v2980 = vunpack.c.h.b16 %v789
    %v2981 = vunpack.c.l.b16 %v790
    %v2982 = vunpack.c.h.b16 %v790
    %v2983 = vunpack.c.l.b16 %v791
    %v2984 = vunpack.c.h.b16 %v791
    %v2985 = vunpack.c.l.b16 %v792
    %v2986 = vunpack.c.h.b16 %v792
    %v2987 = vunpack.c.l.b16 %v793
    %v2988 = vunpack.c.h.b16 %v793
    %v2989 = vunpack.c.l.b16 %v794
    %v2990 = vunpack.c.h.b16 %v794
    %v2991 = vunpack.c.l.b16 %v795
    %v2992 = vunpack.c.h.b16 %v795
    %v2993 = vunpack.c.l.b16 %v796
    %v2994 = vunpack.c.h.b16 %v796
    %v2995 = vunpack.c.l.b16 %v797
    %v2996 = vunpack.c.h.b16 %v797
    %v2997 = vunpack.c.l.b16 %v798
    %v2998 = vunpack.c.h.b16 %v798
    %v2999 = vunpack.c.l.b16 %v799
    %v3000 = vunpack.c.h.b16 %v799
    %v3001 = vunpack.c.l.b16 %v800
    %v3002 = vunpack.c.h.b16 %v800
    %v3003 = vunpack.c.l.b16 %v801
    %v3004 = vunpack.c.h.b16 %v801
    %v3005 = vunpack.c.l.b16 %v802
    %v3006 = vunpack.c.h.b16 %v802
    %v3007 = vunpack.c.l.b16 %v803
    %v3008 = vunpack.c.h.b16 %v803
    %v3009 = vunpack.c.l.b16 %v804
    %v3010 = vunpack.c.h.b16 %v804
    %v3011 = vunpack.c.l.b16 %v805
    %v3012 = vunpack.c.h.b16 %v805
    %v3013 = vunpack.c.l.b16 %v806
    %v3014 = vunpack.c.h.b16 %v806
    %v3015 = vunpack.c.l.b16 %v807
    %v3016 = vunpack.c.h.b16 %v807
    %v3017 = vunpack.c.l.b16 %v808
    %v3018 = vunpack.c.h.b16 %v808
    %v3019 = vunpack.c.l.b16 %v809
    %v3020 = vunpack.c.h.b16 %v809
    %v3021 = vunpack.c.l.b16 %v810
    %v3022 = vunpack.c.h.b16 %v810
    %v3023 = vunpack.c.l.b16 %v811
    %v3024 = vunpack.c.h.b16 %v811
    %v3025 = vunpack.c.l.b16 %v812
    %v3026 = vunpack.c.h.b16 %v812
    %v3027 = vunpack.c.l.b16 %v813
    %v3028 = vunpack.c.h.b16 %v813
    %v3029 = vunpack.c.l.b16 %v814
    %v3030 = vunpack.c.h.b16 %v814
    %v3031 = vunpack.c.l.b16 %v815
    %v3032 = vunpack.c.h.b16 %v815
    %v3033 = vunpack.c.l.b16 %v816
    %v3034 = vunpack.c.h.b16 %v816
    %v3035 = vunpack.c.l.b16 %v817
    %v3036 = vunpack.c.h.b16 %v817
    %v3037 = vunpack.c.l.b16 %v818
    %v3038 = vunpack.c.h.b16 %v818
    %v3039 = vunpack.c.l.b16 %v819
    %v3040 = vunpack.c.h.b16 %v819
    %v3041 = vunpack.c.l.b16 %v820
    %v3042 = vunpack.c.h.b16 %v820
    %v3043 = vunpack.c.l.b16 %v821
    %v3044 = vunpack.c.h.b16 %v821
    %v3045 = vunpack.c.l.b16 %v822
    %v3046 = vunpack.c.h.b16 %v822
    %v3047 = vunpack.c.l.b16 %v823
    %v3048 = vunpack.c.h.b16 %v823
    %v3049 = vunpack.c.l.b16 %v824
    %v3050 = vunpack.c.h.b16 %v824
    %v3051 = vunpack.c.l.b16 %v825
    %v3052 = vunpack.c.h.b16 %v825
    %v3053 = vunpack.c.l.b16 %v826
    %v3054 = vunpack.c.h.b16 %v826
    %v3055 = vunpack.c.l.b16 %v827
    %v3056 = vunpack.c.h.b16 %v827
    %v3057 = vunpack.c.l.b16 %v828
    %v3058 = vunpack.c.h.b16 %v828
    %v3059 = vunpack.c.l.b16 %v829
    %v3060 = vunpack.c.h.b16 %v829
    %v3061 = vunpack.c.l.b16 %v830
    %v3062 = vunpack.c.h.b16 %v830
    %v3063 = vunpack.c.l.b16 %v831
    %v3064 = vunpack.c.h.b16 %v831
    %v3065 = vunpack.c.l.b16 %v832
    %v3066 = vunpack.c.h.b16 %v832
    %v3067 = vunpack.c.l.b16 %v833
    %v3068 = vunpack.c.h.b16 %v833
    %v3069 = vunpack.c.l.b16 %v834
    %v3070 = vunpack.c.h.b16 %v834
    %v3071 = vunpack.c.l.b16 %v835
    %v3072 = vunpack.c.h.b16 %v835
    %v3073 = vunpack.c.l.b16 %v836
    %v3074 = vunpack.c.h.b16 %v836
    %v3075 = vunpack.c.l.b16 %v837
    %v3076 = vunpack.c.h.b16 %v837
    %v3077 = vunpack.c.l.b16 %v838
    %v3078 = vunpack.c.h.b16 %v838
    %v3079 = vunpack.c.l.b16 %v839
    %v3080 = vunpack.c.h.b16 %v839
    %v3081 = vunpack.c.l.b16 %v840
    %v3082 = vunpack.c.h.b16 %v840
    %v3083 = vunpack.c.l.b16 %v841
    %v3084 = vunpack.c.h.b16 %v841
    %v3085 = vunpack.c.l.b16 %v842
    %v3086 = vunpack.c.h.b16 %v842
    %v3087 = vunpack.c.l.b16 %v843
    %v3088 = vunpack.c.h.b16 %v843
    %v3089 = vunpack.c.l.b16 %v844
    %v3090 = vunpack.c.h.b16 %v844
    %v3091 = vunpack.c.l.b16 %v845
    %v3092 = vunpack.c.h.b16 %v845
    %v3093 = vunpack.c.l.b16 %v846
    %v3094 = vunpack.c.h.b16 %v846
    %v3095 = vunpack.c.l.b16 %v847
    %v3096 = vunpack.c.h.b16 %v847
    %v3097 = vunpack.c.l.b16 %v848
    %v3098 = vunpack.c.h.b16 %v848
    %v3099 = vunpack.c.l.b16 %v849
    %v3100 = vunpack.c.h.b16 %v849
    %v3101 = vunpack.c.l.b16 %v850
    %v3102 = vunpack.c.h.b16 %v850
    %v3103 = vunpack.c.l.b16 %v851
    %v3104 = vunpack.c.h.b16 %v851
    %v3105 = vunpack.c.l.b16 %v852
    %v3106 = vunpack.c.h.b16 %v852
    %v3107 = vunpack.c.l.b16 %v853
    %v3108 = vunpack.c.h.b16 %v853
    %v3109 = vunpack.c.l.b16 %v854
    %v3110 = vunpack.c.h.b16 %v854
    %v3111 = vunpack.c.l.b16 %v855
    %v3112 = vunpack.c.h.b16 %v855
    %v3113 = vunpack.c.l.b16 %v856
    %v3114 = vunpack.c.h.b16 %v856
    %v3115 = vunpack.c.l.b16 %v857
    %v3116 = vunpack.c.h.b16 %v857
    %v3117 = vunpack.c.l.b16 %v858
    %v3118 = vunpack.c.h.b16 %v858
    %v3119 = vunpack.c.l.b16 %v859
    %v3120 = vunpack.c.h.b16 %v859
    %v3121 = vunpack.c.l.b16 %v860
    %v3122 = vunpack.c.h.b16 %v860
    %v3123 = vunpack.c.l.b16 %v861
    %v3124 = vunpack.c.h.b16 %v861
    %v3125 = vunpack.c.l.b16 %v862
    %v3126 = vunpack.c.h.b16 %v862
    %v3127 = vunpack.c.l.b16 %v863
    %v3128 = vunpack.c.h.b16 %v863
    %v3129 = vunpack.c.l.b16 %v864
    %v3130 = vunpack.c.h.b16 %v864
    %v3131 = vunpack.c.l.b16 %v865
    %v3132 = vunpack.c.h.b16 %v865
    %v3133 = vunpack.c.l.b16 %v866
    %v3134 = vunpack.c.h.b16 %v866
    %v3135 = vunpack.c.l.b16 %v867
    %v3136 = vunpack.c.h.b16 %v867
    %v3137 = vunpack.c.l.b16 %v868
    %v3138 = vunpack.c.h.b16 %v868
    %v3139 = vunpack.c.l.b16 %v869
    %v3140 = vunpack.c.h.b16 %v869
    %v3141 = vunpack.c.l.b16 %v870
    %v3142 = vunpack.c.h.b16 %v870
    %v3143 = vunpack.c.l.b16 %v871
    %v3144 = vunpack.c.h.b16 %v871
    %v3145 = vunpack.c.l.b16 %v872
    %v3146 = vunpack.c.h.b16 %v872
    %v3147 = vunpack.c.l.b16 %v873
    %v3148 = vunpack.c.h.b16 %v873
    %v3149 = vunpack.c.l.b16 %v874
    %v3150 = vunpack.c.h.b16 %v874
    %v3151 = vunpack.c.l.b16 %v875
    %v3152 = vunpack.c.h.b16 %v875
    %v3153 = vunpack.c.l.b16 %v876
    %v3154 = vunpack.c.h.b16 %v876
    %v3155 = vunpack.c.l.b16 %v877
    %v3156 = vunpack.c.h.b16 %v877
    %v3157 = vunpack.c.l.b16 %v878
    %v3158 = vunpack.c.h.b16 %v878
    %v3159 = vunpack.c.l.b16 %v879
    %v3160 = vunpack.c.h.b16 %v879
    %v3161 = vunpack.c.l.b16 %v880
    %v3162 = vunpack.c.h.b16 %v880
    %v3163 = vunpack.c.l.b16 %v881
    %v3164 = vunpack.c.h.b16 %v881
    %v3165 = vunpack.c.l.b16 %v882
    %v3166 = vunpack.c.h.b16 %v882
    %v3167 = vunpack.c.l.b16 %v883
    %v3168 = vunpack.c.h.b16 %v883
    %v3169 = vunpack.c.l.b16 %v884
    %v3170 = vunpack.c.h.b16 %v884
    %v3171 = vunpack.c.l.b16 %v885
    %v3172 = vunpack.c.h.b16 %v885
    %v3173 = vunpack.c.l.b16 %v886
    %v3174 = vunpack.c.h.b16 %v886
    %v3175 = vunpack.c.l.b16 %v887
    %v3176 = vunpack.c.h.b16 %v887
    %v3177 = vunpack.c.l.b16 %v888
    %v3178 = vunpack.c.h.b16 %v888
    %v3179 = vunpack.c.l.b16 %v889
    %v3180 = vunpack.c.h.b16 %v889
    %v3181 = vunpack.c.l.b16 %v890
    %v3182 = vunpack.c.h.b16 %v890
    %v3183 = vunpack.c.l.b16 %v891
    %v3184 = vunpack.c.h.b16 %v891
    %v3185 = vunpack.c.l.b16 %v892
    %v3186 = vunpack.c.h.b16 %v892
    %v3187 = vunpack.c.l.b16 %v893
    %v3188 = vunpack.c.h.b16 %v893
    %v3189 = vunpack.c.l.b16 %v894
    %v3190 = vunpack.c.h.b16 %v894
    %v3191 = vunpack.c.l.b16 %v895
    %v3192 = vunpack.c.h.b16 %v895
    %v3193 = vunpack.c.l.b16 %v896
    %v3194 = vunpack.c.h.b16 %v896
    %v3195 = vunpack.c.l.b16 %v897
    %v3196 = vunpack.c.h.b16 %v897
    %v3197 = vunpack.c.l.b16 %v898
    %v3198 = vunpack.c.h.b16 %v898
    %v3199 = vunpack.c.l.b16 %v899
    %v3200 = vunpack.c.h.b16 %v899
    %v3201 = vunpack.c.l.b16 %v900
    %v3202 = vunpack.c.h.b16 %v900
    %v3203 = vunpack.c.l.b16 %v901
    %v3204 = vunpack.c.h.b16 %v901
    %v3205 = vunpack.c.l.b16 %v902
    %v3206 = vunpack.c.h.b16 %v902
    %v3207 = vunpack.c.l.b16 %v903
    %v3208 = vunpack.c.h.b16 %v903
    %v3209 = vunpack.c.l.b16 %v904
    %v3210 = vunpack.c.h.b16 %v904
    %v3211 = vunpack.c.l.b16 %v905
    %v3212 = vunpack.c.h.b16 %v905
    %v3213 = vunpack.c.l.b16 %v906
    %v3214 = vunpack.c.h.b16 %v906
    %v3215 = vunpack.c.l.b16 %v907
    %v3216 = vunpack.c.h.b16 %v907
    %v3217 = vunpack.c.l.b16 %v908
    %v3218 = vunpack.c.h.b16 %v908
    %v3219 = vunpack.c.l.b16 %v909
    %v3220 = vunpack.c.h.b16 %v909
    %v3221 = vunpack.c.l.b16 %v910
    %v3222 = vunpack.c.h.b16 %v910
    %v3223 = vunpack.c.l.b16 %v911
    %v3224 = vunpack.c.h.b16 %v911
    %v3225 = vunpack.c.l.b16 %v912
    %v3226 = vunpack.c.h.b16 %v912
    %v3227 = vunpack.c.l.b16 %v913
    %v3228 = vunpack.c.h.b16 %v913
    %v3229 = vunpack.c.l.b16 %v914
    %v3230 = vunpack.c.h.b16 %v914
    %v3231 = vunpack.c.l.b16 %v915
    %v3232 = vunpack.c.h.b16 %v915
    %v3233 = vunpack.c.l.b16 %v916
    %v3234 = vunpack.c.h.b16 %v916
    %v3235 = vunpack.c.l.b16 %v917
    %v3236 = vunpack.c.h.b16 %v917
    %v3237 = vunpack.c.l.b16 %v918
    %v3238 = vunpack.c.h.b16 %v918
    %v3239 = vunpack.c.l.b16 %v919
    %v3240 = vunpack.c.h.b16 %v919
    %v3241 = vunpack.c.l.b16 %v920
    %v3242 = vunpack.c.h.b16 %v920
    %v3243 = vunpack.c.l.b16 %v921
    %v3244 = vunpack.c.h.b16 %v921
    %v3245 = vunpack.c.l.b16 %v922
    %v3246 = vunpack.c.h.b16 %v922
    %v3247 = vunpack.c.l.b16 %v923
    %v3248 = vunpack.c.h.b16 %v923
    %v3249 = vunpack.c.l.b16 %v924
    %v3250 = vunpack.c.h.b16 %v924
    %v3251 = vunpack.c.l.b16 %v925
    %v3252 = vunpack.c.h.b16 %v925
    %v3253 = vunpack.c.l.b16 %v926
    %v3254 = vunpack.c.h.b16 %v926
    %v3255 = vunpack.c.l.b16 %v927
    %v3256 = vunpack.c.h.b16 %v927
    %v3257 = vunpack.c.l.b16 %v928
    %v3258 = vunpack.c.h.b16 %v928
    %v3259 = vunpack.c.l.b16 %v929
    %v3260 = vunpack.c.h.b16 %v929
    %v3261 = vunpack.c.l.b16 %v930
    %v3262 = vunpack.c.h.b16 %v930
    %v3263 = vunpack.c.l.b16 %v931
    %v3264 = vunpack.c.h.b16 %v931
    %v3265 = vunpack.c.l.b16 %v932
    %v3266 = vunpack.c.h.b16 %v932
    %v3267 = vunpack.c.l.b16 %v933
    %v3268 = vunpack.c.h.b16 %v933
    %v3269 = vunpack.c.l.b16 %v934
    %v3270 = vunpack.c.h.b16 %v934
    %v3271 = vunpack.c.l.b16 %v935
    %v3272 = vunpack.c.h.b16 %v935
    %v3273 = vunpack.c.l.b16 %v936
    %v3274 = vunpack.c.h.b16 %v936
    %v3275 = vunpack.c.l.b16 %v937
    %v3276 = vunpack.c.h.b16 %v937
    %v3277 = vunpack.c.l.b16 %v938
    %v3278 = vunpack.c.h.b16 %v938
    %v3279 = vunpack.c.l.b16 %v939
    %v3280 = vunpack.c.h.b16 %v939
    %v3281 = vunpack.c.l.b16 %v940
    %v3282 = vunpack.c.h.b16 %v940
    %v3283 = vunpack.c.l.b16 %v941
    %v3284 = vunpack.c.h.b16 %v941
    %v3285 = vunpack.c.l.b16 %v942
    %v3286 = vunpack.c.h.b16 %v942
    %v3287 = vunpack.c.l.b16 %v943
    %v3288 = vunpack.c.h.b16 %v943
    %v3289 = vunpack.c.l.b16 %v944
    %v3290 = vunpack.c.h.b16 %v944
    %v3291 = vunpack.c.l.b16 %v945
    %v3292 = vunpack.c.h.b16 %v945
    %v3293 = vunpack.c.l.b16 %v946
    %v3294 = vunpack.c.h.b16 %v946
    %v3295 = vunpack.c.l.b16 %v947
    %v3296 = vunpack.c.h.b16 %v947
    %v3297 = vunpack.c.l.b16 %v948
    %v3298 = vunpack.c.h.b16 %v948
    %v3299 = vunpack.c.l.b16 %v949
    %v3300 = vunpack.c.h.b16 %v949
    %v3301 = vunpack.c.l.b16 %v950
    %v3302 = vunpack.c.h.b16 %v950
    %v3303 = vunpack.c.l.b16 %v951
    %v3304 = vunpack.c.h.b16 %v951
    %v3305 = vunpack.c.l.b16 %v952
    %v3306 = vunpack.c.h.b16 %v952
    %v3307 = vunpack.c.l.b16 %v953
    %v3308 = vunpack.c.h.b16 %v953
    %v3309 = vunpack.c.l.b16 %v954
    %v3310 = vunpack.c.h.b16 %v954
    %v3311 = vunpack.c.l.b16 %v955
    %v3312 = vunpack.c.h.b16 %v955
    %v3313 = vunpack.c.l.b16 %v956
    %v3314 = vunpack.c.h.b16 %v956
    %v3315 = vunpack.c.l.b16 %v957
    %v3316 = vunpack.c.h.b16 %v957
    %v3317 = vunpack.c.l.b16 %v958
    %v3318 = vunpack.c.h.b16 %v958
    %v3319 = vunpack.c.l.b16 %v959
    %v3320 = vunpack.c.h.b16 %v959
    %v3321 = vunpack.c.l.b16 %v960
    %v3322 = vunpack.c.h.b16 %v960
    %v3323 = vunpack.c.l.b16 %v961
    %v3324 = vunpack.c.h.b16 %v961
    %v3325 = vunpack.c.l.b16 %v962
    %v3326 = vunpack.c.h.b16 %v962
    %v3327 = vunpack.c.l.b16 %v963
    %v3328 = vunpack.c.h.b16 %v963
    %v3329 = vunpack.c.l.b16 %v964
    %v3330 = vunpack.c.h.b16 %v964
    %v3331 = vunpack.c.l.b16 %v965
    %v3332 = vunpack.c.h.b16 %v965
    %v3333 = vunpack.c.l.b16 %v966
    %v3334 = vunpack.c.h.b16 %v966
    %v3335 = vunpack.c.l.b16 %v967
    %v3336 = vunpack.c.h.b16 %v967
    %v3337 = vunpack.c.l.b16 %v968
    %v3338 = vunpack.c.h.b16 %v968
    %v3339 = vunpack.c.l.b16 %v969
    %v3340 = vunpack.c.h.b16 %v969
    %v3341 = vunpack.c.l.b16 %v970
    %v3342 = vunpack.c.h.b16 %v970
    %v3343 = vunpack.c.l.b16 %v971
    %v3344 = vunpack.c.h.b16 %v971
    %v3345 = vunpack.c.l.b16 %v972
    %v3346 = vunpack.c.h.b16 %v972
    %v3347 = vpack.c.b16 %v1783, %v1779
    %v3348 = vpack.c.b16 %v1784, %v1780
    %v3349 = vpack.c.b16 %v1785, %v1781
    %v3350 = vpack.c.b16 %v1786, %v1782
    %v3351 = vpack.c.b16 %v1791, %v1787
    %v3352 = vpack.c.b16 %v1792, %v1788
    %v3353 = vpack.c.b16 %v1793, %v1789
    %v3354 = vpack.c.b16 %v1794, %v1790
    %v3355 = vpack.c.b16 %v1799, %v1795
    %v3356 = vpack.c.b16 %v1800, %v1796
    %v3357 = vpack.c.b16 %v1801, %v1797
    %v3358 = vpack.c.b16 %v1802, %v1798
    %v3359 = vpack.c.b16 %v1807, %v1803
    %v3360 = vpack.c.b16 %v1808, %v1804
    %v3361 = vpack.c.b16 %v1809, %v1805
    %v3362 = vpack.c.b16 %v1810, %v1806
    %v3363 = vpack.c.b16 %v1815, %v1811
    %v3364 = vpack.c.b16 %v1816, %v1812
    %v3365 = vpack.c.b16 %v1817, %v1813
    %v3366 = vpack.c.b16 %v1818, %v1814
    %v3367 = vpack.c.b16 %v1823, %v1819
    %v3368 = vpack.c.b16 %v1824, %v1820
    %v3369 = vpack.c.b16 %v1825, %v1821
    %v3370 = vpack.c.b16 %v1826, %v1822
    %v3371 = vpack.c.b16 %v1831, %v1827
    %v3372 = vpack.c.b16 %v1832, %v1828
    %v3373 = vpack.c.b16 %v1833, %v1829
    %v3374 = vpack.c.b16 %v1834, %v1830
    %v3375 = vpack.c.b16 %v1839, %v1835
    %v3376 = vpack.c.b16 %v1840, %v1836
    %v3377 = vpack.c.b16 %v1841, %v1837
    %v3378 = vpack.c.b16 %v1842, %v1838
    %v3379 = vpack.c.b16 %v1847, %v1843
    %v3380 = vpack.c.b16 %v1848, %v1844
    %v3381 = vpack.c.b16 %v1849, %v1845
    %v3382 = vpack.c.b16 %v1850, %v1846
    %v3383 = vpack.c.b16 %v1855, %v1851
    %v3384 = vpack.c.b16 %v1856, %v1852
    %v3385 = vpack.c.b16 %v1857, %v1853
    %v3386 = vpack.c.b16 %v1858, %v1854
    %v3387 = vpack.c.b16 %v1863, %v1859
    %v3388 = vpack.c.b16 %v1864, %v1860
    %v3389 = vpack.c.b16 %v1865, %v1861
    %v3390 = vpack.c.b16 %v1866, %v1862
    %v3391 = vpack.c.b16 %v1871, %v1867
    %v3392 = vpack.c.b16 %v1872, %v1868
    %v3393 = vpack.c.b16 %v1873, %v1869
    %v3394 = vpack.c.b16 %v1874, %v1870
    %v3395 = vpack.c.b16 %v1879, %v1875
    %v3396 = vpack.c.b16 %v1880, %v1876
    %v3397 = vpack.c.b16 %v1881, %v1877
    %v3398 = vpack.c.b16 %v1882, %v1878
    %v3399 = vpack.c.b16 %v1887, %v1883
    %v3400 = vpack.c.b16 %v1888, %v1884
    %v3401 = vpack.c.b16 %v1889, %v1885
    %v3402 = vpack.c.b16 %v1890, %v1886
    %v3403 = vpack.c.b16 %v1895, %v1891
    %v3404 = vpack.c.b16 %v1896, %v1892
    %v3405 = vpack.c.b16 %v1897, %v1893
    %v3406 = vpack.c.b16 %v1898, %v1894
    %v3407 = vpack.c.b16 %v1903, %v1899
    %v3408 = vpack.c.b16 %v1904, %v1900
    %v3409 = vpack.c.b16 %v1905, %v1901
    %v3410 = vpack.c.b16 %v1906, %v1902
    %v3411 = vpack.c.b16 %v1911, %v1907
    %v3412 = vpack.c.b16 %v1912, %v1908
    %v3413 = vpack.c.b16 %v1913, %v1909
    %v3414 = vpack.c.b16 %v1914, %v1910
    %v3415 = vpack.c.b16 %v1919, %v1915
    %v3416 = vpack.c.b16 %v1920, %v1916
    %v3417 = vpack.c.b16 %v1921, %v1917
    %v3418 = vpack.c.b16 %v1922, %v1918
    %v3419 = vpack.c.b16 %v1927, %v1923
    %v3420 = vpack.c.b16 %v1928, %v1924
    %v3421 = vpack.c.b16 %v1929, %v1925
    %v3422 = vpack.c.b16 %v1930, %v1926
    %v3423 = vpack.c.b16 %v1935, %v1931
    %v3424 = vpack.c.b16 %v1936, %v1932
    %v3425 = vpack.c.b16 %v1937, %v1933
    %v3426 = vpack.c.b16 %v1938, %v1934
    %v3427 = vpack.c.b16 %v1943, %v1939
    %v3428 = vpack.c.b16 %v1944, %v1940
    %v3429 = vpack.c.b16 %v1945, %v1941
    %v3430 = vpack.c.b16 %v1946, %v1942
    %v3431 = vpack.c.b16 %v1951, %v1947
    %v3432 = vpack.c.b16 %v1952, %v1948
    %v3433 = vpack.c.b16 %v1953, %v1949
    %v3434 = vpack.c.b16 %v1954, %v1950
    %v3435 = vpack.c.b16 %v1959, %v1955
    %v3436 = vpack.c.b16 %v1960, %v1956
    %v3437 = vpack.c.b16 %v1961, %v1957
    %v3438 = vpack.c.b16 %v1962, %v1958
    %v3439 = vpack.c.b16 %v1967, %v1963
    %v3440 = vpack.c.b16 %v1968, %v1964
    %v3441 = vpack.c.b16 %v1969, %v1965
    %v3442 = vpack.c.b16 %v1970, %v1966
    %v3443 = vpack.c.b16 %v1975, %v1971
    %v3444 = vpack.c.b16 %v1976, %v1972
    %v3445 = vpack.c.b16 %v1977, %v1973
    %v3446 = vpack.c.b16 %v1978, %v1974
    %v3447 = vpack.c.b16 %v1983, %v1979
    %v3448 = vpack.c.b16 %v1984, %v1980
    %v3449 = vpack.c.b16 %v1985, %v1981
    %v3450 = vpack.c.b16 %v1986, %v1982
    %v3451 = vpack.c.b16 %v1991, %v1987
    %v3452 = vpack.c.b16 %v1992, %v1988
    %v3453 = vpack.c.b16 %v1993, %v1989
    %v3454 = vpack.c.b16 %v1994, %v1990
    %v3455 = vpack.c.b16 %v1999, %v1995
    %v3456 = vpack.c.b16 %v2000, %v1996
    %v3457 = vpack.c.b16 %v2001, %v1997
    %v3458 = vpack.c.b16 %v2002, %v1998
    %v3459 = vpack.c.b16 %v2007, %v2003
    %v3460 = vpack.c.b16 %v2008, %v2004
    %v3461 = vpack.c.b16 %v2009, %v2005
    %v3462 = vpack.c.b16 %v2010, %v2006
    %v3463 = vpack.c.b16 %v2015, %v2011
    %v3464 = vpack.c.b16 %v2016, %v2012
    %v3465 = vpack.c.b16 %v2017, %v2013
    %v3466 = vpack.c.b16 %v2018, %v2014
    %v3467 = vpack.c.b16 %v2023, %v2019
    %v3468 = vpack.c.b16 %v2024, %v2020
    %v3469 = vpack.c.b16 %v2025, %v2021
    %v3470 = vpack.c.b16 %v2026, %v2022
    %v3471 = vpack.c.b16 %v2031, %v2027
    %v3472 = vpack.c.b16 %v2032, %v2028
    %v3473 = vpack.c.b16 %v2033, %v2029
    %v3474 = vpack.c.b16 %v2034, %v2030
    %v3475 = vpack.c.b16 %v2039, %v2035
    %v3476 = vpack.c.b16 %v2040, %v2036
    %v3477 = vpack.c.b16 %v2041, %v2037
    %v3478 = vpack.c.b16 %v2042, %v2038
    %v3479 = vpack.c.b16 %v2047, %v2043
    %v3480 = vpack.c.b16 %v2048, %v2044
    %v3481 = vpack.c.b16 %v2049, %v2045
    %v3482 = vpack.c.b16 %v2050, %v2046
    %v3483 = vpack.c.b16 %v2055, %v2051
    %v3484 = vpack.c.b16 %v2056, %v2052
    %v3485 = vpack.c.b16 %v2057, %v2053
    %v3486 = vpack.c.b16 %v2058, %v2054
    %v3487 = vpack.c.b16 %v2063, %v2059
    %v3488 = vpack.c.b16 %v2064, %v2060
    %v3489 = vpack.c.b16 %v2065, %v2061
    %v3490 = vpack.c.b16 %v2066, %v2062
    %v3491 = vpack.c.b16 %v2071, %v2067
    %v3492 = vpack.c.b16 %v2072, %v2068
    %v3493 = vpack.c.b16 %v2073, %v2069
    %v3494 = vpack.c.b16 %v2074, %v2070
    %v3495 = vpack.c.b16 %v2079, %v2075
    %v3496 = vpack.c.b16 %v2080, %v2076
    %v3497 = vpack.c.b16 %v2081, %v2077
    %v3498 = vpack.c.b16 %v2082, %v2078
    %v3499 = vpack.c.b16 %v2087, %v2083
    %v3500 = vpack.c.b16 %v2088, %v2084
    %v3501 = vpack.c.b16 %v2089, %v2085
    %v3502 = vpack.c.b16 %v2090, %v2086
    %v3503 = vpack.c.b16 %v2095, %v2091
    %v3504 = vpack.c.b16 %v2096, %v2092
    %v3505 = vpack.c.b16 %v2097, %v2093
    %v3506 = vpack.c.b16 %v2098, %v2094
    %v3507 = vpack.c.b16 %v2103, %v2099
    %v3508 = vpack.c.b16 %v2104, %v2100
    %v3509 = vpack.c.b16 %v2105, %v2101
    %v3510 = vpack.c.b16 %v2106, %v2102
    %v3511 = vpack.c.b16 %v2111, %v2107
    %v3512 = vpack.c.b16 %v2112, %v2108
    %v3513 = vpack.c.b16 %v2113, %v2109
    %v3514 = vpack.c.b16 %v2114, %v2110
    %v3515 = vpack.c.b16 %v2119, %v2115
    %v3516 = vpack.c.b16 %v2120, %v2116
    %v3517 = vpack.c.b16 %v2121, %v2117
    %v3518 = vpack.c.b16 %v2122, %v2118
    %v3519 = vpack.c.b16 %v2127, %v2123
    %v3520 = vpack.c.b16 %v2128, %v2124
    %v3521 = vpack.c.b16 %v2129, %v2125
    %v3522 = vpack.c.b16 %v2130, %v2126
    %v3523 = vpack.c.b16 %v2135, %v2131
    %v3524 = vpack.c.b16 %v2136, %v2132
    %v3525 = vpack.c.b16 %v2137, %v2133
    %v3526 = vpack.c.b16 %v2138, %v2134
    %v3527 = vpack.c.b16 %v2143, %v2139
    %v3528 = vpack.c.b16 %v2144, %v2140
    %v3529 = vpack.c.b16 %v2145, %v2141
    %v3530 = vpack.c.b16 %v2146, %v2142
    %v3531 = vpack.c.b16 %v2151, %v2147
    %v3532 = vpack.c.b16 %v2152, %v2148
    %v3533 = vpack.c.b16 %v2153, %v2149
    %v3534 = vpack.c.b16 %v2154, %v2150
    %v3535 = vpack.c.b16 %v2159, %v2155
    %v3536 = vpack.c.b16 %v2160, %v2156
    %v3537 = vpack.c.b16 %v2161, %v2157
    %v3538 = vpack.c.b16 %v2162, %v2158
    %v3539 = vpack.c.b16 %v2167, %v2163
    %v3540 = vpack.c.b16 %v2168, %v2164
    %v3541 = vpack.c.b16 %v2169, %v2165
    %v3542 = vpack.c.b16 %v2170, %v2166
    %v3543 = vpack.c.b16 %v2175, %v2171
    %v3544 = vpack.c.b16 %v2176, %v2172
    %v3545 = vpack.c.b16 %v2177, %v2173
    %v3546 = vpack.c.b16 %v2178, %v2174
    %v3547 = vpack.c.b16 %v2183, %v2179
    %v3548 = vpack.c.b16 %v2184, %v2180
    %v3549 = vpack.c.b16 %v2185, %v2181
    %v3550 = vpack.c.b16 %v2186, %v2182
    %v3551 = vpack.c.b16 %v2191, %v2187
    %v3552 = vpack.c.b16 %v2192, %v2188
    %v3553 = vpack.c.b16 %v2193, %v2189
    %v3554 = vpack.c.b16 %v2194, %v2190
    %v3555 = vpack.c.b16 %v2199, %v2195
    %v3556 = vpack.c.b16 %v2200, %v2196
    %v3557 = vpack.c.b16 %v2201, %v2197
    %v3558 = vpack.c.b16 %v2202, %v2198
    %v3559 = vpack.c.b16 %v2207, %v2203
    %v3560 = vpack.c.b16 %v2208, %v2204
    %v3561 = vpack.c.b16 %v2209, %v2205
    %v3562 = vpack.c.b16 %v2210, %v2206
    %v3563 = vpack.c.b16 %v2215, %v2211
    %v3564 = vpack.c.b16 %v2216, %v2212
    %v3565 = vpack.c.b16 %v2217, %v2213
    %v3566 = vpack.c.b16 %v2218, %v2214
    %v3567 = vpack.c.b16 %v2223, %v2219
    %v3568 = vpack.c.b16 %v2224, %v2220
    %v3569 = vpack.c.b16 %v2225, %v2221
    %v3570 = vpack.c.b16 %v2226, %v2222
    %v3571 = vpack.c.b16 %v2231, %v2227
    %v3572 = vpack.c.b16 %v2232, %v2228
    %v3573 = vpack.c.b16 %v2233, %v2229
    %v3574 = vpack.c.b16 %v2234, %v2230
    %v3575 = vpack.c.b16 %v2239, %v2235
    %v3576 = vpack.c.b16 %v2240, %v2236
    %v3577 = vpack.c.b16 %v2241, %v2237
    %v3578 = vpack.c.b16 %v2242, %v2238
    %v3579 = vpack.c.b16 %v2247, %v2243
    %v3580 = vpack.c.b16 %v2248, %v2244
    %v3581 = vpack.c.b16 %v2249, %v2245
    %v3582 = vpack.c.b16 %v2250, %v2246
    %v3583 = vpack.c.b16 %v2255, %v2251
    %v3584 = vpack.c.b16 %v2256, %v2252
    %v3585 = vpack.c.b16 %v2257, %v2253
    %v3586 = vpack.c.b16 %v2258, %v2254
    %v3587 = vpack.c.b16 %v2263, %v2259
    %v3588 = vpack.c.b16 %v2264, %v2260
    %v3589 = vpack.c.b16 %v2265, %v2261
    %v3590 = vpack.c.b16 %v2266, %v2262
    %v3591 = vpack.c.b16 %v2271, %v2267
    %v3592 = vpack.c.b16 %v2272, %v2268
    %v3593 = vpack.c.b16 %v2273, %v2269
    %v3594 = vpack.c.b16 %v2274, %v2270
    %v3595 = vpack.c.b16 %v2279, %v2275
    %v3596 = vpack.c.b16 %v2280, %v2276
    %v3597 = vpack.c.b16 %v2281, %v2277
    %v3598 = vpack.c.b16 %v2282, %v2278
    %v3599 = vpack.c.b16 %v2287, %v2283
    %v3600 = vpack.c.b16 %v2288, %v2284
    %v3601 = vpack.c.b16 %v2289, %v2285
    %v3602 = vpack.c.b16 %v2290, %v2286
    %v3603 = vpack.c.b16 %v2295, %v2291
    %v3604 = vpack.c.b16 %v2296, %v2292
    %v3605 = vpack.c.b16 %v2297, %v2293
    %v3606 = vpack.c.b16 %v2298, %v2294
    %v3607 = vpack.c.b16 %v2303, %v2299
    %v3608 = vpack.c.b16 %v2304, %v2300
    %v3609 = vpack.c.b16 %v2305, %v2301
    %v3610 = vpack.c.b16 %v2306, %v2302
    %v3611 = vpack.c.b16 %v2311, %v2307
    %v3612 = vpack.c.b16 %v2312, %v2308
    %v3613 = vpack.c.b16 %v2313, %v2309
    %v3614 = vpack.c.b16 %v2314, %v2310
    %v3615 = vpack.c.b16 %v2319, %v2315
    %v3616 = vpack.c.b16 %v2320, %v2316
    %v3617 = vpack.c.b16 %v2321, %v2317
    %v3618 = vpack.c.b16 %v2322, %v2318
    %v3619 = vpack.c.b16 %v2327, %v2323
    %v3620 = vpack.c.b16 %v2328, %v2324
    %v3621 = vpack.c.b16 %v2329, %v2325
    %v3622 = vpack.c.b16 %v2330, %v2326
    %v3623 = vpack.c.b16 %v2335, %v2331
    %v3624 = vpack.c.b16 %v2336, %v2332
    %v3625 = vpack.c.b16 %v2337, %v2333
    %v3626 = vpack.c.b16 %v2338, %v2334
    %v3627 = vpack.c.b16 %v2343, %v2339
    %v3628 = vpack.c.b16 %v2344, %v2340
    %v3629 = vpack.c.b16 %v2345, %v2341
    %v3630 = vpack.c.b16 %v2346, %v2342
    %v3631 = vpack.c.b16 %v2351, %v2347
    %v3632 = vpack.c.b16 %v2352, %v2348
    %v3633 = vpack.c.b16 %v2353, %v2349
    %v3634 = vpack.c.b16 %v2354, %v2350
    %v3635 = vpack.c.b16 %v2359, %v2355
    %v3636 = vpack.c.b16 %v2360, %v2356
    %v3637 = vpack.c.b16 %v2361, %v2357
    %v3638 = vpack.c.b16 %v2362, %v2358
    %v3639 = vpack.c.b16 %v2367, %v2363
    %v3640 = vpack.c.b16 %v2368, %v2364
    %v3641 = vpack.c.b16 %v2369, %v2365
    %v3642 = vpack.c.b16 %v2370, %v2366
    %v3643 = vpack.c.b16 %v2375, %v2371
    %v3644 = vpack.c.b16 %v2376, %v2372
    %v3645 = vpack.c.b16 %v2377, %v2373
    %v3646 = vpack.c.b16 %v2378, %v2374
    %v3647 = vpack.c.b16 %v2383, %v2379
    %v3648 = vpack.c.b16 %v2384, %v2380
    %v3649 = vpack.c.b16 %v2385, %v2381
    %v3650 = vpack.c.b16 %v2386, %v2382
    %v3651 = vpack.c.b16 %v2391, %v2387
    %v3652 = vpack.c.b16 %v2392, %v2388
    %v3653 = vpack.c.b16 %v2393, %v2389
    %v3654 = vpack.c.b16 %v2394, %v2390
    %v3655 = vpack.c.b16 %v2399, %v2395
    %v3656 = vpack.c.b16 %v2400, %v2396
    %v3657 = vpack.c.b16 %v2401, %v2397
    %v3658 = vpack.c.b16 %v2402, %v2398
    %v3659 = vpack.c.b16 %v2407, %v2403
    %v3660 = vpack.c.b16 %v2408, %v2404
    %v3661 = vpack.c.b16 %v2409, %v2405
    %v3662 = vpack.c.b16 %v2410, %v2406
    %v3663 = vpack.c.b16 %v2415, %v2411
    %v3664 = vpack.c.b16 %v2416, %v2412
    %v3665 = vpack.c.b16 %v2417, %v2413
    %v3666 = vpack.c.b16 %v2418, %v2414
    %v3667 = vpack.c.b16 %v2423, %v2419
    %v3668 = vpack.c.b16 %v2424, %v2420
    %v3669 = vpack.c.b16 %v2425, %v2421
    %v3670 = vpack.c.b16 %v2426, %v2422
    %v3671 = vpack.c.b16 %v2431, %v2427
    %v3672 = vpack.c.b16 %v2432, %v2428
    %v3673 = vpack.c.b16 %v2433, %v2429
    %v3674 = vpack.c.b16 %v2434, %v2430
    %v3675 = vpack.c.b16 %v2439, %v2435
    %v3676 = vpack.c.b16 %v2440, %v2436
    %v3677 = vpack.c.b16 %v2441, %v2437
    %v3678 = vpack.c.b16 %v2442, %v2438
    %v3679 = vpack.c.b16 %v2447, %v2443
    %v3680 = vpack.c.b16 %v2448, %v2444
    %v3681 = vpack.c.b16 %v2449, %v2445
    %v3682 = vpack.c.b16 %v2450, %v2446
    %v3683 = vpack.c.b16 %v2455, %v2451
    %v3684 = vpack.c.b16 %v2456, %v2452
    %v3685 = vpack.c.b16 %v2457, %v2453
    %v3686 = vpack.c.b16 %v2458, %v2454
    %v3687 = vpack.c.b16 %v2463, %v2459
    %v3688 = vpack.c.b16 %v2464, %v2460
    %v3689 = vpack.c.b16 %v2465, %v2461
    %v3690 = vpack.c.b16 %v2466, %v2462
    %v3691 = vpack.c.b16 %v2471, %v2467
    %v3692 = vpack.c.b16 %v2472, %v2468
    %v3693 = vpack.c.b16 %v2473, %v2469
    %v3694 = vpack.c.b16 %v2474, %v2470
    %v3695 = vpack.c.b16 %v2479, %v2475
    %v3696 = vpack.c.b16 %v2480, %v2476
    %v3697 = vpack.c.b16 %v2481, %v2477
    %v3698 = vpack.c.b16 %v2482, %v2478
    %v3699 = vpack.c.b16 %v2487, %v2483
    %v3700 = vpack.c.b16 %v2488, %v2484
    %v3701 = vpack.c.b16 %v2489, %v2485
    %v3702 = vpack.c.b16 %v2490, %v2486
    %v3703 = vpack.c.b16 %v2495, %v2491
    %v3704 = vpack.c.b16 %v2496, %v2492
    %v3705 = vpack.c.b16 %v2497, %v2493
    %v3706 = vpack.c.b16 %v2498, %v2494
    %v3707 = vpack.c.b16 %v2503, %v2499
    %v3708 = vpack.c.b16 %v2504, %v2500
    %v3709 = vpack.c.b16 %v2505, %v2501
    %v3710 = vpack.c.b16 %v2506, %v2502
    %v3711 = vpack.c.b16 %v2511, %v2507
    %v3712 = vpack.c.b16 %v2512, %v2508
    %v3713 = vpack.c.b16 %v2513, %v2509
    %v3714 = vpack.c.b16 %v2514, %v2510
    %v3715 = vpack.c.b16 %v2519, %v2515
    %v3716 = vpack.c.b16 %v2520, %v2516
    %v3717 = vpack.c.b16 %v2521, %v2517
    %v3718 = vpack.c.b16 %v2522, %v2518
    %v3719 = vpack.c.b16 %v2527, %v2523
    %v3720 = vpack.c.b16 %v2528, %v2524
    %v3721 = vpack.c.b16 %v2529, %v2525
    %v3722 = vpack.c.b16 %v2530, %v2526
    %v3723 = vpack.c.b16 %v2535, %v2531
    %v3724 = vpack.c.b16 %v2536, %v2532
    %v3725 = vpack.c.b16 %v2537, %v2533
    %v3726 = vpack.c.b16 %v2538, %v2534
    %v3727 = vpack.c.b16 %v2543, %v2539
    %v3728 = vpack.c.b16 %v2544, %v2540
    %v3729 = vpack.c.b16 %v2545, %v2541
    %v3730 = vpack.c.b16 %v2546, %v2542
    %v3731 = vpack.c.b16 %v2551, %v2547
    %v3732 = vpack.c.b16 %v2552, %v2548
    %v3733 = vpack.c.b16 %v2553, %v2549
    %v3734 = vpack.c.b16 %v2554, %v2550
    %v3735 = vpack.c.b16 %v2559, %v2555
    %v3736 = vpack.c.b16 %v2560, %v2556
    %v3737 = vpack.c.b16 %v2561, %v2557
    %v3738 = vpack.c.b16 %v2562, %v2558
    %v3739 = vpack.c.b16 %v2567, %v2563
    %v3740 = vpack.c.b16 %v2568, %v2564
    %v3741 = vpack.c.b16 %v2569, %v2565
    %v3742 = vpack.c.b16 %v2570, %v2566
    %v3743 = vpack.c.b16 %v2575, %v2571
    %v3744 = vpack.c.b16 %v2576, %v2572
    %v3745 = vpack.c.b16 %v2577, %v2573
    %v3746 = vpack.c.b16 %v2578, %v2574
    %v3747 = vpack.c.b16 %v2583, %v2579
    %v3748 = vpack.c.b16 %v2584, %v2580
    %v3749 = vpack.c.b16 %v2585, %v2581
    %v3750 = vpack.c.b16 %v2586, %v2582
    %v3751 = vpack.c.b16 %v2591, %v2587
    %v3752 = vpack.c.b16 %v2592, %v2588
    %v3753 = vpack.c.b16 %v2593, %v2589
    %v3754 = vpack.c.b16 %v2594, %v2590
    %v3755 = vpack.c.b16 %v2599, %v2595
    %v3756 = vpack.c.b16 %v2600, %v2596
    %v3757 = vpack.c.b16 %v2601, %v2597
    %v3758 = vpack.c.b16 %v2602, %v2598
    %v3759 = vpack.c.b16 %v2607, %v2603
    %v3760 = vpack.c.b16 %v2608, %v2604
    %v3761 = vpack.c.b16 %v2609, %v2605
    %v3762 = vpack.c.b16 %v2610, %v2606
    %v3763 = vpack.c.b16 %v2615, %v2611
    %v3764 = vpack.c.b16 %v2616, %v2612
    %v3765 = vpack.c.b16 %v2617, %v2613
    %v3766 = vpack.c.b16 %v2618, %v2614
    %v3767 = vpack.c.b16 %v2623, %v2619
    %v3768 = vpack.c.b16 %v2624, %v2620
    %v3769 = vpack.c.b16 %v2625, %v2621
    %v3770 = vpack.c.b16 %v2626, %v2622
    %v3771 = vpack.c.b16 %v2631, %v2627
    %v3772 = vpack.c.b16 %v2632, %v2628
    %v3773 = vpack.c.b16 %v2633, %v2629
    %v3774 = vpack.c.b16 %v2634, %v2630
    %v3775 = vpack.c.b16 %v2639, %v2635
    %v3776 = vpack.c.b16 %v2640, %v2636
    %v3777 = vpack.c.b16 %v2641, %v2637
    %v3778 = vpack.c.b16 %v2642, %v2638
    %v3779 = vpack.c.b16 %v2647, %v2643
    %v3780 = vpack.c.b16 %v2648, %v2644
    %v3781 = vpack.c.b16 %v2649, %v2645
    %v3782 = vpack.c.b16 %v2650, %v2646
    %v3783 = vpack.c.b16 %v2655, %v2651
    %v3784 = vpack.c.b16 %v2656, %v2652
    %v3785 = vpack.c.b16 %v2657, %v2653
    %v3786 = vpack.c.b16 %v2658, %v2654
    %v3787 = vpack.c.b16 %v2663, %v2659
    %v3788 = vpack.c.b16 %v2664, %v2660
    %v3789 = vpack.c.b16 %v2665, %v2661
    %v3790 = vpack.c.b16 %v2666, %v2662
    %v3791 = vpack.c.b16 %v2671, %v2667
    %v3792 = vpack.c.b16 %v2672, %v2668
    %v3793 = vpack.c.b16 %v2673, %v2669
    %v3794 = vpack.c.b16 %v2674, %v2670
    %v3795 = vpack.c.b16 %v2679, %v2675
    %v3796 = vpack.c.b16 %v2680, %v2676
    %v3797 = vpack.c.b16 %v2681, %v2677
    %v3798 = vpack.c.b16 %v2682, %v2678
    %v3799 = vpack.c.b16 %v2687, %v2683
    %v3800 = vpack.c.b16 %v2688, %v2684
    %v3801 = vpack.c.b16 %v2689, %v2685
    %v3802 = vpack.c.b16 %v2690, %v2686
    %v3803 = vpack.c.b16 %v2695, %v2691
    %v3804 = vpack.c.b16 %v2696, %v2692
    %v3805 = vpack.c.b16 %v2697, %v2693
    %v3806 = vpack.c.b16 %v2698, %v2694
    %v3807 = vpack.c.b16 %v2703, %v2699
    %v3808 = vpack.c.b16 %v2704, %v2700
    %v3809 = vpack.c.b16 %v2705, %v2701
    %v3810 = vpack.c.b16 %v2706, %v2702
    %v3811 = vpack.c.b16 %v2711, %v2707
    %v3812 = vpack.c.b16 %v2712, %v2708
    %v3813 = vpack.c.b16 %v2713, %v2709
    %v3814 = vpack.c.b16 %v2714, %v2710
    %v3815 = vpack.c.b16 %v2719, %v2715
    %v3816 = vpack.c.b16 %v2720, %v2716
    %v3817 = vpack.c.b16 %v2721, %v2717
    %v3818 = vpack.c.b16 %v2722, %v2718
    %v3819 = vpack.c.b16 %v2727, %v2723
    %v3820 = vpack.c.b16 %v2728, %v2724
    %v3821 = vpack.c.b16 %v2729, %v2725
    %v3822 = vpack.c.b16 %v2730, %v2726
    %v3823 = vpack.c.b16 %v2735, %v2731
    %v3824 = vpack.c.b16 %v2736, %v2732
    %v3825 = vpack.c.b16 %v2737, %v2733
    %v3826 = vpack.c.b16 %v2738, %v2734
    %v3827 = vpack.c.b16 %v2743, %v2739
    %v3828 = vpack.c.b16 %v2744, %v2740
    %v3829 = vpack.c.b16 %v2745, %v2741
    %v3830 = vpack.c.b16 %v2746, %v2742
    %v3831 = vpack.c.b16 %v2751, %v2747
    %v3832 = vpack.c.b16 %v2752, %v2748
    %v3833 = vpack.c.b16 %v2753, %v2749
    %v3834 = vpack.c.b16 %v2754, %v2750
    %v3835 = vpack.c.b16 %v2759, %v2755
    %v3836 = vpack.c.b16 %v2760, %v2756
    %v3837 = vpack.c.b16 %v2761, %v2757
    %v3838 = vpack.c.b16 %v2762, %v2758
    %v3839 = vpack.c.b16 %v2767, %v2763
    %v3840 = vpack.c.b16 %v2768, %v2764
    %v3841 = vpack.c.b16 %v2769, %v2765
    %v3842 = vpack.c.b16 %v2770, %v2766
    %v3843 = vpack.c.b16 %v2775, %v2771
    %v3844 = vpack.c.b16 %v2776, %v2772
    %v3845 = vpack.c.b16 %v2777, %v2773
    %v3846 = vpack.c.b16 %v2778, %v2774
    %v3847 = vpack.c.b16 %v2783, %v2779
    %v3848 = vpack.c.b16 %v2784, %v2780
    %v3849 = vpack.c.b16 %v2785, %v2781
    %v3850 = vpack.c.b16 %v2786, %v2782
    %v3851 = vpack.c.b16 %v2791, %v2787
    %v3852 = vpack.c.b16 %v2792, %v2788
    %v3853 = vpack.c.b16 %v2793, %v2789
    %v3854 = vpack.c.b16 %v2794, %v2790
    %v3855 = vpack.c.b16 %v2799, %v2795
    %v3856 = vpack.c.b16 %v2800, %v2796
    %v3857 = vpack.c.b16 %v2801, %v2797
    %v3858 = vpack.c.b16 %v2802, %v2798
    %v3859 = vpack.c.b16 %v2807, %v2803
    %v3860 = vpack.c.b16 %v2808, %v2804
    %v3861 = vpack.c.b16 %v2809, %v2805
    %v3862 = vpack.c.b16 %v2810, %v2806
    %v3863 = vpack.c.b16 %v2815, %v2811
    %v3864 = vpack.c.b16 %v2816, %v2812
    %v3865 = vpack.c.b16 %v2817, %v2813
    %v3866 = vpack.c.b16 %v2818, %v2814
    %v3867 = vpack.c.b16 %v2823, %v2819
    %v3868 = vpack.c.b16 %v2824, %v2820
    %v3869 = vpack.c.b16 %v2825, %v2821
    %v3870 = vpack.c.b16 %v2826, %v2822
    %v3871 = vpack.c.b16 %v2831, %v2827
    %v3872 = vpack.c.b16 %v2832, %v2828
    %v3873 = vpack.c.b16 %v2833, %v2829
    %v3874 = vpack.c.b16 %v2834, %v2830
    %v3875 = vpack.c.b16 %v2839, %v2835
    %v3876 = vpack.c.b16 %v2840, %v2836
    %v3877 = vpack.c.b16 %v2841, %v2837
    %v3878 = vpack.c.b16 %v2842, %v2838
    %v3879 = vpack.c.b16 %v2847, %v2843
    %v3880 = vpack.c.b16 %v2848, %v2844
    %v3881 = vpack.c.b16 %v2849, %v2845
    %v3882 = vpack.c.b16 %v2850, %v2846
    %v3883 = vpack.c.b16 %v2855, %v2851
    %v3884 = vpack.c.b16 %v2856, %v2852
    %v3885 = vpack.c.b16 %v2857, %v2853
    %v3886 = vpack.c.b16 %v2858, %v2854
    %v3887 = vpack.c.b16 %v2863, %v2859
    %v3888 = vpack.c.b16 %v2864, %v2860
    %v3889 = vpack.c.b16 %v2865, %v2861
    %v3890 = vpack.c.b16 %v2866, %v2862
    %v3891 = vpack.c.b16 %v2871, %v2867
    %v3892 = vpack.c.b16 %v2872, %v2868
    %v3893 = vpack.c.b16 %v2873, %v2869
    %v3894 = vpack.c.b16 %v2874, %v2870
    %v3895 = vpack.c.b16 %v2879, %v2875
    %v3896 = vpack.c.b16 %v2880, %v2876
    %v3897 = vpack.c.b16 %v2881, %v2877
    %v3898 = vpack.c.b16 %v2882, %v2878
    %v3899 = vpack.c.b16 %v2887, %v2883
    %v3900 = vpack.c.b16 %v2888, %v2884
    %v3901 = vpack.c.b16 %v2889, %v2885
    %v3902 = vpack.c.b16 %v2890, %v2886
    %v3903 = vpack.c.b16 %v2895, %v2891
    %v3904 = vpack.c.b16 %v2896, %v2892
    %v3905 = vpack.c.b16 %v2897, %v2893
    %v3906 = vpack.c.b16 %v2898, %v2894
    %v3907 = vpack.c.b16 %v2903, %v2899
    %v3908 = vpack.c.b16 %v2904, %v2900
    %v3909 = vpack.c.b16 %v2905, %v2901
    %v3910 = vpack.c.b16 %v2906, %v2902
    %v3911 = vpack.c.b16 %v2911, %v2907
    %v3912 = vpack.c.b16 %v2912, %v2908
    %v3913 = vpack.c.b16 %v2913, %v2909
    %v3914 = vpack.c.b16 %v2914, %v2910
    %v3915 = vpack.c.b16 %v2919, %v2915
    %v3916 = vpack.c.b16 %v2920, %v2916
    %v3917 = vpack.c.b16 %v2921, %v2917
    %v3918 = vpack.c.b16 %v2922, %v2918
    %v3919 = vpack.c.b16 %v2927, %v2923
    %v3920 = vpack.c.b16 %v2928, %v2924
    %v3921 = vpack.c.b16 %v2929, %v2925
    %v3922 = vpack.c.b16 %v2930, %v2926
    %v3923 = vpack.c.b16 %v2935, %v2931
    %v3924 = vpack.c.b16 %v2936, %v2932
    %v3925 = vpack.c.b16 %v2937, %v2933
    %v3926 = vpack.c.b16 %v2938, %v2934
    %v3927 = vpack.c.b16 %v2943, %v2939
    %v3928 = vpack.c.b16 %v2944, %v2940
    %v3929 = vpack.c.b16 %v2945, %v2941
    %v3930 = vpack.c.b16 %v2946, %v2942
    %v3931 = vpack.c.b16 %v2951, %v2947
    %v3932 = vpack.c.b16 %v2952, %v2948
    %v3933 = vpack.c.b16 %v2953, %v2949
    %v3934 = vpack.c.b16 %v2954, %v2950
    %v3935 = vpack.c.b16 %v2959, %v2955
    %v3936 = vpack.c.b16 %v2960, %v2956
    %v3937 = vpack.c.b16 %v2961, %v2957
    %v3938 = vpack.c.b16 %v2962, %v2958
    %v3939 = vpack.c.b16 %v2967, %v2963
    %v3940 = vpack.c.b16 %v2968, %v2964
    %v3941 = vpack.c.b16 %v2969, %v2965
    %v3942 = vpack.c.b16 %v2970, %v2966
    %v3943 = vpack.c.b16 %v2975, %v2971
    %v3944 = vpack.c.b16 %v2976, %v2972
    %v3945 = vpack.c.b16 %v2977, %v2973
    %v3946 = vpack.c.b16 %v2978, %v2974
    %v3947 = vpack.c.b16 %v2983, %v2979
    %v3948 = vpack.c.b16 %v2984, %v2980
    %v3949 = vpack.c.b16 %v2985, %v2981
    %v3950 = vpack.c.b16 %v2986, %v2982
    %v3951 = vpack.c.b16 %v2991, %v2987
    %v3952 = vpack.c.b16 %v2992, %v2988
    %v3953 = vpack.c.b16 %v2993, %v2989
    %v3954 = vpack.c.b16 %v2994, %v2990
    %v3955 = vpack.c.b16 %v2999, %v2995
    %v3956 = vpack.c.b16 %v3000, %v2996
    %v3957 = vpack.c.b16 %v3001, %v2997
    %v3958 = vpack.c.b16 %v3002, %v2998
    %v3959 = vpack.c.b16 %v3007, %v3003
    %v3960 = vpack.c.b16 %v3008, %v3004
    %v3961 = vpack.c.b16 %v3009, %v3005
    %v3962 = vpack.c.b16 %v3010, %v3006
    %v3963 = vpack.c.b16 %v3015, %v3011
    %v3964 = vpack.c.b16 %v3016, %v3012
    %v3965 = vpack.c.b16 %v3017, %v3013
    %v3966 = vpack.c.b16 %v3018, %v3014
    %v3967 = vpack.c.b16 %v3023, %v3019
    %v3968 = vpack.c.b16 %v3024, %v3020
    %v3969 = vpack.c.b16 %v3025, %v3021
    %v3970 = vpack.c.b16 %v3026, %v3022
    %v3971 = vpack.c.b16 %v3031, %v3027
    %v3972 = vpack.c.b16 %v3032, %v3028
    %v3973 = vpack.c.b16 %v3033, %v3029
    %v3974 = vpack.c.b16 %v3034, %v3030
    %v3975 = vpack.c.b16 %v3039, %v3035
    %v3976 = vpack.c.b16 %v3040, %v3036
    %v3977 = vpack.c.b16 %v3041, %v3037
    %v3978 = vpack.c.b16 %v3042, %v3038
    %v3979 = vpack.c.b16 %v3047, %v3043
    %v3980 = vpack.c.b16 %v3048, %v3044
    %v3981 = vpack.c.b16 %v3049, %v3045
    %v3982 = vpack.c.b16 %v3050, %v3046
    %v3983 = vpack.c.b16 %v3055, %v3051
    %v3984 = vpack.c.b16 %v3056, %v3052
    %v3985 = vpack.c.b16 %v3057, %v3053
    %v3986 = vpack.c.b16 %v3058, %v3054
    %v3987 = vpack.c.b16 %v3063, %v3059
    %v3988 = vpack.c.b16 %v3064, %v3060
    %v3989 = vpack.c.b16 %v3065, %v3061
    %v3990 = vpack.c.b16 %v3066, %v3062
    %v3991 = vpack.c.b16 %v3071, %v3067
    %v3992 = vpack.c.b16 %v3072, %v3068
    %v3993 = vpack.c.b16 %v3073, %v3069
    %v3994 = vpack.c.b16 %v3074, %v3070
    %v3995 = vpack.c.b16 %v3079, %v3075
    %v3996 = vpack.c.b16 %v3080, %v3076
    %v3997 = vpack.c.b16 %v3081, %v3077
    %v3998 = vpack.c.b16 %v3082, %v3078
    %v3999 = vpack.c.b16 %v3087, %v3083
    %v4000 = vpack.c.b16 %v3088, %v3084
    %v4001 = vpack.c.b16 %v3089, %v3085
    %v4002 = vpack.c.b16 %v3090, %v3086
    %v4003 = vpack.c.b16 %v3095, %v3091
    %v4004 = vpack.c.b16 %v3096, %v3092
    %v4005 = vpack.c.b16 %v3097, %v3093
    %v4006 = vpack.c.b16 %v3098, %v3094
    %v4007 = vpack.c.b16 %v3103, %v3099
    %v4008 = vpack.c.b16 %v3104, %v3100
    %v4009 = vpack.c.b16 %v3105, %v3101
    %v4010 = vpack.c.b16 %v3106, %v3102
    %v4011 = vpack.c.b16 %v3111, %v3107
    %v4012 = vpack.c.b16 %v3112, %v3108
    %v4013 = vpack.c.b16 %v3113, %v3109
    %v4014 = vpack.c.b16 %v3114, %v3110
    %v4015 = vpack.c.b16 %v3119, %v3115
    %v4016 = vpack.c.b16 %v3120, %v3116
    %v4017 = vpack.c.b16 %v3121, %v3117
    %v4018 = vpack.c.b16 %v3122, %v3118
    %v4019 = vpack.c.b16 %v3127, %v3123
    %v4020 = vpack.c.b16 %v3128, %v3124
    %v4021 = vpack.c.b16 %v3129, %v3125
    %v4022 = vpack.c.b16 %v3130, %v3126
    %v4023 = vpack.c.b16 %v3135, %v3131
    %v4024 = vpack.c.b16 %v3136, %v3132
    %v4025 = vpack.c.b16 %v3137, %v3133
    %v4026 = vpack.c.b16 %v3138, %v3134
    %v4027 = vpack.c.b16 %v3143, %v3139
    %v4028 = vpack.c.b16 %v3144, %v3140
    %v4029 = vpack.c.b16 %v3145, %v3141
    %v4030 = vpack.c.b16 %v3146, %v3142
    %v4031 = vpack.c.b16 %v3151, %v3147
    %v4032 = vpack.c.b16 %v3152, %v3148
    %v4033 = vpack.c.b16 %v3153, %v3149
    %v4034 = vpack.c.b16 %v3154, %v3150
    %v4035 = vpack.c.b16 %v3159, %v3155
    %v4036 = vpack.c.b16 %v3160, %v3156
    %v4037 = vpack.c.b16 %v3161, %v3157
    %v4038 = vpack.c.b16 %v3162, %v3158
    %v4039 = vpack.c.b16 %v3167, %v3163
    %v4040 = vpack.c.b16 %v3168, %v3164
    %v4041 = vpack.c.b16 %v3169, %v3165
    %v4042 = vpack.c.b16 %v3170, %v3166
    %v4043 = vpack.c.b16 %v3175, %v3171
    %v4044 = vpack.c.b16 %v3176, %v3172
    %v4045 = vpack.c.b16 %v3177, %v3173
    %v4046 = vpack.c.b16 %v3178, %v3174
    %v4047 = vpack.c.b16 %v3183, %v3179
    %v4048 = vpack.c.b16 %v3184, %v3180
    %v4049 = vpack.c.b16 %v3185, %v3181
    %v4050 = vpack.c.b16 %v3186, %v3182
    %v4051 = vpack.c.b16 %v3191, %v3187
    %v4052 = vpack.c.b16 %v3192, %v3188
    %v4053 = vpack.c.b16 %v3193, %v3189
    %v4054 = vpack.c.b16 %v3194, %v3190
    %v4055 = vpack.c.b16 %v3199, %v3195
    %v4056 = vpack.c.b16 %v3200, %v3196
    %v4057 = vpack.c.b16 %v3201, %v3197
    %v4058 = vpack.c.b16 %v3202, %v3198
    %v4059 = vpack.c.b16 %v3207, %v3203
    %v4060 = vpack.c.b16 %v3208, %v3204
    %v4061 = vpack.c.b16 %v3209, %v3205
    %v4062 = vpack.c.b16 %v3210, %v3206
    %v4063 = vpack.c.b16 %v3215, %v3211
    %v4064 = vpack.c.b16 %v3216, %v3212
    %v4065 = vpack.c.b16 %v3217, %v3213
    %v4066 = vpack.c.b16 %v3218, %v3214
    %v4067 = vpack.c.b16 %v3223, %v3219
    %v4068 = vpack.c.b16 %v3224, %v3220
    %v4069 = vpack.c.b16 %v3225, %v3221
    %v4070 = vpack.c.b16 %v3226, %v3222
    %v4071 = vpack.c.b16 %v3231, %v3227
    %v4072 = vpack.c.b16 %v3232, %v3228
    %v4073 = vpack.c.b16 %v3233, %v3229
    %v4074 = vpack.c.b16 %v3234, %v3230
    %v4075 = vpack.c.b16 %v3239, %v3235
    %v4076 = vpack.c.b16 %v3240, %v3236
    %v4077 = vpack.c.b16 %v3241, %v3237
    %v4078 = vpack.c.b16 %v3242, %v3238
    %v4079 = vpack.c.b16 %v3247, %v3243
    %v4080 = vpack.c.b16 %v3248, %v3244
    %v4081 = vpack.c.b16 %v3249, %v3245
    %v4082 = vpack.c.b16 %v3250, %v3246
    %v4083 = vpack.c.b16 %v3255, %v3251
    %v4084 = vpack.c.b16 %v3256, %v3252
    %v4085 = vpack.c.b16 %v3257, %v3253
    %v4086 = vpack.c.b16 %v3258, %v3254
    %v4087 = vpack.c.b16 %v3263, %v3259
    %v4088 = vpack.c.b16 %v3264, %v3260
    %v4089 = vpack.c.b16 %v3265, %v3261
    %v4090 = vpack.c.b16 %v3266, %v3262
    %v4091 = vpack.c.b16 %v3271, %v3267
    %v4092 = vpack.c.b16 %v3272, %v3268
    %v4093 = vpack.c.b16 %v3273, %v3269
    %v4094 = vpack.c.b16 %v3274, %v3270
    %v4095 = vpack.c.b16 %v3279, %v3275
    %v4096 = vpack.c.b16 %v3280, %v3276
    %v4097 = vpack.c.b16 %v3281, %v3277
    %v4098 = vpack.c.b16 %v3282, %v3278
    %v4099 = vpack.c.b16 %v3287, %v3283
    %v4100 = vpack.c.b16 %v3288, %v3284
    %v4101 = vpack.c.b16 %v3289, %v3285
    %v4102 = vpack.c.b16 %v3290, %v3286
    %v4103 = vpack.c.b16 %v3295, %v3291
    %v4104 = vpack.c.b16 %v3296, %v3292
    %v4105 = vpack.c.b16 %v3297, %v3293
    %v4106 = vpack.c.b16 %v3298, %v3294
    %v4107 = vpack.c.b16 %v3303, %v3299
    %v4108 = vpack.c.b16 %v3304, %v3300
    %v4109 = vpack.c.b16 %v3305, %v3301
    %v4110 = vpack.c.b16 %v3306, %v3302
    %v4111 = vpack.c.b16 %v3311, %v3307
    %v4112 = vpack.c.b16 %v3312, %v3308
    %v4113 = vpack.c.b16 %v3313, %v3309
    %v4114 = vpack.c.b16 %v3314, %v3310
    %v4115 = vpack.c.b16 %v3319, %v3315
    %v4116 = vpack.c.b16 %v3320, %v3316
    %v4117 = vpack.c.b16 %v3321, %v3317
    %v4118 = vpack.c.b16 %v3322, %v3318
    %v4119 = vpack.c.b16 %v3327, %v3323
    %v4120 = vpack.c.b16 %v3328, %v3324
    %v4121 = vpack.c.b16 %v3329, %v3325
    %v4122 = vpack.c.b16 %v3330, %v3326
    %v4123 = vpack.c.b16 %v3335, %v3331
    %v4124 = vpack.c.b16 %v3336, %v3332
    %v4125 = vpack.c.b16 %v3337, %v3333
    %v4126 = vpack.c.b16 %v3338, %v3334
    %v4127 = vpack.c.b16 %v3343, %v3339
    %v4128 = vpack.c.b16 %v3344, %v3340
    %v4129 = vpack.c.b16 %v3345, %v3341
    %v4130 = vpack.c.b16 %v3346, %v3342
    %vm4915 = vcmask 523264
    %v4917 = vsel %vm4915, %v188, 0
    %4919 = vmatprep.subr.bf16.mxu0 %v3348
    %4920 = vmatpush1.bf16.msra.mxu0 %v3347
    %4921 = vmatprep.subr.bf16.mxu0 %v3352
    %4922 = vmatpush1.bf16.msra.mxu0 %v3351
    %4923 = vmatprep.subr.bf16.mxu0 %v3356
    %4924 = vmatpush1.bf16.msra.mxu0 %v3355
    %4925 = vmatprep.subr.bf16.mxu0 %v3360
    %4926 = vmatpush1.bf16.msra.mxu0 %v3359
    %4927 = vmatprep.subr.bf16.mxu0 %v3364
    %4928 = vmatpush1.bf16.msra.mxu0 %v3363
    %4929 = vmatprep.subr.bf16.mxu0 %v3368
    %4930 = vmatpush1.bf16.msra.mxu0 %v3367
    %4931 = vmatprep.subr.bf16.mxu0 %v3372
    %4932 = vmatpush1.bf16.msra.mxu0 %v3371
    %4933 = vmatprep.subr.bf16.mxu0 %v3376
    %4934 = vmatpush1.bf16.msra.mxu0 %v3375
    %4935 = vmatprep.subr.bf16.mxu0 %v3380
    %4936 = vmatpush1.bf16.msra.mxu0 %v3379
    %4937 = vmatprep.subr.bf16.mxu0 %v3384
    %4938 = vmatpush1.bf16.msra.mxu0 %v3383
    %4939 = vmatprep.subr.bf16.mxu0 %v3388
    %4940 = vmatpush1.bf16.msra.mxu0 %v3387
    %4941 = vmatprep.subr.bf16.mxu0 %v3392
    %4942 = vmatpush1.bf16.msra.mxu0 %v3391
    %4943 = vmatprep.subr.bf16.mxu0 %v3396
    %4944 = vmatpush1.bf16.msra.mxu0 %v3395
    %4945 = vmatprep.subr.bf16.mxu0 %v3400
    %4946 = vmatpush1.bf16.msra.mxu0 %v3399
    %4947 = vmatprep.subr.bf16.mxu0 %v3404
    %4948 = vmatpush1.bf16.msra.mxu0 %v3403
    %4949 = vmatprep.subr.bf16.mxu0 %v3408
    %4950 = vmatpush1.bf16.msra.mxu0 %v3407
    %4951 = vmatprep.mubr.bf16.mxu0 %v165
    %4952 = vmatmul.mubr.bf16.gmra.mrb[0].mxu0 %v164
    %v4953 = vpop.f32.mrb[0].mxu0
    %v4954 = vadd.f32 %v978, %v4953
    %v4955 = vpop.f32.mrb[0].mxu0
    %v4956 = vadd.f32 %v982, %v4955
    %v4957 = vpop.f32.mrb[0].mxu0
    %v4958 = vpop.f32.mrb[0].mxu0
    %4959 = vdwg.mxu0
    %4960 = vmatprep.subr.bf16.mxu0 %v3412
    %4961 = vmatpush1.bf16.msra.mxu0 %v3411
    %4962 = vmatprep.subr.bf16.mxu0 %v3416
    %4963 = vmatpush1.bf16.msra.mxu0 %v3415
    %4964 = vmatprep.subr.bf16.mxu0 %v3420
    %4965 = vmatpush1.bf16.msra.mxu0 %v3419
    %4966 = vmatprep.subr.bf16.mxu0 %v3424
    %4967 = vmatpush1.bf16.msra.mxu0 %v3423
    %4968 = vmatprep.subr.bf16.mxu0 %v3428
    %4969 = vmatpush1.bf16.msra.mxu0 %v3427
    %4970 = vmatprep.subr.bf16.mxu0 %v3432
    %4971 = vmatpush1.bf16.msra.mxu0 %v3431
    %4972 = vmatprep.subr.bf16.mxu0 %v3436
    %4973 = vmatpush1.bf16.msra.mxu0 %v3435
    %4974 = vmatprep.subr.bf16.mxu0 %v3440
    %4975 = vmatpush1.bf16.msra.mxu0 %v3439
    %4976 = vmatprep.subr.bf16.mxu0 %v3444
    %4977 = vmatpush1.bf16.msra.mxu0 %v3443
    %4978 = vmatprep.subr.bf16.mxu0 %v3448
    %4979 = vmatpush1.bf16.msra.mxu0 %v3447
    %4980 = vmatprep.subr.bf16.mxu0 %v3452
    %4981 = vmatpush1.bf16.msra.mxu0 %v3451
    %4982 = vmatprep.subr.bf16.mxu0 %v3456
    %4983 = vmatpush1.bf16.msra.mxu0 %v3455
    %4984 = vmatprep.subr.bf16.mxu0 %v3460
    %4985 = vmatpush1.bf16.msra.mxu0 %v3459
    %4986 = vmatprep.subr.bf16.mxu0 %v3464
    %4987 = vmatpush1.bf16.msra.mxu0 %v3463
    %4988 = vmatprep.subr.bf16.mxu0 %v3468
    %4989 = vmatpush1.bf16.msra.mxu0 %v3467
    %4990 = vmatprep.subr.bf16.mxu0 %v3472
    %4991 = vmatpush1.bf16.msra.mxu0 %v3471
    %4992 = vmatprep.mubr.bf16.mxu0 %v167
    %4993 = vmatmul.mubr.bf16.gmra.mrb[0].mxu0 %v166
    %v4994 = vpop.f32.mrb[0].mxu0
    %v4995 = vadd.f32 %v4954, %v4994
    %v4996 = vpop.f32.mrb[0].mxu0
    %v4997 = vadd.f32 %v4956, %v4996
    %v4998 = vpop.f32.mrb[0].mxu0
    %v4999 = vpop.f32.mrb[0].mxu0
    %5000 = vdwg.mxu0
    %5001 = vmatprep.subr.bf16.mxu0 %v3476
    %5002 = vmatpush1.bf16.msra.mxu0 %v3475
    %5003 = vmatprep.subr.bf16.mxu0 %v3480
    %5004 = vmatpush1.bf16.msra.mxu0 %v3479
    %5005 = vmatprep.subr.bf16.mxu0 %v3484
    %5006 = vmatpush1.bf16.msra.mxu0 %v3483
    %5007 = vmatprep.subr.bf16.mxu0 %v3488
    %5008 = vmatpush1.bf16.msra.mxu0 %v3487
    %5009 = vmatprep.subr.bf16.mxu0 %v3492
    %5010 = vmatpush1.bf16.msra.mxu0 %v3491
    %5011 = vmatprep.subr.bf16.mxu0 %v3496
    %5012 = vmatpush1.bf16.msra.mxu0 %v3495
    %5013 = vmatprep.subr.bf16.mxu0 %v3500
    %5014 = vmatpush1.bf16.msra.mxu0 %v3499
    %5015 = vmatprep.subr.bf16.mxu0 %v3504
    %5016 = vmatpush1.bf16.msra.mxu0 %v3503
    %5017 = vmatprep.subr.bf16.mxu0 %v3508
    %5018 = vmatpush1.bf16.msra.mxu0 %v3507
    %5019 = vmatprep.subr.bf16.mxu0 %v3512
    %5020 = vmatpush1.bf16.msra.mxu0 %v3511
    %5021 = vmatprep.subr.bf16.mxu0 %v3516
    %5022 = vmatpush1.bf16.msra.mxu0 %v3515
    %5023 = vmatprep.subr.bf16.mxu0 %v3520
    %5024 = vmatpush1.bf16.msra.mxu0 %v3519
    %5025 = vmatprep.subr.bf16.mxu0 %v3524
    %5026 = vmatpush1.bf16.msra.mxu0 %v3523
    %5027 = vmatprep.subr.bf16.mxu0 %v3528
    %5028 = vmatpush1.bf16.msra.mxu0 %v3527
    %5029 = vmatprep.subr.bf16.mxu0 %v3532
    %5030 = vmatpush1.bf16.msra.mxu0 %v3531
    %5031 = vmatprep.subr.bf16.mxu0 %v3536
    %5032 = vmatpush1.bf16.msra.mxu0 %v3535
    %5033 = vmatprep.mubr.bf16.mxu0 %v169
    %5034 = vmatmul.mubr.bf16.gmra.mrb[0].mxu0 %v168
    %v5035 = vpop.f32.mrb[0].mxu0
    %v5036 = vadd.f32 %v4995, %v5035
    %v5037 = vpop.f32.mrb[0].mxu0
    %v5038 = vadd.f32 %v4997, %v5037
    %v5039 = vpop.f32.mrb[0].mxu0
    %v5040 = vpop.f32.mrb[0].mxu0
    %5041 = vdwg.mxu0
    %5042 = vmatprep.subr.bf16.mxu0 %v3540
    %5043 = vmatpush1.bf16.msra.mxu0 %v3539
    %5044 = vmatprep.subr.bf16.mxu0 %v3544
    %5045 = vmatpush1.bf16.msra.mxu0 %v3543
    %5046 = vmatprep.subr.bf16.mxu0 %v3548
    %5047 = vmatpush1.bf16.msra.mxu0 %v3547
    %5048 = vmatprep.subr.bf16.mxu0 %v3552
    %5049 = vmatpush1.bf16.msra.mxu0 %v3551
    %5050 = vmatprep.subr.bf16.mxu0 %v3556
    %5051 = vmatpush1.bf16.msra.mxu0 %v3555
    %5052 = vmatprep.subr.bf16.mxu0 %v3560
    %5053 = vmatpush1.bf16.msra.mxu0 %v3559
    %5054 = vmatprep.subr.bf16.mxu0 %v3564
    %5055 = vmatpush1.bf16.msra.mxu0 %v3563
    %5056 = vmatprep.subr.bf16.mxu0 %v3568
    %5057 = vmatpush1.bf16.msra.mxu0 %v3567
    %5058 = vmatprep.subr.bf16.mxu0 %v3572
    %5059 = vmatpush1.bf16.msra.mxu0 %v3571
    %5060 = vmatprep.subr.bf16.mxu0 %v3576
    %5061 = vmatpush1.bf16.msra.mxu0 %v3575
    %5062 = vmatprep.subr.bf16.mxu0 %v3580
    %5063 = vmatpush1.bf16.msra.mxu0 %v3579
    %5064 = vmatprep.subr.bf16.mxu0 %v3584
    %5065 = vmatpush1.bf16.msra.mxu0 %v3583
    %5066 = vmatprep.subr.bf16.mxu0 %v3588
    %5067 = vmatpush1.bf16.msra.mxu0 %v3587
    %5068 = vmatprep.subr.bf16.mxu0 %v3592
    %5069 = vmatpush1.bf16.msra.mxu0 %v3591
    %5070 = vmatprep.subr.bf16.mxu0 %v3596
    %5071 = vmatpush1.bf16.msra.mxu0 %v3595
    %5072 = vmatprep.subr.bf16.mxu0 %v3600
    %5073 = vmatpush1.bf16.msra.mxu0 %v3599
    %5074 = vmatprep.mubr.bf16.mxu0 %v171
    %5075 = vmatmul.mubr.bf16.gmra.mrb[0].mxu0 %v170
    %v5076 = vpop.f32.mrb[0].mxu0
    %v5077 = vadd.f32 %v5036, %v5076
    %v5078 = vpop.f32.mrb[0].mxu0
    %v5079 = vadd.f32 %v5038, %v5078
    %v5080 = vpop.f32.mrb[0].mxu0
    %v5081 = vpop.f32.mrb[0].mxu0
    %5082 = vdwg.mxu0
    %5083 = vmatprep.subr.bf16.mxu0 %v3604
    %5084 = vmatpush1.bf16.msra.mxu0 %v3603
    %5085 = vmatprep.subr.bf16.mxu0 %v3608
    %5086 = vmatpush1.bf16.msra.mxu0 %v3607
    %5087 = vmatprep.subr.bf16.mxu0 %v3612
    %5088 = vmatpush1.bf16.msra.mxu0 %v3611
    %5089 = vmatprep.subr.bf16.mxu0 %v3616
    %5090 = vmatpush1.bf16.msra.mxu0 %v3615
    %5091 = vmatprep.subr.bf16.mxu0 %v3620
    %5092 = vmatpush1.bf16.msra.mxu0 %v3619
    %5093 = vmatprep.subr.bf16.mxu0 %v3624
    %5094 = vmatpush1.bf16.msra.mxu0 %v3623
    %5095 = vmatprep.subr.bf16.mxu0 %v3628
    %5096 = vmatpush1.bf16.msra.mxu0 %v3627
    %5097 = vmatprep.subr.bf16.mxu0 %v3632
    %5098 = vmatpush1.bf16.msra.mxu0 %v3631
    %5099 = vmatprep.subr.bf16.mxu0 %v3636
    %5100 = vmatpush1.bf16.msra.mxu0 %v3635
    %5101 = vmatprep.subr.bf16.mxu0 %v3640
    %5102 = vmatpush1.bf16.msra.mxu0 %v3639
    %5103 = vmatprep.subr.bf16.mxu0 %v3644
    %5104 = vmatpush1.bf16.msra.mxu0 %v3643
    %5105 = vmatprep.subr.bf16.mxu0 %v3648
    %5106 = vmatpush1.bf16.msra.mxu0 %v3647
    %5107 = vmatprep.subr.bf16.mxu0 %v3652
    %5108 = vmatpush1.bf16.msra.mxu0 %v3651
    %5109 = vmatprep.subr.bf16.mxu0 %v3656
    %5110 = vmatpush1.bf16.msra.mxu0 %v3655
    %5111 = vmatprep.subr.bf16.mxu0 %v3660
    %5112 = vmatpush1.bf16.msra.mxu0 %v3659
    %5113 = vmatprep.subr.bf16.mxu0 %v3664
    %5114 = vmatpush1.bf16.msra.mxu0 %v3663
    %5115 = vmatprep.mubr.bf16.mxu0 %v173
    %5116 = vmatmul.mubr.bf16.gmra.mrb[0].mxu0 %v172
    %v5117 = vpop.f32.mrb[0].mxu0
    %v5118 = vadd.f32 %v5077, %v5117
    %v5119 = vpop.f32.mrb[0].mxu0
    %v5120 = vadd.f32 %v5079, %v5119
    %v5121 = vpop.f32.mrb[0].mxu0
    %v5122 = vpop.f32.mrb[0].mxu0
    %5123 = vdwg.mxu0
    %5124 = vmatprep.subr.bf16.mxu0 %v3668
    %5125 = vmatpush1.bf16.msra.mxu0 %v3667
    %5126 = vmatprep.subr.bf16.mxu0 %v3672
    %5127 = vmatpush1.bf16.msra.mxu0 %v3671
    %5128 = vmatprep.subr.bf16.mxu0 %v3676
    %5129 = vmatpush1.bf16.msra.mxu0 %v3675
    %5130 = vmatprep.subr.bf16.mxu0 %v3680
    %5131 = vmatpush1.bf16.msra.mxu0 %v3679
    %5132 = vmatprep.subr.bf16.mxu0 %v3684
    %5133 = vmatpush1.bf16.msra.mxu0 %v3683
    %5134 = vmatprep.subr.bf16.mxu0 %v3688
    %5135 = vmatpush1.bf16.msra.mxu0 %v3687
    %5136 = vmatprep.subr.bf16.mxu0 %v3692
    %5137 = vmatpush1.bf16.msra.mxu0 %v3691
    %5138 = vmatprep.subr.bf16.mxu0 %v3696
    %5139 = vmatpush1.bf16.msra.mxu0 %v3695
    %5140 = vmatprep.subr.bf16.mxu0 %v3700
    %5141 = vmatpush1.bf16.msra.mxu0 %v3699
    %5142 = vmatprep.subr.bf16.mxu0 %v3704
    %5143 = vmatpush1.bf16.msra.mxu0 %v3703
    %5144 = vmatprep.subr.bf16.mxu0 %v3708
    %5145 = vmatpush1.bf16.msra.mxu0 %v3707
    %5146 = vmatprep.subr.bf16.mxu0 %v3712
    %5147 = vmatpush1.bf16.msra.mxu0 %v3711
    %5148 = vmatprep.subr.bf16.mxu0 %v3716
    %5149 = vmatpush1.bf16.msra.mxu0 %v3715
    %5150 = vmatprep.subr.bf16.mxu0 %v3720
    %5151 = vmatpush1.bf16.msra.mxu0 %v3719
    %5152 = vmatprep.subr.bf16.mxu0 %v3724
    %5153 = vmatpush1.bf16.msra.mxu0 %v3723
    %5154 = vmatprep.subr.bf16.mxu0 %v3728
    %5155 = vmatpush1.bf16.msra.mxu0 %v3727
    %5156 = vmatprep.mubr.bf16.mxu0 %v175
    %5157 = vmatmul.mubr.bf16.gmra.mrb[0].mxu0 %v174
    %v5158 = vpop.f32.mrb[0].mxu0
    %v5159 = vadd.f32 %v5118, %v5158
    %v5160 = vpop.f32.mrb[0].mxu0
    %v5161 = vadd.f32 %v5120, %v5160
    %v5162 = vpop.f32.mrb[0].mxu0
    %v5163 = vpop.f32.mrb[0].mxu0
    %5164 = vdwg.mxu0
    %5165 = vmatprep.subr.bf16.mxu0 %v3732
    %5166 = vmatpush1.bf16.msra.mxu0 %v3731
    %5167 = vmatprep.subr.bf16.mxu0 %v3736
    %5168 = vmatpush1.bf16.msra.mxu0 %v3735
    %5169 = vmatprep.subr.bf16.mxu0 %v3740
    %5170 = vmatpush1.bf16.msra.mxu0 %v3739
    %5171 = vmatprep.subr.bf16.mxu0 %v3744
    %5172 = vmatpush1.bf16.msra.mxu0 %v3743
    %5173 = vmatprep.subr.bf16.mxu0 %v3748
    %5174 = vmatpush1.bf16.msra.mxu0 %v3747
    %5175 = vmatprep.subr.bf16.mxu0 %v3752
    %5176 = vmatpush1.bf16.msra.mxu0 %v3751
    %5177 = vmatprep.subr.bf16.mxu0 %v3756
    %5178 = vmatpush1.bf16.msra.mxu0 %v3755
    %5179 = vmatprep.subr.bf16.mxu0 %v3760
    %5180 = vmatpush1.bf16.msra.mxu0 %v3759
    %5181 = vmatprep.subr.bf16.mxu0 %v3764
    %5182 = vmatpush1.bf16.msra.mxu0 %v3763
    %5183 = vmatprep.subr.bf16.mxu0 %v3768
    %5184 = vmatpush1.bf16.msra.mxu0 %v3767
    %5185 = vmatprep.subr.bf16.mxu0 %v3772
    %5186 = vmatpush1.bf16.msra.mxu0 %v3771
    %5187 = vmatprep.subr.bf16.mxu0 %v3776
    %5188 = vmatpush1.bf16.msra.mxu0 %v3775
    %5189 = vmatprep.subr.bf16.mxu0 %v3780
    %5190 = vmatpush1.bf16.msra.mxu0 %v3779
    %5191 = vmatprep.subr.bf16.mxu0 %v3784
    %5192 = vmatpush1.bf16.msra.mxu0 %v3783
    %5193 = vmatprep.subr.bf16.mxu0 %v3788
    %5194 = vmatpush1.bf16.msra.mxu0 %v3787
    %5195 = vmatprep.subr.bf16.mxu0 %v3792
    %5196 = vmatpush1.bf16.msra.mxu0 %v3791
    %5197 = vmatprep.mubr.bf16.mxu0 %v177
    %5198 = vmatmul.mubr.bf16.gmra.mrb[0].mxu0 %v176
    %v5199 = vpop.f32.mrb[0].mxu0
    %v5200 = vadd.f32 %v5159, %v5199
    %v5201 = vpop.f32.mrb[0].mxu0
    %v5202 = vadd.f32 %v5161, %v5201
    %v5203 = vpop.f32.mrb[0].mxu0
    %v5204 = vpop.f32.mrb[0].mxu0
    %5205 = vdwg.mxu0
    %5206 = vmatprep.subr.bf16.mxu0 %v3796
    %5207 = vmatpush1.bf16.msra.mxu0 %v3795
    %5208 = vmatprep.subr.bf16.mxu0 %v3800
    %5209 = vmatpush1.bf16.msra.mxu0 %v3799
    %5210 = vmatprep.subr.bf16.mxu0 %v3804
    %5211 = vmatpush1.bf16.msra.mxu0 %v3803
    %5212 = vmatprep.subr.bf16.mxu0 %v3808
    %5213 = vmatpush1.bf16.msra.mxu0 %v3807
    %5214 = vmatprep.subr.bf16.mxu0 %v3812
    %5215 = vmatpush1.bf16.msra.mxu0 %v3811
    %5216 = vmatprep.subr.bf16.mxu0 %v3816
    %5217 = vmatpush1.bf16.msra.mxu0 %v3815
    %5218 = vmatprep.subr.bf16.mxu0 %v3820
    %5219 = vmatpush1.bf16.msra.mxu0 %v3819
    %5220 = vmatprep.subr.bf16.mxu0 %v3824
    %5221 = vmatpush1.bf16.msra.mxu0 %v3823
    %5222 = vmatprep.subr.bf16.mxu0 %v3828
    %5223 = vmatpush1.bf16.msra.mxu0 %v3827
    %5224 = vmatprep.subr.bf16.mxu0 %v3832
    %5225 = vmatpush1.bf16.msra.mxu0 %v3831
    %5226 = vmatprep.subr.bf16.mxu0 %v3836
    %5227 = vmatpush1.bf16.msra.mxu0 %v3835
    %5228 = vmatprep.subr.bf16.mxu0 %v3840
    %5229 = vmatpush1.bf16.msra.mxu0 %v3839
    %5230 = vmatprep.subr.bf16.mxu0 %v3844
    %5231 = vmatpush1.bf16.msra.mxu0 %v3843
    %5232 = vmatprep.subr.bf16.mxu0 %v3848
    %5233 = vmatpush1.bf16.msra.mxu0 %v3847
    %5234 = vmatprep.subr.bf16.mxu0 %v3852
    %5235 = vmatpush1.bf16.msra.mxu0 %v3851
    %5236 = vmatprep.subr.bf16.mxu0 %v3856
    %5237 = vmatpush1.bf16.msra.mxu0 %v3855
    %5238 = vmatprep.mubr.bf16.mxu0 %v179
    %5239 = vmatmul.mubr.bf16.gmra.mrb[0].mxu0 %v178
    %v5240 = vpop.f32.mrb[0].mxu0
    %v5241 = vadd.f32 %v5200, %v5240
    %v5242 = vpop.f32.mrb[0].mxu0
    %v5243 = vadd.f32 %v5202, %v5242
    %v5244 = vpop.f32.mrb[0].mxu0
    %v5245 = vpop.f32.mrb[0].mxu0
    %5246 = vdwg.mxu0
    %5247 = vmatprep.subr.bf16.mxu0 %v3860
    %5248 = vmatpush1.bf16.msra.mxu0 %v3859
    %5249 = vmatprep.subr.bf16.mxu0 %v3864
    %5250 = vmatpush1.bf16.msra.mxu0 %v3863
    %5251 = vmatprep.subr.bf16.mxu0 %v3868
    %5252 = vmatpush1.bf16.msra.mxu0 %v3867
    %5253 = vmatprep.subr.bf16.mxu0 %v3872
    %5254 = vmatpush1.bf16.msra.mxu0 %v3871
    %5255 = vmatprep.subr.bf16.mxu0 %v3876
    %5256 = vmatpush1.bf16.msra.mxu0 %v3875
    %5257 = vmatprep.subr.bf16.mxu0 %v3880
    %5258 = vmatpush1.bf16.msra.mxu0 %v3879
    %5259 = vmatprep.subr.bf16.mxu0 %v3884
    %5260 = vmatpush1.bf16.msra.mxu0 %v3883
    %5261 = vmatprep.subr.bf16.mxu0 %v3888
    %5262 = vmatpush1.bf16.msra.mxu0 %v3887
    %5263 = vmatprep.subr.bf16.mxu0 %v3892
    %5264 = vmatpush1.bf16.msra.mxu0 %v3891
    %5265 = vmatprep.subr.bf16.mxu0 %v3896
    %5266 = vmatpush1.bf16.msra.mxu0 %v3895
    %5267 = vmatprep.subr.bf16.mxu0 %v3900
    %5268 = vmatpush1.bf16.msra.mxu0 %v3899
    %5269 = vmatprep.subr.bf16.mxu0 %v3904
    %5270 = vmatpush1.bf16.msra.mxu0 %v3903
    %5271 = vmatprep.subr.bf16.mxu0 %v3908
    %5272 = vmatpush1.bf16.msra.mxu0 %v3907
    %5273 = vmatprep.subr.bf16.mxu0 %v3912
    %5274 = vmatpush1.bf16.msra.mxu0 %v3911
    %5275 = vmatprep.subr.bf16.mxu0 %v3916
    %5276 = vmatpush1.bf16.msra.mxu0 %v3915
    %5277 = vmatprep.subr.bf16.mxu0 %v3920
    %5278 = vmatpush1.bf16.msra.mxu0 %v3919
    %5279 = vmatprep.mubr.bf16.mxu0 %v181
    %5280 = vmatmul.mubr.bf16.gmra.mrb[0].mxu0 %v180
    %v5281 = vpop.f32.mrb[0].mxu0
    %v5282 = vadd.f32 %v5241, %v5281
    %v5283 = vpop.f32.mrb[0].mxu0
    %v5284 = vadd.f32 %v5243, %v5283
    %v5285 = vpop.f32.mrb[0].mxu0
    %v5286 = vpop.f32.mrb[0].mxu0
    %5287 = vdwg.mxu0
    %5288 = vmatprep.subr.bf16.mxu0 %v3924
    %5289 = vmatpush1.bf16.msra.mxu0 %v3923
    %5290 = vmatprep.subr.bf16.mxu0 %v3928
    %5291 = vmatpush1.bf16.msra.mxu0 %v3927
    %5292 = vmatprep.subr.bf16.mxu0 %v3932
    %5293 = vmatpush1.bf16.msra.mxu0 %v3931
    %5294 = vmatprep.subr.bf16.mxu0 %v3936
    %5295 = vmatpush1.bf16.msra.mxu0 %v3935
    %5296 = vmatprep.subr.bf16.mxu0 %v3940
    %5297 = vmatpush1.bf16.msra.mxu0 %v3939
    %5298 = vmatprep.subr.bf16.mxu0 %v3944
    %5299 = vmatpush1.bf16.msra.mxu0 %v3943
    %5300 = vmatprep.subr.bf16.mxu0 %v3948
    %5301 = vmatpush1.bf16.msra.mxu0 %v3947
    %5302 = vmatprep.subr.bf16.mxu0 %v3952
    %5303 = vmatpush1.bf16.msra.mxu0 %v3951
    %5304 = vmatprep.subr.bf16.mxu0 %v3956
    %5305 = vmatpush1.bf16.msra.mxu0 %v3955
    %5306 = vmatprep.subr.bf16.mxu0 %v3960
    %5307 = vmatpush1.bf16.msra.mxu0 %v3959
    %5308 = vmatprep.subr.bf16.mxu0 %v3964
    %5309 = vmatpush1.bf16.msra.mxu0 %v3963
    %5310 = vmatprep.subr.bf16.mxu0 %v3968
    %5311 = vmatpush1.bf16.msra.mxu0 %v3967
    %5312 = vmatprep.subr.bf16.mxu0 %v3972
    %5313 = vmatpush1.bf16.msra.mxu0 %v3971
    %5314 = vmatprep.subr.bf16.mxu0 %v3976
    %5315 = vmatpush1.bf16.msra.mxu0 %v3975
    %5316 = vmatprep.subr.bf16.mxu0 %v3980
    %5317 = vmatpush1.bf16.msra.mxu0 %v3979
    %5318 = vmatprep.subr.bf16.mxu0 %v3984
    %5319 = vmatpush1.bf16.msra.mxu0 %v3983
    %5320 = vmatprep.mubr.bf16.mxu0 %v183
    %5321 = vmatmul.mubr.bf16.gmra.mrb[0].mxu0 %v182
    %v5322 = vpop.f32.mrb[0].mxu0
    %v5323 = vadd.f32 %v5282, %v5322
    %v5324 = vpop.f32.mrb[0].mxu0
    %v5325 = vadd.f32 %v5284, %v5324
    %v5326 = vpop.f32.mrb[0].mxu0
    %v5327 = vpop.f32.mrb[0].mxu0
    %5328 = vdwg.mxu0
    %5329 = vmatprep.subr.bf16.mxu0 %v3988
    %5330 = vmatpush1.bf16.msra.mxu0 %v3987
    %5331 = vmatprep.subr.bf16.mxu0 %v3992
    %5332 = vmatpush1.bf16.msra.mxu0 %v3991
    %5333 = vmatprep.subr.bf16.mxu0 %v3996
    %5334 = vmatpush1.bf16.msra.mxu0 %v3995
    %5335 = vmatprep.subr.bf16.mxu0 %v4000
    %5336 = vmatpush1.bf16.msra.mxu0 %v3999
    %5337 = vmatprep.subr.bf16.mxu0 %v4004
    %5338 = vmatpush1.bf16.msra.mxu0 %v4003
    %5339 = vmatprep.subr.bf16.mxu0 %v4008
    %5340 = vmatpush1.bf16.msra.mxu0 %v4007
    %5341 = vmatprep.subr.bf16.mxu0 %v4012
    %5342 = vmatpush1.bf16.msra.mxu0 %v4011
    %5343 = vmatprep.subr.bf16.mxu0 %v4016
    %5344 = vmatpush1.bf16.msra.mxu0 %v4015
    %5345 = vmatprep.subr.bf16.mxu0 %v4020
    %5346 = vmatpush1.bf16.msra.mxu0 %v4019
    %5347 = vmatprep.subr.bf16.mxu0 %v4024
    %5348 = vmatpush1.bf16.msra.mxu0 %v4023
    %5349 = vmatprep.subr.bf16.mxu0 %v4028
    %5350 = vmatpush1.bf16.msra.mxu0 %v4027
    %5351 = vmatprep.subr.bf16.mxu0 %v4032
    %5352 = vmatpush1.bf16.msra.mxu0 %v4031
    %5353 = vmatprep.subr.bf16.mxu0 %v4036
    %5354 = vmatpush1.bf16.msra.mxu0 %v4035
    %5355 = vmatprep.subr.bf16.mxu0 %v4040
    %5356 = vmatpush1.bf16.msra.mxu0 %v4039
    %5357 = vmatprep.subr.bf16.mxu0 %v4044
    %5358 = vmatpush1.bf16.msra.mxu0 %v4043
    %5359 = vmatprep.subr.bf16.mxu0 %v4048
    %5360 = vmatpush1.bf16.msra.mxu0 %v4047
    %5361 = vmatprep.mubr.bf16.mxu0 %v185
    %5362 = vmatmul.mubr.bf16.gmra.mrb[0].mxu0 %v184
    %v5363 = vpop.f32.mrb[0].mxu0
    %v5364 = vadd.f32 %v5323, %v5363
    %v5365 = vpop.f32.mrb[0].mxu0
    %v5366 = vadd.f32 %v5325, %v5365
    %v5367 = vpop.f32.mrb[0].mxu0
    %v5368 = vpop.f32.mrb[0].mxu0
    %5369 = vdwg.mxu0
    %5370 = vmatprep.subr.bf16.mxu0 %v4052
    %5371 = vmatpush1.bf16.msra.mxu0 %v4051
    %5372 = vmatprep.subr.bf16.mxu0 %v4056
    %5373 = vmatpush1.bf16.msra.mxu0 %v4055
    %5374 = vmatprep.subr.bf16.mxu0 %v4060
    %5375 = vmatpush1.bf16.msra.mxu0 %v4059
    %5376 = vmatprep.subr.bf16.mxu0 %v4064
    %5377 = vmatpush1.bf16.msra.mxu0 %v4063
    %5378 = vmatprep.subr.bf16.mxu0 %v4068
    %5379 = vmatpush1.bf16.msra.mxu0 %v4067
    %5380 = vmatprep.subr.bf16.mxu0 %v4072
    %5381 = vmatpush1.bf16.msra.mxu0 %v4071
    %5382 = vmatprep.subr.bf16.mxu0 %v4076
    %5383 = vmatpush1.bf16.msra.mxu0 %v4075
    %5384 = vmatprep.subr.bf16.mxu0 %v4080
    %5385 = vmatpush1.bf16.msra.mxu0 %v4079
    %5386 = vmatprep.subr.bf16.mxu0 %v4084
    %5387 = vmatpush1.bf16.msra.mxu0 %v4083
    %5388 = vmatprep.subr.bf16.mxu0 %v4088
    %5389 = vmatpush1.bf16.msra.mxu0 %v4087
    %5390 = vmatprep.subr.bf16.mxu0 %v4092
    %5391 = vmatpush1.bf16.msra.mxu0 %v4091
    %5392 = vmatprep.subr.bf16.mxu0 %v4096
    %5393 = vmatpush1.bf16.msra.mxu0 %v4095
    %5394 = vmatprep.subr.bf16.mxu0 %v4100
    %5395 = vmatpush1.bf16.msra.mxu0 %v4099
    %5396 = vmatprep.subr.bf16.mxu0 %v4104
    %5397 = vmatpush1.bf16.msra.mxu0 %v4103
    %5398 = vmatprep.subr.bf16.mxu0 %v4108
    %5399 = vmatpush1.bf16.msra.mxu0 %v4107
    %5400 = vmatprep.subr.bf16.mxu0 %v4112
    %5401 = vmatpush1.bf16.msra.mxu0 %v4111
    %5402 = vmatprep.mubr.bf16.mxu0 %v187
    %5403 = vmatmul.mubr.bf16.gmra.mrb[0].mxu0 %v186
    %v5404 = vpop.f32.mrb[0].mxu0
    %v5405 = vadd.f32 %v5364, %v5404
    %v5406 = vpop.f32.mrb[0].mxu0
    %v5407 = vadd.f32 %v5366, %v5406
    %v5408 = vpop.f32.mrb[0].mxu0
    %v5409 = vpop.f32.mrb[0].mxu0
    %5410 = vdwg.mxu0
    %5411 = vmatprep.subr.bf16.mxu0 %v4116
    %5412 = vmatpush1.bf16.msra.mxu0 %v4115
    %5413 = vmatprep.subr.bf16.mxu0 %v4120
    %5414 = vmatpush1.bf16.msra.mxu0 %v4119
    %5415 = vmatprep.subr.bf16.mxu0 %v4124
    %5416 = vmatpush1.bf16.msra.mxu0 %v4123
    %5417 = vmatprep.subr.bf16.mxu0 %v4128
    %5418 = vmatpush1.bf16.msra.mxu0 %v4127
    %5419 = vmatprep.subr.bf16.mxu0 0
    %5420 = vmatpush1.bf16.msra.mxu0 0
    %5421 = vmatprep.subr.bf16.mxu0 0
    %5422 = vmatpush1.bf16.msra.mxu0 0
    %5423 = vmatprep.subr.bf16.mxu0 0
    %5424 = vmatpush1.bf16.msra.mxu0 0
    %5425 = vmatprep.subr.bf16.mxu0 0
    %5426 = vmatpush1.bf16.msra.mxu0 0
    %5427 = vmatprep.subr.bf16.mxu0 0
    %5428 = vmatpush1.bf16.msra.mxu0 0
    %5429 = vmatprep.subr.bf16.mxu0 0
    %5430 = vmatpush1.bf16.msra.mxu0 0
    %5431 = vmatprep.subr.bf16.mxu0 0
    %5432 = vmatpush1.bf16.msra.mxu0 0
    %5433 = vmatprep.subr.bf16.mxu0 0
    %5434 = vmatpush1.bf16.msra.mxu0 0
    %5435 = vmatprep.subr.bf16.mxu0 0
    %5436 = vmatpush1.bf16.msra.mxu0 0
    %5437 = vmatprep.subr.bf16.mxu0 0
    %5438 = vmatpush1.bf16.msra.mxu0 0
    %5439 = vmatprep.subr.bf16.mxu0 0
    %5440 = vmatpush1.bf16.msra.mxu0 0
    %5441 = vmatprep.subr.bf16.mxu0 0
    %5442 = vmatpush1.bf16.msra.mxu0 0
    %5443 = vmatprep.mubr.bf16.mxu0 0
    %5444 = vmatmul.mubr.bf16.gmra.mrb[0].mxu0 %v4917
    %v5445 = vpop.f32.mrb[0].mxu0
    %v5446 = vadd.f32 %v5405, %v5445
    %v5447 = vpop.f32.mrb[0].mxu0
    %v5448 = vadd.f32 %v5407, %v5447
    %v5449 = vpop.f32.mrb[0].mxu0
    %v5450 = vpop.f32.mrb[0].mxu0
    %5451 = vdwg.mxu0
    %5452 = vmatprep.subr.bf16.mxu0 %v3350
    %5453 = vmatpush1.bf16.msra.mxu0 %v3349
    %5454 = vmatprep.subr.bf16.mxu0 %v3354
    %5455 = vmatpush1.bf16.msra.mxu0 %v3353
    %5456 = vmatprep.subr.bf16.mxu0 %v3358
    %5457 = vmatpush1.bf16.msra.mxu0 %v3357
    %5458 = vmatprep.subr.bf16.mxu0 %v3362
    %5459 = vmatpush1.bf16.msra.mxu0 %v3361
    %5460 = vmatprep.subr.bf16.mxu0 %v3366
    %5461 = vmatpush1.bf16.msra.mxu0 %v3365
    %5462 = vmatprep.subr.bf16.mxu0 %v3370
    %5463 = vmatpush1.bf16.msra.mxu0 %v3369
    %5464 = vmatprep.subr.bf16.mxu0 %v3374
    %5465 = vmatpush1.bf16.msra.mxu0 %v3373
    %5466 = vmatprep.subr.bf16.mxu0 %v3378
    %5467 = vmatpush1.bf16.msra.mxu0 %v3377
    %5468 = vmatprep.subr.bf16.mxu0 %v3382
    %5469 = vmatpush1.bf16.msra.mxu0 %v3381
    %5470 = vmatprep.subr.bf16.mxu0 %v3386
    %5471 = vmatpush1.bf16.msra.mxu0 %v3385
    %5472 = vmatprep.subr.bf16.mxu0 %v3390
    %5473 = vmatpush1.bf16.msra.mxu0 %v3389
    %5474 = vmatprep.subr.bf16.mxu0 %v3394
    %5475 = vmatpush1.bf16.msra.mxu0 %v3393
    %5476 = vmatprep.subr.bf16.mxu0 %v3398
    %5477 = vmatpush1.bf16.msra.mxu0 %v3397
    %5478 = vmatprep.subr.bf16.mxu0 %v3402
    %5479 = vmatpush1.bf16.msra.mxu0 %v3401
    %5480 = vmatprep.subr.bf16.mxu0 %v3406
    %5481 = vmatpush1.bf16.msra.mxu0 %v3405
    %5482 = vmatprep.subr.bf16.mxu0 %v3410
    %5483 = vmatpush1.bf16.msra.mxu0 %v3409
    %5484 = vmatprep.mubr.bf16.mxu0 %v165
    %5485 = vmatmul.mubr.bf16.gmra.mrb[0].mxu0 %v164
    %v5486 = vpop.f32.mrb[0].mxu0
    %v5487 = vadd.f32 %v986, %v5486
    %v5488 = vpop.f32.mrb[0].mxu0
    %v5489 = vadd.f32 %v990, %v5488
    %v5490 = vpop.f32.mrb[0].mxu0
    %v5491 = vpop.f32.mrb[0].mxu0
    %5492 = vdwg.mxu0
    %5493 = vmatprep.subr.bf16.mxu0 %v3414
    %5494 = vmatpush1.bf16.msra.mxu0 %v3413
    %5495 = vmatprep.subr.bf16.mxu0 %v3418
    %5496 = vmatpush1.bf16.msra.mxu0 %v3417
    %5497 = vmatprep.subr.bf16.mxu0 %v3422
    %5498 = vmatpush1.bf16.msra.mxu0 %v3421
    %5499 = vmatprep.subr.bf16.mxu0 %v3426
    %5500 = vmatpush1.bf16.msra.mxu0 %v3425
    %5501 = vmatprep.subr.bf16.mxu0 %v3430
    %5502 = vmatpush1.bf16.msra.mxu0 %v3429
    %5503 = vmatprep.subr.bf16.mxu0 %v3434
    %5504 = vmatpush1.bf16.msra.mxu0 %v3433
    %5505 = vmatprep.subr.bf16.mxu0 %v3438
    %5506 = vmatpush1.bf16.msra.mxu0 %v3437
    %5507 = vmatprep.subr.bf16.mxu0 %v3442
    %5508 = vmatpush1.bf16.msra.mxu0 %v3441
    %5509 = vmatprep.subr.bf16.mxu0 %v3446
    %5510 = vmatpush1.bf16.msra.mxu0 %v3445
    %5511 = vmatprep.subr.bf16.mxu0 %v3450
    %5512 = vmatpush1.bf16.msra.mxu0 %v3449
    %5513 = vmatprep.subr.bf16.mxu0 %v3454
    %5514 = vmatpush1.bf16.msra.mxu0 %v3453
    %5515 = vmatprep.subr.bf16.mxu0 %v3458
    %5516 = vmatpush1.bf16.msra.mxu0 %v3457
    %5517 = vmatprep.subr.bf16.mxu0 %v3462
    %5518 = vmatpush1.bf16.msra.mxu0 %v3461
    %5519 = vmatprep.subr.bf16.mxu0 %v3466
    %5520 = vmatpush1.bf16.msra.mxu0 %v3465
    %5521 = vmatprep.subr.bf16.mxu0 %v3470
    %5522 = vmatpush1.bf16.msra.mxu0 %v3469
    %5523 = vmatprep.subr.bf16.mxu0 %v3474
    %5524 = vmatpush1.bf16.msra.mxu0 %v3473
    %5525 = vmatprep.mubr.bf16.mxu0 %v167
    %5526 = vmatmul.mubr.bf16.gmra.mrb[0].mxu0 %v166
    %v5527 = vpop.f32.mrb[0].mxu0
    %v5528 = vadd.f32 %v5487, %v5527
    %v5529 = vpop.f32.mrb[0].mxu0
    %v5530 = vadd.f32 %v5489, %v5529
    %v5531 = vpop.f32.mrb[0].mxu0
    %v5532 = vpop.f32.mrb[0].mxu0
    %5533 = vdwg.mxu0
    %5534 = vmatprep.subr.bf16.mxu0 %v3478
    %5535 = vmatpush1.bf16.msra.mxu0 %v3477
    %5536 = vmatprep.subr.bf16.mxu0 %v3482
    %5537 = vmatpush1.bf16.msra.mxu0 %v3481
    %5538 = vmatprep.subr.bf16.mxu0 %v3486
    %5539 = vmatpush1.bf16.msra.mxu0 %v3485
    %5540 = vmatprep.subr.bf16.mxu0 %v3490
    %5541 = vmatpush1.bf16.msra.mxu0 %v3489
    %5542 = vmatprep.subr.bf16.mxu0 %v3494
    %5543 = vmatpush1.bf16.msra.mxu0 %v3493
    %5544 = vmatprep.subr.bf16.mxu0 %v3498
    %5545 = vmatpush1.bf16.msra.mxu0 %v3497
    %5546 = vmatprep.subr.bf16.mxu0 %v3502
    %5547 = vmatpush1.bf16.msra.mxu0 %v3501
    %5548 = vmatprep.subr.bf16.mxu0 %v3506
    %5549 = vmatpush1.bf16.msra.mxu0 %v3505
    %5550 = vmatprep.subr.bf16.mxu0 %v3510
    %5551 = vmatpush1.bf16.msra.mxu0 %v3509
    %5552 = vmatprep.subr.bf16.mxu0 %v3514
    %5553 = vmatpush1.bf16.msra.mxu0 %v3513
    %5554 = vmatprep.subr.bf16.mxu0 %v3518
    %5555 = vmatpush1.bf16.msra.mxu0 %v3517
    %5556 = vmatprep.subr.bf16.mxu0 %v3522
    %5557 = vmatpush1.bf16.msra.mxu0 %v3521
    %5558 = vmatprep.subr.bf16.mxu0 %v3526
    %5559 = vmatpush1.bf16.msra.mxu0 %v3525
    %5560 = vmatprep.subr.bf16.mxu0 %v3530
    %5561 = vmatpush1.bf16.msra.mxu0 %v3529
    %5562 = vmatprep.subr.bf16.mxu0 %v3534
    %5563 = vmatpush1.bf16.msra.mxu0 %v3533
    %5564 = vmatprep.subr.bf16.mxu0 %v3538
    %5565 = vmatpush1.bf16.msra.mxu0 %v3537
    %5566 = vmatprep.mubr.bf16.mxu0 %v169
    %5567 = vmatmul.mubr.bf16.gmra.mrb[0].mxu0 %v168
    %v5568 = vpop.f32.mrb[0].mxu0
    %v5569 = vadd.f32 %v5528, %v5568
    %v5570 = vpop.f32.mrb[0].mxu0
    %v5571 = vadd.f32 %v5530, %v5570
    %v5572 = vpop.f32.mrb[0].mxu0
    %v5573 = vpop.f32.mrb[0].mxu0
    %5574 = vdwg.mxu0
    %5575 = vmatprep.subr.bf16.mxu0 %v3542
    %5576 = vmatpush1.bf16.msra.mxu0 %v3541
    %5577 = vmatprep.subr.bf16.mxu0 %v3546
    %5578 = vmatpush1.bf16.msra.mxu0 %v3545
    %5579 = vmatprep.subr.bf16.mxu0 %v3550
    %5580 = vmatpush1.bf16.msra.mxu0 %v3549
    %5581 = vmatprep.subr.bf16.mxu0 %v3554
    %5582 = vmatpush1.bf16.msra.mxu0 %v3553
    %5583 = vmatprep.subr.bf16.mxu0 %v3558
    %5584 = vmatpush1.bf16.msra.mxu0 %v3557
    %5585 = vmatprep.subr.bf16.mxu0 %v3562
    %5586 = vmatpush1.bf16.msra.mxu0 %v3561
    %5587 = vmatprep.subr.bf16.mxu0 %v3566
    %5588 = vmatpush1.bf16.msra.mxu0 %v3565
    %5589 = vmatprep.subr.bf16.mxu0 %v3570
    %5590 = vmatpush1.bf16.msra.mxu0 %v3569
    %5591 = vmatprep.subr.bf16.mxu0 %v3574
    %5592 = vmatpush1.bf16.msra.mxu0 %v3573
    %5593 = vmatprep.subr.bf16.mxu0 %v3578
    %5594 = vmatpush1.bf16.msra.mxu0 %v3577
    %5595 = vmatprep.subr.bf16.mxu0 %v3582
    %5596 = vmatpush1.bf16.msra.mxu0 %v3581
    %5597 = vmatprep.subr.bf16.mxu0 %v3586
    %5598 = vmatpush1.bf16.msra.mxu0 %v3585
    %5599 = vmatprep.subr.bf16.mxu0 %v3590
    %5600 = vmatpush1.bf16.msra.mxu0 %v3589
    %5601 = vmatprep.subr.bf16.mxu0 %v3594
    %5602 = vmatpush1.bf16.msra.mxu0 %v3593
    %5603 = vmatprep.subr.bf16.mxu0 %v3598
    %5604 = vmatpush1.bf16.msra.mxu0 %v3597
    %5605 = vmatprep.subr.bf16.mxu0 %v3602
    %5606 = vmatpush1.bf16.msra.mxu0 %v3601
    %5607 = vmatprep.mubr.bf16.mxu0 %v171
    %5608 = vmatmul.mubr.bf16.gmra.mrb[0].mxu0 %v170
    %v5609 = vpop.f32.mrb[0].mxu0
    %v5610 = vadd.f32 %v5569, %v5609
    %v5611 = vpop.f32.mrb[0].mxu0
    %v5612 = vadd.f32 %v5571, %v5611
    %v5613 = vpop.f32.mrb[0].mxu0
    %v5614 = vpop.f32.mrb[0].mxu0
    %5615 = vdwg.mxu0
    %5616 = vmatprep.subr.bf16.mxu0 %v3606
    %5617 = vmatpush1.bf16.msra.mxu0 %v3605
    %5618 = vmatprep.subr.bf16.mxu0 %v3610
    %5619 = vmatpush1.bf16.msra.mxu0 %v3609
    %5620 = vmatprep.subr.bf16.mxu0 %v3614
    %5621 = vmatpush1.bf16.msra.mxu0 %v3613
    %5622 = vmatprep.subr.bf16.mxu0 %v3618
    %5623 = vmatpush1.bf16.msra.mxu0 %v3617
    %5624 = vmatprep.subr.bf16.mxu0 %v3622
    %5625 = vmatpush1.bf16.msra.mxu0 %v3621
    %5626 = vmatprep.subr.bf16.mxu0 %v3626
    %5627 = vmatpush1.bf16.msra.mxu0 %v3625
    %5628 = vmatprep.subr.bf16.mxu0 %v3630
    %5629 = vmatpush1.bf16.msra.mxu0 %v3629
    %5630 = vmatprep.subr.bf16.mxu0 %v3634
    %5631 = vmatpush1.bf16.msra.mxu0 %v3633
    %5632 = vmatprep.subr.bf16.mxu0 %v3638
    %5633 = vmatpush1.bf16.msra.mxu0 %v3637
    %5634 = vmatprep.subr.bf16.mxu0 %v3642
    %5635 = vmatpush1.bf16.msra.mxu0 %v3641
    %5636 = vmatprep.subr.bf16.mxu0 %v3646
    %5637 = vmatpush1.bf16.msra.mxu0 %v3645
    %5638 = vmatprep.subr.bf16.mxu0 %v3650
    %5639 = vmatpush1.bf16.msra.mxu0 %v3649
    %5640 = vmatprep.subr.bf16.mxu0 %v3654
    %5641 = vmatpush1.bf16.msra.mxu0 %v3653
    %5642 = vmatprep.subr.bf16.mxu0 %v3658
    %5643 = vmatpush1.bf16.msra.mxu0 %v3657
    %5644 = vmatprep.subr.bf16.mxu0 %v3662
    %5645 = vmatpush1.bf16.msra.mxu0 %v3661
    %5646 = vmatprep.subr.bf16.mxu0 %v3666
    %5647 = vmatpush1.bf16.msra.mxu0 %v3665
    %5648 = vmatprep.mubr.bf16.mxu0 %v173
    %5649 = vmatmul.mubr.bf16.gmra.mrb[0].mxu0 %v172
    %v5650 = vpop.f32.mrb[0].mxu0
    %v5651 = vadd.f32 %v5610, %v5650
    %v5652 = vpop.f32.mrb[0].mxu0
    %v5653 = vadd.f32 %v5612, %v5652
    %v5654 = vpop.f32.mrb[0].mxu0
    %v5655 = vpop.f32.mrb[0].mxu0
    %5656 = vdwg.mxu0
    %5657 = vmatprep.subr.bf16.mxu0 %v3670
    %5658 = vmatpush1.bf16.msra.mxu0 %v3669
    %5659 = vmatprep.subr.bf16.mxu0 %v3674
    %5660 = vmatpush1.bf16.msra.mxu0 %v3673
    %5661 = vmatprep.subr.bf16.mxu0 %v3678
    %5662 = vmatpush1.bf16.msra.mxu0 %v3677
    %5663 = vmatprep.subr.bf16.mxu0 %v3682
    %5664 = vmatpush1.bf16.msra.mxu0 %v3681
    %5665 = vmatprep.subr.bf16.mxu0 %v3686
    %5666 = vmatpush1.bf16.msra.mxu0 %v3685
    %5667 = vmatprep.subr.bf16.mxu0 %v3690
    %5668 = vmatpush1.bf16.msra.mxu0 %v3689
    %5669 = vmatprep.subr.bf16.mxu0 %v3694
    %5670 = vmatpush1.bf16.msra.mxu0 %v3693
    %5671 = vmatprep.subr.bf16.mxu0 %v3698
    %5672 = vmatpush1.bf16.msra.mxu0 %v3697
    %5673 = vmatprep.subr.bf16.mxu0 %v3702
    %5674 = vmatpush1.bf16.msra.mxu0 %v3701
    %5675 = vmatprep.subr.bf16.mxu0 %v3706
    %5676 = vmatpush1.bf16.msra.mxu0 %v3705
    %5677 = vmatprep.subr.bf16.mxu0 %v3710
    %5678 = vmatpush1.bf16.msra.mxu0 %v3709
    %5679 = vmatprep.subr.bf16.mxu0 %v3714
    %5680 = vmatpush1.bf16.msra.mxu0 %v3713
    %5681 = vmatprep.subr.bf16.mxu0 %v3718
    %5682 = vmatpush1.bf16.msra.mxu0 %v3717
    %5683 = vmatprep.subr.bf16.mxu0 %v3722
    %5684 = vmatpush1.bf16.msra.mxu0 %v3721
    %5685 = vmatprep.subr.bf16.mxu0 %v3726
    %5686 = vmatpush1.bf16.msra.mxu0 %v3725
    %5687 = vmatprep.subr.bf16.mxu0 %v3730
    %5688 = vmatpush1.bf16.msra.mxu0 %v3729
    %5689 = vmatprep.mubr.bf16.mxu0 %v175
    %5690 = vmatmul.mubr.bf16.gmra.mrb[0].mxu0 %v174
    %v5691 = vpop.f32.mrb[0].mxu0
    %v5692 = vadd.f32 %v5651, %v5691
    %v5693 = vpop.f32.mrb[0].mxu0
    %v5694 = vadd.f32 %v5653, %v5693
    %v5695 = vpop.f32.mrb[0].mxu0
    %v5696 = vpop.f32.mrb[0].mxu0
    %5697 = vdwg.mxu0
    %5698 = vmatprep.subr.bf16.mxu0 %v3734
    %5699 = vmatpush1.bf16.msra.mxu0 %v3733
    %5700 = vmatprep.subr.bf16.mxu0 %v3738
    %5701 = vmatpush1.bf16.msra.mxu0 %v3737
    %5702 = vmatprep.subr.bf16.mxu0 %v3742
    %5703 = vmatpush1.bf16.msra.mxu0 %v3741
    %5704 = vmatprep.subr.bf16.mxu0 %v3746
    %5705 = vmatpush1.bf16.msra.mxu0 %v3745
    %5706 = vmatprep.subr.bf16.mxu0 %v3750
    %5707 = vmatpush1.bf16.msra.mxu0 %v3749
    %5708 = vmatprep.subr.bf16.mxu0 %v3754
    %5709 = vmatpush1.bf16.msra.mxu0 %v3753
    %5710 = vmatprep.subr.bf16.mxu0 %v3758
    %5711 = vmatpush1.bf16.msra.mxu0 %v3757
    %5712 = vmatprep.subr.bf16.mxu0 %v3762
    %5713 = vmatpush1.bf16.msra.mxu0 %v3761
    %5714 = vmatprep.subr.bf16.mxu0 %v3766
    %5715 = vmatpush1.bf16.msra.mxu0 %v3765
    %5716 = vmatprep.subr.bf16.mxu0 %v3770
    %5717 = vmatpush1.bf16.msra.mxu0 %v3769
    %5718 = vmatprep.subr.bf16.mxu0 %v3774
    %5719 = vmatpush1.bf16.msra.mxu0 %v3773
    %5720 = vmatprep.subr.bf16.mxu0 %v3778
    %5721 = vmatpush1.bf16.msra.mxu0 %v3777
    %5722 = vmatprep.subr.bf16.mxu0 %v3782
    %5723 = vmatpush1.bf16.msra.mxu0 %v3781
    %5724 = vmatprep.subr.bf16.mxu0 %v3786
    %5725 = vmatpush1.bf16.msra.mxu0 %v3785
    %5726 = vmatprep.subr.bf16.mxu0 %v3790
    %5727 = vmatpush1.bf16.msra.mxu0 %v3789
    %5728 = vmatprep.subr.bf16.mxu0 %v3794
    %5729 = vmatpush1.bf16.msra.mxu0 %v3793
    %5730 = vmatprep.mubr.bf16.mxu0 %v177
    %5731 = vmatmul.mubr.bf16.gmra.mrb[0].mxu0 %v176
    %v5732 = vpop.f32.mrb[0].mxu0
    %v5733 = vadd.f32 %v5692, %v5732
    %v5734 = vpop.f32.mrb[0].mxu0
    %v5735 = vadd.f32 %v5694, %v5734
    %v5736 = vpop.f32.mrb[0].mxu0
    %v5737 = vpop.f32.mrb[0].mxu0
    %5738 = vdwg.mxu0
    %5739 = vmatprep.subr.bf16.mxu0 %v3798
    %5740 = vmatpush1.bf16.msra.mxu0 %v3797
    %5741 = vmatprep.subr.bf16.mxu0 %v3802
    %5742 = vmatpush1.bf16.msra.mxu0 %v3801
    %5743 = vmatprep.subr.bf16.mxu0 %v3806
    %5744 = vmatpush1.bf16.msra.mxu0 %v3805
    %5745 = vmatprep.subr.bf16.mxu0 %v3810
    %5746 = vmatpush1.bf16.msra.mxu0 %v3809
    %5747 = vmatprep.subr.bf16.mxu0 %v3814
    %5748 = vmatpush1.bf16.msra.mxu0 %v3813
    %5749 = vmatprep.subr.bf16.mxu0 %v3818
    %5750 = vmatpush1.bf16.msra.mxu0 %v3817
    %5751 = vmatprep.subr.bf16.mxu0 %v3822
    %5752 = vmatpush1.bf16.msra.mxu0 %v3821
    %5753 = vmatprep.subr.bf16.mxu0 %v3826
    %5754 = vmatpush1.bf16.msra.mxu0 %v3825
    %5755 = vmatprep.subr.bf16.mxu0 %v3830
    %5756 = vmatpush1.bf16.msra.mxu0 %v3829
    %5757 = vmatprep.subr.bf16.mxu0 %v3834
    %5758 = vmatpush1.bf16.msra.mxu0 %v3833
    %5759 = vmatprep.subr.bf16.mxu0 %v3838
    %5760 = vmatpush1.bf16.msra.mxu0 %v3837
    %5761 = vmatprep.subr.bf16.mxu0 %v3842
    %5762 = vmatpush1.bf16.msra.mxu0 %v3841
    %5763 = vmatprep.subr.bf16.mxu0 %v3846
    %5764 = vmatpush1.bf16.msra.mxu0 %v3845
    %5765 = vmatprep.subr.bf16.mxu0 %v3850
    %5766 = vmatpush1.bf16.msra.mxu0 %v3849
    %5767 = vmatprep.subr.bf16.mxu0 %v3854
    %5768 = vmatpush1.bf16.msra.mxu0 %v3853
    %5769 = vmatprep.subr.bf16.mxu0 %v3858
    %5770 = vmatpush1.bf16.msra.mxu0 %v3857
    %5771 = vmatprep.mubr.bf16.mxu0 %v179
    %5772 = vmatmul.mubr.bf16.gmra.mrb[0].mxu0 %v178
    %v5773 = vpop.f32.mrb[0].mxu0
    %v5774 = vadd.f32 %v5733, %v5773
    %v5775 = vpop.f32.mrb[0].mxu0
    %v5776 = vadd.f32 %v5735, %v5775
    %v5777 = vpop.f32.mrb[0].mxu0
    %v5778 = vpop.f32.mrb[0].mxu0
    %5779 = vdwg.mxu0
    %5780 = vmatprep.subr.bf16.mxu0 %v3862
    %5781 = vmatpush1.bf16.msra.mxu0 %v3861
    %5782 = vmatprep.subr.bf16.mxu0 %v3866
    %5783 = vmatpush1.bf16.msra.mxu0 %v3865
    %5784 = vmatprep.subr.bf16.mxu0 %v3870
    %5785 = vmatpush1.bf16.msra.mxu0 %v3869
    %5786 = vmatprep.subr.bf16.mxu0 %v3874
    %5787 = vmatpush1.bf16.msra.mxu0 %v3873
    %5788 = vmatprep.subr.bf16.mxu0 %v3878
    %5789 = vmatpush1.bf16.msra.mxu0 %v3877
    %5790 = vmatprep.subr.bf16.mxu0 %v3882
    %5791 = vmatpush1.bf16.msra.mxu0 %v3881
    %5792 = vmatprep.subr.bf16.mxu0 %v3886
    %5793 = vmatpush1.bf16.msra.mxu0 %v3885
    %5794 = vmatprep.subr.bf16.mxu0 %v3890
    %5795 = vmatpush1.bf16.msra.mxu0 %v3889
    %5796 = vmatprep.subr.bf16.mxu0 %v3894
    %5797 = vmatpush1.bf16.msra.mxu0 %v3893
    %5798 = vmatprep.subr.bf16.mxu0 %v3898
    %5799 = vmatpush1.bf16.msra.mxu0 %v3897
    %5800 = vmatprep.subr.bf16.mxu0 %v3902
    %5801 = vmatpush1.bf16.msra.mxu0 %v3901
    %5802 = vmatprep.subr.bf16.mxu0 %v3906
    %5803 = vmatpush1.bf16.msra.mxu0 %v3905
    %5804 = vmatprep.subr.bf16.mxu0 %v3910
    %5805 = vmatpush1.bf16.msra.mxu0 %v3909
    %5806 = vmatprep.subr.bf16.mxu0 %v3914
    %5807 = vmatpush1.bf16.msra.mxu0 %v3913
    %5808 = vmatprep.subr.bf16.mxu0 %v3918
    %5809 = vmatpush1.bf16.msra.mxu0 %v3917
    %5810 = vmatprep.subr.bf16.mxu0 %v3922
    %5811 = vmatpush1.bf16.msra.mxu0 %v3921
    %5812 = vmatprep.mubr.bf16.mxu0 %v181
    %5813 = vmatmul.mubr.bf16.gmra.mrb[0].mxu0 %v180
    %v5814 = vpop.f32.mrb[0].mxu0
    %v5815 = vadd.f32 %v5774, %v5814
    %v5816 = vpop.f32.mrb[0].mxu0
    %v5817 = vadd.f32 %v5776, %v5816
    %v5818 = vpop.f32.mrb[0].mxu0
    %v5819 = vpop.f32.mrb[0].mxu0
    %5820 = vdwg.mxu0
    %5821 = vmatprep.subr.bf16.mxu0 %v3926
    %5822 = vmatpush1.bf16.msra.mxu0 %v3925
    %5823 = vmatprep.subr.bf16.mxu0 %v3930
    %5824 = vmatpush1.bf16.msra.mxu0 %v3929
    %5825 = vmatprep.subr.bf16.mxu0 %v3934
    %5826 = vmatpush1.bf16.msra.mxu0 %v3933
    %5827 = vmatprep.subr.bf16.mxu0 %v3938
    %5828 = vmatpush1.bf16.msra.mxu0 %v3937
    %5829 = vmatprep.subr.bf16.mxu0 %v3942
    %5830 = vmatpush1.bf16.msra.mxu0 %v3941
    %5831 = vmatprep.subr.bf16.mxu0 %v3946
    %5832 = vmatpush1.bf16.msra.mxu0 %v3945
    %5833 = vmatprep.subr.bf16.mxu0 %v3950
    %5834 = vmatpush1.bf16.msra.mxu0 %v3949
    %5835 = vmatprep.subr.bf16.mxu0 %v3954
    %5836 = vmatpush1.bf16.msra.mxu0 %v3953
    %5837 = vmatprep.subr.bf16.mxu0 %v3958
    %5838 = vmatpush1.bf16.msra.mxu0 %v3957
    %5839 = vmatprep.subr.bf16.mxu0 %v3962
    %5840 = vmatpush1.bf16.msra.mxu0 %v3961
    %5841 = vmatprep.subr.bf16.mxu0 %v3966
    %5842 = vmatpush1.bf16.msra.mxu0 %v3965
    %5843 = vmatprep.subr.bf16.mxu0 %v3970
    %5844 = vmatpush1.bf16.msra.mxu0 %v3969
    %5845 = vmatprep.subr.bf16.mxu0 %v3974
    %5846 = vmatpush1.bf16.msra.mxu0 %v3973
    %5847 = vmatprep.subr.bf16.mxu0 %v3978
    %5848 = vmatpush1.bf16.msra.mxu0 %v3977
    %5849 = vmatprep.subr.bf16.mxu0 %v3982
    %5850 = vmatpush1.bf16.msra.mxu0 %v3981
    %5851 = vmatprep.subr.bf16.mxu0 %v3986
    %5852 = vmatpush1.bf16.msra.mxu0 %v3985
    %5853 = vmatprep.mubr.bf16.mxu0 %v183
    %5854 = vmatmul.mubr.bf16.gmra.mrb[0].mxu0 %v182
    %v5855 = vpop.f32.mrb[0].mxu0
    %v5856 = vadd.f32 %v5815, %v5855
    %v5857 = vpop.f32.mrb[0].mxu0
    %v5858 = vadd.f32 %v5817, %v5857
    %v5859 = vpop.f32.mrb[0].mxu0
    %v5860 = vpop.f32.mrb[0].mxu0
    %5861 = vdwg.mxu0
    %5862 = vmatprep.subr.bf16.mxu0 %v3990
    %5863 = vmatpush1.bf16.msra.mxu0 %v3989
    %5864 = vmatprep.subr.bf16.mxu0 %v3994
    %5865 = vmatpush1.bf16.msra.mxu0 %v3993
    %5866 = vmatprep.subr.bf16.mxu0 %v3998
    %5867 = vmatpush1.bf16.msra.mxu0 %v3997
    %5868 = vmatprep.subr.bf16.mxu0 %v4002
    %5869 = vmatpush1.bf16.msra.mxu0 %v4001
    %5870 = vmatprep.subr.bf16.mxu0 %v4006
    %5871 = vmatpush1.bf16.msra.mxu0 %v4005
    %5872 = vmatprep.subr.bf16.mxu0 %v4010
    %5873 = vmatpush1.bf16.msra.mxu0 %v4009
    %5874 = vmatprep.subr.bf16.mxu0 %v4014
    %5875 = vmatpush1.bf16.msra.mxu0 %v4013
    %5876 = vmatprep.subr.bf16.mxu0 %v4018
    %5877 = vmatpush1.bf16.msra.mxu0 %v4017
    %5878 = vmatprep.subr.bf16.mxu0 %v4022
    %5879 = vmatpush1.bf16.msra.mxu0 %v4021
    %5880 = vmatprep.subr.bf16.mxu0 %v4026
    %5881 = vmatpush1.bf16.msra.mxu0 %v4025
    %5882 = vmatprep.subr.bf16.mxu0 %v4030
    %5883 = vmatpush1.bf16.msra.mxu0 %v4029
    %5884 = vmatprep.subr.bf16.mxu0 %v4034
    %5885 = vmatpush1.bf16.msra.mxu0 %v4033
    %5886 = vmatprep.subr.bf16.mxu0 %v4038
    %5887 = vmatpush1.bf16.msra.mxu0 %v4037
    %5888 = vmatprep.subr.bf16.mxu0 %v4042
    %5889 = vmatpush1.bf16.msra.mxu0 %v4041
    %5890 = vmatprep.subr.bf16.mxu0 %v4046
    %5891 = vmatpush1.bf16.msra.mxu0 %v4045
    %5892 = vmatprep.subr.bf16.mxu0 %v4050
    %5893 = vmatpush1.bf16.msra.mxu0 %v4049
    %5894 = vmatprep.mubr.bf16.mxu0 %v185
    %5895 = vmatmul.mubr.bf16.gmra.mrb[0].mxu0 %v184
    %v5896 = vpop.f32.mrb[0].mxu0
    %v5897 = vadd.f32 %v5856, %v5896
    %v5898 = vpop.f32.mrb[0].mxu0
    %v5899 = vadd.f32 %v5858, %v5898
    %v5900 = vpop.f32.mrb[0].mxu0
    %v5901 = vpop.f32.mrb[0].mxu0
    %5902 = vdwg.mxu0
    %5903 = vmatprep.subr.bf16.mxu0 %v4054
    %5904 = vmatpush1.bf16.msra.mxu0 %v4053
    %5905 = vmatprep.subr.bf16.mxu0 %v4058
    %5906 = vmatpush1.bf16.msra.mxu0 %v4057
    %5907 = vmatprep.subr.bf16.mxu0 %v4062
    %5908 = vmatpush1.bf16.msra.mxu0 %v4061
    %5909 = vmatprep.subr.bf16.mxu0 %v4066
    %5910 = vmatpush1.bf16.msra.mxu0 %v4065
    %5911 = vmatprep.subr.bf16.mxu0 %v4070
    %5912 = vmatpush1.bf16.msra.mxu0 %v4069
    %5913 = vmatprep.subr.bf16.mxu0 %v4074
    %5914 = vmatpush1.bf16.msra.mxu0 %v4073
    %5915 = vmatprep.subr.bf16.mxu0 %v4078
    %5916 = vmatpush1.bf16.msra.mxu0 %v4077
    %5917 = vmatprep.subr.bf16.mxu0 %v4082
    %5918 = vmatpush1.bf16.msra.mxu0 %v4081
    %5919 = vmatprep.subr.bf16.mxu0 %v4086
    %5920 = vmatpush1.bf16.msra.mxu0 %v4085
    %5921 = vmatprep.subr.bf16.mxu0 %v4090
    %5922 = vmatpush1.bf16.msra.mxu0 %v4089
    %5923 = vmatprep.subr.bf16.mxu0 %v4094
    %5924 = vmatpush1.bf16.msra.mxu0 %v4093
    %5925 = vmatprep.subr.bf16.mxu0 %v4098
    %5926 = vmatpush1.bf16.msra.mxu0 %v4097
    %5927 = vmatprep.subr.bf16.mxu0 %v4102
    %5928 = vmatpush1.bf16.msra.mxu0 %v4101
    %5929 = vmatprep.subr.bf16.mxu0 %v4106
    %5930 = vmatpush1.bf16.msra.mxu0 %v4105
    %5931 = vmatprep.subr.bf16.mxu0 %v4110
    %5932 = vmatpush1.bf16.msra.mxu0 %v4109
    %5933 = vmatprep.subr.bf16.mxu0 %v4114
    %5934 = vmatpush1.bf16.msra.mxu0 %v4113
    %5935 = vmatprep.mubr.bf16.mxu0 %v187
    %5936 = vmatmul.mubr.bf16.gmra.mrb[0].mxu0 %v186
    %v5937 = vpop.f32.mrb[0].mxu0
    %v5938 = vadd.f32 %v5897, %v5937
    %v5939 = vpop.f32.mrb[0].mxu0
    %v5940 = vadd.f32 %v5899, %v5939
    %v5941 = vpop.f32.mrb[0].mxu0
    %v5942 = vpop.f32.mrb[0].mxu0
    %5943 = vdwg.mxu0
    %5944 = vmatprep.subr.bf16.mxu0 %v4118
    %5945 = vmatpush1.bf16.msra.mxu0 %v4117
    %5946 = vmatprep.subr.bf16.mxu0 %v4122
    %5947 = vmatpush1.bf16.msra.mxu0 %v4121
    %5948 = vmatprep.subr.bf16.mxu0 %v4126
    %5949 = vmatpush1.bf16.msra.mxu0 %v4125
    %5950 = vmatprep.subr.bf16.mxu0 %v4130
    %5951 = vmatpush1.bf16.msra.mxu0 %v4129
    %5952 = vmatprep.subr.bf16.mxu0 0
    %5953 = vmatpush1.bf16.msra.mxu0 0
    %5954 = vmatprep.subr.bf16.mxu0 0
    %5955 = vmatpush1.bf16.msra.mxu0 0
    %5956 = vmatprep.subr.bf16.mxu0 0
    %5957 = vmatpush1.bf16.msra.mxu0 0
    %5958 = vmatprep.subr.bf16.mxu0 0
    %5959 = vmatpush1.bf16.msra.mxu0 0
    %5960 = vmatprep.subr.bf16.mxu0 0
    %5961 = vmatpush1.bf16.msra.mxu0 0
    %5962 = vmatprep.subr.bf16.mxu0 0
    %5963 = vmatpush1.bf16.msra.mxu0 0
    %5964 = vmatprep.subr.bf16.mxu0 0
    %5965 = vmatpush1.bf16.msra.mxu0 0
    %5966 = vmatprep.subr.bf16.mxu0 0
    %5967 = vmatpush1.bf16.msra.mxu0 0
    %5968 = vmatprep.subr.bf16.mxu0 0
    %5969 = vmatpush1.bf16.msra.mxu0 0
    %5970 = vmatprep.subr.bf16.mxu0 0
    %5971 = vmatpush1.bf16.msra.mxu0 0
    %5972 = vmatprep.subr.bf16.mxu0 0
    %5973 = vmatpush1.bf16.msra.mxu0 0
    %5974 = vmatprep.subr.bf16.mxu0 0
    %5975 = vmatpush1.bf16.msra.mxu0 0
    %5976 = vmatprep.mubr.bf16.mxu0 0
    %5977 = vmatmul.mubr.bf16.gmra.mrb[0].mxu0 %v4917
    %v5978 = vpop.f32.mrb[0].mxu0
    %v5979 = vadd.f32 %v5938, %v5978
    %v5980 = vpop.f32.mrb[0].mxu0
    %v5981 = vadd.f32 %v5940, %v5980
    %v5982 = vpop.f32.mrb[0].mxu0
    %v5983 = vpop.f32.mrb[0].mxu0
    %5984 = vdwg.mxu0
    %v5985 = vmul.f32 %v5446, %v5446
    %v5986 = vmul.f32 %v5448, %v5448
    %v5987 = vmul.f32 %v5979, %v5979
    %v5988 = vmul.f32 %v5981, %v5981
    %vm5989 = vcmask 1041408
    %v5990 = vsel %vm5989, %v5985, 0.0
    %v5991 = vsel %vm5989, %v5986, 0.0
    %v5992 = vadd.f32 %v5990, %v5991
    %v5993 = vsel %vm5989, %v5987, 0.0
    %v5994 = vadd.f32 %v5992, %v5993
    %v5995 = vsel %vm5989, %v5988, 0.0
    %v5996 = vadd.f32 %v5994, %v5995
    %5997 = vadd.xlane.f32.xlu0 %v5996
    %v5998 = vpop.xlane.xlu0 %5997
    %v5999 = vadd.f32 %v5998, 1e-12
    %v6000 = vrsqrt.pop %v5999
    %v6001 = vmul.f32 %v5446, %v6000
    %v6002 = vmul.f32 %v5448, %v6000
    %v6003 = vmul.f32 %v5979, %v6000
    %v6004 = vmul.f32 %v5981, %v6000
    %v6009 = vcombine.low %v6001, %v6002
    %v6010 = vcombine.low %v6003, %v6004
    %v6012 = vunpack.c.l.s4 1983009808
    %v6013 = vunpack.c.0.s8 %v6012
    %v6014 = vlaneseq
    %v6015 = vshrl.u32 %v6014, 7
    %v6016 = vsub.s32 %v6013, %v6015
    %v6017 = vrot.slane %v6009, %v6016
    %v6019 = vunpack.c.l.s4 1983009808
    %v6020 = vunpack.c.0.s8 %v6019
    %v6021 = vlaneseq
    %v6022 = vshrl.u32 %v6021, 7
    %v6023 = vsub.s32 %v6020, %v6022
    %v6024 = vrot.slane %v6010, %v6023
    %v6025 = vcombine.low %v6017, %v6024
    %6027 = vst [vmem:[#allocation2] sm:$0xff] %v6025
    // Predicated region
    $region14: #{id_loss_forward.5} parent=1 // pred_check
      _
    $region15: #{id_loss_forward.5} parent=1 // pred_check_branch
      %6029 = sbr.rel (0) target = $region17
    $region16: #{id_loss_forward.5} parent=1 // pred_region
      %s6031 = ssub.s32 128, 128
      %6032 = vsyncadd [#allocation3], %s6031
      %s6034 = sshll.u32 [#allocation2], 4
      %s6035 = int_to_ptr.vmem [resolvable:$true] %s6034
      %6037 = dma.vmem_to_hbm [thread:$0]  %s6035, 128, %s3, [#allocation3]
    $region17: #{id_loss_forward.5} parent=1 // pred_fallthru
      _
    // Predicated region
    $region18: #{id_loss_forward.5} parent=1 // pred_check
      _
    $region19: #{id_loss_forward.5} parent=1 // pred_check_branch
      %6039 = sbr.rel (0) target = $region21
    $region20: #{id_loss_forward.5} parent=1 // pred_region
      %6040 = dma.done [#allocation3], 128
    $region21: #{id_loss_forward.5} parent=1 // pred_fallthru
      _
    %6041 = vsyncpa [#allocation3], 1

</llo_original>
